<compile_context>
chip_gen: v7x
topology: tpu7x:2x2x1
jax: 0.10.0
libtpu: 0.0.40
codegen_flags: <defaults>
</compile_context>

<pallas_src>
import functools

import jax
import jax.numpy as jnp
from jax import lax
from jax.experimental import pallas as pl
from jax.experimental.pallas import tpu as pltpu  # noqa: F401  (kept for TPU-specific tuning hooks)

# ---- scaled-down hyperparameters (original: N_FRAMES=3000, n_mels=80, d=512, 6 layers,
# ---- upsample out=512, vocab=9001) ----
N_FRAMES = 16
N_MELS = 16
D_MODEL = 32          # whisper.dims.n_audio_state
N_HEADS = 4
N_LAYERS = 2
UP_CHANNELS = 64      # ConvTranspose1d out_channels (512 in the original)
VOCAB = 128           # final_layer out_features (9001 in the original)

_LN_EPS = 1e-5


# ----------------------------- in-kernel helpers -----------------------------

def _gelu(x):
    # TODO(synk): torch F.gelu default is the exact erf form; tanh approximation used here.
    return 0.5 * x * (1.0 + jnp.tanh(0.7978845608028654 * (x + 0.044715 * x * x * x)))


def _ln_rows(x, g, b):
    """LayerNorm over the last dim. x:(R,C) or (B,T,C); g,b broadcastable (1,C)."""
    mu = jnp.mean(x, axis=-1, keepdims=True)
    xc = x - mu
    var = jnp.mean(xc * xc, axis=-1, keepdims=True)
    return xc * lax.rsqrt(var + _LN_EPS) * g + b


# ----------------------------- fused Pallas kernels -----------------------------

def _frontend_kernel(x_ref, w1_ref, b1_ref, w2_ref, b2_ref, pos_ref, o_ref):
    """conv1(K=3,s=1,p=1)+GELU -> conv2(K=3,p=1, computed at stride 1)+GELU -> +pos.

    The stride-2 selection of conv2 is done by the caller with a cheap strided slice;
    pos_ref is the positional embedding pre-expanded to all 16 positions.
    """
    x = x_ref[...]                                        # (Bp, T, M)  f32
    Bp, T, M = x.shape
    D = o_ref.shape[-1]

    # conv1 im2col (stride 1, pad 1, K=3)
    zm = jnp.zeros((Bp, 1, M), jnp.float32)
    xp = jnp.concatenate([zm, x, zm], axis=1)             # (Bp, T+2, M)
    p1 = jnp.concatenate([xp[:, 0:T, :], xp[:, 1:T + 1, :], xp[:, 2:T + 2, :]], axis=-1)
    h1 = _gelu(jnp.dot(p1.reshape(Bp * T, 3 * M), w1_ref[...],
                       preferred_element_type=jnp.float32) + b1_ref[...])
    h1 = h1.reshape(Bp, T, D)

    # conv2 im2col (pad 1, K=3) computed at every position; caller keeps the even ones
    zd = jnp.zeros((Bp, 1, D), jnp.float32)
    h1p = jnp.concatenate([zd, h1, zd], axis=1)           # (Bp, T+2, D)
    p2 = jnp.concatenate([h1p[:, 0:T, :], h1p[:, 1:T + 1, :], h1p[:, 2:T + 2, :]], axis=-1)
    h2 = _gelu(jnp.dot(p2.reshape(Bp * T, 3 * D), w2_ref[...],
                       preferred_element_type=jnp.float32) + b2_ref[...])
    o_ref[...] = h2.reshape(Bp, T, D) + pos_ref[...]      # pos broadcasts over batch


def _encoder_block_kernel(h_ref, ln1g_ref, ln1b_ref, wq_ref, bq_ref, wk_ref, wv_ref, bv_ref,
                          wo_ref, bo_ref, ln2g_ref, ln2b_ref, wfc1_ref, bfc1_ref,
                          wfc2_ref, bfc2_ref, lnpg_ref, lnpb_ref, o_ref,
                          *, n_heads, apply_post_ln):
    """One whisper ResidualAttentionBlock, fully fused (optionally followed by ln_post)."""
    h = h_ref[...]                                        # (Bp, T, D)
    Bp, T, D = h.shape
    Dh = D // n_heads
    h2 = h.reshape(Bp * T, D)

    # --- attention ---
    xn = _ln_rows(h2, ln1g_ref[...], ln1b_ref[...])
    q = jnp.dot(xn, wq_ref[...], preferred_element_type=jnp.float32) + bq_ref[...]
    k = jnp.dot(xn, wk_ref[...], preferred_element_type=jnp.float32)   # whisper: no key bias
    v = jnp.dot(xn, wv_ref[...], preferred_element_type=jnp.float32) + bv_ref[...]
    q3 = q.reshape(Bp, T, D)
    k3 = k.reshape(Bp, T, D)
    v3 = v.reshape(Bp, T, D)

    scale = 1.0 / float(Dh) ** 0.5     # (Dh**-0.25 on q and k) folded into one score multiply
    head_outs = []
    for hh in range(n_heads):          # static unroll; all heads live in VMEM/vregs
        sl = slice(hh * Dh, (hh + 1) * Dh)
        s = jnp.einsum("btd,bsd->bts", q3[..., sl], k3[..., sl],
                       preferred_element_type=jnp.float32) * scale
        m = jnp.max(s, axis=-1, keepdims=True)
        p = jnp.exp(s - m)
        p = p * pl.reciprocal(jnp.sum(p, axis=-1, keepdims=True), approx=True)
        head_outs.append(jnp.einsum("bts,bsd->btd", p, v3[..., sl],
                                    preferred_element_type=jnp.float32))
    attn = jnp.concatenate(head_outs, axis=-1).reshape(Bp * T, D)
    h2 = h2 + jnp.dot(attn, wo_ref[...], preferred_element_type=jnp.float32) + bo_ref[...]

    # --- mlp ---
    xn = _ln_rows(h2, ln2g_ref[...], ln2b_ref[...])
    m1 = _gelu(jnp.dot(xn, wfc1_ref[...], preferred_element_type=jnp.float32) + bfc1_ref[...])
    h2 = h2 + jnp.dot(m1, wfc2_ref[...], preferred_element_type=jnp.float32) + bfc2_ref[...]

    if apply_post_ln:
        h2 = _ln_rows(h2, lnpg_ref[...], lnpb_ref[...])
    o_ref[...] = h2.reshape(Bp, T, D)


def _upsample_kernel(z_ref, w_ref, b_ref, o_ref, *, kernel_size, conv_pad):
    """ConvTranspose1d as conv over the zero-inserted signal; im2col + matmul in-kernel."""
    z = z_ref[...]                                        # (Bp, Tz, D) zero-inserted in time
    Bp, Tz, D = z.shape
    To = o_ref.shape[1]
    Tcalc = ((To + 7) // 8) * 8                           # compute a tile-aligned number of rows
    pad_back = Tcalc + kernel_size - 1 - conv_pad - Tz
    zp = jnp.concatenate([jnp.zeros((Bp, conv_pad, D), jnp.float32), z,
                          jnp.zeros((Bp, pad_back, D), jnp.float32)], axis=1)
    patches = jnp.concatenate([zp[:, kk:kk + Tcalc, :] for kk in range(kernel_size)], axis=-1)
    y = jnp.dot(patches.reshape(Bp * Tcalc, kernel_size * D), w_ref[...],
                preferred_element_type=jnp.float32) + b_ref[...]
    y = y.reshape(Bp, Tcalc, -1)
    o_ref[...] = y[:, :To, :]


def _final_kernel(x_ref, w_ref, b_ref, logits_ref, logp_ref):
    """final Linear + log_softmax, fused (VOCAB=128 -> lane-dense output stores)."""
    logits = jnp.dot(x_ref[...], w_ref[...], preferred_element_type=jnp.float32) + b_ref[...]
    m = jnp.max(logits, axis=-1, keepdims=True)
    zc = logits - m
    lse = jnp.log(jnp.sum(jnp.exp(zc), axis=-1, keepdims=True))
    logits_ref[...] = logits
    logp_ref[...] = zc - lse


# ----------------------------- Model.forward -----------------------------

def model_forward(audio_mel_features, params):
    """audio_mel_features: (B, T_in, N_MELS) float32. just_encoder=True, split_seq=True path."""
    B, T_in, _ = audio_mel_features.shape
    Bp = 2 * B
    T = N_FRAMES
    T_half = T // 2

    # torch: transpose (B,T,M)->(B,M,T), pad time to 2*N_FRAMES, split into two N_FRAMES windows.
    # Here (channels-last) we pad/split the time axis and stack the two windows along batch so
    # the whole encoder runs once with B'=2B.
    # TODO(synk): torch skips the second window when it is all-zero (data-dependent host branch);
    # here both windows are always encoded and the final crop to T_in keeps results identical.
    padded = jnp.pad(audio_mel_features, ((0, 0), (0, 2 * N_FRAMES - T_in), (0, 0)))
    windows = jnp.concatenate([padded[:, :N_FRAMES, :], padded[:, N_FRAMES:2 * N_FRAMES, :]],
                              axis=0)                                     # (2B, T, M)

    # --- fused conv frontend ---
    front = pl.pallas_call(
        _frontend_kernel,
        out_shape=jax.ShapeDtypeStruct((Bp, T, D_MODEL), jnp.float32),
    )(windows, params["conv1_mat"], params["conv1_b"],
      params["conv2_mat"], params["conv2_b"], params["pos_expanded"])
    h = front[:, ::2, :]                                  # stride-2 conv2 selection -> (2B, T/2, D)

    # --- fused transformer blocks (last one also applies ln_post) ---
    n_blocks = len(params["blocks"])
    for li, blk in enumerate(params["blocks"]):
        h = pl.pallas_call(
            functools.partial(_encoder_block_kernel, n_heads=N_HEADS,
                              apply_post_ln=(li == n_blocks - 1)),
            out_shape=jax.ShapeDtypeStruct((Bp, T_half, D_MODEL), jnp.float32),
        )(h, blk["ln1_g"], blk["ln1_b"], blk["wq"], blk["bq"], blk["wk"], blk["wv"], blk["bv"],
          blk["wo"], blk["bo"], blk["ln2_g"], blk["ln2_b"], blk["w_fc1"], blk["b_fc1"],
          blk["w_fc2"], blk["b_fc2"], params["ln_post_g"], params["ln_post_b"])

    # --- ConvTranspose1d(K=5, stride=2, pad=1): zero-insert in time, then fused im2col conv ---
    z = lax.pad(h, jnp.array(0.0, jnp.float32),
                ((0, 0, 0), (0, 0, 1), (0, 0, 0)))        # interior pad -> (2B, 2*T/2-1, D)
    T_up = (T_half - 1) * 2 - 2 * 1 + 5                   # = T + 1
    up = pl.pallas_call(
        functools.partial(_upsample_kernel, kernel_size=5, conv_pad=3),   # conv_pad = K-1-pad
        out_shape=jax.ShapeDtypeStruct((Bp, T_up, UP_CHANNELS), jnp.float32),
    )(z, params["up_mat"], params["up_b"])

    # re-assemble the two windows along time, crop to the input length
    x = jnp.concatenate([up[:B], up[B:]], axis=1)         # (B, 2*T_up, U)
    x = x[:, :T_in, :]
    R = B * T_in

    # --- fused final Linear + log_softmax ---
    logits2d, logp2d = pl.pallas_call(
        _final_kernel,
        out_shape=(jax.ShapeDtypeStruct((R, VOCAB), jnp.float32),
                   jax.ShapeDtypeStruct((R, VOCAB), jnp.float32)),
    )(x.reshape(R, UP_CHANNELS), params["final_mat"], params["final_b"])

    log_probs = logp2d.reshape(B, T_in, VOCAB)
    logits_ce_order = jnp.transpose(logits2d.reshape(B, T_in, VOCAB), (0, 2, 1))   # (B, VOCAB, T)
    return log_probs, logits_ce_order


# ----------------------------- parameter prep (torch layouts -> kernel layouts) -----------------------------

def prepare_params(p):
    def t2(w):                      # torch Linear weight (out, in) -> (in, out)
        return jnp.transpose(w)

    def row(b):                     # 1-D bias/gain -> (1, N) for clean 2-D broadcasting in-kernel
        return b.reshape(1, -1)

    def conv_mat(w_oik):            # torch Conv1d weight (Cout, Cin, K) -> (K*Cin, Cout)
        return jnp.transpose(w_oik, (2, 1, 0)).reshape(-1, w_oik.shape[0])

    prep = {
        "conv1_mat": conv_mat(p["conv1_w"]), "conv1_b": row(p["conv1_b"]),
        "conv2_mat": conv_mat(p["conv2_w"]), "conv2_b": row(p["conv2_b"]),
        # pos_emb expanded to all 16 conv positions (even rows are the real ones)
        "pos_expanded": jnp.repeat(p["pos_emb"], 2, axis=0)[None],       # (1, N_FRAMES, D)
        "ln_post_g": row(p["ln_post_g"]), "ln_post_b": row(p["ln_post_b"]),
        "up_b": row(p["up_b"]),
        "final_mat": t2(p["final_w"]), "final_b": row(p["final_b"]),
    }
    # ConvTranspose1d weight (Cin, Cout, K): flip over K -> equivalent Conv1d weight (Cout, Cin, K)
    w_conv = jnp.transpose(jnp.flip(p["up_w"], axis=-1), (1, 0, 2))
    prep["up_mat"] = conv_mat(w_conv)

    blocks = []
    for blk in p["blocks"]:
        blocks.append(dict(
            ln1_g=row(blk["ln1_g"]), ln1_b=row(blk["ln1_b"]),
            wq=t2(blk["wq"]), bq=row(blk["bq"]),
            wk=t2(blk["wk"]),
            wv=t2(blk["wv"]), bv=row(blk["bv"]),
            wo=t2(blk["wo"]), bo=row(blk["bo"]),
            ln2_g=row(blk["ln2_g"]), ln2_b=row(blk["ln2_b"]),
            w_fc1=t2(blk["w_fc1"]), b_fc1=row(blk["b_fc1"]),
            w_fc2=t2(blk["w_fc2"]), b_fc2=row(blk["b_fc2"]),
        ))
    prep["blocks"] = blocks
    return prep


# ----------------------------- deterministic parameter init (torch layouts) -----------------------------

def init_params(key):
    keys = iter(jax.random.split(key, 64))

    def nrm(shape, scale=0.02):
        return (scale * jax.random.normal(next(keys), shape)).astype(jnp.float32)

    p = {
        "conv1_w": nrm((D_MODEL, N_MELS, 3)), "conv1_b": nrm((D_MODEL,)),
        "conv2_w": nrm((D_MODEL, D_MODEL, 3)), "conv2_b": nrm((D_MODEL,)),
        "pos_emb": nrm((N_FRAMES // 2, D_MODEL)),
        "ln_post_g": jnp.ones((D_MODEL,), jnp.float32),
        "ln_post_b": jnp.zeros((D_MODEL,), jnp.float32),
        "up_w": nrm((D_MODEL, UP_CHANNELS, 5)),      # ConvTranspose1d weight (in, out, K)
        "up_b": nrm((UP_CHANNELS,)),
        "final_w": nrm((VOCAB, UP_CHANNELS)),        # nn.Linear weight (out, in)
        "final_b": nrm((VOCAB,)),
    }
    blocks = []
    for _ in range(N_LAYERS):
        blocks.append(dict(
            ln1_g=jnp.ones((D_MODEL,), jnp.float32), ln1_b=jnp.zeros((D_MODEL,), jnp.float32),
            wq=nrm((D_MODEL, D_MODEL)), bq=nrm((D_MODEL,)),
            wk=nrm((D_MODEL, D_MODEL)),
            wv=nrm((D_MODEL, D_MODEL)), bv=nrm((D_MODEL,)),
            wo=nrm((D_MODEL, D_MODEL)), bo=nrm((D_MODEL,)),
            ln2_g=jnp.ones((D_MODEL,), jnp.float32), ln2_b=jnp.zeros((D_MODEL,), jnp.float32),
            w_fc1=nrm((4 * D_MODEL, D_MODEL)), b_fc1=nrm((4 * D_MODEL,)),
            w_fc2=nrm((D_MODEL, 4 * D_MODEL)), b_fc2=nrm((D_MODEL,)),
        ))
    p["blocks"] = blocks
    return p


if __name__ == "__main__":
    key = jax.random.PRNGKey(0)
    pkey, xkey = jax.random.split(key)
    params = prepare_params(init_params(pkey))

    B, T_in = 2, 20   # T_in > N_FRAMES so the second-window path is exercised
    audio_mel_features = jax.random.normal(xkey, (B, T_in, N_MELS), dtype=jnp.float32)

    fwd = jax.jit(model_forward)
    log_probs, logits_ce_order = fwd(audio_mel_features, params)
    jax.block_until_ready((log_probs, logits_ce_order))

    assert log_probs.shape == (B, T_in, VOCAB)
    assert logits_ce_order.shape == (B, VOCAB, T_in)
    # log_softmax rows must (exp-)sum to ~1
    assert jnp.allclose(jnp.sum(jnp.exp(log_probs), axis=-1), 1.0, atol=1e-4)
    # log_probs must be a log_softmax of the returned logits
    ref_lp = jax.nn.log_softmax(jnp.transpose(logits_ce_order, (0, 2, 1)), axis=-1)
    assert jnp.allclose(log_probs, ref_lp, atol=2e-3)
    print("KERNEL_OK")
</pallas_src>

<mosaic_0001>
module attributes {stable_mosaic.version = 11 : i64} {
  func.func @_frontend_kernel(%arg0: memref<4x16x16xf32, #tpu.memory_space<vmem>>, %arg1: memref<48x32xf32, #tpu.memory_space<vmem>>, %arg2: memref<1x32xf32, #tpu.memory_space<vmem>>, %arg3: memref<96x32xf32, #tpu.memory_space<vmem>>, %arg4: memref<1x32xf32, #tpu.memory_space<vmem>>, %arg5: memref<1x16x32xf32, #tpu.memory_space<vmem>>, %arg6: memref<4x16x32xf32, #tpu.memory_space<vmem>>) attributes {dimension_semantics = [], scalar_prefetch = 0 : i64, scratch_operands = 0 : i64, tpu.core_type = #tpu.core_type<tc>} {
    %c0 = arith.constant 0 : index
    %c0_0 = arith.constant 0 : index
    %c0_1 = arith.constant 0 : index
    %0 = vector.load %arg0[%c0, %c0_0, %c0_1] : memref<4x16x16xf32, #tpu.memory_space<vmem>>, vector<4x16x16xf32>
    %cst = arith.constant 0.000000e+00 : f32
    %1 = vector.broadcast %cst : f32 to vector<4x1x16xf32>
    %2 = tpu.concatenate %1, %0, %1 in 1 : vector<4x1x16xf32>, vector<4x16x16xf32>, vector<4x1x16xf32> -> vector<4x18x16xf32>
    %3 = vector.extract_strided_slice %2 {offsets = [0, 0, 0], sizes = [4, 16, 16], strides = [1, 1, 1]} : vector<4x18x16xf32> to vector<4x16x16xf32>
    %4 = vector.extract_strided_slice %2 {offsets = [0, 1, 0], sizes = [4, 16, 16], strides = [1, 1, 1]} : vector<4x18x16xf32> to vector<4x16x16xf32>
    %5 = vector.extract_strided_slice %2 {offsets = [0, 2, 0], sizes = [4, 16, 16], strides = [1, 1, 1]} : vector<4x18x16xf32> to vector<4x16x16xf32>
    %6 = tpu.concatenate %3, %4, %5 in 2 : vector<4x16x16xf32>, vector<4x16x16xf32>, vector<4x16x16xf32> -> vector<4x16x48xf32>
    %7 = vector.shape_cast %6 : vector<4x16x48xf32> to vector<64x48xf32>
    %c0_2 = arith.constant 0 : index
    %c0_3 = arith.constant 0 : index
    %8 = vector.load %arg1[%c0_2, %c0_3] : memref<48x32xf32, #tpu.memory_space<vmem>>, vector<48x32xf32>
    %cst_4 = arith.constant dense<0.000000e+00> : vector<64x32xf32>
    %9 = tpu.matmul %7, %8, %cst_4 {dimension_numbers = #tpu.dot_dimension_numbers<[1], [0], [0], [1], [0, 0, 1, 1], [], []>} : vector<64x48xf32>, vector<48x32xf32>, vector<64x32xf32> -> vector<64x32xf32>
    %c0_5 = arith.constant 0 : index
    %c0_6 = arith.constant 0 : index
    %10 = vector.load %arg2[%c0_5, %c0_6] : memref<1x32xf32, #tpu.memory_space<vmem>>, vector<1x32xf32>
    %11 = vector.broadcast %10 : vector<1x32xf32> to vector<64x32xf32>
    %12 = arith.addf %9, %11 : vector<64x32xf32>
    %cst_7 = arith.constant 5.000000e-01 : f32
    %13 = vector.broadcast %cst_7 : f32 to vector<64x32xf32>
    %14 = arith.mulf %13, %12 : vector<64x32xf32>
    %cst_8 = arith.constant 4.471500e-02 : f32
    %15 = vector.broadcast %cst_8 : f32 to vector<64x32xf32>
    %16 = arith.mulf %15, %12 : vector<64x32xf32>
    %17 = arith.mulf %16, %12 : vector<64x32xf32>
    %18 = arith.mulf %17, %12 : vector<64x32xf32>
    %19 = arith.addf %12, %18 : vector<64x32xf32>
    %cst_9 = arith.constant 0.797884583 : f32
    %20 = vector.broadcast %cst_9 : f32 to vector<64x32xf32>
    %21 = arith.mulf %20, %19 : vector<64x32xf32>
    %22 = math.tanh %21 : vector<64x32xf32>
    %cst_10 = arith.constant 1.000000e+00 : f32
    %23 = vector.broadcast %cst_10 : f32 to vector<64x32xf32>
    %24 = arith.addf %23, %22 : vector<64x32xf32>
    %25 = arith.mulf %14, %24 : vector<64x32xf32>
    %26 = vector.shape_cast %25 : vector<64x32xf32> to vector<4x16x32xf32>
    %cst_11 = arith.constant 0.000000e+00 : f32
    %27 = vector.broadcast %cst_11 : f32 to vector<4x1x32xf32>
    %28 = tpu.concatenate %27, %26, %27 in 1 : vector<4x1x32xf32>, vector<4x16x32xf32>, vector<4x1x32xf32> -> vector<4x18x32xf32>
    %29 = vector.extract_strided_slice %28 {offsets = [0, 0, 0], sizes = [4, 16, 32], strides = [1, 1, 1]} : vector<4x18x32xf32> to vector<4x16x32xf32>
    %30 = vector.extract_strided_slice %28 {offsets = [0, 1, 0], sizes = [4, 16, 32], strides = [1, 1, 1]} : vector<4x18x32xf32> to vector<4x16x32xf32>
    %31 = vector.extract_strided_slice %28 {offsets = [0, 2, 0], sizes = [4, 16, 32], strides = [1, 1, 1]} : vector<4x18x32xf32> to vector<4x16x32xf32>
    %32 = tpu.concatenate %29, %30, %31 in 2 : vector<4x16x32xf32>, vector<4x16x32xf32>, vector<4x16x32xf32> -> vector<4x16x96xf32>
    %33 = vector.shape_cast %32 : vector<4x16x96xf32> to vector<64x96xf32>
    %c0_12 = arith.constant 0 : index
    %c0_13 = arith.constant 0 : index
    %34 = vector.load %arg3[%c0_12, %c0_13] : memref<96x32xf32, #tpu.memory_space<vmem>>, vector<96x32xf32>
    %cst_14 = arith.constant dense<0.000000e+00> : vector<64x32xf32>
    %35 = tpu.matmul %33, %34, %cst_14 {dimension_numbers = #tpu.dot_dimension_numbers<[1], [0], [0], [1], [0, 0, 1, 1], [], []>} : vector<64x96xf32>, vector<96x32xf32>, vector<64x32xf32> -> vector<64x32xf32>
    %c0_15 = arith.constant 0 : index
    %c0_16 = arith.constant 0 : index
    %36 = vector.load %arg4[%c0_15, %c0_16] : memref<1x32xf32, #tpu.memory_space<vmem>>, vector<1x32xf32>
    %37 = vector.broadcast %36 : vector<1x32xf32> to vector<64x32xf32>
    %38 = arith.addf %35, %37 : vector<64x32xf32>
    %cst_17 = arith.constant 5.000000e-01 : f32
    %39 = vector.broadcast %cst_17 : f32 to vector<64x32xf32>
    %40 = arith.mulf %39, %38 : vector<64x32xf32>
    %cst_18 = arith.constant 4.471500e-02 : f32
    %41 = vector.broadcast %cst_18 : f32 to vector<64x32xf32>
    %42 = arith.mulf %41, %38 : vector<64x32xf32>
    %43 = arith.mulf %42, %38 : vector<64x32xf32>
    %44 = arith.mulf %43, %38 : vector<64x32xf32>
    %45 = arith.addf %38, %44 : vector<64x32xf32>
    %cst_19 = arith.constant 0.797884583 : f32
    %46 = vector.broadcast %cst_19 : f32 to vector<64x32xf32>
    %47 = arith.mulf %46, %45 : vector<64x32xf32>
    %48 = math.tanh %47 : vector<64x32xf32>
    %cst_20 = arith.constant 1.000000e+00 : f32
    %49 = vector.broadcast %cst_20 : f32 to vector<64x32xf32>
    %50 = arith.addf %49, %48 : vector<64x32xf32>
    %51 = arith.mulf %40, %50 : vector<64x32xf32>
    %52 = vector.shape_cast %51 : vector<64x32xf32> to vector<4x16x32xf32>
    %c0_21 = arith.constant 0 : index
    %c0_22 = arith.constant 0 : index
    %c0_23 = arith.constant 0 : index
    %53 = vector.load %arg5[%c0_21, %c0_22, %c0_23] : memref<1x16x32xf32, #tpu.memory_space<vmem>>, vector<1x16x32xf32>
    %54 = vector.broadcast %53 : vector<1x16x32xf32> to vector<4x16x32xf32>
    %55 = arith.addf %52, %54 : vector<4x16x32xf32>
    %c0_24 = arith.constant 0 : index
    %c0_25 = arith.constant 0 : index
    %c0_26 = arith.constant 0 : index
    %56 = vector.load %arg6[%c0_24, %c0_25, %c0_26] : memref<4x16x32xf32, #tpu.memory_space<vmem>>, vector<4x16x32xf32>
    tpu.vector_store %arg6[%c0_24, %c0_25, %c0_26], %55 {strides = array<i32>} : memref<4x16x32xf32, #tpu.memory_space<vmem>>, vector<4x16x32xf32>,
    return
  }
}

module attributes {stable_mosaic.version = 11 : i64} {
  func.func @_encoder_block_kernel(%arg0: memref<4x8x32xf32, #tpu.memory_space<vmem>>, %arg1: memref<1x32xf32, #tpu.memory_space<vmem>>, %arg2: memref<1x32xf32, #tpu.memory_space<vmem>>, %arg3: memref<32x32xf32, #tpu.memory_space<vmem>>, %arg4: memref<1x32xf32, #tpu.memory_space<vmem>>, %arg5: memref<32x32xf32, #tpu.memory_space<vmem>>, %arg6: memref<32x32xf32, #tpu.memory_space<vmem>>, %arg7: memref<1x32xf32, #tpu.memory_space<vmem>>, %arg8: memref<32x32xf32, #tpu.memory_space<vmem>>, %arg9: memref<1x32xf32, #tpu.memory_space<vmem>>, %arg10: memref<1x32xf32, #tpu.memory_space<vmem>>, %arg11: memref<1x32xf32, #tpu.memory_space<vmem>>, %arg12: memref<32x128xf32, #tpu.memory_space<vmem>>, %arg13: memref<1x128xf32, #tpu.memory_space<vmem>>, %arg14: memref<128x32xf32, #tpu.memory_space<vmem>>, %arg15: memref<1x32xf32, #tpu.memory_space<vmem>>, %arg16: memref<1x32xf32, #tpu.memory_space<vmem>>, %arg17: memref<1x32xf32, #tpu.memory_space<vmem>>, %arg18: memref<4x8x32xf32, #tpu.memory_space<vmem>>) attributes {dimension_semantics = [], scalar_prefetch = 0 : i64, scratch_operands = 0 : i64, tpu.core_type = #tpu.core_type<tc>} {
    %c0 = arith.constant 0 : index
    %c0_0 = arith.constant 0 : index
    %c0_1 = arith.constant 0 : index
    %0 = vector.load %arg0[%c0, %c0_0, %c0_1] : memref<4x8x32xf32, #tpu.memory_space<vmem>>, vector<4x8x32xf32>
    %1 = vector.shape_cast %0 : vector<4x8x32xf32> to vector<32x32xf32>
    %c0_2 = arith.constant 0 : index
    %c0_3 = arith.constant 0 : index
    %2 = vector.load %arg1[%c0_2, %c0_3] : memref<1x32xf32, #tpu.memory_space<vmem>>, vector<1x32xf32>
    %c0_4 = arith.constant 0 : index
    %c0_5 = arith.constant 0 : index
    %3 = vector.load %arg2[%c0_4, %c0_5] : memref<1x32xf32, #tpu.memory_space<vmem>>, vector<1x32xf32>
    %cst = arith.constant dense<0.000000e+00> : vector<32xf32>
    %4 = vector.multi_reduction <add>, %1, %cst [1] : vector<32x32xf32> to vector<32xf32>
    %5 = vector.shape_cast %4 : vector<32xf32> to vector<32x1xf32>
    %cst_6 = arith.constant 3.200000e+01 : f32
    %6 = vector.broadcast %cst_6 : f32 to vector<32x1xf32>
    %7 = arith.divf %5, %6 : vector<32x1xf32>
    %8 = vector.broadcast %7 : vector<32x1xf32> to vector<32x32xf32>
    %9 = arith.subf %1, %8 : vector<32x32xf32>
    %10 = arith.mulf %9, %9 : vector<32x32xf32>
    %cst_7 = arith.constant dense<0.000000e+00> : vector<32xf32>
    %11 = vector.multi_reduction <add>, %10, %cst_7 [1] : vector<32x32xf32> to vector<32xf32>
    %12 = vector.shape_cast %11 : vector<32xf32> to vector<32x1xf32>
    %cst_8 = arith.constant 3.200000e+01 : f32
    %13 = vector.broadcast %cst_8 : f32 to vector<32x1xf32>
    %14 = arith.divf %12, %13 : vector<32x1xf32>
    %cst_9 = arith.constant 9.99999974E-6 : f32
    %15 = vector.broadcast %cst_9 : f32 to vector<32x1xf32>
    %16 = arith.addf %14, %15 : vector<32x1xf32>
    %17 = math.rsqrt %16 : vector<32x1xf32>
    %18 = vector.broadcast %17 : vector<32x1xf32> to vector<32x32xf32>
    %19 = arith.mulf %9, %18 : vector<32x32xf32>
    %20 = vector.broadcast %2 : vector<1x32xf32> to vector<32x32xf32>
    %21 = arith.mulf %19, %20 : vector<32x32xf32>
    %22 = vector.broadcast %3 : vector<1x32xf32> to vector<32x32xf32>
    %23 = arith.addf %21, %22 : vector<32x32xf32>
    %c0_10 = arith.constant 0 : index
    %c0_11 = arith.constant 0 : index
    %24 = vector.load %arg3[%c0_10, %c0_11] : memref<32x32xf32, #tpu.memory_space<vmem>>, vector<32x32xf32>
    %cst_12 = arith.constant dense<0.000000e+00> : vector<32x32xf32>
    %25 = tpu.matmul %23, %24, %cst_12 {dimension_numbers = #tpu.dot_dimension_numbers<[1], [0], [0], [1], [0, 0, 1, 1], [], []>} : vector<32x32xf32>, vector<32x32xf32>, vector<32x32xf32> -> vector<32x32xf32>
    %c0_13 = arith.constant 0 : index
    %c0_14 = arith.constant 0 : index
    %26 = vector.load %arg4[%c0_13, %c0_14] : memref<1x32xf32, #tpu.memory_space<vmem>>, vector<1x32xf32>
    %27 = vector.broadcast %26 : vector<1x32xf32> to vector<32x32xf32>
    %28 = arith.addf %25, %27 : vector<32x32xf32>
    %c0_15 = arith.constant 0 : index
    %c0_16 = arith.constant 0 : index
    %29 = vector.load %arg5[%c0_15, %c0_16] : memref<32x32xf32, #tpu.memory_space<vmem>>, vector<32x32xf32>
    %cst_17 = arith.constant dense<0.000000e+00> : vector<32x32xf32>
    %30 = tpu.matmul %23, %29, %cst_17 {dimension_numbers = #tpu.dot_dimension_numbers<[1], [0], [0], [1], [0, 0, 1, 1], [], []>} : vector<32x32xf32>, vector<32x32xf32>, vector<32x32xf32> -> vector<32x32xf32>
    %c0_18 = arith.constant 0 : index
    %c0_19 = arith.constant 0 : index
    %31 = vector.load %arg6[%c0_18, %c0_19] : memref<32x32xf32, #tpu.memory_space<vmem>>, vector<32x32xf32>
    %cst_20 = arith.constant dense<0.000000e+00> : vector<32x32xf32>
    %32 = tpu.matmul %23, %31, %cst_20 {dimension_numbers = #tpu.dot_dimension_numbers<[1], [0], [0], [1], [0, 0, 1, 1], [], []>} : vector<32x32xf32>, vector<32x32xf32>, vector<32x32xf32> -> vector<32x32xf32>
    %c0_21 = arith.constant 0 : index
    %c0_22 = arith.constant 0 : index
    %33 = vector.load %arg7[%c0_21, %c0_22] : memref<1x32xf32, #tpu.memory_space<vmem>>, vector<1x32xf32>
    %34 = vector.broadcast %33 : vector<1x32xf32> to vector<32x32xf32>
    %35 = arith.addf %32, %34 : vector<32x32xf32>
    %36 = vector.shape_cast %28 : vector<32x32xf32> to vector<4x8x32xf32>
    %37 = vector.shape_cast %30 : vector<32x32xf32> to vector<4x8x32xf32>
    %38 = vector.shape_cast %35 : vector<32x32xf32> to vector<4x8x32xf32>
    %39 = vector.extract_strided_slice %36 {offsets = [0, 0, 0], sizes = [4, 8, 8], strides = [1, 1, 1]} : vector<4x8x32xf32> to vector<4x8x8xf32>
    %40 = vector.extract_strided_slice %37 {offsets = [0, 0, 0], sizes = [4, 8, 8], strides = [1, 1, 1]} : vector<4x8x32xf32> to vector<4x8x8xf32>
    "tpu.trace_start"() <{level = 10 : i32, message = "btd,bsd->bts"}> : () -> ()
    %cst_23 = arith.constant dense<0.000000e+00> : vector<4x8x8xf32>
    %41 = tpu.matmul %39, %40, %cst_23 {dimension_numbers = #tpu.dot_dimension_numbers<[2], [2], [1], [1], [0, 0, 0, 1, 1, 1], [0], [0]>} : vector<4x8x8xf32>, vector<4x8x8xf32>, vector<4x8x8xf32> -> vector<4x8x8xf32>
    "tpu.trace_stop"() : () -> ()
    %cst_24 = arith.constant 0.353553385 : f32
    %42 = vector.broadcast %cst_24 : f32 to vector<4x8x8xf32>
    %43 = arith.mulf %41, %42 : vector<4x8x8xf32>
    %cst_25 = arith.constant dense<0xFF800000> : vector<4x8xf32>
    %44 = vector.multi_reduction <maximumf>, %43, %cst_25 [2] : vector<4x8x8xf32> to vector<4x8xf32>
    %45 = vector.shape_cast %44 : vector<4x8xf32> to vector<4x8x1xf32>
    %46 = vector.broadcast %45 : vector<4x8x1xf32> to vector<4x8x8xf32>
    %47 = arith.subf %43, %46 : vector<4x8x8xf32>
    %48 = math.exp %47 : vector<4x8x8xf32>
    %cst_26 = arith.constant dense<0.000000e+00> : vector<4x8xf32>
    %49 = vector.multi_reduction <add>, %48, %cst_26 [2] : vector<4x8x8xf32> to vector<4x8xf32>
    %50 = vector.shape_cast %49 : vector<4x8xf32> to vector<4x8x1xf32>
    %51 = tpu.reciprocal %50 {approx = true} : vector<4x8x1xf32> -> vector<4x8x1xf32>
    %52 = vector.broadcast %51 : vector<4x8x1xf32> to vector<4x8x8xf32>
    %53 = arith.mulf %48, %52 : vector<4x8x8xf32>
    %54 = vector.extract_strided_slice %38 {offsets = [0, 0, 0], sizes = [4, 8, 8], strides = [1, 1, 1]} : vector<4x8x32xf32> to vector<4x8x8xf32>
    "tpu.trace_start"() <{level = 10 : i32, message = "bts,bsd->btd"}> : () -> ()
    %cst_27 = arith.constant dense<0.000000e+00> : vector<4x8x8xf32>
    %55 = tpu.matmul %53, %54, %cst_27 {dimension_numbers = #tpu.dot_dimension_numbers<[2], [1], [1], [2], [0, 0, 0, 1, 1, 2], [0], [0]>} : vector<4x8x8xf32>, vector<4x8x8xf32>, vector<4x8x8xf32> -> vector<4x8x8xf32>
    "tpu.trace_stop"() : () -> ()
    %56 = vector.extract_strided_slice %36 {offsets = [0, 0, 8], sizes = [4, 8, 8], strides = [1, 1, 1]} : vector<4x8x32xf32> to vector<4x8x8xf32>
    %57 = vector.extract_strided_slice %37 {offsets = [0, 0, 8], sizes = [4, 8, 8], strides = [1, 1, 1]} : vector<4x8x32xf32> to vector<4x8x8xf32>
    "tpu.trace_start"() <{level = 10 : i32, message = "btd,bsd->bts"}> : () -> ()
    %cst_28 = arith.constant dense<0.000000e+00> : vector<4x8x8xf32>
    %58 = tpu.matmul %56, %57, %cst_28 {dimension_numbers = #tpu.dot_dimension_numbers<[2], [2], [1], [1], [0, 0, 0, 1, 1, 1], [0], [0]>} : vector<4x8x8xf32>, vector<4x8x8xf32>, vector<4x8x8xf32> -> vector<4x8x8xf32>
    "tpu.trace_stop"() : () -> ()
    %cst_29 = arith.constant 0.353553385 : f32
    %59 = vector.broadcast %cst_29 : f32 to vector<4x8x8xf32>
    %60 = arith.mulf %58, %59 : vector<4x8x8xf32>
    %cst_30 = arith.constant dense<0xFF800000> : vector<4x8xf32>
    %61 = vector.multi_reduction <maximumf>, %60, %cst_30 [2] : vector<4x8x8xf32> to vector<4x8xf32>
    %62 = vector.shape_cast %61 : vector<4x8xf32> to vector<4x8x1xf32>
    %63 = vector.broadcast %62 : vector<4x8x1xf32> to vector<4x8x8xf32>
    %64 = arith.subf %60, %63 : vector<4x8x8xf32>
    %65 = math.exp %64 : vector<4x8x8xf32>
    %cst_31 = arith.constant dense<0.000000e+00> : vector<4x8xf32>
    %66 = vector.multi_reduction <add>, %65, %cst_31 [2] : vector<4x8x8xf32> to vector<4x8xf32>
    %67 = vector.shape_cast %66 : vector<4x8xf32> to vector<4x8x1xf32>
    %68 = tpu.reciprocal %67 {approx = true} : vector<4x8x1xf32> -> vector<4x8x1xf32>
    %69 = vector.broadcast %68 : vector<4x8x1xf32> to vector<4x8x8xf32>
    %70 = arith.mulf %65, %69 : vector<4x8x8xf32>
    %71 = vector.extract_strided_slice %38 {offsets = [0, 0, 8], sizes = [4, 8, 8], strides = [1, 1, 1]} : vector<4x8x32xf32> to vector<4x8x8xf32>
    "tpu.trace_start"() <{level = 10 : i32, message = "bts,bsd->btd"}> : () -> ()
    %cst_32 = arith.constant dense<0.000000e+00> : vector<4x8x8xf32>
    %72 = tpu.matmul %70, %71, %cst_32 {dimension_numbers = #tpu.dot_dimension_numbers<[2], [1], [1], [2], [0, 0, 0, 1, 1, 2], [0], [0]>} : vector<4x8x8xf32>, vector<4x8x8xf32>, vector<4x8x8xf32> -> vector<4x8x8xf32>
    "tpu.trace_stop"() : () -> ()
    %73 = vector.extract_strided_slice %36 {offsets = [0, 0, 16], sizes = [4, 8, 8], strides = [1, 1, 1]} : vector<4x8x32xf32> to vector<4x8x8xf32>
    %74 = vector.extract_strided_slice %37 {offsets = [0, 0, 16], sizes = [4, 8, 8], strides = [1, 1, 1]} : vector<4x8x32xf32> to vector<4x8x8xf32>
    "tpu.trace_start"() <{level = 10 : i32, message = "btd,bsd->bts"}> : () -> ()
    %cst_33 = arith.constant dense<0.000000e+00> : vector<4x8x8xf32>
    %75 = tpu.matmul %73, %74, %cst_33 {dimension_numbers = #tpu.dot_dimension_numbers<[2], [2], [1], [1], [0, 0, 0, 1, 1, 1], [0], [0]>} : vector<4x8x8xf32>, vector<4x8x8xf32>, vector<4x8x8xf32> -> vector<4x8x8xf32>
    "tpu.trace_stop"() : () -> ()
    %cst_34 = arith.constant 0.353553385 : f32
    %76 = vector.broadcast %cst_34 : f32 to vector<4x8x8xf32>
    %77 = arith.mulf %75, %76 : vector<4x8x8xf32>
    %cst_35 = arith.constant dense<0xFF800000> : vector<4x8xf32>
    %78 = vector.multi_reduction <maximumf>, %77, %cst_35 [2] : vector<4x8x8xf32> to vector<4x8xf32>
    %79 = vector.shape_cast %78 : vector<4x8xf32> to vector<4x8x1xf32>
    %80 = vector.broadcast %79 : vector<4x8x1xf32> to vector<4x8x8xf32>
    %81 = arith.subf %77, %80 : vector<4x8x8xf32>
    %82 = math.exp %81 : vector<4x8x8xf32>
    %cst_36 = arith.constant dense<0.000000e+00> : vector<4x8xf32>
    %83 = vector.multi_reduction <add>, %82, %cst_36 [2] : vector<4x8x8xf32> to vector<4x8xf32>
    %84 = vector.shape_cast %83 : vector<4x8xf32> to vector<4x8x1xf32>
    %85 = tpu.reciprocal %84 {approx = true} : vector<4x8x1xf32> -> vector<4x8x1xf32>
    %86 = vector.broadcast %85 : vector<4x8x1xf32> to vector<4x8x8xf32>
    %87 = arith.mulf %82, %86 : vector<4x8x8xf32>
    %88 = vector.extract_strided_slice %38 {offsets = [0, 0, 16], sizes = [4, 8, 8], strides = [1, 1, 1]} : vector<4x8x32xf32> to vector<4x8x8xf32>
    "tpu.trace_start"() <{level = 10 : i32, message = "bts,bsd->btd"}> : () -> ()
    %cst_37 = arith.constant dense<0.000000e+00> : vector<4x8x8xf32>
    %89 = tpu.matmul %87, %88, %cst_37 {dimension_numbers = #tpu.dot_dimension_numbers<[2], [1], [1], [2], [0, 0, 0, 1, 1, 2], [0], [0]>} : vector<4x8x8xf32>, vector<4x8x8xf32>, vector<4x8x8xf32> -> vector<4x8x8xf32>
    "tpu.trace_stop"() : () -> ()
    %90 = vector.extract_strided_slice %36 {offsets = [0, 0, 24], sizes = [4, 8, 8], strides = [1, 1, 1]} : vector<4x8x32xf32> to vector<4x8x8xf32>
    %91 = vector.extract_strided_slice %37 {offsets = [0, 0, 24], sizes = [4, 8, 8], strides = [1, 1, 1]} : vector<4x8x32xf32> to vector<4x8x8xf32>
    "tpu.trace_start"() <{level = 10 : i32, message = "btd,bsd->bts"}> : () -> ()
    %cst_38 = arith.constant dense<0.000000e+00> : vector<4x8x8xf32>
    %92 = tpu.matmul %90, %91, %cst_38 {dimension_numbers = #tpu.dot_dimension_numbers<[2], [2], [1], [1], [0, 0, 0, 1, 1, 1], [0], [0]>} : vector<4x8x8xf32>, vector<4x8x8xf32>, vector<4x8x8xf32> -> vector<4x8x8xf32>
    "tpu.trace_stop"() : () -> ()
    %cst_39 = arith.constant 0.353553385 : f32
    %93 = vector.broadcast %cst_39 : f32 to vector<4x8x8xf32>
    %94 = arith.mulf %92, %93 : vector<4x8x8xf32>
    %cst_40 = arith.constant dense<0xFF800000> : vector<4x8xf32>
    %95 = vector.multi_reduction <maximumf>, %94, %cst_40 [2] : vector<4x8x8xf32> to vector<4x8xf32>
    %96 = vector.shape_cast %95 : vector<4x8xf32> to vector<4x8x1xf32>
    %97 = vector.broadcast %96 : vector<4x8x1xf32> to vector<4x8x8xf32>
    %98 = arith.subf %94, %97 : vector<4x8x8xf32>
    %99 = math.exp %98 : vector<4x8x8xf32>
    %cst_41 = arith.constant dense<0.000000e+00> : vector<4x8xf32>
    %100 = vector.multi_reduction <add>, %99, %cst_41 [2] : vector<4x8x8xf32> to vector<4x8xf32>
    %101 = vector.shape_cast %100 : vector<4x8xf32> to vector<4x8x1xf32>
    %102 = tpu.reciprocal %101 {approx = true} : vector<4x8x1xf32> -> vector<4x8x1xf32>
    %103 = vector.broadcast %102 : vector<4x8x1xf32> to vector<4x8x8xf32>
    %104 = arith.mulf %99, %103 : vector<4x8x8xf32>
    %105 = vector.extract_strided_slice %38 {offsets = [0, 0, 24], sizes = [4, 8, 8], strides = [1, 1, 1]} : vector<4x8x32xf32> to vector<4x8x8xf32>
    "tpu.trace_start"() <{level = 10 : i32, message = "bts,bsd->btd"}> : () -> ()
    %cst_42 = arith.constant dense<0.000000e+00> : vector<4x8x8xf32>
    %106 = tpu.matmul %104, %105, %cst_42 {dimension_numbers = #tpu.dot_dimension_numbers<[2], [1], [1], [2], [0, 0, 0, 1, 1, 2], [0], [0]>} : vector<4x8x8xf32>, vector<4x8x8xf32>, vector<4x8x8xf32> -> vector<4x8x8xf32>
    "tpu.trace_stop"() : () -> ()
    %107 = tpu.concatenate %55, %72, %89, %106 in 2 : vector<4x8x8xf32>, vector<4x8x8xf32>, vector<4x8x8xf32>, vector<4x8x8xf32> -> vector<4x8x32xf32>
    %108 = vector.shape_cast %107 : vector<4x8x32xf32> to vector<32x32xf32>
    %c0_43 = arith.constant 0 : index
    %c0_44 = arith.constant 0 : index
    %109 = vector.load %arg8[%c0_43, %c0_44] : memref<32x32xf32, #tpu.memory_space<vmem>>, vector<32x32xf32>
    %cst_45 = arith.constant dense<0.000000e+00> : vector<32x32xf32>
    %110 = tpu.matmul %108, %109, %cst_45 {dimension_numbers = #tpu.dot_dimension_numbers<[1], [0], [0], [1], [0, 0, 1, 1], [], []>} : vector<32x32xf32>, vector<32x32xf32>, vector<32x32xf32> -> vector<32x32xf32>
    %111 = arith.addf %1, %110 : vector<32x32xf32>
    %c0_46 = arith.constant 0 : index
    %c0_47 = arith.constant 0 : index
    %112 = vector.load %arg9[%c0_46, %c0_47] : memref<1x32xf32, #tpu.memory_space<vmem>>, vector<1x32xf32>
    %113 = vector.broadcast %112 : vector<1x32xf32> to vector<32x32xf32>
    %114 = arith.addf %111, %113 : vector<32x32xf32>
    %c0_48 = arith.constant 0 : index
    %c0_49 = arith.constant 0 : index
    %115 = vector.load %arg10[%c0_48, %c0_49] : memref<1x32xf32, #tpu.memory_space<vmem>>, vector<1x32xf32>
    %c0_50 = arith.constant 0 : index
    %c0_51 = arith.constant 0 : index
    %116 = vector.load %arg11[%c0_50, %c0_51] : memref<1x32xf32, #tpu.memory_space<vmem>>, vector<1x32xf32>
    %cst_52 = arith.constant dense<0.000000e+00> : vector<32xf32>
    %117 = vector.multi_reduction <add>, %114, %cst_52 [1] : vector<32x32xf32> to vector<32xf32>
    %118 = vector.shape_cast %117 : vector<32xf32> to vector<32x1xf32>
    %cst_53 = arith.constant 3.200000e+01 : f32
    %119 = vector.broadcast %cst_53 : f32 to vector<32x1xf32>
    %120 = arith.divf %118, %119 : vector<32x1xf32>
    %121 = vector.broadcast %120 : vector<32x1xf32> to vector<32x32xf32>
    %122 = arith.subf %114, %121 : vector<32x32xf32>
    %123 = arith.mulf %122, %122 : vector<32x32xf32>
    %cst_54 = arith.constant dense<0.000000e+00> : vector<32xf32>
    %124 = vector.multi_reduction <add>, %123, %cst_54 [1] : vector<32x32xf32> to vector<32xf32>
    %125 = vector.shape_cast %124 : vector<32xf32> to vector<32x1xf32>
    %cst_55 = arith.constant 3.200000e+01 : f32
    %126 = vector.broadcast %cst_55 : f32 to vector<32x1xf32>
    %127 = arith.divf %125, %126 : vector<32x1xf32>
    %cst_56 = arith.constant 9.99999974E-6 : f32
    %128 = vector.broadcast %cst_56 : f32 to vector<32x1xf32>
    %129 = arith.addf %127, %128 : vector<32x1xf32>
    %130 = math.rsqrt %129 : vector<32x1xf32>
    %131 = vector.broadcast %130 : vector<32x1xf32> to vector<32x32xf32>
    %132 = arith.mulf %122, %131 : vector<32x32xf32>
    %133 = vector.broadcast %115 : vector<1x32xf32> to vector<32x32xf32>
    %134 = arith.mulf %132, %133 : vector<32x32xf32>
    %135 = vector.broadcast %116 : vector<1x32xf32> to vector<32x32xf32>
    %136 = arith.addf %134, %135 : vector<32x32xf32>
    %c0_57 = arith.constant 0 : index
    %c0_58 = arith.constant 0 : index
    %137 = vector.load %arg12[%c0_57, %c0_58] : memref<32x128xf32, #tpu.memory_space<vmem>>, vector<32x128xf32>
    %cst_59 = arith.constant dense<0.000000e+00> : vector<32x128xf32>
    %138 = tpu.matmul %136, %137, %cst_59 {dimension_numbers = #tpu.dot_dimension_numbers<[1], [0], [0], [1], [0, 0, 1, 1], [], []>} : vector<32x32xf32>, vector<32x128xf32>, vector<32x128xf32> -> vector<32x128xf32>
    %c0_60 = arith.constant 0 : index
    %c0_61 = arith.constant 0 : index
    %139 = vector.load %arg13[%c0_60, %c0_61] : memref<1x128xf32, #tpu.memory_space<vmem>>, vector<1x128xf32>
    %140 = vector.broadcast %139 : vector<1x128xf32> to vector<32x128xf32>
    %141 = arith.addf %138, %140 : vector<32x128xf32>
    %cst_62 = arith.constant 5.000000e-01 : f32
    %142 = vector.broadcast %cst_62 : f32 to vector<32x128xf32>
    %143 = arith.mulf %142, %141 : vector<32x128xf32>
    %cst_63 = arith.constant 4.471500e-02 : f32
    %144 = vector.broadcast %cst_63 : f32 to vector<32x128xf32>
    %145 = arith.mulf %144, %141 : vector<32x128xf32>
    %146 = arith.mulf %145, %141 : vector<32x128xf32>
    %147 = arith.mulf %146, %141 : vector<32x128xf32>
    %148 = arith.addf %141, %147 : vector<32x128xf32>
    %cst_64 = arith.constant 0.797884583 : f32
    %149 = vector.broadcast %cst_64 : f32 to vector<32x128xf32>
    %150 = arith.mulf %149, %148 : vector<32x128xf32>
    %151 = math.tanh %150 : vector<32x128xf32>
    %cst_65 = arith.constant 1.000000e+00 : f32
    %152 = vector.broadcast %cst_65 : f32 to vector<32x128xf32>
    %153 = arith.addf %152, %151 : vector<32x128xf32>
    %154 = arith.mulf %143, %153 : vector<32x128xf32>
    %c0_66 = arith.constant 0 : index
    %c0_67 = arith.constant 0 : index
    %155 = vector.load %arg14[%c0_66, %c0_67] : memref<128x32xf32, #tpu.memory_space<vmem>>, vector<128x32xf32>
    %cst_68 = arith.constant dense<0.000000e+00> : vector<32x32xf32>
    %156 = tpu.matmul %154, %155, %cst_68 {dimension_numbers = #tpu.dot_dimension_numbers<[1], [0], [0], [1], [0, 0, 1, 1], [], []>} : vector<32x128xf32>, vector<128x32xf32>, vector<32x32xf32> -> vector<32x32xf32>
    %157 = arith.addf %114, %156 : vector<32x32xf32>
    %c0_69 = arith.constant 0 : index
    %c0_70 = arith.constant 0 : index
    %158 = vector.load %arg15[%c0_69, %c0_70] : memref<1x32xf32, #tpu.memory_space<vmem>>, vector<1x32xf32>
    %159 = vector.broadcast %158 : vector<1x32xf32> to vector<32x32xf32>
    %160 = arith.addf %157, %159 : vector<32x32xf32>
    %c0_71 = arith.constant 0 : index
    %c0_72 = arith.constant 0 : index
    %161 = vector.load %arg16[%c0_71, %c0_72] : memref<1x32xf32, #tpu.memory_space<vmem>>, vector<1x32xf32>
    %c0_73 = arith.constant 0 : index
    %c0_74 = arith.constant 0 : index
    %162 = vector.load %arg17[%c0_73, %c0_74] : memref<1x32xf32, #tpu.memory_space<vmem>>, vector<1x32xf32>
    %cst_75 = arith.constant dense<0.000000e+00> : vector<32xf32>
    %163 = vector.multi_reduction <add>, %160, %cst_75 [1] : vector<32x32xf32> to vector<32xf32>
    %164 = vector.shape_cast %163 : vector<32xf32> to vector<32x1xf32>
    %cst_76 = arith.constant 3.200000e+01 : f32
    %165 = vector.broadcast %cst_76 : f32 to vector<32x1xf32>
    %166 = arith.divf %164, %165 : vector<32x1xf32>
    %167 = vector.broadcast %166 : vector<32x1xf32> to vector<32x32xf32>
    %168 = arith.subf %160, %167 : vector<32x32xf32>
    %169 = arith.mulf %168, %168 : vector<32x32xf32>
    %cst_77 = arith.constant dense<0.000000e+00> : vector<32xf32>
    %170 = vector.multi_reduction <add>, %169, %cst_77 [1] : vector<32x32xf32> to vector<32xf32>
    %171 = vector.shape_cast %170 : vector<32xf32> to vector<32x1xf32>
    %cst_78 = arith.constant 3.200000e+01 : f32
    %172 = vector.broadcast %cst_78 : f32 to vector<32x1xf32>
    %173 = arith.divf %171, %172 : vector<32x1xf32>
    %cst_79 = arith.constant 9.99999974E-6 : f32
    %174 = vector.broadcast %cst_79 : f32 to vector<32x1xf32>
    %175 = arith.addf %173, %174 : vector<32x1xf32>
    %176 = math.rsqrt %175 : vector<32x1xf32>
    %177 = vector.broadcast %176 : vector<32x1xf32> to vector<32x32xf32>
    %178 = arith.mulf %168, %177 : vector<32x32xf32>
    %179 = vector.broadcast %161 : vector<1x32xf32> to vector<32x32xf32>
    %180 = arith.mulf %178, %179 : vector<32x32xf32>
    %181 = vector.broadcast %162 : vector<1x32xf32> to vector<32x32xf32>
    %182 = arith.addf %180, %181 : vector<32x32xf32>
    %183 = vector.shape_cast %182 : vector<32x32xf32> to vector<4x8x32xf32>
    %c0_80 = arith.constant 0 : index
    %c0_81 = arith.constant 0 : index
    %c0_82 = arith.constant 0 : index
    %184 = vector.load %arg18[%c0_80, %c0_81, %c0_82] : memref<4x8x32xf32, #tpu.memory_space<vmem>>, vector<4x8x32xf32>
    tpu.vector_store %arg18[%c0_80, %c0_81, %c0_82], %183 {strides = array<i32>} : memref<4x8x32xf32, #tpu.memory_space<vmem>>, vector<4x8x32xf32>,
    return
  }
}

module attributes {stable_mosaic.version = 11 : i64} {
  func.func @_encoder_block_kernel(%arg0: memref<4x8x32xf32, #tpu.memory_space<vmem>>, %arg1: memref<1x32xf32, #tpu.memory_space<vmem>>, %arg2: memref<1x32xf32, #tpu.memory_space<vmem>>, %arg3: memref<32x32xf32, #tpu.memory_space<vmem>>, %arg4: memref<1x32xf32, #tpu.memory_space<vmem>>, %arg5: memref<32x32xf32, #tpu.memory_space<vmem>>, %arg6: memref<32x32xf32, #tpu.memory_space<vmem>>, %arg7: memref<1x32xf32, #tpu.memory_space<vmem>>, %arg8: memref<32x32xf32, #tpu.memory_space<vmem>>, %arg9: memref<1x32xf32, #tpu.memory_space<vmem>>, %arg10: memref<1x32xf32, #tpu.memory_space<vmem>>, %arg11: memref<1x32xf32, #tpu.memory_space<vmem>>, %arg12: memref<32x128xf32, #tpu.memory_space<vmem>>, %arg13: memref<1x128xf32, #tpu.memory_space<vmem>>, %arg14: memref<128x32xf32, #tpu.memory_space<vmem>>, %arg15: memref<1x32xf32, #tpu.memory_space<vmem>>, %arg16: memref<1x32xf32, #tpu.memory_space<vmem>>, %arg17: memref<1x32xf32, #tpu.memory_space<vmem>>, %arg18: memref<4x8x32xf32, #tpu.memory_space<vmem>>) attributes {dimension_semantics = [], scalar_prefetch = 0 : i64, scratch_operands = 0 : i64, tpu.core_type = #tpu.core_type<tc>} {
    %c0 = arith.constant 0 : index
    %c0_0 = arith.constant 0 : index
    %c0_1 = arith.constant 0 : index
    %0 = vector.load %arg0[%c0, %c0_0, %c0_1] : memref<4x8x32xf32, #tpu.memory_space<vmem>>, vector<4x8x32xf32>
    %1 = vector.shape_cast %0 : vector<4x8x32xf32> to vector<32x32xf32>
    %c0_2 = arith.constant 0 : index
    %c0_3 = arith.constant 0 : index
    %2 = vector.load %arg1[%c0_2, %c0_3] : memref<1x32xf32, #tpu.memory_space<vmem>>, vector<1x32xf32>
    %c0_4 = arith.constant 0 : index
    %c0_5 = arith.constant 0 : index
    %3 = vector.load %arg2[%c0_4, %c0_5] : memref<1x32xf32, #tpu.memory_space<vmem>>, vector<1x32xf32>
    %cst = arith.constant dense<0.000000e+00> : vector<32xf32>
    %4 = vector.multi_reduction <add>, %1, %cst [1] : vector<32x32xf32> to vector<32xf32>
    %5 = vector.shape_cast %4 : vector<32xf32> to vector<32x1xf32>
    %cst_6 = arith.constant 3.200000e+01 : f32
    %6 = vector.broadcast %cst_6 : f32 to vector<32x1xf32>
    %7 = arith.divf %5, %6 : vector<32x1xf32>
    %8 = vector.broadcast %7 : vector<32x1xf32> to vector<32x32xf32>
    %9 = arith.subf %1, %8 : vector<32x32xf32>
    %10 = arith.mulf %9, %9 : vector<32x32xf32>
    %cst_7 = arith.constant dense<0.000000e+00> : vector<32xf32>
    %11 = vector.multi_reduction <add>, %10, %cst_7 [1] : vector<32x32xf32> to vector<32xf32>
    %12 = vector.shape_cast %11 : vector<32xf32> to vector<32x1xf32>
    %cst_8 = arith.constant 3.200000e+01 : f32
    %13 = vector.broadcast %cst_8 : f32 to vector<32x1xf32>
    %14 = arith.divf %12, %13 : vector<32x1xf32>
    %cst_9 = arith.constant 9.99999974E-6 : f32
    %15 = vector.broadcast %cst_9 : f32 to vector<32x1xf32>
    %16 = arith.addf %14, %15 : vector<32x1xf32>
    %17 = math.rsqrt %16 : vector<32x1xf32>
    %18 = vector.broadcast %17 : vector<32x1xf32> to vector<32x32xf32>
    %19 = arith.mulf %9, %18 : vector<32x32xf32>
    %20 = vector.broadcast %2 : vector<1x32xf32> to vector<32x32xf32>
    %21 = arith.mulf %19, %20 : vector<32x32xf32>
    %22 = vector.broadcast %3 : vector<1x32xf32> to vector<32x32xf32>
    %23 = arith.addf %21, %22 : vector<32x32xf32>
    %c0_10 = arith.constant 0 : index
    %c0_11 = arith.constant 0 : index
    %24 = vector.load %arg3[%c0_10, %c0_11] : memref<32x32xf32, #tpu.memory_space<vmem>>, vector<32x32xf32>
    %cst_12 = arith.constant dense<0.000000e+00> : vector<32x32xf32>
    %25 = tpu.matmul %23, %24, %cst_12 {dimension_numbers = #tpu.dot_dimension_numbers<[1], [0], [0], [1], [0, 0, 1, 1], [], []>} : vector<32x32xf32>, vector<32x32xf32>, vector<32x32xf32> -> vector<32x32xf32>
    %c0_13 = arith.constant 0 : index
    %c0_14 = arith.constant 0 : index
    %26 = vector.load %arg4[%c0_13, %c0_14] : memref<1x32xf32, #tpu.memory_space<vmem>>, vector<1x32xf32>
    %27 = vector.broadcast %26 : vector<1x32xf32> to vector<32x32xf32>
    %28 = arith.addf %25, %27 : vector<32x32xf32>
    %c0_15 = arith.constant 0 : index
    %c0_16 = arith.constant 0 : index
    %29 = vector.load %arg5[%c0_15, %c0_16] : memref<32x32xf32, #tpu.memory_space<vmem>>, vector<32x32xf32>
    %cst_17 = arith.constant dense<0.000000e+00> : vector<32x32xf32>
    %30 = tpu.matmul %23, %29, %cst_17 {dimension_numbers = #tpu.dot_dimension_numbers<[1], [0], [0], [1], [0, 0, 1, 1], [], []>} : vector<32x32xf32>, vector<32x32xf32>, vector<32x32xf32> -> vector<32x32xf32>
    %c0_18 = arith.constant 0 : index
    %c0_19 = arith.constant 0 : index
    %31 = vector.load %arg6[%c0_18, %c0_19] : memref<32x32xf32, #tpu.memory_space<vmem>>, vector<32x32xf32>
    %cst_20 = arith.constant dense<0.000000e+00> : vector<32x32xf32>
    %32 = tpu.matmul %23, %31, %cst_20 {dimension_numbers = #tpu.dot_dimension_numbers<[1], [0], [0], [1], [0, 0, 1, 1], [], []>} : vector<32x32xf32>, vector<32x32xf32>, vector<32x32xf32> -> vector<32x32xf32>
    %c0_21 = arith.constant 0 : index
    %c0_22 = arith.constant 0 : index
    %33 = vector.load %arg7[%c0_21, %c0_22] : memref<1x32xf32, #tpu.memory_space<vmem>>, vector<1x32xf32>
    %34 = vector.broadcast %33 : vector<1x32xf32> to vector<32x32xf32>
    %35 = arith.addf %32, %34 : vector<32x32xf32>
    %36 = vector.shape_cast %28 : vector<32x32xf32> to vector<4x8x32xf32>
    %37 = vector.shape_cast %30 : vector<32x32xf32> to vector<4x8x32xf32>
    %38 = vector.shape_cast %35 : vector<32x32xf32> to vector<4x8x32xf32>
    %39 = vector.extract_strided_slice %36 {offsets = [0, 0, 0], sizes = [4, 8, 8], strides = [1, 1, 1]} : vector<4x8x32xf32> to vector<4x8x8xf32>
    %40 = vector.extract_strided_slice %37 {offsets = [0, 0, 0], sizes = [4, 8, 8], strides = [1, 1, 1]} : vector<4x8x32xf32> to vector<4x8x8xf32>
    "tpu.trace_start"() <{level = 10 : i32, message = "btd,bsd->bts"}> : () -> ()
    %cst_23 = arith.constant dense<0.000000e+00> : vector<4x8x8xf32>
    %41 = tpu.matmul %39, %40, %cst_23 {dimension_numbers = #tpu.dot_dimension_numbers<[2], [2], [1], [1], [0, 0, 0, 1, 1, 1], [0], [0]>} : vector<4x8x8xf32>, vector<4x8x8xf32>, vector<4x8x8xf32> -> vector<4x8x8xf32>
    "tpu.trace_stop"() : () -> ()
    %cst_24 = arith.constant 0.353553385 : f32
    %42 = vector.broadcast %cst_24 : f32 to vector<4x8x8xf32>
    %43 = arith.mulf %41, %42 : vector<4x8x8xf32>
    %cst_25 = arith.constant dense<0xFF800000> : vector<4x8xf32>
    %44 = vector.multi_reduction <maximumf>, %43, %cst_25 [2] : vector<4x8x8xf32> to vector<4x8xf32>
    %45 = vector.shape_cast %44 : vector<4x8xf32> to vector<4x8x1xf32>
    %46 = vector.broadcast %45 : vector<4x8x1xf32> to vector<4x8x8xf32>
    %47 = arith.subf %43, %46 : vector<4x8x8xf32>
    %48 = math.exp %47 : vector<4x8x8xf32>
    %cst_26 = arith.constant dense<0.000000e+00> : vector<4x8xf32>
    %49 = vector.multi_reduction <add>, %48, %cst_26 [2] : vector<4x8x8xf32> to vector<4x8xf32>
    %50 = vector.shape_cast %49 : vector<4x8xf32> to vector<4x8x1xf32>
    %51 = tpu.reciprocal %50 {approx = true} : vector<4x8x1xf32> -> vector<4x8x1xf32>
    %52 = vector.broadcast %51 : vector<4x8x1xf32> to vector<4x8x8xf32>
    %53 = arith.mulf %48, %52 : vector<4x8x8xf32>
    %54 = vector.extract_strided_slice %38 {offsets = [0, 0, 0], sizes = [4, 8, 8], strides = [1, 1, 1]} : vector<4x8x32xf32> to vector<4x8x8xf32>
    "tpu.trace_start"() <{level = 10 : i32, message = "bts,bsd->btd"}> : () -> ()
    %cst_27 = arith.constant dense<0.000000e+00> : vector<4x8x8xf32>
    %55 = tpu.matmul %53, %54, %cst_27 {dimension_numbers = #tpu.dot_dimension_numbers<[2], [1], [1], [2], [0, 0, 0, 1, 1, 2], [0], [0]>} : vector<4x8x8xf32>, vector<4x8x8xf32>, vector<4x8x8xf32> -> vector<4x8x8xf32>
    "tpu.trace_stop"() : () -> ()
    %56 = vector.extract_strided_slice %36 {offsets = [0, 0, 8], sizes = [4, 8, 8], strides = [1, 1, 1]} : vector<4x8x32xf32> to vector<4x8x8xf32>
    %57 = vector.extract_strided_slice %37 {offsets = [0, 0, 8], sizes = [4, 8, 8], strides = [1, 1, 1]} : vector<4x8x32xf32> to vector<4x8x8xf32>
    "tpu.trace_start"() <{level = 10 : i32, message = "btd,bsd->bts"}> : () -> ()
    %cst_28 = arith.constant dense<0.000000e+00> : vector<4x8x8xf32>
    %58 = tpu.matmul %56, %57, %cst_28 {dimension_numbers = #tpu.dot_dimension_numbers<[2], [2], [1], [1], [0, 0, 0, 1, 1, 1], [0], [0]>} : vector<4x8x8xf32>, vector<4x8x8xf32>, vector<4x8x8xf32> -> vector<4x8x8xf32>
    "tpu.trace_stop"() : () -> ()
    %cst_29 = arith.constant 0.353553385 : f32
    %59 = vector.broadcast %cst_29 : f32 to vector<4x8x8xf32>
    %60 = arith.mulf %58, %59 : vector<4x8x8xf32>
    %cst_30 = arith.constant dense<0xFF800000> : vector<4x8xf32>
    %61 = vector.multi_reduction <maximumf>, %60, %cst_30 [2] : vector<4x8x8xf32> to vector<4x8xf32>
    %62 = vector.shape_cast %61 : vector<4x8xf32> to vector<4x8x1xf32>
    %63 = vector.broadcast %62 : vector<4x8x1xf32> to vector<4x8x8xf32>
    %64 = arith.subf %60, %63 : vector<4x8x8xf32>
    %65 = math.exp %64 : vector<4x8x8xf32>
    %cst_31 = arith.constant dense<0.000000e+00> : vector<4x8xf32>
    %66 = vector.multi_reduction <add>, %65, %cst_31 [2] : vector<4x8x8xf32> to vector<4x8xf32>
    %67 = vector.shape_cast %66 : vector<4x8xf32> to vector<4x8x1xf32>
    %68 = tpu.reciprocal %67 {approx = true} : vector<4x8x1xf32> -> vector<4x8x1xf32>
    %69 = vector.broadcast %68 : vector<4x8x1xf32> to vector<4x8x8xf32>
    %70 = arith.mulf %65, %69 : vector<4x8x8xf32>
    %71 = vector.extract_strided_slice %38 {offsets = [0, 0, 8], sizes = [4, 8, 8], strides = [1, 1, 1]} : vector<4x8x32xf32> to vector<4x8x8xf32>
    "tpu.trace_start"() <{level = 10 : i32, message = "bts,bsd->btd"}> : () -> ()
    %cst_32 = arith.constant dense<0.000000e+00> : vector<4x8x8xf32>
    %72 = tpu.matmul %70, %71, %cst_32 {dimension_numbers = #tpu.dot_dimension_numbers<[2], [1], [1], [2], [0, 0, 0, 1, 1, 2], [0], [0]>} : vector<4x8x8xf32>, vector<4x8x8xf32>, vector<4x8x8xf32> -> vector<4x8x8xf32>
    "tpu.trace_stop"() : () -> ()
    %73 = vector.extract_strided_slice %36 {offsets = [0, 0, 16], sizes = [4, 8, 8], strides = [1, 1, 1]} : vector<4x8x32xf32> to vector<4x8x8xf32>
    %74 = vector.extract_strided_slice %37 {offsets = [0, 0, 16], sizes = [4, 8, 8], strides = [1, 1, 1]} : vector<4x8x32xf32> to vector<4x8x8xf32>
    "tpu.trace_start"() <{level = 10 : i32, message = "btd,bsd->bts"}> : () -> ()
    %cst_33 = arith.constant dense<0.000000e+00> : vector<4x8x8xf32>
    %75 = tpu.matmul %73, %74, %cst_33 {dimension_numbers = #tpu.dot_dimension_numbers<[2], [2], [1], [1], [0, 0, 0, 1, 1, 1], [0], [0]>} : vector<4x8x8xf32>, vector<4x8x8xf32>, vector<4x8x8xf32> -> vector<4x8x8xf32>
    "tpu.trace_stop"() : () -> ()
    %cst_34 = arith.constant 0.353553385 : f32
    %76 = vector.broadcast %cst_34 : f32 to vector<4x8x8xf32>
    %77 = arith.mulf %75, %76 : vector<4x8x8xf32>
    %cst_35 = arith.constant dense<0xFF800000> : vector<4x8xf32>
    %78 = vector.multi_reduction <maximumf>, %77, %cst_35 [2] : vector<4x8x8xf32> to vector<4x8xf32>
    %79 = vector.shape_cast %78 : vector<4x8xf32> to vector<4x8x1xf32>
    %80 = vector.broadcast %79 : vector<4x8x1xf32> to vector<4x8x8xf32>
    %81 = arith.subf %77, %80 : vector<4x8x8xf32>
    %82 = math.exp %81 : vector<4x8x8xf32>
    %cst_36 = arith.constant dense<0.000000e+00> : vector<4x8xf32>
    %83 = vector.multi_reduction <add>, %82, %cst_36 [2] : vector<4x8x8xf32> to vector<4x8xf32>
    %84 = vector.shape_cast %83 : vector<4x8xf32> to vector<4x8x1xf32>
    %85 = tpu.reciprocal %84 {approx = true} : vector<4x8x1xf32> -> vector<4x8x1xf32>
    %86 = vector.broadcast %85 : vector<4x8x1xf32> to vector<4x8x8xf32>
    %87 = arith.mulf %82, %86 : vector<4x8x8xf32>
    %88 = vector.extract_strided_slice %38 {offsets = [0, 0, 16], sizes = [4, 8, 8], strides = [1, 1, 1]} : vector<4x8x32xf32> to vector<4x8x8xf32>
    "tpu.trace_start"() <{level = 10 : i32, message = "bts,bsd->btd"}> : () -> ()
    %cst_37 = arith.constant dense<0.000000e+00> : vector<4x8x8xf32>
    %89 = tpu.matmul %87, %88, %cst_37 {dimension_numbers = #tpu.dot_dimension_numbers<[2], [1], [1], [2], [0, 0, 0, 1, 1, 2], [0], [0]>} : vector<4x8x8xf32>, vector<4x8x8xf32>, vector<4x8x8xf32> -> vector<4x8x8xf32>
    "tpu.trace_stop"() : () -> ()
    %90 = vector.extract_strided_slice %36 {offsets = [0, 0, 24], sizes = [4, 8, 8], strides = [1, 1, 1]} : vector<4x8x32xf32> to vector<4x8x8xf32>
    %91 = vector.extract_strided_slice %37 {offsets = [0, 0, 24], sizes = [4, 8, 8], strides = [1, 1, 1]} : vector<4x8x32xf32> to vector<4x8x8xf32>
    "tpu.trace_start"() <{level = 10 : i32, message = "btd,bsd->bts"}> : () -> ()
    %cst_38 = arith.constant dense<0.000000e+00> : vector<4x8x8xf32>
    %92 = tpu.matmul %90, %91, %cst_38 {dimension_numbers = #tpu.dot_dimension_numbers<[2], [2], [1], [1], [0, 0, 0, 1, 1, 1], [0], [0]>} : vector<4x8x8xf32>, vector<4x8x8xf32>, vector<4x8x8xf32> -> vector<4x8x8xf32>
    "tpu.trace_stop"() : () -> ()
    %cst_39 = arith.constant 0.353553385 : f32
    %93 = vector.broadcast %cst_39 : f32 to vector<4x8x8xf32>
    %94 = arith.mulf %92, %93 : vector<4x8x8xf32>
    %cst_40 = arith.constant dense<0xFF800000> : vector<4x8xf32>
    %95 = vector.multi_reduction <maximumf>, %94, %cst_40 [2] : vector<4x8x8xf32> to vector<4x8xf32>
    %96 = vector.shape_cast %95 : vector<4x8xf32> to vector<4x8x1xf32>
    %97 = vector.broadcast %96 : vector<4x8x1xf32> to vector<4x8x8xf32>
    %98 = arith.subf %94, %97 : vector<4x8x8xf32>
    %99 = math.exp %98 : vector<4x8x8xf32>
    %cst_41 = arith.constant dense<0.000000e+00> : vector<4x8xf32>
    %100 = vector.multi_reduction <add>, %99, %cst_41 [2] : vector<4x8x8xf32> to vector<4x8xf32>
    %101 = vector.shape_cast %100 : vector<4x8xf32> to vector<4x8x1xf32>
    %102 = tpu.reciprocal %101 {approx = true} : vector<4x8x1xf32> -> vector<4x8x1xf32>
    %103 = vector.broadcast %102 : vector<4x8x1xf32> to vector<4x8x8xf32>
    %104 = arith.mulf %99, %103 : vector<4x8x8xf32>
    %105 = vector.extract_strided_slice %38 {offsets = [0, 0, 24], sizes = [4, 8, 8], strides = [1, 1, 1]} : vector<4x8x32xf32> to vector<4x8x8xf32>
    "tpu.trace_start"() <{level = 10 : i32, message = "bts,bsd->btd"}> : () -> ()
    %cst_42 = arith.constant dense<0.000000e+00> : vector<4x8x8xf32>
    %106 = tpu.matmul %104, %105, %cst_42 {dimension_numbers = #tpu.dot_dimension_numbers<[2], [1], [1], [2], [0, 0, 0, 1, 1, 2], [0], [0]>} : vector<4x8x8xf32>, vector<4x8x8xf32>, vector<4x8x8xf32> -> vector<4x8x8xf32>
    "tpu.trace_stop"() : () -> ()
    %107 = tpu.concatenate %55, %72, %89, %106 in 2 : vector<4x8x8xf32>, vector<4x8x8xf32>, vector<4x8x8xf32>, vector<4x8x8xf32> -> vector<4x8x32xf32>
    %108 = vector.shape_cast %107 : vector<4x8x32xf32> to vector<32x32xf32>
    %c0_43 = arith.constant 0 : index
    %c0_44 = arith.constant 0 : index
    %109 = vector.load %arg8[%c0_43, %c0_44] : memref<32x32xf32, #tpu.memory_space<vmem>>, vector<32x32xf32>
    %cst_45 = arith.constant dense<0.000000e+00> : vector<32x32xf32>
    %110 = tpu.matmul %108, %109, %cst_45 {dimension_numbers = #tpu.dot_dimension_numbers<[1], [0], [0], [1], [0, 0, 1, 1], [], []>} : vector<32x32xf32>, vector<32x32xf32>, vector<32x32xf32> -> vector<32x32xf32>
    %111 = arith.addf %1, %110 : vector<32x32xf32>
    %c0_46 = arith.constant 0 : index
    %c0_47 = arith.constant 0 : index
    %112 = vector.load %arg9[%c0_46, %c0_47] : memref<1x32xf32, #tpu.memory_space<vmem>>, vector<1x32xf32>
    %113 = vector.broadcast %112 : vector<1x32xf32> to vector<32x32xf32>
    %114 = arith.addf %111, %113 : vector<32x32xf32>
    %c0_48 = arith.constant 0 : index
    %c0_49 = arith.constant 0 : index
    %115 = vector.load %arg10[%c0_48, %c0_49] : memref<1x32xf32, #tpu.memory_space<vmem>>, vector<1x32xf32>
    %c0_50 = arith.constant 0 : index
    %c0_51 = arith.constant 0 : index
    %116 = vector.load %arg11[%c0_50, %c0_51] : memref<1x32xf32, #tpu.memory_space<vmem>>, vector<1x32xf32>
    %cst_52 = arith.constant dense<0.000000e+00> : vector<32xf32>
    %117 = vector.multi_reduction <add>, %114, %cst_52 [1] : vector<32x32xf32> to vector<32xf32>
    %118 = vector.shape_cast %117 : vector<32xf32> to vector<32x1xf32>
    %cst_53 = arith.constant 3.200000e+01 : f32
    %119 = vector.broadcast %cst_53 : f32 to vector<32x1xf32>
    %120 = arith.divf %118, %119 : vector<32x1xf32>
    %121 = vector.broadcast %120 : vector<32x1xf32> to vector<32x32xf32>
    %122 = arith.subf %114, %121 : vector<32x32xf32>
    %123 = arith.mulf %122, %122 : vector<32x32xf32>
    %cst_54 = arith.constant dense<0.000000e+00> : vector<32xf32>
    %124 = vector.multi_reduction <add>, %123, %cst_54 [1] : vector<32x32xf32> to vector<32xf32>
    %125 = vector.shape_cast %124 : vector<32xf32> to vector<32x1xf32>
    %cst_55 = arith.constant 3.200000e+01 : f32
    %126 = vector.broadcast %cst_55 : f32 to vector<32x1xf32>
    %127 = arith.divf %125, %126 : vector<32x1xf32>
    %cst_56 = arith.constant 9.99999974E-6 : f32
    %128 = vector.broadcast %cst_56 : f32 to vector<32x1xf32>
    %129 = arith.addf %127, %128 : vector<32x1xf32>
    %130 = math.rsqrt %129 : vector<32x1xf32>
    %131 = vector.broadcast %130 : vector<32x1xf32> to vector<32x32xf32>
    %132 = arith.mulf %122, %131 : vector<32x32xf32>
    %133 = vector.broadcast %115 : vector<1x32xf32> to vector<32x32xf32>
    %134 = arith.mulf %132, %133 : vector<32x32xf32>
    %135 = vector.broadcast %116 : vector<1x32xf32> to vector<32x32xf32>
    %136 = arith.addf %134, %135 : vector<32x32xf32>
    %c0_57 = arith.constant 0 : index
    %c0_58 = arith.constant 0 : index
    %137 = vector.load %arg12[%c0_57, %c0_58] : memref<32x128xf32, #tpu.memory_space<vmem>>, vector<32x128xf32>
    %cst_59 = arith.constant dense<0.000000e+00> : vector<32x128xf32>
    %138 = tpu.matmul %136, %137, %cst_59 {dimension_numbers = #tpu.dot_dimension_numbers<[1], [0], [0], [1], [0, 0, 1, 1], [], []>} : vector<32x32xf32>, vector<32x128xf32>, vector<32x128xf32> -> vector<32x128xf32>
    %c0_60 = arith.constant 0 : index
    %c0_61 = arith.constant 0 : index
    %139 = vector.load %arg13[%c0_60, %c0_61] : memref<1x128xf32, #tpu.memory_space<vmem>>, vector<1x128xf32>
    %140 = vector.broadcast %139 : vector<1x128xf32> to vector<32x128xf32>
    %141 = arith.addf %138, %140 : vector<32x128xf32>
    %cst_62 = arith.constant 5.000000e-01 : f32
    %142 = vector.broadcast %cst_62 : f32 to vector<32x128xf32>
    %143 = arith.mulf %142, %141 : vector<32x128xf32>
    %cst_63 = arith.constant 4.471500e-02 : f32
    %144 = vector.broadcast %cst_63 : f32 to vector<32x128xf32>
    %145 = arith.mulf %144, %141 : vector<32x128xf32>
    %146 = arith.mulf %145, %141 : vector<32x128xf32>
    %147 = arith.mulf %146, %141 : vector<32x128xf32>
    %148 = arith.addf %141, %147 : vector<32x128xf32>
    %cst_64 = arith.constant 0.797884583 : f32
    %149 = vector.broadcast %cst_64 : f32 to vector<32x128xf32>
    %150 = arith.mulf %149, %148 : vector<32x128xf32>
    %151 = math.tanh %150 : vector<32x128xf32>
    %cst_65 = arith.constant 1.000000e+00 : f32
    %152 = vector.broadcast %cst_65 : f32 to vector<32x128xf32>
    %153 = arith.addf %152, %151 : vector<32x128xf32>
    %154 = arith.mulf %143, %153 : vector<32x128xf32>
    %c0_66 = arith.constant 0 : index
    %c0_67 = arith.constant 0 : index
    %155 = vector.load %arg14[%c0_66, %c0_67] : memref<128x32xf32, #tpu.memory_space<vmem>>, vector<128x32xf32>
    %cst_68 = arith.constant dense<0.000000e+00> : vector<32x32xf32>
    %156 = tpu.matmul %154, %155, %cst_68 {dimension_numbers = #tpu.dot_dimension_numbers<[1], [0], [0], [1], [0, 0, 1, 1], [], []>} : vector<32x128xf32>, vector<128x32xf32>, vector<32x32xf32> -> vector<32x32xf32>
    %157 = arith.addf %114, %156 : vector<32x32xf32>
    %c0_69 = arith.constant 0 : index
    %c0_70 = arith.constant 0 : index
    %158 = vector.load %arg15[%c0_69, %c0_70] : memref<1x32xf32, #tpu.memory_space<vmem>>, vector<1x32xf32>
    %159 = vector.broadcast %158 : vector<1x32xf32> to vector<32x32xf32>
    %160 = arith.addf %157, %159 : vector<32x32xf32>
    %161 = vector.shape_cast %160 : vector<32x32xf32> to vector<4x8x32xf32>
    %c0_71 = arith.constant 0 : index
    %c0_72 = arith.constant 0 : index
    %c0_73 = arith.constant 0 : index
    %162 = vector.load %arg18[%c0_71, %c0_72, %c0_73] : memref<4x8x32xf32, #tpu.memory_space<vmem>>, vector<4x8x32xf32>
    tpu.vector_store %arg18[%c0_71, %c0_72, %c0_73], %161 {strides = array<i32>} : memref<4x8x32xf32, #tpu.memory_space<vmem>>, vector<4x8x32xf32>,
    return
  }
}

module attributes {stable_mosaic.version = 11 : i64} {
  func.func @_upsample_kernel(%arg0: memref<4x15x32xf32, #tpu.memory_space<vmem>>, %arg1: memref<160x64xf32, #tpu.memory_space<vmem>>, %arg2: memref<1x64xf32, #tpu.memory_space<vmem>>, %arg3: memref<4x17x64xf32, #tpu.memory_space<vmem>>) attributes {dimension_semantics = [], scalar_prefetch = 0 : i64, scratch_operands = 0 : i64, tpu.core_type = #tpu.core_type<tc>} {
    %c0 = arith.constant 0 : index
    %c0_0 = arith.constant 0 : index
    %c0_1 = arith.constant 0 : index
    %0 = vector.load %arg0[%c0, %c0_0, %c0_1] : memref<4x15x32xf32, #tpu.memory_space<vmem>>, vector<4x15x32xf32>
    %cst = arith.constant 0.000000e+00 : f32
    %1 = vector.broadcast %cst : f32 to vector<4x3x32xf32>
    %cst_2 = arith.constant 0.000000e+00 : f32
    %2 = vector.broadcast %cst_2 : f32 to vector<4x10x32xf32>
    %3 = tpu.concatenate %1, %0, %2 in 1 : vector<4x3x32xf32>, vector<4x15x32xf32>, vector<4x10x32xf32> -> vector<4x28x32xf32>
    %4 = vector.extract_strided_slice %3 {offsets = [0, 0, 0], sizes = [4, 24, 32], strides = [1, 1, 1]} : vector<4x28x32xf32> to vector<4x24x32xf32>
    %5 = vector.extract_strided_slice %3 {offsets = [0, 1, 0], sizes = [4, 24, 32], strides = [1, 1, 1]} : vector<4x28x32xf32> to vector<4x24x32xf32>
    %6 = vector.extract_strided_slice %3 {offsets = [0, 2, 0], sizes = [4, 24, 32], strides = [1, 1, 1]} : vector<4x28x32xf32> to vector<4x24x32xf32>
    %7 = vector.extract_strided_slice %3 {offsets = [0, 3, 0], sizes = [4, 24, 32], strides = [1, 1, 1]} : vector<4x28x32xf32> to vector<4x24x32xf32>
    %8 = vector.extract_strided_slice %3 {offsets = [0, 4, 0], sizes = [4, 24, 32], strides = [1, 1, 1]} : vector<4x28x32xf32> to vector<4x24x32xf32>
    %9 = tpu.concatenate %4, %5, %6, %7, %8 in 2 : vector<4x24x32xf32>, vector<4x24x32xf32>, vector<4x24x32xf32>, vector<4x24x32xf32>, vector<4x24x32xf32> -> vector<4x24x160xf32>
    %10 = vector.shape_cast %9 : vector<4x24x160xf32> to vector<96x160xf32>
    %c0_3 = arith.constant 0 : index
    %c0_4 = arith.constant 0 : index
    %11 = vector.load %arg1[%c0_3, %c0_4] : memref<160x64xf32, #tpu.memory_space<vmem>>, vector<160x64xf32>
    %cst_5 = arith.constant dense<0.000000e+00> : vector<96x64xf32>
    %12 = tpu.matmul %10, %11, %cst_5 {dimension_numbers = #tpu.dot_dimension_numbers<[1], [0], [0], [1], [0, 0, 1, 1], [], []>} : vector<96x160xf32>, vector<160x64xf32>, vector<96x64xf32> -> vector<96x64xf32>
    %c0_6 = arith.constant 0 : index
    %c0_7 = arith.constant 0 : index
    %13 = vector.load %arg2[%c0_6, %c0_7] : memref<1x64xf32, #tpu.memory_space<vmem>>, vector<1x64xf32>
    %14 = vector.broadcast %13 : vector<1x64xf32> to vector<96x64xf32>
    %15 = arith.addf %12, %14 : vector<96x64xf32>
    %16 = vector.shape_cast %15 : vector<96x64xf32> to vector<4x24x64xf32>
    %17 = vector.extract_strided_slice %16 {offsets = [0, 0, 0], sizes = [4, 17, 64], strides = [1, 1, 1]} : vector<4x24x64xf32> to vector<4x17x64xf32>
    %c0_8 = arith.constant 0 : index
    %c0_9 = arith.constant 0 : index
    %c0_10 = arith.constant 0 : index
    %18 = vector.load %arg3[%c0_8, %c0_9, %c0_10] : memref<4x17x64xf32, #tpu.memory_space<vmem>>, vector<4x17x64xf32>
    tpu.vector_store %arg3[%c0_8, %c0_9, %c0_10], %17 {strides = array<i32>} : memref<4x17x64xf32, #tpu.memory_space<vmem>>, vector<4x17x64xf32>,
    return
  }
}

module attributes {stable_mosaic.version = 11 : i64} {
  func.func @_final_kernel(%arg0: memref<40x64xf32, #tpu.memory_space<vmem>>, %arg1: memref<64x128xf32, #tpu.memory_space<vmem>>, %arg2: memref<1x128xf32, #tpu.memory_space<vmem>>, %arg3: memref<40x128xf32, #tpu.memory_space<vmem>>, %arg4: memref<40x128xf32, #tpu.memory_space<vmem>>) attributes {dimension_semantics = [], scalar_prefetch = 0 : i64, scratch_operands = 0 : i64, tpu.core_type = #tpu.core_type<tc>} {
    %c0 = arith.constant 0 : index
    %c0_0 = arith.constant 0 : index
    %0 = vector.load %arg0[%c0, %c0_0] : memref<40x64xf32, #tpu.memory_space<vmem>>, vector<40x64xf32>
    %c0_1 = arith.constant 0 : index
    %c0_2 = arith.constant 0 : index
    %1 = vector.load %arg1[%c0_1, %c0_2] : memref<64x128xf32, #tpu.memory_space<vmem>>, vector<64x128xf32>
    %cst = arith.constant dense<0.000000e+00> : vector<40x128xf32>
    %2 = tpu.matmul %0, %1, %cst {dimension_numbers = #tpu.dot_dimension_numbers<[1], [0], [0], [1], [0, 0, 1, 1], [], []>} : vector<40x64xf32>, vector<64x128xf32>, vector<40x128xf32> -> vector<40x128xf32>
    %c0_3 = arith.constant 0 : index
    %c0_4 = arith.constant 0 : index
    %3 = vector.load %arg2[%c0_3, %c0_4] : memref<1x128xf32, #tpu.memory_space<vmem>>, vector<1x128xf32>
    %4 = vector.broadcast %3 : vector<1x128xf32> to vector<40x128xf32>
    %5 = arith.addf %2, %4 : vector<40x128xf32>
    %cst_5 = arith.constant dense<0xFF800000> : vector<40xf32>
    %6 = vector.multi_reduction <maximumf>, %5, %cst_5 [1] : vector<40x128xf32> to vector<40xf32>
    %7 = vector.shape_cast %6 : vector<40xf32> to vector<40x1xf32>
    %8 = vector.broadcast %7 : vector<40x1xf32> to vector<40x128xf32>
    %9 = arith.subf %5, %8 : vector<40x128xf32>
    %10 = math.exp %9 : vector<40x128xf32>
    %cst_6 = arith.constant dense<0.000000e+00> : vector<40xf32>
    %11 = vector.multi_reduction <add>, %10, %cst_6 [1] : vector<40x128xf32> to vector<40xf32>
    %12 = vector.shape_cast %11 : vector<40xf32> to vector<40x1xf32>
    %13 = math.log %12 : vector<40x1xf32>
    %c0_7 = arith.constant 0 : index
    %c0_8 = arith.constant 0 : index
    %14 = vector.load %arg3[%c0_7, %c0_8] : memref<40x128xf32, #tpu.memory_space<vmem>>, vector<40x128xf32>
    tpu.vector_store %arg3[%c0_7, %c0_8], %5 {strides = array<i32>} : memref<40x128xf32, #tpu.memory_space<vmem>>, vector<40x128xf32>,
    %15 = vector.broadcast %13 : vector<40x1xf32> to vector<40x128xf32>
    %16 = arith.subf %9, %15 : vector<40x128xf32>
    %c0_9 = arith.constant 0 : index
    %c0_10 = arith.constant 0 : index
    %17 = vector.load %arg4[%c0_9, %c0_10] : memref<40x128xf32, #tpu.memory_space<vmem>>, vector<40x128xf32>
    tpu.vector_store %arg4[%c0_9, %c0_10], %16 {strides = array<i32>} : memref<40x128xf32, #tpu.memory_space<vmem>>, vector<40x128xf32>,
    return
  }
}

</mosaic_0001>

<llo_original>
// kernel: model_forward.8
$region0: #{model_forward.8}
  #allocation0 [shape = 'u32[]', space=smem, size = 0x4, offset = 0x4, fixed_abs, tag = 'smem constant byte address 0x4 - core index']
  #allocation1 [shape = 'u32[144,128]{1,0:T(1,128)}', space=vmem, size = 0x12000, scoped, tag = 'internal scratch']
  %s0 = inlined_call_operand.vmem [shape: f32[4,15,32], index: 0, kind: input, shape index: {}]
  %s1 = inlined_call_operand.vmem [shape: f32[160,64], index: 1, kind: input, shape index: {}]
  %s2 = inlined_call_operand.vmem [shape: f32[1,64], index: 2, kind: input, shape index: {}]
  %s3 = inlined_call_operand.vmem [shape: f32[4,17,64], index: 3, kind: output, shape index: {}]
  %s4 = sld [smem:[#allocation0]]
  $region22: #{model_forward.8} parent=0
    _
  %s6 = ssub.s32 1, %s4
  %s7 = scalar_select 0, %s6, %s4
  // Predicated region
  $region2: #{model_forward.8} parent=0 // pred_check
    _
  $region3: #{model_forward.8} parent=0 // pred_check_branch
    %9 = sbr.rel (0) target = $region5
  $region4: #{model_forward.8} parent=0 // pred_region
    _
  $region5: #{model_forward.8} parent=0 // pred_fallthru
    _
  // Predicated region
  $region6: #{model_forward.8} parent=0 // pred_check
    _
  $region7: #{model_forward.8} parent=0 // pred_check_branch
    %11 = sbr.rel (0) target = $region9
  $region8: #{model_forward.8} parent=0 // pred_region
    _
  $region9: #{model_forward.8} parent=0 // pred_fallthru
    _
  // Predicated region
  $region10: #{model_forward.8} parent=0 // pred_check
    _
  $region11: #{model_forward.8} parent=0 // pred_check_branch
    %13 = sbr.rel (0) target = $region13
  $region12: #{model_forward.8} parent=0 // pred_region
    _
  $region13: #{model_forward.8} parent=0 // pred_fallthru
    _
  %v14 = vld [vmem:[%s0] sm:$0xff]
  %v15 = vld [vmem:[%s0 + $0x8] sm:$0x7f]
  %v16 = vld [vmem:[%s0 + $0x10] sm:$0xff]
  %v17 = vld [vmem:[%s0 + $0x18] sm:$0x7f]
  %v18 = vld [vmem:[%s0 + $0x20] sm:$0xff]
  %v19 = vld [vmem:[%s0 + $0x28] sm:$0x7f]
  %v20 = vld [vmem:[%s0 + $0x30] sm:$0xff]
  %v21 = vld [vmem:[%s0 + $0x38] sm:$0x7f]
  %vm30 = vcmask 1042432
  %v31 = vrot.slane %v14, 5
  %v32 = vrot.slane %v15, 5
  %v33 = vsel %vm30, %v31, %v32
  %v34 = vrot.slane %v16, 5
  %v35 = vrot.slane %v17, 5
  %v36 = vsel %vm30, %v34, %v35
  %v37 = vrot.slane %v18, 5
  %v38 = vrot.slane %v19, 5
  %v39 = vsel %vm30, %v37, %v38
  %v40 = vrot.slane %v20, 5
  %v41 = vrot.slane %v21, 5
  %v42 = vsel %vm30, %v40, %v41
  %v55 = vsel %vm30, 0.0, %v31
  %v56 = vsel %vm30, 0.0, %v34
  %v57 = vsel %vm30, 0.0, %v37
  %v58 = vsel %vm30, 0.0, %v40
  %vm59 = vcmask 1041408
  %v60 = vsel %vm59, %v32, 0.0
  %v61 = vsel %vm59, %v35, 0.0
  %v62 = vsel %vm59, %v38, 0.0
  %v63 = vsel %vm59, %v41, 0.0
  %vm73 = vcmask 1046528
  %v74 = vrot.slane %v55, 1
  %v75 = vrot.slane %v33, 1
  %v76 = vsel %vm73, %v74, %v75
  %v77 = vrot.slane %v60, 1
  %v78 = vsel %vm73, %v75, %v77
  %v79 = vrot.slane 0.0, 1
  %v80 = vsel %vm73, %v77, %v79
  %v81 = vrot.slane %v56, 1
  %v82 = vrot.slane %v36, 1
  %v83 = vsel %vm73, %v81, %v82
  %v84 = vrot.slane %v61, 1
  %v85 = vsel %vm73, %v82, %v84
  %v86 = vsel %vm73, %v84, %v79
  %v87 = vrot.slane %v57, 1
  %v88 = vrot.slane %v39, 1
  %v89 = vsel %vm73, %v87, %v88
  %v90 = vrot.slane %v62, 1
  %v91 = vsel %vm73, %v88, %v90
  %v92 = vsel %vm73, %v90, %v79
  %v93 = vrot.slane %v58, 1
  %v94 = vrot.slane %v42, 1
  %v95 = vsel %vm73, %v93, %v94
  %v96 = vrot.slane %v63, 1
  %v97 = vsel %vm73, %v94, %v96
  %v98 = vsel %vm73, %v96, %v79
  %99 = vrot.lane.b32.xlu0 %v76, 32
  %v100 = vpop.permute.xlu0 %99
  %101 = vrot.lane.b32.xlu0 %v78, 32
  %v102 = vpop.permute.xlu0 %101
  %103 = vrot.lane.b32.xlu0 %v80, 32
  %v104 = vpop.permute.xlu0 %103
  %105 = vrot.lane.b32.xlu0 %v83, 32
  %v106 = vpop.permute.xlu0 %105
  %107 = vrot.lane.b32.xlu0 %v85, 32
  %v108 = vpop.permute.xlu0 %107
  %109 = vrot.lane.b32.xlu0 %v86, 32
  %v110 = vpop.permute.xlu0 %109
  %111 = vrot.lane.b32.xlu0 %v89, 32
  %v112 = vpop.permute.xlu0 %111
  %113 = vrot.lane.b32.xlu0 %v91, 32
  %v114 = vpop.permute.xlu0 %113
  %115 = vrot.lane.b32.xlu0 %v92, 32
  %v116 = vpop.permute.xlu0 %115
  %117 = vrot.lane.b32.xlu0 %v95, 32
  %v118 = vpop.permute.xlu0 %117
  %119 = vrot.lane.b32.xlu0 %v97, 32
  %v120 = vpop.permute.xlu0 %119
  %121 = vrot.lane.b32.xlu0 %v98, 32
  %v122 = vpop.permute.xlu0 %121
  %vm135 = vcmask 1045504
  %v136 = vrot.slane %v55, 2
  %v137 = vrot.slane %v33, 2
  %v138 = vsel %vm135, %v136, %v137
  %v139 = vrot.slane %v60, 2
  %v140 = vsel %vm135, %v137, %v139
  %v141 = vrot.slane 0.0, 2
  %v142 = vsel %vm135, %v139, %v141
  %v143 = vrot.slane %v56, 2
  %v144 = vrot.slane %v36, 2
  %v145 = vsel %vm135, %v143, %v144
  %v146 = vrot.slane %v61, 2
  %v147 = vsel %vm135, %v144, %v146
  %v148 = vsel %vm135, %v146, %v141
  %v149 = vrot.slane %v57, 2
  %v150 = vrot.slane %v39, 2
  %v151 = vsel %vm135, %v149, %v150
  %v152 = vrot.slane %v62, 2
  %v153 = vsel %vm135, %v150, %v152
  %v154 = vsel %vm135, %v152, %v141
  %v155 = vrot.slane %v58, 2
  %v156 = vrot.slane %v42, 2
  %v157 = vsel %vm135, %v155, %v156
  %v158 = vrot.slane %v63, 2
  %v159 = vsel %vm135, %v156, %v158
  %v160 = vsel %vm135, %v158, %v141
  %161 = vrot.lane.b32.xlu0 %v138, 64
  %v162 = vpop.permute.xlu0 %161
  %163 = vrot.lane.b32.xlu0 %v140, 64
  %v164 = vpop.permute.xlu0 %163
  %165 = vrot.lane.b32.xlu0 %v142, 64
  %v166 = vpop.permute.xlu0 %165
  %167 = vrot.lane.b32.xlu0 %v145, 64
  %v168 = vpop.permute.xlu0 %167
  %169 = vrot.lane.b32.xlu0 %v147, 64
  %v170 = vpop.permute.xlu0 %169
  %171 = vrot.lane.b32.xlu0 %v148, 64
  %v172 = vpop.permute.xlu0 %171
  %173 = vrot.lane.b32.xlu0 %v151, 64
  %v174 = vpop.permute.xlu0 %173
  %175 = vrot.lane.b32.xlu0 %v153, 64
  %v176 = vpop.permute.xlu0 %175
  %177 = vrot.lane.b32.xlu0 %v154, 64
  %v178 = vpop.permute.xlu0 %177
  %179 = vrot.lane.b32.xlu0 %v157, 64
  %v180 = vpop.permute.xlu0 %179
  %181 = vrot.lane.b32.xlu0 %v159, 64
  %v182 = vpop.permute.xlu0 %181
  %183 = vrot.lane.b32.xlu0 %v160, 64
  %v184 = vpop.permute.xlu0 %183
  %vm197 = vcmask 1044480
  %v198 = vrot.slane %v55, 3
  %v199 = vrot.slane %v33, 3
  %v200 = vsel %vm197, %v198, %v199
  %v201 = vrot.slane %v60, 3
  %v202 = vsel %vm197, %v199, %v201
  %v203 = vrot.slane 0.0, 3
  %v204 = vsel %vm197, %v201, %v203
  %v205 = vrot.slane %v56, 3
  %v206 = vrot.slane %v36, 3
  %v207 = vsel %vm197, %v205, %v206
  %v208 = vrot.slane %v61, 3
  %v209 = vsel %vm197, %v206, %v208
  %v210 = vsel %vm197, %v208, %v203
  %v211 = vrot.slane %v57, 3
  %v212 = vrot.slane %v39, 3
  %v213 = vsel %vm197, %v211, %v212
  %v214 = vrot.slane %v62, 3
  %v215 = vsel %vm197, %v212, %v214
  %v216 = vsel %vm197, %v214, %v203
  %v217 = vrot.slane %v58, 3
  %v218 = vrot.slane %v42, 3
  %v219 = vsel %vm197, %v217, %v218
  %v220 = vrot.slane %v63, 3
  %v221 = vsel %vm197, %v218, %v220
  %v222 = vsel %vm197, %v220, %v203
  %223 = vrot.lane.b32.xlu0 %v200, 96
  %v224 = vpop.permute.xlu0 %223
  %225 = vrot.lane.b32.xlu0 %v202, 96
  %v226 = vpop.permute.xlu0 %225
  %227 = vrot.lane.b32.xlu0 %v204, 96
  %v228 = vpop.permute.xlu0 %227
  %229 = vrot.lane.b32.xlu0 %v207, 96
  %v230 = vpop.permute.xlu0 %229
  %231 = vrot.lane.b32.xlu0 %v209, 96
  %v232 = vpop.permute.xlu0 %231
  %233 = vrot.lane.b32.xlu0 %v210, 96
  %v234 = vpop.permute.xlu0 %233
  %235 = vrot.lane.b32.xlu0 %v213, 96
  %v236 = vpop.permute.xlu0 %235
  %237 = vrot.lane.b32.xlu0 %v215, 96
  %v238 = vpop.permute.xlu0 %237
  %239 = vrot.lane.b32.xlu0 %v216, 96
  %v240 = vpop.permute.xlu0 %239
  %241 = vrot.lane.b32.xlu0 %v219, 96
  %v242 = vpop.permute.xlu0 %241
  %243 = vrot.lane.b32.xlu0 %v221, 96
  %v244 = vpop.permute.xlu0 %243
  %245 = vrot.lane.b32.xlu0 %v222, 96
  %v246 = vpop.permute.xlu0 %245
  %vm259 = vcmask 1043456
  %v260 = vrot.slane %v55, 4
  %v261 = vrot.slane %v33, 4
  %v262 = vsel %vm259, %v260, %v261
  %v263 = vrot.slane %v60, 4
  %v264 = vsel %vm259, %v261, %v263
  %v265 = vrot.slane 0.0, 4
  %v266 = vsel %vm259, %v263, %v265
  %v267 = vrot.slane %v56, 4
  %v268 = vrot.slane %v36, 4
  %v269 = vsel %vm259, %v267, %v268
  %v270 = vrot.slane %v61, 4
  %v271 = vsel %vm259, %v268, %v270
  %v272 = vsel %vm259, %v270, %v265
  %v273 = vrot.slane %v57, 4
  %v274 = vrot.slane %v39, 4
  %v275 = vsel %vm259, %v273, %v274
  %v276 = vrot.slane %v62, 4
  %v277 = vsel %vm259, %v274, %v276
  %v278 = vsel %vm259, %v276, %v265
  %v279 = vrot.slane %v58, 4
  %v280 = vrot.slane %v42, 4
  %v281 = vsel %vm259, %v279, %v280
  %v282 = vrot.slane %v63, 4
  %v283 = vsel %vm259, %v280, %v282
  %v284 = vsel %vm259, %v282, %v265
  %vm285 = vcmask 261120
  %v286 = vsel %vm285, %v55, %v100
  %v287 = vsel %vm285, %v33, %v102
  %v288 = vsel %vm285, %v60, %v104
  %v289 = vsel %vm285, %v56, %v106
  %v290 = vsel %vm285, %v36, %v108
  %v291 = vsel %vm285, %v61, %v110
  %v292 = vsel %vm285, %v57, %v112
  %v293 = vsel %vm285, %v39, %v114
  %v294 = vsel %vm285, %v62, %v116
  %v295 = vsel %vm285, %v58, %v118
  %v296 = vsel %vm285, %v42, %v120
  %v297 = vsel %vm285, %v63, %v122
  %vm298 = vcmask 523264
  %v299 = vsel %vm298, %v286, %v162
  %v300 = vsel %vm298, %v287, %v164
  %v301 = vsel %vm298, %v288, %v166
  %v302 = vsel %vm298, %v289, %v168
  %v303 = vsel %vm298, %v290, %v170
  %v304 = vsel %vm298, %v291, %v172
  %v305 = vsel %vm298, %v292, %v174
  %v306 = vsel %vm298, %v293, %v176
  %v307 = vsel %vm298, %v294, %v178
  %v308 = vsel %vm298, %v295, %v180
  %v309 = vsel %vm298, %v296, %v182
  %v310 = vsel %vm298, %v297, %v184
  %vm311 = vcmask 785408
  %v312 = vsel %vm311, %v299, %v224
  %v313 = vsel %vm311, %v300, %v226
  %v314 = vsel %vm311, %v301, %v228
  %v315 = vsel %vm311, %v302, %v230
  %v316 = vsel %vm311, %v303, %v232
  %v317 = vsel %vm311, %v304, %v234
  %v318 = vsel %vm311, %v305, %v236
  %v319 = vsel %vm311, %v306, %v238
  %v320 = vsel %vm311, %v307, %v240
  %v321 = vsel %vm311, %v308, %v242
  %v322 = vsel %vm311, %v309, %v244
  %v323 = vsel %vm311, %v310, %v246
  %v324 = vld [vmem:[%s1] sm:$0xff]
  %v325 = vld [vmem:[%s1 + $0x8] sm:$0xff]
  %v326 = vld [vmem:[%s1 + $0x10] sm:$0xff]
  %v327 = vld [vmem:[%s1 + $0x18] sm:$0xff]
  %v328 = vld [vmem:[%s1 + $0x20] sm:$0xff]
  %v329 = vld [vmem:[%s1 + $0x28] sm:$0xff]
  %v330 = vld [vmem:[%s1 + $0x30] sm:$0xff]
  %v331 = vld [vmem:[%s1 + $0x38] sm:$0xff]
  %v332 = vld [vmem:[%s1 + $0x40] sm:$0xff]
  %v333 = vld [vmem:[%s1 + $0x48] sm:$0xff]
  %v334 = vld [vmem:[%s1 + $0x50] sm:$0xff]
  %v335 = vld [vmem:[%s1 + $0x58] sm:$0xff]
  %v336 = vld [vmem:[%s1 + $0x60] sm:$0xff]
  %v337 = vld [vmem:[%s1 + $0x68] sm:$0xff]
  %v338 = vld [vmem:[%s1 + $0x70] sm:$0xff]
  %v339 = vld [vmem:[%s1 + $0x78] sm:$0xff]
  %v340 = vld [vmem:[%s1 + $0x80] sm:$0xff]
  %v341 = vld [vmem:[%s1 + $0x88] sm:$0xff]
  %v342 = vld [vmem:[%s1 + $0x90] sm:$0xff]
  %v343 = vld [vmem:[%s1 + $0x98] sm:$0xff]
  %v344 = vld [vmem:[%s2] sm:$0x1]
  %v346 = vlaneseq
  %v347 = vshrl.u32 %v346, 7
  %v348 = vsub.s32 0, %v347
  %v349 = vrot.slane %v344, %v348
  %v351 = vsel %vm285, %v262, 0
  %v353 = vsel %vm285, %v264, 0
  %v355 = vsel %vm285, %v266, 0
  %v357 = vsel %vm285, %v269, 0
  %v359 = vsel %vm285, %v271, 0
  %v361 = vsel %vm285, %v272, 0
  %v363 = vsel %vm285, %v275, 0
  %v365 = vsel %vm285, %v277, 0
  %v367 = vsel %vm285, %v278, 0
  %v369 = vsel %vm285, %v281, 0
  %v371 = vsel %vm285, %v283, 0
  %v373 = vsel %vm285, %v284, 0
  %375 = vmatprep.subr.mxu0 0.0
  %376 = vmatpush1.msra.mxu0 %v324
  %377 = vmatprep.subr.mxu0 0.0
  %378 = vmatpush1.msra.mxu0 %v325
  %379 = vmatprep.subr.mxu0 0.0
  %380 = vmatpush1.msra.mxu0 %v326
  %381 = vmatprep.subr.mxu0 0.0
  %382 = vmatpush1.msra.mxu0 %v327
  %383 = vmatprep.subr.mxu0 0.0
  %384 = vmatpush1.msra.mxu0 %v328
  %385 = vmatprep.subr.mxu0 0.0
  %386 = vmatpush1.msra.mxu0 %v329
  %387 = vmatprep.subr.mxu0 0.0
  %388 = vmatpush1.msra.mxu0 %v330
  %389 = vmatprep.subr.mxu0 0.0
  %390 = vmatpush1.msra.mxu0 %v331
  %391 = vmatprep.subr.mxu0 0.0
  %392 = vmatpush1.msra.mxu0 %v332
  %393 = vmatprep.subr.mxu0 0.0
  %394 = vmatpush1.msra.mxu0 %v333
  %395 = vmatprep.subr.mxu0 0.0
  %396 = vmatpush1.msra.mxu0 %v334
  %397 = vmatprep.subr.mxu0 0.0
  %398 = vmatpush1.msra.mxu0 %v335
  %399 = vmatprep.subr.mxu0 0.0
  %400 = vmatpush1.msra.mxu0 %v336
  %401 = vmatprep.subr.mxu0 0.0
  %402 = vmatpush1.msra.mxu0 %v337
  %403 = vmatprep.subr.mxu0 0.0
  %404 = vmatpush1.msra.mxu0 %v338
  %405 = vmatprep.subr.mxu0 0.0
  %406 = vmatpush1.msra.mxu0 %v339
  %407 = vmatprep.subr.mxu0 0.0
  %408 = vmatpush1.msra.mxu0 %v340
  %409 = vmatprep.subr.mxu0 0.0
  %410 = vmatpush1.msra.mxu0 %v341
  %411 = vmatprep.subr.mxu0 0.0
  %412 = vmatpush1.msra.mxu0 %v342
  %413 = vmatprep.subr.mxu0 0.0
  %414 = vmatpush1.msra.mxu0 %v343
  %415 = vmatprep.subr.mxu0 0.0
  %416 = vmatpush1.msra.mxu0 0.0
  %417 = vmatprep.subr.mxu0 0.0
  %418 = vmatpush1.msra.mxu0 0.0
  %419 = vmatprep.subr.mxu0 0.0
  %420 = vmatpush1.msra.mxu0 0.0
  %421 = vmatprep.subr.mxu0 0.0
  %422 = vmatpush1.msra.mxu0 0.0
  %423 = vmatprep.subr.mxu0 0.0
  %424 = vmatpush1.msra.mxu0 0.0
  %425 = vmatprep.subr.mxu0 0.0
  %426 = vmatpush1.msra.mxu0 0.0
  %427 = vmatprep.subr.mxu0 0.0
  %428 = vmatpush1.msra.mxu0 0.0
  %429 = vmatprep.subr.mxu0 0.0
  %430 = vmatpush1.msra.mxu0 0.0
  %431 = vmatprep.subr.mxu0 0.0
  %432 = vmatpush1.msra.mxu0 0.0
  %433 = vmatprep.subr.mxu0 0.0
  %434 = vmatpush1.msra.mxu0 0.0
  %435 = vmatprep.subr.mxu0 0.0
  %436 = vmatpush1.msra.mxu0 0.0
  %437 = vmatprep.subr.mxu0 0.0
  %438 = vmatpush1.msra.mxu0 0.0
  %439 = vmatprep.mubr.f32.mxu0 %v351
  %440 = vmatmul.mubr.f32.gmra.mrb[0].mxu0 %v312
  %v441 = vpop.f32.mrb[0].mxu0
  %v442 = vadd.f32 %v349, %v441
  %v443 = vpop.f32.mrb[0].mxu0
  %444 = vmatprep.mubr.f32.mxu0 %v353
  %445 = vmatmul.mubr.f32.gmra.mrb[0].mxu0 %v313
  %v446 = vpop.f32.mrb[0].mxu0
  %v447 = vadd.f32 %v349, %v446
  %v448 = vpop.f32.mrb[0].mxu0
  %449 = vmatprep.mubr.f32.mxu0 %v355
  %450 = vmatmul.mubr.f32.gmra.mrb[0].mxu0 %v314
  %v451 = vpop.f32.mrb[0].mxu0
  %v452 = vadd.f32 %v349, %v451
  %v453 = vpop.f32.mrb[0].mxu0
  %454 = vmatprep.mubr.f32.mxu0 %v357
  %455 = vmatmul.mubr.f32.gmra.mrb[0].mxu0 %v315
  %v456 = vpop.f32.mrb[0].mxu0
  %v457 = vadd.f32 %v349, %v456
  %v458 = vpop.f32.mrb[0].mxu0
  %459 = vmatprep.mubr.f32.mxu0 %v359
  %460 = vmatmul.mubr.f32.gmra.mrb[0].mxu0 %v316
  %v461 = vpop.f32.mrb[0].mxu0
  %v462 = vadd.f32 %v349, %v461
  %v463 = vpop.f32.mrb[0].mxu0
  %464 = vmatprep.mubr.f32.mxu0 %v361
  %465 = vmatmul.mubr.f32.gmra.mrb[0].mxu0 %v317
  %v466 = vpop.f32.mrb[0].mxu0
  %v467 = vadd.f32 %v349, %v466
  %v468 = vpop.f32.mrb[0].mxu0
  %469 = vmatprep.mubr.f32.mxu0 %v363
  %470 = vmatmul.mubr.f32.gmra.mrb[0].mxu0 %v318
  %v471 = vpop.f32.mrb[0].mxu0
  %v472 = vadd.f32 %v349, %v471
  %v473 = vpop.f32.mrb[0].mxu0
  %474 = vmatprep.mubr.f32.mxu0 %v365
  %475 = vmatmul.mubr.f32.gmra.mrb[0].mxu0 %v319
  %v476 = vpop.f32.mrb[0].mxu0
  %v477 = vadd.f32 %v349, %v476
  %v478 = vpop.f32.mrb[0].mxu0
  %479 = vmatprep.mubr.f32.mxu0 %v367
  %480 = vmatmul.mubr.f32.gmra.mrb[0].mxu0 %v320
  %v481 = vpop.f32.mrb[0].mxu0
  %v482 = vadd.f32 %v349, %v481
  %v483 = vpop.f32.mrb[0].mxu0
  %484 = vmatprep.mubr.f32.mxu0 %v369
  %485 = vmatmul.mubr.f32.gmra.mrb[0].mxu0 %v321
  %v486 = vpop.f32.mrb[0].mxu0
  %v487 = vadd.f32 %v349, %v486
  %v488 = vpop.f32.mrb[0].mxu0
  %489 = vmatprep.mubr.f32.mxu0 %v371
  %490 = vmatmul.mubr.f32.gmra.mrb[0].mxu0 %v322
  %v491 = vpop.f32.mrb[0].mxu0
  %v492 = vadd.f32 %v349, %v491
  %v493 = vpop.f32.mrb[0].mxu0
  %494 = vmatprep.mubr.f32.mxu0 %v373
  %495 = vmatmul.mubr.f32.gmra.mrb[0].mxu0 %v323
  %v496 = vpop.f32.mrb[0].mxu0
  %v497 = vadd.f32 %v349, %v496
  %v498 = vpop.f32.mrb[0].mxu0
  %499 = vdwg.mxu0
  %500 = vst.msk [vmem:[%s3] sm:$0xff] %vm298, %v442
  %501 = vst.msk [vmem:[%s3 + $0x8] sm:$0xff] %vm298, %v447
  %vm502 = vcmask 516096
  %503 = vst.msk [vmem:[%s3 + $0x10] sm:$0x1] %vm502, %v452
  %504 = vst.msk [vmem:[%s3 + $0x18] sm:$0xff] %vm298, %v457
  %505 = vst.msk [vmem:[%s3 + $0x20] sm:$0xff] %vm298, %v462
  %506 = vst.msk [vmem:[%s3 + $0x28] sm:$0x1] %vm502, %v467
  %507 = vst.msk [vmem:[%s3 + $0x30] sm:$0xff] %vm298, %v472
  %508 = vst.msk [vmem:[%s3 + $0x38] sm:$0xff] %vm298, %v477
  %509 = vst.msk [vmem:[%s3 + $0x40] sm:$0x1] %vm502, %v482
  %510 = vst.msk [vmem:[%s3 + $0x48] sm:$0xff] %vm298, %v487
  %511 = vst.msk [vmem:[%s3 + $0x50] sm:$0xff] %vm298, %v492
  %512 = vst.msk [vmem:[%s3 + $0x58] sm:$0x1] %vm502, %v497
  // Predicated region
  $region14: #{model_forward.8} parent=0 // pred_check
    _
  $region15: #{model_forward.8} parent=0 // pred_check_branch
    %514 = sbr.rel (0) target = $region17
  $region16: #{model_forward.8} parent=0 // pred_region
    _
  $region17: #{model_forward.8} parent=0 // pred_fallthru
    _
  // Predicated region
  $region18: #{model_forward.8} parent=0 // pred_check
    _
  $region19: #{model_forward.8} parent=0 // pred_check_branch
    %516 = sbr.rel (0) target = $region21
  $region20: #{model_forward.8} parent=0 // pred_region
    _
  $region21: #{model_forward.8} parent=0 // pred_fallthru
    _

// kernel: model_forward.5
$region0: #{model_forward.5}
  #allocation0 [shape = 'u32[]', space=smem, size = 0x4, offset = 0x4, fixed_abs, tag = 'smem constant byte address 0x4 - core index']
  #allocation1 [shape = 'u32[144,128]{1,0:T(1,128)}', space=vmem, size = 0x12000, scoped, tag = 'internal scratch']
  %s0 = inlined_call_operand.vmem [shape: f32[4,16,16], index: 0, kind: input, shape index: {}]
  %s1 = inlined_call_operand.vmem [shape: f32[48,32], index: 1, kind: input, shape index: {}]
  %s2 = inlined_call_operand.vmem [shape: f32[1,32], index: 2, kind: input, shape index: {}]
  %s3 = inlined_call_operand.vmem [shape: f32[96,32], index: 3, kind: input, shape index: {}]
  %s4 = inlined_call_operand.vmem [shape: f32[1,32], index: 4, kind: input, shape index: {}]
  %s5 = inlined_call_operand.vmem [shape: f32[1,16,32], index: 5, kind: input, shape index: {}]
  %s6 = inlined_call_operand.vmem [shape: f32[4,16,32], index: 6, kind: output, shape index: {}]
  %s7 = sld [smem:[#allocation0]]
  $region34: #{model_forward.5} parent=0
    _
  %s9 = ssub.s32 1, %s7
  %s10 = scalar_select 0, %s9, %s7
  // Predicated region
  $region2: #{model_forward.5} parent=0 // pred_check
    _
  $region3: #{model_forward.5} parent=0 // pred_check_branch
    %12 = sbr.rel (0) target = $region5
  $region4: #{model_forward.5} parent=0 // pred_region
    _
  $region5: #{model_forward.5} parent=0 // pred_fallthru
    _
  // Predicated region
  $region6: #{model_forward.5} parent=0 // pred_check
    _
  $region7: #{model_forward.5} parent=0 // pred_check_branch
    %14 = sbr.rel (0) target = $region9
  $region8: #{model_forward.5} parent=0 // pred_region
    _
  $region9: #{model_forward.5} parent=0 // pred_fallthru
    _
  // Predicated region
  $region10: #{model_forward.5} parent=0 // pred_check
    _
  $region11: #{model_forward.5} parent=0 // pred_check_branch
    %16 = sbr.rel (0) target = $region13
  $region12: #{model_forward.5} parent=0 // pred_region
    _
  $region13: #{model_forward.5} parent=0 // pred_fallthru
    _
  // Predicated region
  $region14: #{model_forward.5} parent=0 // pred_check
    _
  $region15: #{model_forward.5} parent=0 // pred_check_branch
    %18 = sbr.rel (0) target = $region17
  $region16: #{model_forward.5} parent=0 // pred_region
    _
  $region17: #{model_forward.5} parent=0 // pred_fallthru
    _
  // Predicated region
  $region18: #{model_forward.5} parent=0 // pred_check
    _
  $region19: #{model_forward.5} parent=0 // pred_check_branch
    %20 = sbr.rel (0) target = $region21
  $region20: #{model_forward.5} parent=0 // pred_region
    _
  $region21: #{model_forward.5} parent=0 // pred_fallthru
    _
  // Predicated region
  $region22: #{model_forward.5} parent=0 // pred_check
    _
  $region23: #{model_forward.5} parent=0 // pred_check_branch
    %22 = sbr.rel (0) target = $region25
  $region24: #{model_forward.5} parent=0 // pred_region
    _
  $region25: #{model_forward.5} parent=0 // pred_fallthru
    _
  %v23 = vld [vmem:[%s0] sm:$0xff]
  %v24 = vld [vmem:[%s0 + $0x8] sm:$0xff]
  %v25 = vld [vmem:[%s0 + $0x10] sm:$0xff]
  %v26 = vld [vmem:[%s0 + $0x18] sm:$0xff]
  %v27 = vld [vmem:[%s0 + $0x20] sm:$0xff]
  %v28 = vld [vmem:[%s0 + $0x28] sm:$0xff]
  %v29 = vld [vmem:[%s0 + $0x30] sm:$0xff]
  %v30 = vld [vmem:[%s0 + $0x38] sm:$0xff]
  %vm39 = vcmask 1040384
  %v40 = vrot.slane %v23, 7
  %v41 = vrot.slane %v24, 7
  %v42 = vsel %vm39, %v40, %v41
  %v43 = vrot.slane %v25, 7
  %v44 = vrot.slane %v26, 7
  %v45 = vsel %vm39, %v43, %v44
  %v46 = vrot.slane %v27, 7
  %v47 = vrot.slane %v28, 7
  %v48 = vsel %vm39, %v46, %v47
  %v49 = vrot.slane %v29, 7
  %v50 = vrot.slane %v30, 7
  %v51 = vsel %vm39, %v49, %v50
  %v64 = vsel %vm39, 0.0, %v40
  %v65 = vsel %vm39, 0.0, %v43
  %v66 = vsel %vm39, 0.0, %v46
  %v67 = vsel %vm39, 0.0, %v49
  %v68 = vsel %vm39, %v41, 0.0
  %v69 = vsel %vm39, %v44, 0.0
  %v70 = vsel %vm39, %v47, 0.0
  %v71 = vsel %vm39, %v50, 0.0
  %vm80 = vcmask 1046528
  %v81 = vrot.slane %v64, 1
  %v82 = vrot.slane %v42, 1
  %v83 = vsel %vm80, %v81, %v82
  %v84 = vrot.slane %v68, 1
  %v85 = vsel %vm80, %v82, %v84
  %v86 = vrot.slane %v65, 1
  %v87 = vrot.slane %v45, 1
  %v88 = vsel %vm80, %v86, %v87
  %v89 = vrot.slane %v69, 1
  %v90 = vsel %vm80, %v87, %v89
  %v91 = vrot.slane %v66, 1
  %v92 = vrot.slane %v48, 1
  %v93 = vsel %vm80, %v91, %v92
  %v94 = vrot.slane %v70, 1
  %v95 = vsel %vm80, %v92, %v94
  %v96 = vrot.slane %v67, 1
  %v97 = vrot.slane %v51, 1
  %v98 = vsel %vm80, %v96, %v97
  %v99 = vrot.slane %v71, 1
  %v100 = vsel %vm80, %v97, %v99
  %101 = vrot.lane.b32.xlu0 %v83, 16
  %v102 = vpop.permute.xlu0 %101
  %103 = vrot.lane.b32.xlu0 %v85, 16
  %v104 = vpop.permute.xlu0 %103
  %105 = vrot.lane.b32.xlu0 %v88, 16
  %v106 = vpop.permute.xlu0 %105
  %107 = vrot.lane.b32.xlu0 %v90, 16
  %v108 = vpop.permute.xlu0 %107
  %109 = vrot.lane.b32.xlu0 %v93, 16
  %v110 = vpop.permute.xlu0 %109
  %111 = vrot.lane.b32.xlu0 %v95, 16
  %v112 = vpop.permute.xlu0 %111
  %113 = vrot.lane.b32.xlu0 %v98, 16
  %v114 = vpop.permute.xlu0 %113
  %115 = vrot.lane.b32.xlu0 %v100, 16
  %v116 = vpop.permute.xlu0 %115
  %vm125 = vcmask 1045504
  %v126 = vrot.slane %v64, 2
  %v127 = vrot.slane %v42, 2
  %v128 = vsel %vm125, %v126, %v127
  %v129 = vrot.slane %v68, 2
  %v130 = vsel %vm125, %v127, %v129
  %v131 = vrot.slane %v65, 2
  %v132 = vrot.slane %v45, 2
  %v133 = vsel %vm125, %v131, %v132
  %v134 = vrot.slane %v69, 2
  %v135 = vsel %vm125, %v132, %v134
  %v136 = vrot.slane %v66, 2
  %v137 = vrot.slane %v48, 2
  %v138 = vsel %vm125, %v136, %v137
  %v139 = vrot.slane %v70, 2
  %v140 = vsel %vm125, %v137, %v139
  %v141 = vrot.slane %v67, 2
  %v142 = vrot.slane %v51, 2
  %v143 = vsel %vm125, %v141, %v142
  %v144 = vrot.slane %v71, 2
  %v145 = vsel %vm125, %v142, %v144
  %146 = vrot.lane.b32.xlu0 %v128, 32
  %v147 = vpop.permute.xlu0 %146
  %148 = vrot.lane.b32.xlu0 %v130, 32
  %v149 = vpop.permute.xlu0 %148
  %150 = vrot.lane.b32.xlu0 %v133, 32
  %v151 = vpop.permute.xlu0 %150
  %152 = vrot.lane.b32.xlu0 %v135, 32
  %v153 = vpop.permute.xlu0 %152
  %154 = vrot.lane.b32.xlu0 %v138, 32
  %v155 = vpop.permute.xlu0 %154
  %156 = vrot.lane.b32.xlu0 %v140, 32
  %v157 = vpop.permute.xlu0 %156
  %158 = vrot.lane.b32.xlu0 %v143, 32
  %v159 = vpop.permute.xlu0 %158
  %160 = vrot.lane.b32.xlu0 %v145, 32
  %v161 = vpop.permute.xlu0 %160
  %vm170 = vcmask 130048
  %v171 = vsel %vm170, %v64, %v102
  %v172 = vsel %vm170, %v42, %v104
  %v173 = vsel %vm170, %v65, %v106
  %v174 = vsel %vm170, %v45, %v108
  %v175 = vsel %vm170, %v66, %v110
  %v176 = vsel %vm170, %v48, %v112
  %v177 = vsel %vm170, %v67, %v114
  %v178 = vsel %vm170, %v51, %v116
  %vm179 = vcmask 261120
  %v180 = vsel %vm179, %v171, %v147
  %v181 = vsel %vm179, %v172, %v149
  %v182 = vsel %vm179, %v173, %v151
  %v183 = vsel %vm179, %v174, %v153
  %v184 = vsel %vm179, %v175, %v155
  %v185 = vsel %vm179, %v176, %v157
  %v186 = vsel %vm179, %v177, %v159
  %v187 = vsel %vm179, %v178, %v161
  %v188 = vld [vmem:[%s1] sm:$0xff]
  %v189 = vld [vmem:[%s1 + $0x8] sm:$0xff]
  %v190 = vld [vmem:[%s1 + $0x10] sm:$0xff]
  %v191 = vld [vmem:[%s1 + $0x18] sm:$0xff]
  %v192 = vld [vmem:[%s1 + $0x20] sm:$0xff]
  %v193 = vld [vmem:[%s1 + $0x28] sm:$0xff]
  %v194 = vld [vmem:[%s2] sm:$0x1]
  %v196 = vlaneseq
  %v197 = vshrl.u32 %v196, 7
  %v198 = vsub.s32 0, %v197
  %v199 = vrot.slane %v194, %v198
  %vm201 = vcmask 392192
  %v203 = vsel %vm201, %v180, 0
  %v206 = vsel %vm201, %v181, 0
  %v209 = vsel %vm201, %v182, 0
  %v212 = vsel %vm201, %v183, 0
  %v215 = vsel %vm201, %v184, 0
  %v218 = vsel %vm201, %v185, 0
  %v221 = vsel %vm201, %v186, 0
  %v224 = vsel %vm201, %v187, 0
  %226 = vmatprep.subr.mxu0 0.0
  %227 = vmatpush1.msra.mxu0 %v188
  %228 = vmatprep.subr.mxu0 0.0
  %229 = vmatpush1.msra.mxu0 %v189
  %230 = vmatprep.subr.mxu0 0.0
  %231 = vmatpush1.msra.mxu0 %v190
  %232 = vmatprep.subr.mxu0 0.0
  %233 = vmatpush1.msra.mxu0 %v191
  %234 = vmatprep.subr.mxu0 0.0
  %235 = vmatpush1.msra.mxu0 %v192
  %236 = vmatprep.subr.mxu0 0.0
  %237 = vmatpush1.msra.mxu0 %v193
  %238 = vmatprep.subr.mxu0 0.0
  %239 = vmatpush1.msra.mxu0 0.0
  %240 = vmatprep.subr.mxu0 0.0
  %241 = vmatpush1.msra.mxu0 0.0
  %242 = vmatprep.subr.mxu0 0.0
  %243 = vmatpush1.msra.mxu0 0.0
  %244 = vmatprep.subr.mxu0 0.0
  %245 = vmatpush1.msra.mxu0 0.0
  %246 = vmatprep.subr.mxu0 0.0
  %247 = vmatpush1.msra.mxu0 0.0
  %248 = vmatprep.subr.mxu0 0.0
  %249 = vmatpush1.msra.mxu0 0.0
  %250 = vmatprep.subr.mxu0 0.0
  %251 = vmatpush1.msra.mxu0 0.0
  %252 = vmatprep.subr.mxu0 0.0
  %253 = vmatpush1.msra.mxu0 0.0
  %254 = vmatprep.subr.mxu0 0.0
  %255 = vmatpush1.msra.mxu0 0.0
  %256 = vmatprep.subr.mxu0 0.0
  %257 = vmatpush1.msra.mxu0 0.0
  %258 = vmatprep.subr.mxu0 0.0
  %259 = vmatpush1.msra.mxu0 0.0
  %260 = vmatprep.subr.mxu0 0.0
  %261 = vmatpush1.msra.mxu0 0.0
  %262 = vmatprep.subr.mxu0 0.0
  %263 = vmatpush1.msra.mxu0 0.0
  %264 = vmatprep.subr.mxu0 0.0
  %265 = vmatpush1.msra.mxu0 0.0
  %266 = vmatprep.subr.mxu0 0.0
  %267 = vmatpush1.msra.mxu0 0.0
  %268 = vmatprep.subr.mxu0 0.0
  %269 = vmatpush1.msra.mxu0 0.0
  %270 = vmatprep.subr.mxu0 0.0
  %271 = vmatpush1.msra.mxu0 0.0
  %272 = vmatprep.subr.mxu0 0.0
  %273 = vmatpush1.msra.mxu0 0.0
  %274 = vmatprep.subr.mxu0 0.0
  %275 = vmatpush1.msra.mxu0 0.0
  %276 = vmatprep.subr.mxu0 0.0
  %277 = vmatpush1.msra.mxu0 0.0
  %278 = vmatprep.subr.mxu0 0.0
  %279 = vmatpush1.msra.mxu0 0.0
  %280 = vmatprep.subr.mxu0 0.0
  %281 = vmatpush1.msra.mxu0 0.0
  %282 = vmatprep.subr.mxu0 0.0
  %283 = vmatpush1.msra.mxu0 0.0
  %284 = vmatprep.subr.mxu0 0.0
  %285 = vmatpush1.msra.mxu0 0.0
  %286 = vmatprep.subr.mxu0 0.0
  %287 = vmatpush1.msra.mxu0 0.0
  %288 = vmatprep.subr.mxu0 0.0
  %289 = vmatpush1.msra.mxu0 0.0
  %290 = vmatprep.mubr.f32.mxu0 0.0
  %291 = vmatmul.mubr.f32.gmra.mrb[0].mxu0 %v203
  %v292 = vpop.f32.mrb[0].mxu0
  %v293 = vadd.f32 %v199, %v292
  %v294 = vpop.f32.mrb[0].mxu0
  %295 = vmatprep.mubr.f32.mxu0 0.0
  %296 = vmatmul.mubr.f32.gmra.mrb[0].mxu0 %v206
  %v297 = vpop.f32.mrb[0].mxu0
  %v298 = vadd.f32 %v199, %v297
  %v299 = vpop.f32.mrb[0].mxu0
  %300 = vmatprep.mubr.f32.mxu0 0.0
  %301 = vmatmul.mubr.f32.gmra.mrb[0].mxu0 %v209
  %v302 = vpop.f32.mrb[0].mxu0
  %v303 = vadd.f32 %v199, %v302
  %v304 = vpop.f32.mrb[0].mxu0
  %305 = vmatprep.mubr.f32.mxu0 0.0
  %306 = vmatmul.mubr.f32.gmra.mrb[0].mxu0 %v212
  %v307 = vpop.f32.mrb[0].mxu0
  %v308 = vadd.f32 %v199, %v307
  %v309 = vpop.f32.mrb[0].mxu0
  %310 = vmatprep.mubr.f32.mxu0 0.0
  %311 = vmatmul.mubr.f32.gmra.mrb[0].mxu0 %v215
  %v312 = vpop.f32.mrb[0].mxu0
  %v313 = vadd.f32 %v199, %v312
  %v314 = vpop.f32.mrb[0].mxu0
  %315 = vmatprep.mubr.f32.mxu0 0.0
  %316 = vmatmul.mubr.f32.gmra.mrb[0].mxu0 %v218
  %v317 = vpop.f32.mrb[0].mxu0
  %v318 = vadd.f32 %v199, %v317
  %v319 = vpop.f32.mrb[0].mxu0
  %320 = vmatprep.mubr.f32.mxu0 0.0
  %321 = vmatmul.mubr.f32.gmra.mrb[0].mxu0 %v221
  %v322 = vpop.f32.mrb[0].mxu0
  %v323 = vadd.f32 %v199, %v322
  %v324 = vpop.f32.mrb[0].mxu0
  %325 = vmatprep.mubr.f32.mxu0 0.0
  %326 = vmatmul.mubr.f32.gmra.mrb[0].mxu0 %v224
  %v327 = vpop.f32.mrb[0].mxu0
  %v328 = vadd.f32 %v199, %v327
  %v329 = vpop.f32.mrb[0].mxu0
  %330 = vdwg.mxu0
  %v331 = vmul.f32 %v293, 0.5
  %v332 = vmul.f32 %v298, 0.5
  %v333 = vmul.f32 %v303, 0.5
  %v334 = vmul.f32 %v308, 0.5
  %v335 = vmul.f32 %v313, 0.5
  %v336 = vmul.f32 %v318, 0.5
  %v337 = vmul.f32 %v323, 0.5
  %v338 = vmul.f32 %v328, 0.5
  %v339 = vmul.f32 %v293, 0.044715
  %v340 = vmul.f32 %v298, 0.044715
  %v341 = vmul.f32 %v303, 0.044715
  %v342 = vmul.f32 %v308, 0.044715
  %v343 = vmul.f32 %v313, 0.044715
  %v344 = vmul.f32 %v318, 0.044715
  %v345 = vmul.f32 %v323, 0.044715
  %v346 = vmul.f32 %v328, 0.044715
  %v347 = vmul.f32 %v339, %v293
  %v348 = vmul.f32 %v340, %v298
  %v349 = vmul.f32 %v341, %v303
  %v350 = vmul.f32 %v342, %v308
  %v351 = vmul.f32 %v343, %v313
  %v352 = vmul.f32 %v344, %v318
  %v353 = vmul.f32 %v345, %v323
  %v354 = vmul.f32 %v346, %v328
  %v355 = vmul.f32 %v347, %v293
  %v356 = vmul.f32 %v348, %v298
  %v357 = vmul.f32 %v349, %v303
  %v358 = vmul.f32 %v350, %v308
  %v359 = vmul.f32 %v351, %v313
  %v360 = vmul.f32 %v352, %v318
  %v361 = vmul.f32 %v353, %v323
  %v362 = vmul.f32 %v354, %v328
  %v363 = vadd.f32 %v293, %v355
  %v364 = vadd.f32 %v298, %v356
  %v365 = vadd.f32 %v303, %v357
  %v366 = vadd.f32 %v308, %v358
  %v367 = vadd.f32 %v313, %v359
  %v368 = vadd.f32 %v318, %v360
  %v369 = vadd.f32 %v323, %v361
  %v370 = vadd.f32 %v328, %v362
  %v371 = vmul.f32 %v363, 0.7978846
  %v372 = vmul.f32 %v364, 0.7978846
  %v373 = vmul.f32 %v365, 0.7978846
  %v374 = vmul.f32 %v366, 0.7978846
  %v375 = vmul.f32 %v367, 0.7978846
  %v376 = vmul.f32 %v368, 0.7978846
  %v377 = vmul.f32 %v369, 0.7978846
  %v378 = vmul.f32 %v370, 0.7978846
  %v379 = vtanh.pop %v371
  %v380 = vtanh.pop %v372
  %v381 = vtanh.pop %v373
  %v382 = vtanh.pop %v374
  %v383 = vtanh.pop %v375
  %v384 = vtanh.pop %v376
  %v385 = vtanh.pop %v377
  %v386 = vtanh.pop %v378
  %v387 = vadd.f32 %v379, 1.0
  %v388 = vadd.f32 %v380, 1.0
  %v389 = vadd.f32 %v381, 1.0
  %v390 = vadd.f32 %v382, 1.0
  %v391 = vadd.f32 %v383, 1.0
  %v392 = vadd.f32 %v384, 1.0
  %v393 = vadd.f32 %v385, 1.0
  %v394 = vadd.f32 %v386, 1.0
  %v395 = vmul.f32 %v331, %v387
  %v396 = vmul.f32 %v332, %v388
  %v397 = vmul.f32 %v333, %v389
  %v398 = vmul.f32 %v334, %v390
  %v399 = vmul.f32 %v335, %v391
  %v400 = vmul.f32 %v336, %v392
  %v401 = vmul.f32 %v337, %v393
  %v402 = vmul.f32 %v338, %v394
  %v411 = vrot.slane %v395, 7
  %v412 = vrot.slane %v396, 7
  %v413 = vsel %vm39, %v411, %v412
  %v414 = vrot.slane %v397, 7
  %v415 = vrot.slane %v398, 7
  %v416 = vsel %vm39, %v414, %v415
  %v417 = vrot.slane %v399, 7
  %v418 = vrot.slane %v400, 7
  %v419 = vsel %vm39, %v417, %v418
  %v420 = vrot.slane %v401, 7
  %v421 = vrot.slane %v402, 7
  %v422 = vsel %vm39, %v420, %v421
  %v435 = vsel %vm39, 0.0, %v411
  %v436 = vsel %vm39, 0.0, %v414
  %v437 = vsel %vm39, 0.0, %v417
  %v438 = vsel %vm39, 0.0, %v420
  %v439 = vsel %vm39, %v412, 0.0
  %v440 = vsel %vm39, %v415, 0.0
  %v441 = vsel %vm39, %v418, 0.0
  %v442 = vsel %vm39, %v421, 0.0
  %v451 = vrot.slane %v435, 1
  %v452 = vrot.slane %v413, 1
  %v453 = vsel %vm80, %v451, %v452
  %v454 = vrot.slane %v439, 1
  %v455 = vsel %vm80, %v452, %v454
  %v456 = vrot.slane %v436, 1
  %v457 = vrot.slane %v416, 1
  %v458 = vsel %vm80, %v456, %v457
  %v459 = vrot.slane %v440, 1
  %v460 = vsel %vm80, %v457, %v459
  %v461 = vrot.slane %v437, 1
  %v462 = vrot.slane %v419, 1
  %v463 = vsel %vm80, %v461, %v462
  %v464 = vrot.slane %v441, 1
  %v465 = vsel %vm80, %v462, %v464
  %v466 = vrot.slane %v438, 1
  %v467 = vrot.slane %v422, 1
  %v468 = vsel %vm80, %v466, %v467
  %v469 = vrot.slane %v442, 1
  %v470 = vsel %vm80, %v467, %v469
  %471 = vrot.lane.b32.xlu0 %v453, 32
  %v472 = vpop.permute.xlu0 %471
  %473 = vrot.lane.b32.xlu0 %v455, 32
  %v474 = vpop.permute.xlu0 %473
  %475 = vrot.lane.b32.xlu0 %v458, 32
  %v476 = vpop.permute.xlu0 %475
  %477 = vrot.lane.b32.xlu0 %v460, 32
  %v478 = vpop.permute.xlu0 %477
  %479 = vrot.lane.b32.xlu0 %v463, 32
  %v480 = vpop.permute.xlu0 %479
  %481 = vrot.lane.b32.xlu0 %v465, 32
  %v482 = vpop.permute.xlu0 %481
  %483 = vrot.lane.b32.xlu0 %v468, 32
  %v484 = vpop.permute.xlu0 %483
  %485 = vrot.lane.b32.xlu0 %v470, 32
  %v486 = vpop.permute.xlu0 %485
  %v495 = vrot.slane %v435, 2
  %v496 = vrot.slane %v413, 2
  %v497 = vsel %vm125, %v495, %v496
  %v498 = vrot.slane %v439, 2
  %v499 = vsel %vm125, %v496, %v498
  %v500 = vrot.slane %v436, 2
  %v501 = vrot.slane %v416, 2
  %v502 = vsel %vm125, %v500, %v501
  %v503 = vrot.slane %v440, 2
  %v504 = vsel %vm125, %v501, %v503
  %v505 = vrot.slane %v437, 2
  %v506 = vrot.slane %v419, 2
  %v507 = vsel %vm125, %v505, %v506
  %v508 = vrot.slane %v441, 2
  %v509 = vsel %vm125, %v506, %v508
  %v510 = vrot.slane %v438, 2
  %v511 = vrot.slane %v422, 2
  %v512 = vsel %vm125, %v510, %v511
  %v513 = vrot.slane %v442, 2
  %v514 = vsel %vm125, %v511, %v513
  %515 = vrot.lane.b32.xlu0 %v497, 64
  %v516 = vpop.permute.xlu0 %515
  %517 = vrot.lane.b32.xlu0 %v499, 64
  %v518 = vpop.permute.xlu0 %517
  %519 = vrot.lane.b32.xlu0 %v502, 64
  %v520 = vpop.permute.xlu0 %519
  %521 = vrot.lane.b32.xlu0 %v504, 64
  %v522 = vpop.permute.xlu0 %521
  %523 = vrot.lane.b32.xlu0 %v507, 64
  %v524 = vpop.permute.xlu0 %523
  %525 = vrot.lane.b32.xlu0 %v509, 64
  %v526 = vpop.permute.xlu0 %525
  %527 = vrot.lane.b32.xlu0 %v512, 64
  %v528 = vpop.permute.xlu0 %527
  %529 = vrot.lane.b32.xlu0 %v514, 64
  %v530 = vpop.permute.xlu0 %529
  %v539 = vsel %vm179, %v435, %v472
  %v540 = vsel %vm179, %v413, %v474
  %v541 = vsel %vm179, %v436, %v476
  %v542 = vsel %vm179, %v416, %v478
  %v543 = vsel %vm179, %v437, %v480
  %v544 = vsel %vm179, %v419, %v482
  %v545 = vsel %vm179, %v438, %v484
  %v546 = vsel %vm179, %v422, %v486
  %vm547 = vcmask 523264
  %v548 = vsel %vm547, %v539, %v516
  %v549 = vsel %vm547, %v540, %v518
  %v550 = vsel %vm547, %v541, %v520
  %v551 = vsel %vm547, %v542, %v522
  %v552 = vsel %vm547, %v543, %v524
  %v553 = vsel %vm547, %v544, %v526
  %v554 = vsel %vm547, %v545, %v528
  %v555 = vsel %vm547, %v546, %v530
  %v556 = vld [vmem:[%s3] sm:$0xff]
  %v557 = vld [vmem:[%s3 + $0x8] sm:$0xff]
  %v558 = vld [vmem:[%s3 + $0x10] sm:$0xff]
  %v559 = vld [vmem:[%s3 + $0x18] sm:$0xff]
  %v560 = vld [vmem:[%s3 + $0x20] sm:$0xff]
  %v561 = vld [vmem:[%s3 + $0x28] sm:$0xff]
  %v562 = vld [vmem:[%s3 + $0x30] sm:$0xff]
  %v563 = vld [vmem:[%s3 + $0x38] sm:$0xff]
  %v564 = vld [vmem:[%s3 + $0x40] sm:$0xff]
  %v565 = vld [vmem:[%s3 + $0x48] sm:$0xff]
  %v566 = vld [vmem:[%s3 + $0x50] sm:$0xff]
  %v567 = vld [vmem:[%s3 + $0x58] sm:$0xff]
  %v568 = vld [vmem:[%s4] sm:$0x1]
  %v570 = vlaneseq
  %v571 = vshrl.u32 %v570, 7
  %v572 = vsub.s32 0, %v571
  %v573 = vrot.slane %v568, %v572
  %vm575 = vcmask 785408
  %v577 = vsel %vm575, %v548, 0
  %v580 = vsel %vm575, %v549, 0
  %v583 = vsel %vm575, %v550, 0
  %v586 = vsel %vm575, %v551, 0
  %v589 = vsel %vm575, %v552, 0
  %v592 = vsel %vm575, %v553, 0
  %v595 = vsel %vm575, %v554, 0
  %v598 = vsel %vm575, %v555, 0
  %600 = vmatprep.subr.mxu0 0.0
  %601 = vmatpush1.msra.mxu0 %v556
  %602 = vmatprep.subr.mxu0 0.0
  %603 = vmatpush1.msra.mxu0 %v557
  %604 = vmatprep.subr.mxu0 0.0
  %605 = vmatpush1.msra.mxu0 %v558
  %606 = vmatprep.subr.mxu0 0.0
  %607 = vmatpush1.msra.mxu0 %v559
  %608 = vmatprep.subr.mxu0 0.0
  %609 = vmatpush1.msra.mxu0 %v560
  %610 = vmatprep.subr.mxu0 0.0
  %611 = vmatpush1.msra.mxu0 %v561
  %612 = vmatprep.subr.mxu0 0.0
  %613 = vmatpush1.msra.mxu0 %v562
  %614 = vmatprep.subr.mxu0 0.0
  %615 = vmatpush1.msra.mxu0 %v563
  %616 = vmatprep.subr.mxu0 0.0
  %617 = vmatpush1.msra.mxu0 %v564
  %618 = vmatprep.subr.mxu0 0.0
  %619 = vmatpush1.msra.mxu0 %v565
  %620 = vmatprep.subr.mxu0 0.0
  %621 = vmatpush1.msra.mxu0 %v566
  %622 = vmatprep.subr.mxu0 0.0
  %623 = vmatpush1.msra.mxu0 %v567
  %624 = vmatprep.subr.mxu0 0.0
  %625 = vmatpush1.msra.mxu0 0.0
  %626 = vmatprep.subr.mxu0 0.0
  %627 = vmatpush1.msra.mxu0 0.0
  %628 = vmatprep.subr.mxu0 0.0
  %629 = vmatpush1.msra.mxu0 0.0
  %630 = vmatprep.subr.mxu0 0.0
  %631 = vmatpush1.msra.mxu0 0.0
  %632 = vmatprep.subr.mxu0 0.0
  %633 = vmatpush1.msra.mxu0 0.0
  %634 = vmatprep.subr.mxu0 0.0
  %635 = vmatpush1.msra.mxu0 0.0
  %636 = vmatprep.subr.mxu0 0.0
  %637 = vmatpush1.msra.mxu0 0.0
  %638 = vmatprep.subr.mxu0 0.0
  %639 = vmatpush1.msra.mxu0 0.0
  %640 = vmatprep.subr.mxu0 0.0
  %641 = vmatpush1.msra.mxu0 0.0
  %642 = vmatprep.subr.mxu0 0.0
  %643 = vmatpush1.msra.mxu0 0.0
  %644 = vmatprep.subr.mxu0 0.0
  %645 = vmatpush1.msra.mxu0 0.0
  %646 = vmatprep.subr.mxu0 0.0
  %647 = vmatpush1.msra.mxu0 0.0
  %648 = vmatprep.subr.mxu0 0.0
  %649 = vmatpush1.msra.mxu0 0.0
  %650 = vmatprep.subr.mxu0 0.0
  %651 = vmatpush1.msra.mxu0 0.0
  %652 = vmatprep.subr.mxu0 0.0
  %653 = vmatpush1.msra.mxu0 0.0
  %654 = vmatprep.subr.mxu0 0.0
  %655 = vmatpush1.msra.mxu0 0.0
  %656 = vmatprep.subr.mxu0 0.0
  %657 = vmatpush1.msra.mxu0 0.0
  %658 = vmatprep.subr.mxu0 0.0
  %659 = vmatpush1.msra.mxu0 0.0
  %660 = vmatprep.subr.mxu0 0.0
  %661 = vmatpush1.msra.mxu0 0.0
  %662 = vmatprep.subr.mxu0 0.0
  %663 = vmatpush1.msra.mxu0 0.0
  %664 = vmatprep.mubr.f32.mxu0 0.0
  %665 = vmatmul.mubr.f32.gmra.mrb[0].mxu0 %v577
  %v666 = vpop.f32.mrb[0].mxu0
  %v667 = vadd.f32 %v573, %v666
  %v668 = vpop.f32.mrb[0].mxu0
  %669 = vmatprep.mubr.f32.mxu0 0.0
  %670 = vmatmul.mubr.f32.gmra.mrb[0].mxu0 %v580
  %v671 = vpop.f32.mrb[0].mxu0
  %v672 = vadd.f32 %v573, %v671
  %v673 = vpop.f32.mrb[0].mxu0
  %674 = vmatprep.mubr.f32.mxu0 0.0
  %675 = vmatmul.mubr.f32.gmra.mrb[0].mxu0 %v583
  %v676 = vpop.f32.mrb[0].mxu0
  %v677 = vadd.f32 %v573, %v676
  %v678 = vpop.f32.mrb[0].mxu0
  %679 = vmatprep.mubr.f32.mxu0 0.0
  %680 = vmatmul.mubr.f32.gmra.mrb[0].mxu0 %v586
  %v681 = vpop.f32.mrb[0].mxu0
  %v682 = vadd.f32 %v573, %v681
  %v683 = vpop.f32.mrb[0].mxu0
  %684 = vmatprep.mubr.f32.mxu0 0.0
  %685 = vmatmul.mubr.f32.gmra.mrb[0].mxu0 %v589
  %v686 = vpop.f32.mrb[0].mxu0
  %v687 = vadd.f32 %v573, %v686
  %v688 = vpop.f32.mrb[0].mxu0
  %689 = vmatprep.mubr.f32.mxu0 0.0
  %690 = vmatmul.mubr.f32.gmra.mrb[0].mxu0 %v592
  %v691 = vpop.f32.mrb[0].mxu0
  %v692 = vadd.f32 %v573, %v691
  %v693 = vpop.f32.mrb[0].mxu0
  %694 = vmatprep.mubr.f32.mxu0 0.0
  %695 = vmatmul.mubr.f32.gmra.mrb[0].mxu0 %v595
  %v696 = vpop.f32.mrb[0].mxu0
  %v697 = vadd.f32 %v573, %v696
  %v698 = vpop.f32.mrb[0].mxu0
  %699 = vmatprep.mubr.f32.mxu0 0.0
  %700 = vmatmul.mubr.f32.gmra.mrb[0].mxu0 %v598
  %v701 = vpop.f32.mrb[0].mxu0
  %v702 = vadd.f32 %v573, %v701
  %v703 = vpop.f32.mrb[0].mxu0
  %704 = vdwg.mxu0
  %v705 = vmul.f32 %v667, 0.5
  %v706 = vmul.f32 %v672, 0.5
  %v707 = vmul.f32 %v677, 0.5
  %v708 = vmul.f32 %v682, 0.5
  %v709 = vmul.f32 %v687, 0.5
  %v710 = vmul.f32 %v692, 0.5
  %v711 = vmul.f32 %v697, 0.5
  %v712 = vmul.f32 %v702, 0.5
  %v713 = vmul.f32 %v667, 0.044715
  %v714 = vmul.f32 %v672, 0.044715
  %v715 = vmul.f32 %v677, 0.044715
  %v716 = vmul.f32 %v682, 0.044715
  %v717 = vmul.f32 %v687, 0.044715
  %v718 = vmul.f32 %v692, 0.044715
  %v719 = vmul.f32 %v697, 0.044715
  %v720 = vmul.f32 %v702, 0.044715
  %v721 = vmul.f32 %v713, %v667
  %v722 = vmul.f32 %v714, %v672
  %v723 = vmul.f32 %v715, %v677
  %v724 = vmul.f32 %v716, %v682
  %v725 = vmul.f32 %v717, %v687
  %v726 = vmul.f32 %v718, %v692
  %v727 = vmul.f32 %v719, %v697
  %v728 = vmul.f32 %v720, %v702
  %v729 = vmul.f32 %v721, %v667
  %v730 = vmul.f32 %v722, %v672
  %v731 = vmul.f32 %v723, %v677
  %v732 = vmul.f32 %v724, %v682
  %v733 = vmul.f32 %v725, %v687
  %v734 = vmul.f32 %v726, %v692
  %v735 = vmul.f32 %v727, %v697
  %v736 = vmul.f32 %v728, %v702
  %v737 = vadd.f32 %v667, %v729
  %v738 = vadd.f32 %v672, %v730
  %v739 = vadd.f32 %v677, %v731
  %v740 = vadd.f32 %v682, %v732
  %v741 = vadd.f32 %v687, %v733
  %v742 = vadd.f32 %v692, %v734
  %v743 = vadd.f32 %v697, %v735
  %v744 = vadd.f32 %v702, %v736
  %v745 = vmul.f32 %v737, 0.7978846
  %v746 = vmul.f32 %v738, 0.7978846
  %v747 = vmul.f32 %v739, 0.7978846
  %v748 = vmul.f32 %v740, 0.7978846
  %v749 = vmul.f32 %v741, 0.7978846
  %v750 = vmul.f32 %v742, 0.7978846
  %v751 = vmul.f32 %v743, 0.7978846
  %v752 = vmul.f32 %v744, 0.7978846
  %v753 = vtanh.pop %v745
  %v754 = vtanh.pop %v746
  %v755 = vtanh.pop %v747
  %v756 = vtanh.pop %v748
  %v757 = vtanh.pop %v749
  %v758 = vtanh.pop %v750
  %v759 = vtanh.pop %v751
  %v760 = vtanh.pop %v752
  %v761 = vadd.f32 %v753, 1.0
  %v762 = vadd.f32 %v754, 1.0
  %v763 = vadd.f32 %v755, 1.0
  %v764 = vadd.f32 %v756, 1.0
  %v765 = vadd.f32 %v757, 1.0
  %v766 = vadd.f32 %v758, 1.0
  %v767 = vadd.f32 %v759, 1.0
  %v768 = vadd.f32 %v760, 1.0
  %v769 = vmul.f32 %v705, %v761
  %v770 = vmul.f32 %v706, %v762
  %v771 = vmul.f32 %v707, %v763
  %v772 = vmul.f32 %v708, %v764
  %v773 = vmul.f32 %v709, %v765
  %v774 = vmul.f32 %v710, %v766
  %v775 = vmul.f32 %v711, %v767
  %v776 = vmul.f32 %v712, %v768
  %v777 = vld [vmem:[%s5] sm:$0xff]
  %v778 = vld [vmem:[%s5 + $0x8] sm:$0xff]
  %v779 = vadd.f32 %v769, %v777
  %v780 = vadd.f32 %v770, %v778
  %v781 = vadd.f32 %v771, %v777
  %v782 = vadd.f32 %v772, %v778
  %v783 = vadd.f32 %v773, %v777
  %v784 = vadd.f32 %v774, %v778
  %v785 = vadd.f32 %v775, %v777
  %v786 = vadd.f32 %v776, %v778
  %787 = vst.msk [vmem:[%s6] sm:$0xff] %vm179, %v779
  %788 = vst.msk [vmem:[%s6 + $0x8] sm:$0xff] %vm179, %v780
  %789 = vst.msk [vmem:[%s6 + $0x10] sm:$0xff] %vm179, %v781
  %790 = vst.msk [vmem:[%s6 + $0x18] sm:$0xff] %vm179, %v782
  %791 = vst.msk [vmem:[%s6 + $0x20] sm:$0xff] %vm179, %v783
  %792 = vst.msk [vmem:[%s6 + $0x28] sm:$0xff] %vm179, %v784
  %793 = vst.msk [vmem:[%s6 + $0x30] sm:$0xff] %vm179, %v785
  %794 = vst.msk [vmem:[%s6 + $0x38] sm:$0xff] %vm179, %v786
  // Predicated region
  $region26: #{model_forward.5} parent=0 // pred_check
    _
  $region27: #{model_forward.5} parent=0 // pred_check_branch
    %796 = sbr.rel (0) target = $region29
  $region28: #{model_forward.5} parent=0 // pred_region
    _
  $region29: #{model_forward.5} parent=0 // pred_fallthru
    _
  // Predicated region
  $region30: #{model_forward.5} parent=0 // pred_check
    _
  $region31: #{model_forward.5} parent=0 // pred_check_branch
    %798 = sbr.rel (0) target = $region33
  $region32: #{model_forward.5} parent=0 // pred_region
    _
  $region33: #{model_forward.5} parent=0 // pred_fallthru
    _

// kernel: model_forward.7
$region0: #{model_forward.7}
  #allocation0 [shape = 'u32[]', space=smem, size = 0x4, offset = 0x4, fixed_abs, tag = 'smem constant byte address 0x4 - core index']
  #allocation1 [shape = 'u32[144,128]{1,0:T(1,128)}', space=vmem, size = 0x12000, scoped, tag = 'internal scratch']
  %s0 = inlined_call_operand.vmem [shape: f32[4,8,32], index: 0, kind: input, shape index: {}]
  %s1 = inlined_call_operand.vmem [shape: f32[1,32], index: 1, kind: input, shape index: {}]
  %s2 = inlined_call_operand.vmem [shape: f32[1,32], index: 2, kind: input, shape index: {}]
  %s3 = inlined_call_operand.vmem [shape: f32[32,32], index: 3, kind: input, shape index: {}]
  %s4 = inlined_call_operand.vmem [shape: f32[1,32], index: 4, kind: input, shape index: {}]
  %s5 = inlined_call_operand.vmem [shape: f32[32,32], index: 5, kind: input, shape index: {}]
  %s6 = inlined_call_operand.vmem [shape: f32[32,32], index: 6, kind: input, shape index: {}]
  %s7 = inlined_call_operand.vmem [shape: f32[1,32], index: 7, kind: input, shape index: {}]
  %s8 = inlined_call_operand.vmem [shape: f32[32,32], index: 8, kind: input, shape index: {}]
  %s9 = inlined_call_operand.vmem [shape: f32[1,32], index: 9, kind: input, shape index: {}]
  %s10 = inlined_call_operand.vmem [shape: f32[1,32], index: 10, kind: input, shape index: {}]
  %s11 = inlined_call_operand.vmem [shape: f32[1,32], index: 11, kind: input, shape index: {}]
  %s12 = inlined_call_operand.vmem [shape: f32[32,128], index: 12, kind: input, shape index: {}]
  %s13 = inlined_call_operand.vmem [shape: f32[1,128], index: 13, kind: input, shape index: {}]
  %s14 = inlined_call_operand.vmem [shape: f32[128,32], index: 14, kind: input, shape index: {}]
  %s15 = inlined_call_operand.vmem [shape: f32[1,32], index: 15, kind: input, shape index: {}]
  %s16 = inlined_call_operand.vmem [shape: f32[1,32], index: 16, kind: input, shape index: {}]
  %s17 = inlined_call_operand.vmem [shape: f32[1,32], index: 17, kind: input, shape index: {}]
  %s18 = inlined_call_operand.vmem [shape: f32[4,8,32], index: 18, kind: output, shape index: {}]
  %s19 = sld [smem:[#allocation0]]
  $region82: #{model_forward.7} parent=0
    _
  %s21 = ssub.s32 1, %s19
  %s22 = scalar_select 0, %s21, %s19
  // Predicated region
  $region2: #{model_forward.7} parent=0 // pred_check
    _
  $region3: #{model_forward.7} parent=0 // pred_check_branch
    %24 = sbr.rel (0) target = $region5
  $region4: #{model_forward.7} parent=0 // pred_region
    _
  $region5: #{model_forward.7} parent=0 // pred_fallthru
    _
  // Predicated region
  $region6: #{model_forward.7} parent=0 // pred_check
    _
  $region7: #{model_forward.7} parent=0 // pred_check_branch
    %26 = sbr.rel (0) target = $region9
  $region8: #{model_forward.7} parent=0 // pred_region
    _
  $region9: #{model_forward.7} parent=0 // pred_fallthru
    _
  // Predicated region
  $region10: #{model_forward.7} parent=0 // pred_check
    _
  $region11: #{model_forward.7} parent=0 // pred_check_branch
    %28 = sbr.rel (0) target = $region13
  $region12: #{model_forward.7} parent=0 // pred_region
    _
  $region13: #{model_forward.7} parent=0 // pred_fallthru
    _
  // Predicated region
  $region14: #{model_forward.7} parent=0 // pred_check
    _
  $region15: #{model_forward.7} parent=0 // pred_check_branch
    %30 = sbr.rel (0) target = $region17
  $region16: #{model_forward.7} parent=0 // pred_region
    _
  $region17: #{model_forward.7} parent=0 // pred_fallthru
    _
  // Predicated region
  $region18: #{model_forward.7} parent=0 // pred_check
    _
  $region19: #{model_forward.7} parent=0 // pred_check_branch
    %32 = sbr.rel (0) target = $region21
  $region20: #{model_forward.7} parent=0 // pred_region
    _
  $region21: #{model_forward.7} parent=0 // pred_fallthru
    _
  // Predicated region
  $region22: #{model_forward.7} parent=0 // pred_check
    _
  $region23: #{model_forward.7} parent=0 // pred_check_branch
    %34 = sbr.rel (0) target = $region25
  $region24: #{model_forward.7} parent=0 // pred_region
    _
  $region25: #{model_forward.7} parent=0 // pred_fallthru
    _
  // Predicated region
  $region26: #{model_forward.7} parent=0 // pred_check
    _
  $region27: #{model_forward.7} parent=0 // pred_check_branch
    %36 = sbr.rel (0) target = $region29
  $region28: #{model_forward.7} parent=0 // pred_region
    _
  $region29: #{model_forward.7} parent=0 // pred_fallthru
    _
  // Predicated region
  $region30: #{model_forward.7} parent=0 // pred_check
    _
  $region31: #{model_forward.7} parent=0 // pred_check_branch
    %38 = sbr.rel (0) target = $region33
  $region32: #{model_forward.7} parent=0 // pred_region
    _
  $region33: #{model_forward.7} parent=0 // pred_fallthru
    _
  // Predicated region
  $region34: #{model_forward.7} parent=0 // pred_check
    _
  $region35: #{model_forward.7} parent=0 // pred_check_branch
    %40 = sbr.rel (0) target = $region37
  $region36: #{model_forward.7} parent=0 // pred_region
    _
  $region37: #{model_forward.7} parent=0 // pred_fallthru
    _
  // Predicated region
  $region38: #{model_forward.7} parent=0 // pred_check
    _
  $region39: #{model_forward.7} parent=0 // pred_check_branch
    %42 = sbr.rel (0) target = $region41
  $region40: #{model_forward.7} parent=0 // pred_region
    _
  $region41: #{model_forward.7} parent=0 // pred_fallthru
    _
  // Predicated region
  $region42: #{model_forward.7} parent=0 // pred_check
    _
  $region43: #{model_forward.7} parent=0 // pred_check_branch
    %44 = sbr.rel (0) target = $region45
  $region44: #{model_forward.7} parent=0 // pred_region
    _
  $region45: #{model_forward.7} parent=0 // pred_fallthru
    _
  // Predicated region
  $region46: #{model_forward.7} parent=0 // pred_check
    _
  $region47: #{model_forward.7} parent=0 // pred_check_branch
    %46 = sbr.rel (0) target = $region49
  $region48: #{model_forward.7} parent=0 // pred_region
    _
  $region49: #{model_forward.7} parent=0 // pred_fallthru
    _
  // Predicated region
  $region50: #{model_forward.7} parent=0 // pred_check
    _
  $region51: #{model_forward.7} parent=0 // pred_check_branch
    %48 = sbr.rel (0) target = $region53
  $region52: #{model_forward.7} parent=0 // pred_region
    _
  $region53: #{model_forward.7} parent=0 // pred_fallthru
    _
  // Predicated region
  $region54: #{model_forward.7} parent=0 // pred_check
    _
  $region55: #{model_forward.7} parent=0 // pred_check_branch
    %50 = sbr.rel (0) target = $region57
  $region56: #{model_forward.7} parent=0 // pred_region
    _
  $region57: #{model_forward.7} parent=0 // pred_fallthru
    _
  // Predicated region
  $region58: #{model_forward.7} parent=0 // pred_check
    _
  $region59: #{model_forward.7} parent=0 // pred_check_branch
    %52 = sbr.rel (0) target = $region61
  $region60: #{model_forward.7} parent=0 // pred_region
    _
  $region61: #{model_forward.7} parent=0 // pred_fallthru
    _
  // Predicated region
  $region62: #{model_forward.7} parent=0 // pred_check
    _
  $region63: #{model_forward.7} parent=0 // pred_check_branch
    %54 = sbr.rel (0) target = $region65
  $region64: #{model_forward.7} parent=0 // pred_region
    _
  $region65: #{model_forward.7} parent=0 // pred_fallthru
    _
  // Predicated region
  $region66: #{model_forward.7} parent=0 // pred_check
    _
  $region67: #{model_forward.7} parent=0 // pred_check_branch
    %56 = sbr.rel (0) target = $region69
  $region68: #{model_forward.7} parent=0 // pred_region
    _
  $region69: #{model_forward.7} parent=0 // pred_fallthru
    _
  // Predicated region
  $region70: #{model_forward.7} parent=0 // pred_check
    _
  $region71: #{model_forward.7} parent=0 // pred_check_branch
    %58 = sbr.rel (0) target = $region73
  $region72: #{model_forward.7} parent=0 // pred_region
    _
  $region73: #{model_forward.7} parent=0 // pred_fallthru
    _
  %v59 = vld [vmem:[%s0] sm:$0xff]
  %v60 = vld [vmem:[%s0 + $0x8] sm:$0xff]
  %v61 = vld [vmem:[%s0 + $0x10] sm:$0xff]
  %v62 = vld [vmem:[%s0 + $0x18] sm:$0xff]
  %v63 = vld [vmem:[%s1] sm:$0x1]
  %v64 = vld [vmem:[%s2] sm:$0x1]
  %vm65 = vcmask 261120
  %v66 = vsel %vm65, %v59, 0.0
  %67 = vadd.xlane.f32.xlu0 %v66
  %v68 = vpop.xlane.xlu0 %67
  %v69 = vsel %vm65, %v60, 0.0
  %70 = vadd.xlane.f32.xlu0 %v69
  %v71 = vpop.xlane.xlu0 %70
  %v72 = vsel %vm65, %v61, 0.0
  %73 = vadd.xlane.f32.xlu0 %v72
  %v74 = vpop.xlane.xlu0 %73
  %v75 = vsel %vm65, %v62, 0.0
  %76 = vadd.xlane.f32.xlu0 %v75
  %v77 = vpop.xlane.xlu0 %76
  %v78 = vrcp.pop 32.0
  %v79 = vmul.f32 %v68, %v78
  %v80 = vmul.f32 %v71, %v78
  %v81 = vmul.f32 %v74, %v78
  %v82 = vmul.f32 %v77, %v78
  %v83 = vsub.f32 %v59, %v79
  %v84 = vsub.f32 %v60, %v80
  %v85 = vsub.f32 %v61, %v81
  %v86 = vsub.f32 %v62, %v82
  %v87 = vmul.f32 %v83, %v83
  %v88 = vmul.f32 %v84, %v84
  %v89 = vmul.f32 %v85, %v85
  %v90 = vmul.f32 %v86, %v86
  %v91 = vsel %vm65, %v87, 0.0
  %92 = vadd.xlane.f32.xlu0 %v91
  %v93 = vpop.xlane.xlu0 %92
  %v94 = vsel %vm65, %v88, 0.0
  %95 = vadd.xlane.f32.xlu0 %v94
  %v96 = vpop.xlane.xlu0 %95
  %v97 = vsel %vm65, %v89, 0.0
  %98 = vadd.xlane.f32.xlu0 %v97
  %v99 = vpop.xlane.xlu0 %98
  %v100 = vsel %vm65, %v90, 0.0
  %101 = vadd.xlane.f32.xlu0 %v100
  %v102 = vpop.xlane.xlu0 %101
  %v103 = vmul.f32 %v93, %v78
  %v104 = vmul.f32 %v96, %v78
  %v105 = vmul.f32 %v99, %v78
  %v106 = vmul.f32 %v102, %v78
  %v107 = vadd.f32 %v103, 1e-05
  %v108 = vadd.f32 %v104, 1e-05
  %v109 = vadd.f32 %v105, 1e-05
  %v110 = vadd.f32 %v106, 1e-05
  %v111 = vrsqrt.pop %v107
  %v112 = vrsqrt.pop %v108
  %v113 = vrsqrt.pop %v109
  %v114 = vrsqrt.pop %v110
  %v115 = vmul.f32 %v83, %v111
  %v116 = vmul.f32 %v84, %v112
  %v117 = vmul.f32 %v85, %v113
  %v118 = vmul.f32 %v86, %v114
  %v120 = vlaneseq
  %v121 = vshrl.u32 %v120, 7
  %v122 = vsub.s32 0, %v121
  %v123 = vrot.slane %v63, %v122
  %v125 = vmul.f32 %v115, %v123
  %v126 = vmul.f32 %v116, %v123
  %v127 = vmul.f32 %v117, %v123
  %v128 = vmul.f32 %v118, %v123
  %v130 = vlaneseq
  %v131 = vshrl.u32 %v130, 7
  %v132 = vsub.s32 0, %v131
  %v133 = vrot.slane %v64, %v132
  %v135 = vadd.f32 %v125, %v133
  %v136 = vadd.f32 %v126, %v133
  %v137 = vadd.f32 %v127, %v133
  %v138 = vadd.f32 %v128, %v133
  %v139 = vld [vmem:[%s3] sm:$0xff]
  %v140 = vld [vmem:[%s3 + $0x8] sm:$0xff]
  %v141 = vld [vmem:[%s3 + $0x10] sm:$0xff]
  %v142 = vld [vmem:[%s3 + $0x18] sm:$0xff]
  %v143 = vld [vmem:[%s4] sm:$0x1]
  %v145 = vlaneseq
  %v146 = vshrl.u32 %v145, 7
  %v147 = vsub.s32 0, %v146
  %v148 = vrot.slane %v143, %v147
  %v151 = vsel %vm65, %v135, 0
  %v154 = vsel %vm65, %v136, 0
  %v157 = vsel %vm65, %v137, 0
  %v160 = vsel %vm65, %v138, 0
  %162 = vmatprep.subr.mxu0 0.0
  %163 = vmatpush1.msra.mxu0 %v139
  %164 = vmatprep.subr.mxu0 0.0
  %165 = vmatpush1.msra.mxu0 %v140
  %166 = vmatprep.subr.mxu0 0.0
  %167 = vmatpush1.msra.mxu0 %v141
  %168 = vmatprep.subr.mxu0 0.0
  %169 = vmatpush1.msra.mxu0 %v142
  %170 = vmatprep.subr.mxu0 0.0
  %171 = vmatpush1.msra.mxu0 0.0
  %172 = vmatprep.subr.mxu0 0.0
  %173 = vmatpush1.msra.mxu0 0.0
  %174 = vmatprep.subr.mxu0 0.0
  %175 = vmatpush1.msra.mxu0 0.0
  %176 = vmatprep.subr.mxu0 0.0
  %177 = vmatpush1.msra.mxu0 0.0
  %178 = vmatprep.subr.mxu0 0.0
  %179 = vmatpush1.msra.mxu0 0.0
  %180 = vmatprep.subr.mxu0 0.0
  %181 = vmatpush1.msra.mxu0 0.0
  %182 = vmatprep.subr.mxu0 0.0
  %183 = vmatpush1.msra.mxu0 0.0
  %184 = vmatprep.subr.mxu0 0.0
  %185 = vmatpush1.msra.mxu0 0.0
  %186 = vmatprep.subr.mxu0 0.0
  %187 = vmatpush1.msra.mxu0 0.0
  %188 = vmatprep.subr.mxu0 0.0
  %189 = vmatpush1.msra.mxu0 0.0
  %190 = vmatprep.subr.mxu0 0.0
  %191 = vmatpush1.msra.mxu0 0.0
  %192 = vmatprep.subr.mxu0 0.0
  %193 = vmatpush1.msra.mxu0 0.0
  %194 = vmatprep.subr.mxu0 0.0
  %195 = vmatpush1.msra.mxu0 0.0
  %196 = vmatprep.subr.mxu0 0.0
  %197 = vmatpush1.msra.mxu0 0.0
  %198 = vmatprep.subr.mxu0 0.0
  %199 = vmatpush1.msra.mxu0 0.0
  %200 = vmatprep.subr.mxu0 0.0
  %201 = vmatpush1.msra.mxu0 0.0
  %202 = vmatprep.subr.mxu0 0.0
  %203 = vmatpush1.msra.mxu0 0.0
  %204 = vmatprep.subr.mxu0 0.0
  %205 = vmatpush1.msra.mxu0 0.0
  %206 = vmatprep.subr.mxu0 0.0
  %207 = vmatpush1.msra.mxu0 0.0
  %208 = vmatprep.subr.mxu0 0.0
  %209 = vmatpush1.msra.mxu0 0.0
  %210 = vmatprep.subr.mxu0 0.0
  %211 = vmatpush1.msra.mxu0 0.0
  %212 = vmatprep.subr.mxu0 0.0
  %213 = vmatpush1.msra.mxu0 0.0
  %214 = vmatprep.subr.mxu0 0.0
  %215 = vmatpush1.msra.mxu0 0.0
  %216 = vmatprep.subr.mxu0 0.0
  %217 = vmatpush1.msra.mxu0 0.0
  %218 = vmatprep.subr.mxu0 0.0
  %219 = vmatpush1.msra.mxu0 0.0
  %220 = vmatprep.subr.mxu0 0.0
  %221 = vmatpush1.msra.mxu0 0.0
  %222 = vmatprep.subr.mxu0 0.0
  %223 = vmatpush1.msra.mxu0 0.0
  %224 = vmatprep.subr.mxu0 0.0
  %225 = vmatpush1.msra.mxu0 0.0
  %226 = vmatprep.mubr.f32.mxu0 0.0
  %227 = vmatmul.mubr.f32.gmra.mrb[0].mxu0 %v151
  %v228 = vpop.f32.mrb[0].mxu0
  %v229 = vadd.f32 %v148, %v228
  %v230 = vpop.f32.mrb[0].mxu0
  %231 = vmatprep.mubr.f32.mxu0 0.0
  %232 = vmatmul.mubr.f32.gmra.mrb[0].mxu0 %v154
  %v233 = vpop.f32.mrb[0].mxu0
  %v234 = vadd.f32 %v148, %v233
  %v235 = vpop.f32.mrb[0].mxu0
  %236 = vmatprep.mubr.f32.mxu0 0.0
  %237 = vmatmul.mubr.f32.gmra.mrb[0].mxu0 %v157
  %v238 = vpop.f32.mrb[0].mxu0
  %v239 = vadd.f32 %v148, %v238
  %v240 = vpop.f32.mrb[0].mxu0
  %241 = vmatprep.mubr.f32.mxu0 0.0
  %242 = vmatmul.mubr.f32.gmra.mrb[0].mxu0 %v160
  %v243 = vpop.f32.mrb[0].mxu0
  %v244 = vadd.f32 %v148, %v243
  %v245 = vpop.f32.mrb[0].mxu0
  %246 = vdwg.mxu0
  %v247 = vld [vmem:[%s5] sm:$0xff]
  %v248 = vld [vmem:[%s5 + $0x8] sm:$0xff]
  %v249 = vld [vmem:[%s5 + $0x10] sm:$0xff]
  %v250 = vld [vmem:[%s5 + $0x18] sm:$0xff]
  %251 = vmatprep.subr.mxu0 0.0
  %252 = vmatpush1.msra.mxu0 %v247
  %253 = vmatprep.subr.mxu0 0.0
  %254 = vmatpush1.msra.mxu0 %v248
  %255 = vmatprep.subr.mxu0 0.0
  %256 = vmatpush1.msra.mxu0 %v249
  %257 = vmatprep.subr.mxu0 0.0
  %258 = vmatpush1.msra.mxu0 %v250
  %259 = vmatprep.subr.mxu0 0.0
  %260 = vmatpush1.msra.mxu0 0.0
  %261 = vmatprep.subr.mxu0 0.0
  %262 = vmatpush1.msra.mxu0 0.0
  %263 = vmatprep.subr.mxu0 0.0
  %264 = vmatpush1.msra.mxu0 0.0
  %265 = vmatprep.subr.mxu0 0.0
  %266 = vmatpush1.msra.mxu0 0.0
  %267 = vmatprep.subr.mxu0 0.0
  %268 = vmatpush1.msra.mxu0 0.0
  %269 = vmatprep.subr.mxu0 0.0
  %270 = vmatpush1.msra.mxu0 0.0
  %271 = vmatprep.subr.mxu0 0.0
  %272 = vmatpush1.msra.mxu0 0.0
  %273 = vmatprep.subr.mxu0 0.0
  %274 = vmatpush1.msra.mxu0 0.0
  %275 = vmatprep.subr.mxu0 0.0
  %276 = vmatpush1.msra.mxu0 0.0
  %277 = vmatprep.subr.mxu0 0.0
  %278 = vmatpush1.msra.mxu0 0.0
  %279 = vmatprep.subr.mxu0 0.0
  %280 = vmatpush1.msra.mxu0 0.0
  %281 = vmatprep.subr.mxu0 0.0
  %282 = vmatpush1.msra.mxu0 0.0
  %283 = vmatprep.subr.mxu0 0.0
  %284 = vmatpush1.msra.mxu0 0.0
  %285 = vmatprep.subr.mxu0 0.0
  %286 = vmatpush1.msra.mxu0 0.0
  %287 = vmatprep.subr.mxu0 0.0
  %288 = vmatpush1.msra.mxu0 0.0
  %289 = vmatprep.subr.mxu0 0.0
  %290 = vmatpush1.msra.mxu0 0.0
  %291 = vmatprep.subr.mxu0 0.0
  %292 = vmatpush1.msra.mxu0 0.0
  %293 = vmatprep.subr.mxu0 0.0
  %294 = vmatpush1.msra.mxu0 0.0
  %295 = vmatprep.subr.mxu0 0.0
  %296 = vmatpush1.msra.mxu0 0.0
  %297 = vmatprep.subr.mxu0 0.0
  %298 = vmatpush1.msra.mxu0 0.0
  %299 = vmatprep.subr.mxu0 0.0
  %300 = vmatpush1.msra.mxu0 0.0
  %301 = vmatprep.subr.mxu0 0.0
  %302 = vmatpush1.msra.mxu0 0.0
  %303 = vmatprep.subr.mxu0 0.0
  %304 = vmatpush1.msra.mxu0 0.0
  %305 = vmatprep.subr.mxu0 0.0
  %306 = vmatpush1.msra.mxu0 0.0
  %307 = vmatprep.subr.mxu0 0.0
  %308 = vmatpush1.msra.mxu0 0.0
  %309 = vmatprep.subr.mxu0 0.0
  %310 = vmatpush1.msra.mxu0 0.0
  %311 = vmatprep.subr.mxu0 0.0
  %312 = vmatpush1.msra.mxu0 0.0
  %313 = vmatprep.subr.mxu0 0.0
  %314 = vmatpush1.msra.mxu0 0.0
  %315 = vmatprep.mubr.f32.mxu0 0.0
  %316 = vmatmul.mubr.f32.gmra.mrb[0].mxu0 %v151
  %v317 = vpop.f32.mrb[0].mxu0
  %v318 = vadd.f32 0.0, %v317
  %v319 = vpop.f32.mrb[0].mxu0
  %320 = vmatprep.mubr.f32.mxu0 0.0
  %321 = vmatmul.mubr.f32.gmra.mrb[0].mxu0 %v154
  %v322 = vpop.f32.mrb[0].mxu0
  %v323 = vadd.f32 0.0, %v322
  %v324 = vpop.f32.mrb[0].mxu0
  %325 = vmatprep.mubr.f32.mxu0 0.0
  %326 = vmatmul.mubr.f32.gmra.mrb[0].mxu0 %v157
  %v327 = vpop.f32.mrb[0].mxu0
  %v328 = vadd.f32 0.0, %v327
  %v329 = vpop.f32.mrb[0].mxu0
  %330 = vmatprep.mubr.f32.mxu0 0.0
  %331 = vmatmul.mubr.f32.gmra.mrb[0].mxu0 %v160
  %v332 = vpop.f32.mrb[0].mxu0
  %v333 = vadd.f32 0.0, %v332
  %v334 = vpop.f32.mrb[0].mxu0
  %335 = vdwg.mxu0
  %v336 = vld [vmem:[%s6] sm:$0xff]
  %v337 = vld [vmem:[%s6 + $0x8] sm:$0xff]
  %v338 = vld [vmem:[%s6 + $0x10] sm:$0xff]
  %v339 = vld [vmem:[%s6 + $0x18] sm:$0xff]
  %v340 = vld [vmem:[%s7] sm:$0x1]
  %v342 = vlaneseq
  %v343 = vshrl.u32 %v342, 7
  %v344 = vsub.s32 0, %v343
  %v345 = vrot.slane %v340, %v344
  %347 = vmatprep.subr.mxu0 0.0
  %348 = vmatpush1.msra.mxu0 %v336
  %349 = vmatprep.subr.mxu0 0.0
  %350 = vmatpush1.msra.mxu0 %v337
  %351 = vmatprep.subr.mxu0 0.0
  %352 = vmatpush1.msra.mxu0 %v338
  %353 = vmatprep.subr.mxu0 0.0
  %354 = vmatpush1.msra.mxu0 %v339
  %355 = vmatprep.subr.mxu0 0.0
  %356 = vmatpush1.msra.mxu0 0.0
  %357 = vmatprep.subr.mxu0 0.0
  %358 = vmatpush1.msra.mxu0 0.0
  %359 = vmatprep.subr.mxu0 0.0
  %360 = vmatpush1.msra.mxu0 0.0
  %361 = vmatprep.subr.mxu0 0.0
  %362 = vmatpush1.msra.mxu0 0.0
  %363 = vmatprep.subr.mxu0 0.0
  %364 = vmatpush1.msra.mxu0 0.0
  %365 = vmatprep.subr.mxu0 0.0
  %366 = vmatpush1.msra.mxu0 0.0
  %367 = vmatprep.subr.mxu0 0.0
  %368 = vmatpush1.msra.mxu0 0.0
  %369 = vmatprep.subr.mxu0 0.0
  %370 = vmatpush1.msra.mxu0 0.0
  %371 = vmatprep.subr.mxu0 0.0
  %372 = vmatpush1.msra.mxu0 0.0
  %373 = vmatprep.subr.mxu0 0.0
  %374 = vmatpush1.msra.mxu0 0.0
  %375 = vmatprep.subr.mxu0 0.0
  %376 = vmatpush1.msra.mxu0 0.0
  %377 = vmatprep.subr.mxu0 0.0
  %378 = vmatpush1.msra.mxu0 0.0
  %379 = vmatprep.subr.mxu0 0.0
  %380 = vmatpush1.msra.mxu0 0.0
  %381 = vmatprep.subr.mxu0 0.0
  %382 = vmatpush1.msra.mxu0 0.0
  %383 = vmatprep.subr.mxu0 0.0
  %384 = vmatpush1.msra.mxu0 0.0
  %385 = vmatprep.subr.mxu0 0.0
  %386 = vmatpush1.msra.mxu0 0.0
  %387 = vmatprep.subr.mxu0 0.0
  %388 = vmatpush1.msra.mxu0 0.0
  %389 = vmatprep.subr.mxu0 0.0
  %390 = vmatpush1.msra.mxu0 0.0
  %391 = vmatprep.subr.mxu0 0.0
  %392 = vmatpush1.msra.mxu0 0.0
  %393 = vmatprep.subr.mxu0 0.0
  %394 = vmatpush1.msra.mxu0 0.0
  %395 = vmatprep.subr.mxu0 0.0
  %396 = vmatpush1.msra.mxu0 0.0
  %397 = vmatprep.subr.mxu0 0.0
  %398 = vmatpush1.msra.mxu0 0.0
  %399 = vmatprep.subr.mxu0 0.0
  %400 = vmatpush1.msra.mxu0 0.0
  %401 = vmatprep.subr.mxu0 0.0
  %402 = vmatpush1.msra.mxu0 0.0
  %403 = vmatprep.subr.mxu0 0.0
  %404 = vmatpush1.msra.mxu0 0.0
  %405 = vmatprep.subr.mxu0 0.0
  %406 = vmatpush1.msra.mxu0 0.0
  %407 = vmatprep.subr.mxu0 0.0
  %408 = vmatpush1.msra.mxu0 0.0
  %409 = vmatprep.subr.mxu0 0.0
  %410 = vmatpush1.msra.mxu0 0.0
  %411 = vmatprep.mubr.f32.mxu0 0.0
  %412 = vmatmul.mubr.f32.gmra.mrb[0].mxu0 %v151
  %v413 = vpop.f32.mrb[0].mxu0
  %v414 = vadd.f32 %v345, %v413
  %v415 = vpop.f32.mrb[0].mxu0
  %416 = vmatprep.mubr.f32.mxu0 0.0
  %417 = vmatmul.mubr.f32.gmra.mrb[0].mxu0 %v154
  %v418 = vpop.f32.mrb[0].mxu0
  %v419 = vadd.f32 %v345, %v418
  %v420 = vpop.f32.mrb[0].mxu0
  %421 = vmatprep.mubr.f32.mxu0 0.0
  %422 = vmatmul.mubr.f32.gmra.mrb[0].mxu0 %v157
  %v423 = vpop.f32.mrb[0].mxu0
  %v424 = vadd.f32 %v345, %v423
  %v425 = vpop.f32.mrb[0].mxu0
  %426 = vmatprep.mubr.f32.mxu0 0.0
  %427 = vmatmul.mubr.f32.gmra.mrb[0].mxu0 %v160
  %v428 = vpop.f32.mrb[0].mxu0
  %v429 = vadd.f32 %v345, %v428
  %v430 = vpop.f32.mrb[0].mxu0
  %431 = vdwg.mxu0
  %vm432 = vcmask 64512
  %v434 = vsel %vm432, %v229, 0
  %v437 = vsel %vm432, %v318, 0
  %439 = vmatprep.subr.mxu0 0.0
  %440 = vmatpush1.xpose.msra.mxu0 %v437
  %441 = vmatprep.subr.mxu0 0.0
  %442 = vmatpush1.xpose.msra.mxu0 0.0
  %443 = vmatprep.subr.mxu0 0.0
  %444 = vmatpush1.xpose.msra.mxu0 0.0
  %445 = vmatprep.subr.mxu0 0.0
  %446 = vmatpush1.xpose.msra.mxu0 0.0
  %447 = vmatprep.subr.mxu0 0.0
  %448 = vmatpush1.xpose.msra.mxu0 0.0
  %449 = vmatprep.subr.mxu0 0.0
  %450 = vmatpush1.xpose.msra.mxu0 0.0
  %451 = vmatprep.subr.mxu0 0.0
  %452 = vmatpush1.xpose.msra.mxu0 0.0
  %453 = vmatprep.subr.mxu0 0.0
  %454 = vmatpush1.xpose.msra.mxu0 0.0
  %455 = vmatprep.subr.mxu0 0.0
  %456 = vmatpush1.xpose.msra.mxu0 0.0
  %457 = vmatprep.subr.mxu0 0.0
  %458 = vmatpush1.xpose.msra.mxu0 0.0
  %459 = vmatprep.subr.mxu0 0.0
  %460 = vmatpush1.xpose.msra.mxu0 0.0
  %461 = vmatprep.subr.mxu0 0.0
  %462 = vmatpush1.xpose.msra.mxu0 0.0
  %463 = vmatprep.subr.mxu0 0.0
  %464 = vmatpush1.xpose.msra.mxu0 0.0
  %465 = vmatprep.subr.mxu0 0.0
  %466 = vmatpush1.xpose.msra.mxu0 0.0
  %467 = vmatprep.subr.mxu0 0.0
  %468 = vmatpush1.xpose.msra.mxu0 0.0
  %469 = vmatprep.subr.mxu0 0.0
  %470 = vmatpush1.xpose.msra.mxu0 0.0
  %471 = vmatprep.subr.mxu0 0.0
  %472 = vmatpush1.xpose.msra.mxu0 0.0
  %473 = vmatprep.subr.mxu0 0.0
  %474 = vmatpush1.xpose.msra.mxu0 0.0
  %475 = vmatprep.subr.mxu0 0.0
  %476 = vmatpush1.xpose.msra.mxu0 0.0
  %477 = vmatprep.subr.mxu0 0.0
  %478 = vmatpush1.xpose.msra.mxu0 0.0
  %479 = vmatprep.subr.mxu0 0.0
  %480 = vmatpush1.xpose.msra.mxu0 0.0
  %481 = vmatprep.subr.mxu0 0.0
  %482 = vmatpush1.xpose.msra.mxu0 0.0
  %483 = vmatprep.subr.mxu0 0.0
  %484 = vmatpush1.xpose.msra.mxu0 0.0
  %485 = vmatprep.subr.mxu0 0.0
  %486 = vmatpush1.xpose.msra.mxu0 0.0
  %487 = vmatprep.subr.mxu0 0.0
  %488 = vmatpush1.xpose.msra.mxu0 0.0
  %489 = vmatprep.subr.mxu0 0.0
  %490 = vmatpush1.xpose.msra.mxu0 0.0
  %491 = vmatprep.subr.mxu0 0.0
  %492 = vmatpush1.xpose.msra.mxu0 0.0
  %493 = vmatprep.subr.mxu0 0.0
  %494 = vmatpush1.xpose.msra.mxu0 0.0
  %495 = vmatprep.subr.mxu0 0.0
  %496 = vmatpush1.xpose.msra.mxu0 0.0
  %497 = vmatprep.subr.mxu0 0.0
  %498 = vmatpush1.xpose.msra.mxu0 0.0
  %499 = vmatprep.subr.mxu0 0.0
  %500 = vmatpush1.xpose.msra.mxu0 0.0
  %501 = vmatprep.subr.mxu0 0.0
  %502 = vmatpush1.xpose.msra.mxu0 0.0
  %503 = vmatprep.mubr.f32.mxu0 0.0
  %504 = vmatmul.mubr.f32.gmra.mrb[0].mxu0 %v434
  %v505 = vpop.f32.mrb[0].mxu0
  %v506 = vadd.f32 0.0, %v505
  %v507 = vpop.f32.mrb[0].mxu0
  %508 = vdwg.mxu0
  %v510 = vsel %vm432, %v234, 0
  %v513 = vsel %vm432, %v323, 0
  %515 = vmatprep.subr.mxu0 0.0
  %516 = vmatpush1.xpose.msra.mxu0 %v513
  %517 = vmatprep.subr.mxu0 0.0
  %518 = vmatpush1.xpose.msra.mxu0 0.0
  %519 = vmatprep.subr.mxu0 0.0
  %520 = vmatpush1.xpose.msra.mxu0 0.0
  %521 = vmatprep.subr.mxu0 0.0
  %522 = vmatpush1.xpose.msra.mxu0 0.0
  %523 = vmatprep.subr.mxu0 0.0
  %524 = vmatpush1.xpose.msra.mxu0 0.0
  %525 = vmatprep.subr.mxu0 0.0
  %526 = vmatpush1.xpose.msra.mxu0 0.0
  %527 = vmatprep.subr.mxu0 0.0
  %528 = vmatpush1.xpose.msra.mxu0 0.0
  %529 = vmatprep.subr.mxu0 0.0
  %530 = vmatpush1.xpose.msra.mxu0 0.0
  %531 = vmatprep.subr.mxu0 0.0
  %532 = vmatpush1.xpose.msra.mxu0 0.0
  %533 = vmatprep.subr.mxu0 0.0
  %534 = vmatpush1.xpose.msra.mxu0 0.0
  %535 = vmatprep.subr.mxu0 0.0
  %536 = vmatpush1.xpose.msra.mxu0 0.0
  %537 = vmatprep.subr.mxu0 0.0
  %538 = vmatpush1.xpose.msra.mxu0 0.0
  %539 = vmatprep.subr.mxu0 0.0
  %540 = vmatpush1.xpose.msra.mxu0 0.0
  %541 = vmatprep.subr.mxu0 0.0
  %542 = vmatpush1.xpose.msra.mxu0 0.0
  %543 = vmatprep.subr.mxu0 0.0
  %544 = vmatpush1.xpose.msra.mxu0 0.0
  %545 = vmatprep.subr.mxu0 0.0
  %546 = vmatpush1.xpose.msra.mxu0 0.0
  %547 = vmatprep.subr.mxu0 0.0
  %548 = vmatpush1.xpose.msra.mxu0 0.0
  %549 = vmatprep.subr.mxu0 0.0
  %550 = vmatpush1.xpose.msra.mxu0 0.0
  %551 = vmatprep.subr.mxu0 0.0
  %552 = vmatpush1.xpose.msra.mxu0 0.0
  %553 = vmatprep.subr.mxu0 0.0
  %554 = vmatpush1.xpose.msra.mxu0 0.0
  %555 = vmatprep.subr.mxu0 0.0
  %556 = vmatpush1.xpose.msra.mxu0 0.0
  %557 = vmatprep.subr.mxu0 0.0
  %558 = vmatpush1.xpose.msra.mxu0 0.0
  %559 = vmatprep.subr.mxu0 0.0
  %560 = vmatpush1.xpose.msra.mxu0 0.0
  %561 = vmatprep.subr.mxu0 0.0
  %562 = vmatpush1.xpose.msra.mxu0 0.0
  %563 = vmatprep.subr.mxu0 0.0
  %564 = vmatpush1.xpose.msra.mxu0 0.0
  %565 = vmatprep.subr.mxu0 0.0
  %566 = vmatpush1.xpose.msra.mxu0 0.0
  %567 = vmatprep.subr.mxu0 0.0
  %568 = vmatpush1.xpose.msra.mxu0 0.0
  %569 = vmatprep.subr.mxu0 0.0
  %570 = vmatpush1.xpose.msra.mxu0 0.0
  %571 = vmatprep.subr.mxu0 0.0
  %572 = vmatpush1.xpose.msra.mxu0 0.0
  %573 = vmatprep.subr.mxu0 0.0
  %574 = vmatpush1.xpose.msra.mxu0 0.0
  %575 = vmatprep.subr.mxu0 0.0
  %576 = vmatpush1.xpose.msra.mxu0 0.0
  %577 = vmatprep.subr.mxu0 0.0
  %578 = vmatpush1.xpose.msra.mxu0 0.0
  %579 = vmatprep.mubr.f32.mxu0 0.0
  %580 = vmatmul.mubr.f32.gmra.mrb[0].mxu0 %v510
  %v581 = vpop.f32.mrb[0].mxu0
  %v582 = vadd.f32 0.0, %v581
  %v583 = vpop.f32.mrb[0].mxu0
  %584 = vdwg.mxu0
  %v586 = vsel %vm432, %v239, 0
  %v589 = vsel %vm432, %v328, 0
  %591 = vmatprep.subr.mxu0 0.0
  %592 = vmatpush1.xpose.msra.mxu0 %v589
  %593 = vmatprep.subr.mxu0 0.0
  %594 = vmatpush1.xpose.msra.mxu0 0.0
  %595 = vmatprep.subr.mxu0 0.0
  %596 = vmatpush1.xpose.msra.mxu0 0.0
  %597 = vmatprep.subr.mxu0 0.0
  %598 = vmatpush1.xpose.msra.mxu0 0.0
  %599 = vmatprep.subr.mxu0 0.0
  %600 = vmatpush1.xpose.msra.mxu0 0.0
  %601 = vmatprep.subr.mxu0 0.0
  %602 = vmatpush1.xpose.msra.mxu0 0.0
  %603 = vmatprep.subr.mxu0 0.0
  %604 = vmatpush1.xpose.msra.mxu0 0.0
  %605 = vmatprep.subr.mxu0 0.0
  %606 = vmatpush1.xpose.msra.mxu0 0.0
  %607 = vmatprep.subr.mxu0 0.0
  %608 = vmatpush1.xpose.msra.mxu0 0.0
  %609 = vmatprep.subr.mxu0 0.0
  %610 = vmatpush1.xpose.msra.mxu0 0.0
  %611 = vmatprep.subr.mxu0 0.0
  %612 = vmatpush1.xpose.msra.mxu0 0.0
  %613 = vmatprep.subr.mxu0 0.0
  %614 = vmatpush1.xpose.msra.mxu0 0.0
  %615 = vmatprep.subr.mxu0 0.0
  %616 = vmatpush1.xpose.msra.mxu0 0.0
  %617 = vmatprep.subr.mxu0 0.0
  %618 = vmatpush1.xpose.msra.mxu0 0.0
  %619 = vmatprep.subr.mxu0 0.0
  %620 = vmatpush1.xpose.msra.mxu0 0.0
  %621 = vmatprep.subr.mxu0 0.0
  %622 = vmatpush1.xpose.msra.mxu0 0.0
  %623 = vmatprep.subr.mxu0 0.0
  %624 = vmatpush1.xpose.msra.mxu0 0.0
  %625 = vmatprep.subr.mxu0 0.0
  %626 = vmatpush1.xpose.msra.mxu0 0.0
  %627 = vmatprep.subr.mxu0 0.0
  %628 = vmatpush1.xpose.msra.mxu0 0.0
  %629 = vmatprep.subr.mxu0 0.0
  %630 = vmatpush1.xpose.msra.mxu0 0.0
  %631 = vmatprep.subr.mxu0 0.0
  %632 = vmatpush1.xpose.msra.mxu0 0.0
  %633 = vmatprep.subr.mxu0 0.0
  %634 = vmatpush1.xpose.msra.mxu0 0.0
  %635 = vmatprep.subr.mxu0 0.0
  %636 = vmatpush1.xpose.msra.mxu0 0.0
  %637 = vmatprep.subr.mxu0 0.0
  %638 = vmatpush1.xpose.msra.mxu0 0.0
  %639 = vmatprep.subr.mxu0 0.0
  %640 = vmatpush1.xpose.msra.mxu0 0.0
  %641 = vmatprep.subr.mxu0 0.0
  %642 = vmatpush1.xpose.msra.mxu0 0.0
  %643 = vmatprep.subr.mxu0 0.0
  %644 = vmatpush1.xpose.msra.mxu0 0.0
  %645 = vmatprep.subr.mxu0 0.0
  %646 = vmatpush1.xpose.msra.mxu0 0.0
  %647 = vmatprep.subr.mxu0 0.0
  %648 = vmatpush1.xpose.msra.mxu0 0.0
  %649 = vmatprep.subr.mxu0 0.0
  %650 = vmatpush1.xpose.msra.mxu0 0.0
  %651 = vmatprep.subr.mxu0 0.0
  %652 = vmatpush1.xpose.msra.mxu0 0.0
  %653 = vmatprep.subr.mxu0 0.0
  %654 = vmatpush1.xpose.msra.mxu0 0.0
  %655 = vmatprep.mubr.f32.mxu0 0.0
  %656 = vmatmul.mubr.f32.gmra.mrb[0].mxu0 %v586
  %v657 = vpop.f32.mrb[0].mxu0
  %v658 = vadd.f32 0.0, %v657
  %v659 = vpop.f32.mrb[0].mxu0
  %660 = vdwg.mxu0
  %v662 = vsel %vm432, %v244, 0
  %v665 = vsel %vm432, %v333, 0
  %667 = vmatprep.subr.mxu0 0.0
  %668 = vmatpush1.xpose.msra.mxu0 %v665
  %669 = vmatprep.subr.mxu0 0.0
  %670 = vmatpush1.xpose.msra.mxu0 0.0
  %671 = vmatprep.subr.mxu0 0.0
  %672 = vmatpush1.xpose.msra.mxu0 0.0
  %673 = vmatprep.subr.mxu0 0.0
  %674 = vmatpush1.xpose.msra.mxu0 0.0
  %675 = vmatprep.subr.mxu0 0.0
  %676 = vmatpush1.xpose.msra.mxu0 0.0
  %677 = vmatprep.subr.mxu0 0.0
  %678 = vmatpush1.xpose.msra.mxu0 0.0
  %679 = vmatprep.subr.mxu0 0.0
  %680 = vmatpush1.xpose.msra.mxu0 0.0
  %681 = vmatprep.subr.mxu0 0.0
  %682 = vmatpush1.xpose.msra.mxu0 0.0
  %683 = vmatprep.subr.mxu0 0.0
  %684 = vmatpush1.xpose.msra.mxu0 0.0
  %685 = vmatprep.subr.mxu0 0.0
  %686 = vmatpush1.xpose.msra.mxu0 0.0
  %687 = vmatprep.subr.mxu0 0.0
  %688 = vmatpush1.xpose.msra.mxu0 0.0
  %689 = vmatprep.subr.mxu0 0.0
  %690 = vmatpush1.xpose.msra.mxu0 0.0
  %691 = vmatprep.subr.mxu0 0.0
  %692 = vmatpush1.xpose.msra.mxu0 0.0
  %693 = vmatprep.subr.mxu0 0.0
  %694 = vmatpush1.xpose.msra.mxu0 0.0
  %695 = vmatprep.subr.mxu0 0.0
  %696 = vmatpush1.xpose.msra.mxu0 0.0
  %697 = vmatprep.subr.mxu0 0.0
  %698 = vmatpush1.xpose.msra.mxu0 0.0
  %699 = vmatprep.subr.mxu0 0.0
  %700 = vmatpush1.xpose.msra.mxu0 0.0
  %701 = vmatprep.subr.mxu0 0.0
  %702 = vmatpush1.xpose.msra.mxu0 0.0
  %703 = vmatprep.subr.mxu0 0.0
  %704 = vmatpush1.xpose.msra.mxu0 0.0
  %705 = vmatprep.subr.mxu0 0.0
  %706 = vmatpush1.xpose.msra.mxu0 0.0
  %707 = vmatprep.subr.mxu0 0.0
  %708 = vmatpush1.xpose.msra.mxu0 0.0
  %709 = vmatprep.subr.mxu0 0.0
  %710 = vmatpush1.xpose.msra.mxu0 0.0
  %711 = vmatprep.subr.mxu0 0.0
  %712 = vmatpush1.xpose.msra.mxu0 0.0
  %713 = vmatprep.subr.mxu0 0.0
  %714 = vmatpush1.xpose.msra.mxu0 0.0
  %715 = vmatprep.subr.mxu0 0.0
  %716 = vmatpush1.xpose.msra.mxu0 0.0
  %717 = vmatprep.subr.mxu0 0.0
  %718 = vmatpush1.xpose.msra.mxu0 0.0
  %719 = vmatprep.subr.mxu0 0.0
  %720 = vmatpush1.xpose.msra.mxu0 0.0
  %721 = vmatprep.subr.mxu0 0.0
  %722 = vmatpush1.xpose.msra.mxu0 0.0
  %723 = vmatprep.subr.mxu0 0.0
  %724 = vmatpush1.xpose.msra.mxu0 0.0
  %725 = vmatprep.subr.mxu0 0.0
  %726 = vmatpush1.xpose.msra.mxu0 0.0
  %727 = vmatprep.subr.mxu0 0.0
  %728 = vmatpush1.xpose.msra.mxu0 0.0
  %729 = vmatprep.subr.mxu0 0.0
  %730 = vmatpush1.xpose.msra.mxu0 0.0
  %731 = vmatprep.mubr.f32.mxu0 0.0
  %732 = vmatmul.mubr.f32.gmra.mrb[0].mxu0 %v662
  %v733 = vpop.f32.mrb[0].mxu0
  %v734 = vadd.f32 0.0, %v733
  %v735 = vpop.f32.mrb[0].mxu0
  %736 = vdwg.mxu0
  %v737 = vmul.f32 %v506, 0.35355338
  %v738 = vmul.f32 %v582, 0.35355338
  %v739 = vmul.f32 %v658, 0.35355338
  %v740 = vmul.f32 %v734, 0.35355338
  %v741 = vsel %vm432, %v737, -inf
  %742 = vmax.xlane.f32.xlu0 %v741
  %v743 = vpop.xlane.xlu0 %742
  %v744 = vsel %vm432, %v738, -inf
  %745 = vmax.xlane.f32.xlu0 %v744
  %v746 = vpop.xlane.xlu0 %745
  %v747 = vsel %vm432, %v739, -inf
  %748 = vmax.xlane.f32.xlu0 %v747
  %v749 = vpop.xlane.xlu0 %748
  %v750 = vsel %vm432, %v740, -inf
  %751 = vmax.xlane.f32.xlu0 %v750
  %v752 = vpop.xlane.xlu0 %751
  %v753 = vsub.f32 %v737, %v743
  %v754 = vsub.f32 %v738, %v746
  %v755 = vsub.f32 %v739, %v749
  %v756 = vsub.f32 %v740, %v752
  %v757 = vmul.f32 %v753, 1.442695
  %v758 = vpow.pop %v757
  %v759 = vmul.f32 %v754, 1.442695
  %v760 = vpow.pop %v759
  %v761 = vmul.f32 %v755, 1.442695
  %v762 = vpow.pop %v761
  %v763 = vmul.f32 %v756, 1.442695
  %v764 = vpow.pop %v763
  %v765 = vsel %vm432, %v758, 0.0
  %766 = vadd.xlane.f32.xlu0 %v765
  %v767 = vpop.xlane.xlu0 %766
  %v768 = vsel %vm432, %v760, 0.0
  %769 = vadd.xlane.f32.xlu0 %v768
  %v770 = vpop.xlane.xlu0 %769
  %v771 = vsel %vm432, %v762, 0.0
  %772 = vadd.xlane.f32.xlu0 %v771
  %v773 = vpop.xlane.xlu0 %772
  %v774 = vsel %vm432, %v764, 0.0
  %775 = vadd.xlane.f32.xlu0 %v774
  %v776 = vpop.xlane.xlu0 %775
  %v777 = vrcp.pop %v767
  %v778 = vrcp.pop %v770
  %v779 = vrcp.pop %v773
  %v780 = vrcp.pop %v776
  %v781 = vmul.f32 %v758, %v777
  %v782 = vmul.f32 %v760, %v778
  %v783 = vmul.f32 %v762, %v779
  %v784 = vmul.f32 %v764, %v780
  %v786 = vsel %vm432, %v781, 0
  %788 = vmatprep.subr.mxu0 0.0
  %789 = vmatpush1.msra.mxu0 %v414
  %790 = vmatprep.subr.mxu0 0.0
  %791 = vmatpush1.msra.mxu0 0.0
  %792 = vmatprep.subr.mxu0 0.0
  %793 = vmatpush1.msra.mxu0 0.0
  %794 = vmatprep.subr.mxu0 0.0
  %795 = vmatpush1.msra.mxu0 0.0
  %796 = vmatprep.subr.mxu0 0.0
  %797 = vmatpush1.msra.mxu0 0.0
  %798 = vmatprep.subr.mxu0 0.0
  %799 = vmatpush1.msra.mxu0 0.0
  %800 = vmatprep.subr.mxu0 0.0
  %801 = vmatpush1.msra.mxu0 0.0
  %802 = vmatprep.subr.mxu0 0.0
  %803 = vmatpush1.msra.mxu0 0.0
  %804 = vmatprep.subr.mxu0 0.0
  %805 = vmatpush1.msra.mxu0 0.0
  %806 = vmatprep.subr.mxu0 0.0
  %807 = vmatpush1.msra.mxu0 0.0
  %808 = vmatprep.subr.mxu0 0.0
  %809 = vmatpush1.msra.mxu0 0.0
  %810 = vmatprep.subr.mxu0 0.0
  %811 = vmatpush1.msra.mxu0 0.0
  %812 = vmatprep.subr.mxu0 0.0
  %813 = vmatpush1.msra.mxu0 0.0
  %814 = vmatprep.subr.mxu0 0.0
  %815 = vmatpush1.msra.mxu0 0.0
  %816 = vmatprep.subr.mxu0 0.0
  %817 = vmatpush1.msra.mxu0 0.0
  %818 = vmatprep.subr.mxu0 0.0
  %819 = vmatpush1.msra.mxu0 0.0
  %820 = vmatprep.subr.mxu0 0.0
  %821 = vmatpush1.msra.mxu0 0.0
  %822 = vmatprep.subr.mxu0 0.0
  %823 = vmatpush1.msra.mxu0 0.0
  %824 = vmatprep.subr.mxu0 0.0
  %825 = vmatpush1.msra.mxu0 0.0
  %826 = vmatprep.subr.mxu0 0.0
  %827 = vmatpush1.msra.mxu0 0.0
  %828 = vmatprep.subr.mxu0 0.0
  %829 = vmatpush1.msra.mxu0 0.0
  %830 = vmatprep.subr.mxu0 0.0
  %831 = vmatpush1.msra.mxu0 0.0
  %832 = vmatprep.subr.mxu0 0.0
  %833 = vmatpush1.msra.mxu0 0.0
  %834 = vmatprep.subr.mxu0 0.0
  %835 = vmatpush1.msra.mxu0 0.0
  %836 = vmatprep.subr.mxu0 0.0
  %837 = vmatpush1.msra.mxu0 0.0
  %838 = vmatprep.subr.mxu0 0.0
  %839 = vmatpush1.msra.mxu0 0.0
  %840 = vmatprep.subr.mxu0 0.0
  %841 = vmatpush1.msra.mxu0 0.0
  %842 = vmatprep.subr.mxu0 0.0
  %843 = vmatpush1.msra.mxu0 0.0
  %844 = vmatprep.subr.mxu0 0.0
  %845 = vmatpush1.msra.mxu0 0.0
  %846 = vmatprep.subr.mxu0 0.0
  %847 = vmatpush1.msra.mxu0 0.0
  %848 = vmatprep.subr.mxu0 0.0
  %849 = vmatpush1.msra.mxu0 0.0
  %850 = vmatprep.subr.mxu0 0.0
  %851 = vmatpush1.msra.mxu0 0.0
  %852 = vmatprep.mubr.f32.mxu0 0.0
  %853 = vmatmul.mubr.f32.gmra.mrb[0].mxu0 %v786
  %v854 = vpop.f32.mrb[0].mxu0
  %v855 = vadd.f32 0.0, %v854
  %v856 = vpop.f32.mrb[0].mxu0
  %857 = vdwg.mxu0
  %v859 = vsel %vm432, %v782, 0
  %861 = vmatprep.subr.mxu0 0.0
  %862 = vmatpush1.msra.mxu0 %v419
  %863 = vmatprep.subr.mxu0 0.0
  %864 = vmatpush1.msra.mxu0 0.0
  %865 = vmatprep.subr.mxu0 0.0
  %866 = vmatpush1.msra.mxu0 0.0
  %867 = vmatprep.subr.mxu0 0.0
  %868 = vmatpush1.msra.mxu0 0.0
  %869 = vmatprep.subr.mxu0 0.0
  %870 = vmatpush1.msra.mxu0 0.0
  %871 = vmatprep.subr.mxu0 0.0
  %872 = vmatpush1.msra.mxu0 0.0
  %873 = vmatprep.subr.mxu0 0.0
  %874 = vmatpush1.msra.mxu0 0.0
  %875 = vmatprep.subr.mxu0 0.0
  %876 = vmatpush1.msra.mxu0 0.0
  %877 = vmatprep.subr.mxu0 0.0
  %878 = vmatpush1.msra.mxu0 0.0
  %879 = vmatprep.subr.mxu0 0.0
  %880 = vmatpush1.msra.mxu0 0.0
  %881 = vmatprep.subr.mxu0 0.0
  %882 = vmatpush1.msra.mxu0 0.0
  %883 = vmatprep.subr.mxu0 0.0
  %884 = vmatpush1.msra.mxu0 0.0
  %885 = vmatprep.subr.mxu0 0.0
  %886 = vmatpush1.msra.mxu0 0.0
  %887 = vmatprep.subr.mxu0 0.0
  %888 = vmatpush1.msra.mxu0 0.0
  %889 = vmatprep.subr.mxu0 0.0
  %890 = vmatpush1.msra.mxu0 0.0
  %891 = vmatprep.subr.mxu0 0.0
  %892 = vmatpush1.msra.mxu0 0.0
  %893 = vmatprep.subr.mxu0 0.0
  %894 = vmatpush1.msra.mxu0 0.0
  %895 = vmatprep.subr.mxu0 0.0
  %896 = vmatpush1.msra.mxu0 0.0
  %897 = vmatprep.subr.mxu0 0.0
  %898 = vmatpush1.msra.mxu0 0.0
  %899 = vmatprep.subr.mxu0 0.0
  %900 = vmatpush1.msra.mxu0 0.0
  %901 = vmatprep.subr.mxu0 0.0
  %902 = vmatpush1.msra.mxu0 0.0
  %903 = vmatprep.subr.mxu0 0.0
  %904 = vmatpush1.msra.mxu0 0.0
  %905 = vmatprep.subr.mxu0 0.0
  %906 = vmatpush1.msra.mxu0 0.0
  %907 = vmatprep.subr.mxu0 0.0
  %908 = vmatpush1.msra.mxu0 0.0
  %909 = vmatprep.subr.mxu0 0.0
  %910 = vmatpush1.msra.mxu0 0.0
  %911 = vmatprep.subr.mxu0 0.0
  %912 = vmatpush1.msra.mxu0 0.0
  %913 = vmatprep.subr.mxu0 0.0
  %914 = vmatpush1.msra.mxu0 0.0
  %915 = vmatprep.subr.mxu0 0.0
  %916 = vmatpush1.msra.mxu0 0.0
  %917 = vmatprep.subr.mxu0 0.0
  %918 = vmatpush1.msra.mxu0 0.0
  %919 = vmatprep.subr.mxu0 0.0
  %920 = vmatpush1.msra.mxu0 0.0
  %921 = vmatprep.subr.mxu0 0.0
  %922 = vmatpush1.msra.mxu0 0.0
  %923 = vmatprep.subr.mxu0 0.0
  %924 = vmatpush1.msra.mxu0 0.0
  %925 = vmatprep.mubr.f32.mxu0 0.0
  %926 = vmatmul.mubr.f32.gmra.mrb[0].mxu0 %v859
  %v927 = vpop.f32.mrb[0].mxu0
  %v928 = vadd.f32 0.0, %v927
  %v929 = vpop.f32.mrb[0].mxu0
  %930 = vdwg.mxu0
  %v932 = vsel %vm432, %v783, 0
  %934 = vmatprep.subr.mxu0 0.0
  %935 = vmatpush1.msra.mxu0 %v424
  %936 = vmatprep.subr.mxu0 0.0
  %937 = vmatpush1.msra.mxu0 0.0
  %938 = vmatprep.subr.mxu0 0.0
  %939 = vmatpush1.msra.mxu0 0.0
  %940 = vmatprep.subr.mxu0 0.0
  %941 = vmatpush1.msra.mxu0 0.0
  %942 = vmatprep.subr.mxu0 0.0
  %943 = vmatpush1.msra.mxu0 0.0
  %944 = vmatprep.subr.mxu0 0.0
  %945 = vmatpush1.msra.mxu0 0.0
  %946 = vmatprep.subr.mxu0 0.0
  %947 = vmatpush1.msra.mxu0 0.0
  %948 = vmatprep.subr.mxu0 0.0
  %949 = vmatpush1.msra.mxu0 0.0
  %950 = vmatprep.subr.mxu0 0.0
  %951 = vmatpush1.msra.mxu0 0.0
  %952 = vmatprep.subr.mxu0 0.0
  %953 = vmatpush1.msra.mxu0 0.0
  %954 = vmatprep.subr.mxu0 0.0
  %955 = vmatpush1.msra.mxu0 0.0
  %956 = vmatprep.subr.mxu0 0.0
  %957 = vmatpush1.msra.mxu0 0.0
  %958 = vmatprep.subr.mxu0 0.0
  %959 = vmatpush1.msra.mxu0 0.0
  %960 = vmatprep.subr.mxu0 0.0
  %961 = vmatpush1.msra.mxu0 0.0
  %962 = vmatprep.subr.mxu0 0.0
  %963 = vmatpush1.msra.mxu0 0.0
  %964 = vmatprep.subr.mxu0 0.0
  %965 = vmatpush1.msra.mxu0 0.0
  %966 = vmatprep.subr.mxu0 0.0
  %967 = vmatpush1.msra.mxu0 0.0
  %968 = vmatprep.subr.mxu0 0.0
  %969 = vmatpush1.msra.mxu0 0.0
  %970 = vmatprep.subr.mxu0 0.0
  %971 = vmatpush1.msra.mxu0 0.0
  %972 = vmatprep.subr.mxu0 0.0
  %973 = vmatpush1.msra.mxu0 0.0
  %974 = vmatprep.subr.mxu0 0.0
  %975 = vmatpush1.msra.mxu0 0.0
  %976 = vmatprep.subr.mxu0 0.0
  %977 = vmatpush1.msra.mxu0 0.0
  %978 = vmatprep.subr.mxu0 0.0
  %979 = vmatpush1.msra.mxu0 0.0
  %980 = vmatprep.subr.mxu0 0.0
  %981 = vmatpush1.msra.mxu0 0.0
  %982 = vmatprep.subr.mxu0 0.0
  %983 = vmatpush1.msra.mxu0 0.0
  %984 = vmatprep.subr.mxu0 0.0
  %985 = vmatpush1.msra.mxu0 0.0
  %986 = vmatprep.subr.mxu0 0.0
  %987 = vmatpush1.msra.mxu0 0.0
  %988 = vmatprep.subr.mxu0 0.0
  %989 = vmatpush1.msra.mxu0 0.0
  %990 = vmatprep.subr.mxu0 0.0
  %991 = vmatpush1.msra.mxu0 0.0
  %992 = vmatprep.subr.mxu0 0.0
  %993 = vmatpush1.msra.mxu0 0.0
  %994 = vmatprep.subr.mxu0 0.0
  %995 = vmatpush1.msra.mxu0 0.0
  %996 = vmatprep.subr.mxu0 0.0
  %997 = vmatpush1.msra.mxu0 0.0
  %998 = vmatprep.mubr.f32.mxu0 0.0
  %999 = vmatmul.mubr.f32.gmra.mrb[0].mxu0 %v932
  %v1000 = vpop.f32.mrb[0].mxu0
  %v1001 = vadd.f32 0.0, %v1000
  %v1002 = vpop.f32.mrb[0].mxu0
  %1003 = vdwg.mxu0
  %v1005 = vsel %vm432, %v784, 0
  %1007 = vmatprep.subr.mxu0 0.0
  %1008 = vmatpush1.msra.mxu0 %v429
  %1009 = vmatprep.subr.mxu0 0.0
  %1010 = vmatpush1.msra.mxu0 0.0
  %1011 = vmatprep.subr.mxu0 0.0
  %1012 = vmatpush1.msra.mxu0 0.0
  %1013 = vmatprep.subr.mxu0 0.0
  %1014 = vmatpush1.msra.mxu0 0.0
  %1015 = vmatprep.subr.mxu0 0.0
  %1016 = vmatpush1.msra.mxu0 0.0
  %1017 = vmatprep.subr.mxu0 0.0
  %1018 = vmatpush1.msra.mxu0 0.0
  %1019 = vmatprep.subr.mxu0 0.0
  %1020 = vmatpush1.msra.mxu0 0.0
  %1021 = vmatprep.subr.mxu0 0.0
  %1022 = vmatpush1.msra.mxu0 0.0
  %1023 = vmatprep.subr.mxu0 0.0
  %1024 = vmatpush1.msra.mxu0 0.0
  %1025 = vmatprep.subr.mxu0 0.0
  %1026 = vmatpush1.msra.mxu0 0.0
  %1027 = vmatprep.subr.mxu0 0.0
  %1028 = vmatpush1.msra.mxu0 0.0
  %1029 = vmatprep.subr.mxu0 0.0
  %1030 = vmatpush1.msra.mxu0 0.0
  %1031 = vmatprep.subr.mxu0 0.0
  %1032 = vmatpush1.msra.mxu0 0.0
  %1033 = vmatprep.subr.mxu0 0.0
  %1034 = vmatpush1.msra.mxu0 0.0
  %1035 = vmatprep.subr.mxu0 0.0
  %1036 = vmatpush1.msra.mxu0 0.0
  %1037 = vmatprep.subr.mxu0 0.0
  %1038 = vmatpush1.msra.mxu0 0.0
  %1039 = vmatprep.subr.mxu0 0.0
  %1040 = vmatpush1.msra.mxu0 0.0
  %1041 = vmatprep.subr.mxu0 0.0
  %1042 = vmatpush1.msra.mxu0 0.0
  %1043 = vmatprep.subr.mxu0 0.0
  %1044 = vmatpush1.msra.mxu0 0.0
  %1045 = vmatprep.subr.mxu0 0.0
  %1046 = vmatpush1.msra.mxu0 0.0
  %1047 = vmatprep.subr.mxu0 0.0
  %1048 = vmatpush1.msra.mxu0 0.0
  %1049 = vmatprep.subr.mxu0 0.0
  %1050 = vmatpush1.msra.mxu0 0.0
  %1051 = vmatprep.subr.mxu0 0.0
  %1052 = vmatpush1.msra.mxu0 0.0
  %1053 = vmatprep.subr.mxu0 0.0
  %1054 = vmatpush1.msra.mxu0 0.0
  %1055 = vmatprep.subr.mxu0 0.0
  %1056 = vmatpush1.msra.mxu0 0.0
  %1057 = vmatprep.subr.mxu0 0.0
  %1058 = vmatpush1.msra.mxu0 0.0
  %1059 = vmatprep.subr.mxu0 0.0
  %1060 = vmatpush1.msra.mxu0 0.0
  %1061 = vmatprep.subr.mxu0 0.0
  %1062 = vmatpush1.msra.mxu0 0.0
  %1063 = vmatprep.subr.mxu0 0.0
  %1064 = vmatpush1.msra.mxu0 0.0
  %1065 = vmatprep.subr.mxu0 0.0
  %1066 = vmatpush1.msra.mxu0 0.0
  %1067 = vmatprep.subr.mxu0 0.0
  %1068 = vmatpush1.msra.mxu0 0.0
  %1069 = vmatprep.subr.mxu0 0.0
  %1070 = vmatpush1.msra.mxu0 0.0
  %1071 = vmatprep.mubr.f32.mxu0 0.0
  %1072 = vmatmul.mubr.f32.gmra.mrb[0].mxu0 %v1005
  %v1073 = vpop.f32.mrb[0].mxu0
  %v1074 = vadd.f32 0.0, %v1073
  %v1075 = vpop.f32.mrb[0].mxu0
  %1076 = vdwg.mxu0
  %1077 = vrot.lane.b32.xlu0 %v229, 120
  %v1078 = vpop.permute.xlu0 %1077
  %1079 = vrot.lane.b32.xlu0 %v318, 120
  %v1080 = vpop.permute.xlu0 %1079
  %v1081 = vsel %vm432, %v1078, 0
  %v1083 = vsel %vm432, %v1080, 0
  %1085 = vmatprep.subr.mxu0 0.0
  %1086 = vmatpush1.xpose.msra.mxu0 %v1083
  %1087 = vmatprep.subr.mxu0 0.0
  %1088 = vmatpush1.xpose.msra.mxu0 0.0
  %1089 = vmatprep.subr.mxu0 0.0
  %1090 = vmatpush1.xpose.msra.mxu0 0.0
  %1091 = vmatprep.subr.mxu0 0.0
  %1092 = vmatpush1.xpose.msra.mxu0 0.0
  %1093 = vmatprep.subr.mxu0 0.0
  %1094 = vmatpush1.xpose.msra.mxu0 0.0
  %1095 = vmatprep.subr.mxu0 0.0
  %1096 = vmatpush1.xpose.msra.mxu0 0.0
  %1097 = vmatprep.subr.mxu0 0.0
  %1098 = vmatpush1.xpose.msra.mxu0 0.0
  %1099 = vmatprep.subr.mxu0 0.0
  %1100 = vmatpush1.xpose.msra.mxu0 0.0
  %1101 = vmatprep.subr.mxu0 0.0
  %1102 = vmatpush1.xpose.msra.mxu0 0.0
  %1103 = vmatprep.subr.mxu0 0.0
  %1104 = vmatpush1.xpose.msra.mxu0 0.0
  %1105 = vmatprep.subr.mxu0 0.0
  %1106 = vmatpush1.xpose.msra.mxu0 0.0
  %1107 = vmatprep.subr.mxu0 0.0
  %1108 = vmatpush1.xpose.msra.mxu0 0.0
  %1109 = vmatprep.subr.mxu0 0.0
  %1110 = vmatpush1.xpose.msra.mxu0 0.0
  %1111 = vmatprep.subr.mxu0 0.0
  %1112 = vmatpush1.xpose.msra.mxu0 0.0
  %1113 = vmatprep.subr.mxu0 0.0
  %1114 = vmatpush1.xpose.msra.mxu0 0.0
  %1115 = vmatprep.subr.mxu0 0.0
  %1116 = vmatpush1.xpose.msra.mxu0 0.0
  %1117 = vmatprep.subr.mxu0 0.0
  %1118 = vmatpush1.xpose.msra.mxu0 0.0
  %1119 = vmatprep.subr.mxu0 0.0
  %1120 = vmatpush1.xpose.msra.mxu0 0.0
  %1121 = vmatprep.subr.mxu0 0.0
  %1122 = vmatpush1.xpose.msra.mxu0 0.0
  %1123 = vmatprep.subr.mxu0 0.0
  %1124 = vmatpush1.xpose.msra.mxu0 0.0
  %1125 = vmatprep.subr.mxu0 0.0
  %1126 = vmatpush1.xpose.msra.mxu0 0.0
  %1127 = vmatprep.subr.mxu0 0.0
  %1128 = vmatpush1.xpose.msra.mxu0 0.0
  %1129 = vmatprep.subr.mxu0 0.0
  %1130 = vmatpush1.xpose.msra.mxu0 0.0
  %1131 = vmatprep.subr.mxu0 0.0
  %1132 = vmatpush1.xpose.msra.mxu0 0.0
  %1133 = vmatprep.subr.mxu0 0.0
  %1134 = vmatpush1.xpose.msra.mxu0 0.0
  %1135 = vmatprep.subr.mxu0 0.0
  %1136 = vmatpush1.xpose.msra.mxu0 0.0
  %1137 = vmatprep.subr.mxu0 0.0
  %1138 = vmatpush1.xpose.msra.mxu0 0.0
  %1139 = vmatprep.subr.mxu0 0.0
  %1140 = vmatpush1.xpose.msra.mxu0 0.0
  %1141 = vmatprep.subr.mxu0 0.0
  %1142 = vmatpush1.xpose.msra.mxu0 0.0
  %1143 = vmatprep.subr.mxu0 0.0
  %1144 = vmatpush1.xpose.msra.mxu0 0.0
  %1145 = vmatprep.subr.mxu0 0.0
  %1146 = vmatpush1.xpose.msra.mxu0 0.0
  %1147 = vmatprep.subr.mxu0 0.0
  %1148 = vmatpush1.xpose.msra.mxu0 0.0
  %1149 = vmatprep.mubr.f32.mxu0 0.0
  %1150 = vmatmul.mubr.f32.gmra.mrb[0].mxu0 %v1081
  %v1151 = vpop.f32.mrb[0].mxu0
  %v1152 = vadd.f32 0.0, %v1151
  %v1153 = vpop.f32.mrb[0].mxu0
  %1154 = vdwg.mxu0
  %1155 = vrot.lane.b32.xlu0 %v234, 120
  %v1156 = vpop.permute.xlu0 %1155
  %1157 = vrot.lane.b32.xlu0 %v323, 120
  %v1158 = vpop.permute.xlu0 %1157
  %v1159 = vsel %vm432, %v1156, 0
  %v1161 = vsel %vm432, %v1158, 0
  %1163 = vmatprep.subr.mxu0 0.0
  %1164 = vmatpush1.xpose.msra.mxu0 %v1161
  %1165 = vmatprep.subr.mxu0 0.0
  %1166 = vmatpush1.xpose.msra.mxu0 0.0
  %1167 = vmatprep.subr.mxu0 0.0
  %1168 = vmatpush1.xpose.msra.mxu0 0.0
  %1169 = vmatprep.subr.mxu0 0.0
  %1170 = vmatpush1.xpose.msra.mxu0 0.0
  %1171 = vmatprep.subr.mxu0 0.0
  %1172 = vmatpush1.xpose.msra.mxu0 0.0
  %1173 = vmatprep.subr.mxu0 0.0
  %1174 = vmatpush1.xpose.msra.mxu0 0.0
  %1175 = vmatprep.subr.mxu0 0.0
  %1176 = vmatpush1.xpose.msra.mxu0 0.0
  %1177 = vmatprep.subr.mxu0 0.0
  %1178 = vmatpush1.xpose.msra.mxu0 0.0
  %1179 = vmatprep.subr.mxu0 0.0
  %1180 = vmatpush1.xpose.msra.mxu0 0.0
  %1181 = vmatprep.subr.mxu0 0.0
  %1182 = vmatpush1.xpose.msra.mxu0 0.0
  %1183 = vmatprep.subr.mxu0 0.0
  %1184 = vmatpush1.xpose.msra.mxu0 0.0
  %1185 = vmatprep.subr.mxu0 0.0
  %1186 = vmatpush1.xpose.msra.mxu0 0.0
  %1187 = vmatprep.subr.mxu0 0.0
  %1188 = vmatpush1.xpose.msra.mxu0 0.0
  %1189 = vmatprep.subr.mxu0 0.0
  %1190 = vmatpush1.xpose.msra.mxu0 0.0
  %1191 = vmatprep.subr.mxu0 0.0
  %1192 = vmatpush1.xpose.msra.mxu0 0.0
  %1193 = vmatprep.subr.mxu0 0.0
  %1194 = vmatpush1.xpose.msra.mxu0 0.0
  %1195 = vmatprep.subr.mxu0 0.0
  %1196 = vmatpush1.xpose.msra.mxu0 0.0
  %1197 = vmatprep.subr.mxu0 0.0
  %1198 = vmatpush1.xpose.msra.mxu0 0.0
  %1199 = vmatprep.subr.mxu0 0.0
  %1200 = vmatpush1.xpose.msra.mxu0 0.0
  %1201 = vmatprep.subr.mxu0 0.0
  %1202 = vmatpush1.xpose.msra.mxu0 0.0
  %1203 = vmatprep.subr.mxu0 0.0
  %1204 = vmatpush1.xpose.msra.mxu0 0.0
  %1205 = vmatprep.subr.mxu0 0.0
  %1206 = vmatpush1.xpose.msra.mxu0 0.0
  %1207 = vmatprep.subr.mxu0 0.0
  %1208 = vmatpush1.xpose.msra.mxu0 0.0
  %1209 = vmatprep.subr.mxu0 0.0
  %1210 = vmatpush1.xpose.msra.mxu0 0.0
  %1211 = vmatprep.subr.mxu0 0.0
  %1212 = vmatpush1.xpose.msra.mxu0 0.0
  %1213 = vmatprep.subr.mxu0 0.0
  %1214 = vmatpush1.xpose.msra.mxu0 0.0
  %1215 = vmatprep.subr.mxu0 0.0
  %1216 = vmatpush1.xpose.msra.mxu0 0.0
  %1217 = vmatprep.subr.mxu0 0.0
  %1218 = vmatpush1.xpose.msra.mxu0 0.0
  %1219 = vmatprep.subr.mxu0 0.0
  %1220 = vmatpush1.xpose.msra.mxu0 0.0
  %1221 = vmatprep.subr.mxu0 0.0
  %1222 = vmatpush1.xpose.msra.mxu0 0.0
  %1223 = vmatprep.subr.mxu0 0.0
  %1224 = vmatpush1.xpose.msra.mxu0 0.0
  %1225 = vmatprep.subr.mxu0 0.0
  %1226 = vmatpush1.xpose.msra.mxu0 0.0
  %1227 = vmatprep.mubr.f32.mxu0 0.0
  %1228 = vmatmul.mubr.f32.gmra.mrb[0].mxu0 %v1159
  %v1229 = vpop.f32.mrb[0].mxu0
  %v1230 = vadd.f32 0.0, %v1229
  %v1231 = vpop.f32.mrb[0].mxu0
  %1232 = vdwg.mxu0
  %1233 = vrot.lane.b32.xlu0 %v239, 120
  %v1234 = vpop.permute.xlu0 %1233
  %1235 = vrot.lane.b32.xlu0 %v328, 120
  %v1236 = vpop.permute.xlu0 %1235
  %v1237 = vsel %vm432, %v1234, 0
  %v1239 = vsel %vm432, %v1236, 0
  %1241 = vmatprep.subr.mxu0 0.0
  %1242 = vmatpush1.xpose.msra.mxu0 %v1239
  %1243 = vmatprep.subr.mxu0 0.0
  %1244 = vmatpush1.xpose.msra.mxu0 0.0
  %1245 = vmatprep.subr.mxu0 0.0
  %1246 = vmatpush1.xpose.msra.mxu0 0.0
  %1247 = vmatprep.subr.mxu0 0.0
  %1248 = vmatpush1.xpose.msra.mxu0 0.0
  %1249 = vmatprep.subr.mxu0 0.0
  %1250 = vmatpush1.xpose.msra.mxu0 0.0
  %1251 = vmatprep.subr.mxu0 0.0
  %1252 = vmatpush1.xpose.msra.mxu0 0.0
  %1253 = vmatprep.subr.mxu0 0.0
  %1254 = vmatpush1.xpose.msra.mxu0 0.0
  %1255 = vmatprep.subr.mxu0 0.0
  %1256 = vmatpush1.xpose.msra.mxu0 0.0
  %1257 = vmatprep.subr.mxu0 0.0
  %1258 = vmatpush1.xpose.msra.mxu0 0.0
  %1259 = vmatprep.subr.mxu0 0.0
  %1260 = vmatpush1.xpose.msra.mxu0 0.0
  %1261 = vmatprep.subr.mxu0 0.0
  %1262 = vmatpush1.xpose.msra.mxu0 0.0
  %1263 = vmatprep.subr.mxu0 0.0
  %1264 = vmatpush1.xpose.msra.mxu0 0.0
  %1265 = vmatprep.subr.mxu0 0.0
  %1266 = vmatpush1.xpose.msra.mxu0 0.0
  %1267 = vmatprep.subr.mxu0 0.0
  %1268 = vmatpush1.xpose.msra.mxu0 0.0
  %1269 = vmatprep.subr.mxu0 0.0
  %1270 = vmatpush1.xpose.msra.mxu0 0.0
  %1271 = vmatprep.subr.mxu0 0.0
  %1272 = vmatpush1.xpose.msra.mxu0 0.0
  %1273 = vmatprep.subr.mxu0 0.0
  %1274 = vmatpush1.xpose.msra.mxu0 0.0
  %1275 = vmatprep.subr.mxu0 0.0
  %1276 = vmatpush1.xpose.msra.mxu0 0.0
  %1277 = vmatprep.subr.mxu0 0.0
  %1278 = vmatpush1.xpose.msra.mxu0 0.0
  %1279 = vmatprep.subr.mxu0 0.0
  %1280 = vmatpush1.xpose.msra.mxu0 0.0
  %1281 = vmatprep.subr.mxu0 0.0
  %1282 = vmatpush1.xpose.msra.mxu0 0.0
  %1283 = vmatprep.subr.mxu0 0.0
  %1284 = vmatpush1.xpose.msra.mxu0 0.0
  %1285 = vmatprep.subr.mxu0 0.0
  %1286 = vmatpush1.xpose.msra.mxu0 0.0
  %1287 = vmatprep.subr.mxu0 0.0
  %1288 = vmatpush1.xpose.msra.mxu0 0.0
  %1289 = vmatprep.subr.mxu0 0.0
  %1290 = vmatpush1.xpose.msra.mxu0 0.0
  %1291 = vmatprep.subr.mxu0 0.0
  %1292 = vmatpush1.xpose.msra.mxu0 0.0
  %1293 = vmatprep.subr.mxu0 0.0
  %1294 = vmatpush1.xpose.msra.mxu0 0.0
  %1295 = vmatprep.subr.mxu0 0.0
  %1296 = vmatpush1.xpose.msra.mxu0 0.0
  %1297 = vmatprep.subr.mxu0 0.0
  %1298 = vmatpush1.xpose.msra.mxu0 0.0
  %1299 = vmatprep.subr.mxu0 0.0
  %1300 = vmatpush1.xpose.msra.mxu0 0.0
  %1301 = vmatprep.subr.mxu0 0.0
  %1302 = vmatpush1.xpose.msra.mxu0 0.0
  %1303 = vmatprep.subr.mxu0 0.0
  %1304 = vmatpush1.xpose.msra.mxu0 0.0
  %1305 = vmatprep.mubr.f32.mxu0 0.0
  %1306 = vmatmul.mubr.f32.gmra.mrb[0].mxu0 %v1237
  %v1307 = vpop.f32.mrb[0].mxu0
  %v1308 = vadd.f32 0.0, %v1307
  %v1309 = vpop.f32.mrb[0].mxu0
  %1310 = vdwg.mxu0
  %1311 = vrot.lane.b32.xlu0 %v244, 120
  %v1312 = vpop.permute.xlu0 %1311
  %1313 = vrot.lane.b32.xlu0 %v333, 120
  %v1314 = vpop.permute.xlu0 %1313
  %v1315 = vsel %vm432, %v1312, 0
  %v1317 = vsel %vm432, %v1314, 0
  %1319 = vmatprep.subr.mxu0 0.0
  %1320 = vmatpush1.xpose.msra.mxu0 %v1317
  %1321 = vmatprep.subr.mxu0 0.0
  %1322 = vmatpush1.xpose.msra.mxu0 0.0
  %1323 = vmatprep.subr.mxu0 0.0
  %1324 = vmatpush1.xpose.msra.mxu0 0.0
  %1325 = vmatprep.subr.mxu0 0.0
  %1326 = vmatpush1.xpose.msra.mxu0 0.0
  %1327 = vmatprep.subr.mxu0 0.0
  %1328 = vmatpush1.xpose.msra.mxu0 0.0
  %1329 = vmatprep.subr.mxu0 0.0
  %1330 = vmatpush1.xpose.msra.mxu0 0.0
  %1331 = vmatprep.subr.mxu0 0.0
  %1332 = vmatpush1.xpose.msra.mxu0 0.0
  %1333 = vmatprep.subr.mxu0 0.0
  %1334 = vmatpush1.xpose.msra.mxu0 0.0
  %1335 = vmatprep.subr.mxu0 0.0
  %1336 = vmatpush1.xpose.msra.mxu0 0.0
  %1337 = vmatprep.subr.mxu0 0.0
  %1338 = vmatpush1.xpose.msra.mxu0 0.0
  %1339 = vmatprep.subr.mxu0 0.0
  %1340 = vmatpush1.xpose.msra.mxu0 0.0
  %1341 = vmatprep.subr.mxu0 0.0
  %1342 = vmatpush1.xpose.msra.mxu0 0.0
  %1343 = vmatprep.subr.mxu0 0.0
  %1344 = vmatpush1.xpose.msra.mxu0 0.0
  %1345 = vmatprep.subr.mxu0 0.0
  %1346 = vmatpush1.xpose.msra.mxu0 0.0
  %1347 = vmatprep.subr.mxu0 0.0
  %1348 = vmatpush1.xpose.msra.mxu0 0.0
  %1349 = vmatprep.subr.mxu0 0.0
  %1350 = vmatpush1.xpose.msra.mxu0 0.0
  %1351 = vmatprep.subr.mxu0 0.0
  %1352 = vmatpush1.xpose.msra.mxu0 0.0
  %1353 = vmatprep.subr.mxu0 0.0
  %1354 = vmatpush1.xpose.msra.mxu0 0.0
  %1355 = vmatprep.subr.mxu0 0.0
  %1356 = vmatpush1.xpose.msra.mxu0 0.0
  %1357 = vmatprep.subr.mxu0 0.0
  %1358 = vmatpush1.xpose.msra.mxu0 0.0
  %1359 = vmatprep.subr.mxu0 0.0
  %1360 = vmatpush1.xpose.msra.mxu0 0.0
  %1361 = vmatprep.subr.mxu0 0.0
  %1362 = vmatpush1.xpose.msra.mxu0 0.0
  %1363 = vmatprep.subr.mxu0 0.0
  %1364 = vmatpush1.xpose.msra.mxu0 0.0
  %1365 = vmatprep.subr.mxu0 0.0
  %1366 = vmatpush1.xpose.msra.mxu0 0.0
  %1367 = vmatprep.subr.mxu0 0.0
  %1368 = vmatpush1.xpose.msra.mxu0 0.0
  %1369 = vmatprep.subr.mxu0 0.0
  %1370 = vmatpush1.xpose.msra.mxu0 0.0
  %1371 = vmatprep.subr.mxu0 0.0
  %1372 = vmatpush1.xpose.msra.mxu0 0.0
  %1373 = vmatprep.subr.mxu0 0.0
  %1374 = vmatpush1.xpose.msra.mxu0 0.0
  %1375 = vmatprep.subr.mxu0 0.0
  %1376 = vmatpush1.xpose.msra.mxu0 0.0
  %1377 = vmatprep.subr.mxu0 0.0
  %1378 = vmatpush1.xpose.msra.mxu0 0.0
  %1379 = vmatprep.subr.mxu0 0.0
  %1380 = vmatpush1.xpose.msra.mxu0 0.0
  %1381 = vmatprep.subr.mxu0 0.0
  %1382 = vmatpush1.xpose.msra.mxu0 0.0
  %1383 = vmatprep.mubr.f32.mxu0 0.0
  %1384 = vmatmul.mubr.f32.gmra.mrb[0].mxu0 %v1315
  %v1385 = vpop.f32.mrb[0].mxu0
  %v1386 = vadd.f32 0.0, %v1385
  %v1387 = vpop.f32.mrb[0].mxu0
  %1388 = vdwg.mxu0
  %v1389 = vmul.f32 %v1152, 0.35355338
  %v1390 = vmul.f32 %v1230, 0.35355338
  %v1391 = vmul.f32 %v1308, 0.35355338
  %v1392 = vmul.f32 %v1386, 0.35355338
  %v1393 = vsel %vm432, %v1389, -inf
  %1394 = vmax.xlane.f32.xlu0 %v1393
  %v1395 = vpop.xlane.xlu0 %1394
  %v1396 = vsel %vm432, %v1390, -inf
  %1397 = vmax.xlane.f32.xlu0 %v1396
  %v1398 = vpop.xlane.xlu0 %1397
  %v1399 = vsel %vm432, %v1391, -inf
  %1400 = vmax.xlane.f32.xlu0 %v1399
  %v1401 = vpop.xlane.xlu0 %1400
  %v1402 = vsel %vm432, %v1392, -inf
  %1403 = vmax.xlane.f32.xlu0 %v1402
  %v1404 = vpop.xlane.xlu0 %1403
  %v1405 = vsub.f32 %v1389, %v1395
  %v1406 = vsub.f32 %v1390, %v1398
  %v1407 = vsub.f32 %v1391, %v1401
  %v1408 = vsub.f32 %v1392, %v1404
  %v1409 = vmul.f32 %v1405, 1.442695
  %v1410 = vpow.pop %v1409
  %v1411 = vmul.f32 %v1406, 1.442695
  %v1412 = vpow.pop %v1411
  %v1413 = vmul.f32 %v1407, 1.442695
  %v1414 = vpow.pop %v1413
  %v1415 = vmul.f32 %v1408, 1.442695
  %v1416 = vpow.pop %v1415
  %v1417 = vsel %vm432, %v1410, 0.0
  %1418 = vadd.xlane.f32.xlu0 %v1417
  %v1419 = vpop.xlane.xlu0 %1418
  %v1420 = vsel %vm432, %v1412, 0.0
  %1421 = vadd.xlane.f32.xlu0 %v1420
  %v1422 = vpop.xlane.xlu0 %1421
  %v1423 = vsel %vm432, %v1414, 0.0
  %1424 = vadd.xlane.f32.xlu0 %v1423
  %v1425 = vpop.xlane.xlu0 %1424
  %v1426 = vsel %vm432, %v1416, 0.0
  %1427 = vadd.xlane.f32.xlu0 %v1426
  %v1428 = vpop.xlane.xlu0 %1427
  %v1429 = vrcp.pop %v1419
  %v1430 = vrcp.pop %v1422
  %v1431 = vrcp.pop %v1425
  %v1432 = vrcp.pop %v1428
  %v1433 = vmul.f32 %v1410, %v1429
  %v1434 = vmul.f32 %v1412, %v1430
  %v1435 = vmul.f32 %v1414, %v1431
  %v1436 = vmul.f32 %v1416, %v1432
  %1438 = vrot.lane.b32.xlu0 %v414, 120
  %v1439 = vpop.permute.xlu0 %1438
  %v1442 = vsel %vm432, %v1433, 0
  %1444 = vmatprep.subr.mxu0 0.0
  %1445 = vmatpush1.msra.mxu0 %v1439
  %1446 = vmatprep.subr.mxu0 0.0
  %1447 = vmatpush1.msra.mxu0 0.0
  %1448 = vmatprep.subr.mxu0 0.0
  %1449 = vmatpush1.msra.mxu0 0.0
  %1450 = vmatprep.subr.mxu0 0.0
  %1451 = vmatpush1.msra.mxu0 0.0
  %1452 = vmatprep.subr.mxu0 0.0
  %1453 = vmatpush1.msra.mxu0 0.0
  %1454 = vmatprep.subr.mxu0 0.0
  %1455 = vmatpush1.msra.mxu0 0.0
  %1456 = vmatprep.subr.mxu0 0.0
  %1457 = vmatpush1.msra.mxu0 0.0
  %1458 = vmatprep.subr.mxu0 0.0
  %1459 = vmatpush1.msra.mxu0 0.0
  %1460 = vmatprep.subr.mxu0 0.0
  %1461 = vmatpush1.msra.mxu0 0.0
  %1462 = vmatprep.subr.mxu0 0.0
  %1463 = vmatpush1.msra.mxu0 0.0
  %1464 = vmatprep.subr.mxu0 0.0
  %1465 = vmatpush1.msra.mxu0 0.0
  %1466 = vmatprep.subr.mxu0 0.0
  %1467 = vmatpush1.msra.mxu0 0.0
  %1468 = vmatprep.subr.mxu0 0.0
  %1469 = vmatpush1.msra.mxu0 0.0
  %1470 = vmatprep.subr.mxu0 0.0
  %1471 = vmatpush1.msra.mxu0 0.0
  %1472 = vmatprep.subr.mxu0 0.0
  %1473 = vmatpush1.msra.mxu0 0.0
  %1474 = vmatprep.subr.mxu0 0.0
  %1475 = vmatpush1.msra.mxu0 0.0
  %1476 = vmatprep.subr.mxu0 0.0
  %1477 = vmatpush1.msra.mxu0 0.0
  %1478 = vmatprep.subr.mxu0 0.0
  %1479 = vmatpush1.msra.mxu0 0.0
  %1480 = vmatprep.subr.mxu0 0.0
  %1481 = vmatpush1.msra.mxu0 0.0
  %1482 = vmatprep.subr.mxu0 0.0
  %1483 = vmatpush1.msra.mxu0 0.0
  %1484 = vmatprep.subr.mxu0 0.0
  %1485 = vmatpush1.msra.mxu0 0.0
  %1486 = vmatprep.subr.mxu0 0.0
  %1487 = vmatpush1.msra.mxu0 0.0
  %1488 = vmatprep.subr.mxu0 0.0
  %1489 = vmatpush1.msra.mxu0 0.0
  %1490 = vmatprep.subr.mxu0 0.0
  %1491 = vmatpush1.msra.mxu0 0.0
  %1492 = vmatprep.subr.mxu0 0.0
  %1493 = vmatpush1.msra.mxu0 0.0
  %1494 = vmatprep.subr.mxu0 0.0
  %1495 = vmatpush1.msra.mxu0 0.0
  %1496 = vmatprep.subr.mxu0 0.0
  %1497 = vmatpush1.msra.mxu0 0.0
  %1498 = vmatprep.subr.mxu0 0.0
  %1499 = vmatpush1.msra.mxu0 0.0
  %1500 = vmatprep.subr.mxu0 0.0
  %1501 = vmatpush1.msra.mxu0 0.0
  %1502 = vmatprep.subr.mxu0 0.0
  %1503 = vmatpush1.msra.mxu0 0.0
  %1504 = vmatprep.subr.mxu0 0.0
  %1505 = vmatpush1.msra.mxu0 0.0
  %1506 = vmatprep.subr.mxu0 0.0
  %1507 = vmatpush1.msra.mxu0 0.0
  %1508 = vmatprep.mubr.f32.mxu0 0.0
  %1509 = vmatmul.mubr.f32.gmra.mrb[0].mxu0 %v1442
  %v1510 = vpop.f32.mrb[0].mxu0
  %v1511 = vadd.f32 0.0, %v1510
  %v1512 = vpop.f32.mrb[0].mxu0
  %1513 = vdwg.mxu0
  %1515 = vrot.lane.b32.xlu0 %v419, 120
  %v1516 = vpop.permute.xlu0 %1515
  %v1519 = vsel %vm432, %v1434, 0
  %1521 = vmatprep.subr.mxu0 0.0
  %1522 = vmatpush1.msra.mxu0 %v1516
  %1523 = vmatprep.subr.mxu0 0.0
  %1524 = vmatpush1.msra.mxu0 0.0
  %1525 = vmatprep.subr.mxu0 0.0
  %1526 = vmatpush1.msra.mxu0 0.0
  %1527 = vmatprep.subr.mxu0 0.0
  %1528 = vmatpush1.msra.mxu0 0.0
  %1529 = vmatprep.subr.mxu0 0.0
  %1530 = vmatpush1.msra.mxu0 0.0
  %1531 = vmatprep.subr.mxu0 0.0
  %1532 = vmatpush1.msra.mxu0 0.0
  %1533 = vmatprep.subr.mxu0 0.0
  %1534 = vmatpush1.msra.mxu0 0.0
  %1535 = vmatprep.subr.mxu0 0.0
  %1536 = vmatpush1.msra.mxu0 0.0
  %1537 = vmatprep.subr.mxu0 0.0
  %1538 = vmatpush1.msra.mxu0 0.0
  %1539 = vmatprep.subr.mxu0 0.0
  %1540 = vmatpush1.msra.mxu0 0.0
  %1541 = vmatprep.subr.mxu0 0.0
  %1542 = vmatpush1.msra.mxu0 0.0
  %1543 = vmatprep.subr.mxu0 0.0
  %1544 = vmatpush1.msra.mxu0 0.0
  %1545 = vmatprep.subr.mxu0 0.0
  %1546 = vmatpush1.msra.mxu0 0.0
  %1547 = vmatprep.subr.mxu0 0.0
  %1548 = vmatpush1.msra.mxu0 0.0
  %1549 = vmatprep.subr.mxu0 0.0
  %1550 = vmatpush1.msra.mxu0 0.0
  %1551 = vmatprep.subr.mxu0 0.0
  %1552 = vmatpush1.msra.mxu0 0.0
  %1553 = vmatprep.subr.mxu0 0.0
  %1554 = vmatpush1.msra.mxu0 0.0
  %1555 = vmatprep.subr.mxu0 0.0
  %1556 = vmatpush1.msra.mxu0 0.0
  %1557 = vmatprep.subr.mxu0 0.0
  %1558 = vmatpush1.msra.mxu0 0.0
  %1559 = vmatprep.subr.mxu0 0.0
  %1560 = vmatpush1.msra.mxu0 0.0
  %1561 = vmatprep.subr.mxu0 0.0
  %1562 = vmatpush1.msra.mxu0 0.0
  %1563 = vmatprep.subr.mxu0 0.0
  %1564 = vmatpush1.msra.mxu0 0.0
  %1565 = vmatprep.subr.mxu0 0.0
  %1566 = vmatpush1.msra.mxu0 0.0
  %1567 = vmatprep.subr.mxu0 0.0
  %1568 = vmatpush1.msra.mxu0 0.0
  %1569 = vmatprep.subr.mxu0 0.0
  %1570 = vmatpush1.msra.mxu0 0.0
  %1571 = vmatprep.subr.mxu0 0.0
  %1572 = vmatpush1.msra.mxu0 0.0
  %1573 = vmatprep.subr.mxu0 0.0
  %1574 = vmatpush1.msra.mxu0 0.0
  %1575 = vmatprep.subr.mxu0 0.0
  %1576 = vmatpush1.msra.mxu0 0.0
  %1577 = vmatprep.subr.mxu0 0.0
  %1578 = vmatpush1.msra.mxu0 0.0
  %1579 = vmatprep.subr.mxu0 0.0
  %1580 = vmatpush1.msra.mxu0 0.0
  %1581 = vmatprep.subr.mxu0 0.0
  %1582 = vmatpush1.msra.mxu0 0.0
  %1583 = vmatprep.subr.mxu0 0.0
  %1584 = vmatpush1.msra.mxu0 0.0
  %1585 = vmatprep.mubr.f32.mxu0 0.0
  %1586 = vmatmul.mubr.f32.gmra.mrb[0].mxu0 %v1519
  %v1587 = vpop.f32.mrb[0].mxu0
  %v1588 = vadd.f32 0.0, %v1587
  %v1589 = vpop.f32.mrb[0].mxu0
  %1590 = vdwg.mxu0
  %1592 = vrot.lane.b32.xlu0 %v424, 120
  %v1593 = vpop.permute.xlu0 %1592
  %v1596 = vsel %vm432, %v1435, 0
  %1598 = vmatprep.subr.mxu0 0.0
  %1599 = vmatpush1.msra.mxu0 %v1593
  %1600 = vmatprep.subr.mxu0 0.0
  %1601 = vmatpush1.msra.mxu0 0.0
  %1602 = vmatprep.subr.mxu0 0.0
  %1603 = vmatpush1.msra.mxu0 0.0
  %1604 = vmatprep.subr.mxu0 0.0
  %1605 = vmatpush1.msra.mxu0 0.0
  %1606 = vmatprep.subr.mxu0 0.0
  %1607 = vmatpush1.msra.mxu0 0.0
  %1608 = vmatprep.subr.mxu0 0.0
  %1609 = vmatpush1.msra.mxu0 0.0
  %1610 = vmatprep.subr.mxu0 0.0
  %1611 = vmatpush1.msra.mxu0 0.0
  %1612 = vmatprep.subr.mxu0 0.0
  %1613 = vmatpush1.msra.mxu0 0.0
  %1614 = vmatprep.subr.mxu0 0.0
  %1615 = vmatpush1.msra.mxu0 0.0
  %1616 = vmatprep.subr.mxu0 0.0
  %1617 = vmatpush1.msra.mxu0 0.0
  %1618 = vmatprep.subr.mxu0 0.0
  %1619 = vmatpush1.msra.mxu0 0.0
  %1620 = vmatprep.subr.mxu0 0.0
  %1621 = vmatpush1.msra.mxu0 0.0
  %1622 = vmatprep.subr.mxu0 0.0
  %1623 = vmatpush1.msra.mxu0 0.0
  %1624 = vmatprep.subr.mxu0 0.0
  %1625 = vmatpush1.msra.mxu0 0.0
  %1626 = vmatprep.subr.mxu0 0.0
  %1627 = vmatpush1.msra.mxu0 0.0
  %1628 = vmatprep.subr.mxu0 0.0
  %1629 = vmatpush1.msra.mxu0 0.0
  %1630 = vmatprep.subr.mxu0 0.0
  %1631 = vmatpush1.msra.mxu0 0.0
  %1632 = vmatprep.subr.mxu0 0.0
  %1633 = vmatpush1.msra.mxu0 0.0
  %1634 = vmatprep.subr.mxu0 0.0
  %1635 = vmatpush1.msra.mxu0 0.0
  %1636 = vmatprep.subr.mxu0 0.0
  %1637 = vmatpush1.msra.mxu0 0.0
  %1638 = vmatprep.subr.mxu0 0.0
  %1639 = vmatpush1.msra.mxu0 0.0
  %1640 = vmatprep.subr.mxu0 0.0
  %1641 = vmatpush1.msra.mxu0 0.0
  %1642 = vmatprep.subr.mxu0 0.0
  %1643 = vmatpush1.msra.mxu0 0.0
  %1644 = vmatprep.subr.mxu0 0.0
  %1645 = vmatpush1.msra.mxu0 0.0
  %1646 = vmatprep.subr.mxu0 0.0
  %1647 = vmatpush1.msra.mxu0 0.0
  %1648 = vmatprep.subr.mxu0 0.0
  %1649 = vmatpush1.msra.mxu0 0.0
  %1650 = vmatprep.subr.mxu0 0.0
  %1651 = vmatpush1.msra.mxu0 0.0
  %1652 = vmatprep.subr.mxu0 0.0
  %1653 = vmatpush1.msra.mxu0 0.0
  %1654 = vmatprep.subr.mxu0 0.0
  %1655 = vmatpush1.msra.mxu0 0.0
  %1656 = vmatprep.subr.mxu0 0.0
  %1657 = vmatpush1.msra.mxu0 0.0
  %1658 = vmatprep.subr.mxu0 0.0
  %1659 = vmatpush1.msra.mxu0 0.0
  %1660 = vmatprep.subr.mxu0 0.0
  %1661 = vmatpush1.msra.mxu0 0.0
  %1662 = vmatprep.mubr.f32.mxu0 0.0
  %1663 = vmatmul.mubr.f32.gmra.mrb[0].mxu0 %v1596
  %v1664 = vpop.f32.mrb[0].mxu0
  %v1665 = vadd.f32 0.0, %v1664
  %v1666 = vpop.f32.mrb[0].mxu0
  %1667 = vdwg.mxu0
  %1669 = vrot.lane.b32.xlu0 %v429, 120
  %v1670 = vpop.permute.xlu0 %1669
  %v1673 = vsel %vm432, %v1436, 0
  %1675 = vmatprep.subr.mxu0 0.0
  %1676 = vmatpush1.msra.mxu0 %v1670
  %1677 = vmatprep.subr.mxu0 0.0
  %1678 = vmatpush1.msra.mxu0 0.0
  %1679 = vmatprep.subr.mxu0 0.0
  %1680 = vmatpush1.msra.mxu0 0.0
  %1681 = vmatprep.subr.mxu0 0.0
  %1682 = vmatpush1.msra.mxu0 0.0
  %1683 = vmatprep.subr.mxu0 0.0
  %1684 = vmatpush1.msra.mxu0 0.0
  %1685 = vmatprep.subr.mxu0 0.0
  %1686 = vmatpush1.msra.mxu0 0.0
  %1687 = vmatprep.subr.mxu0 0.0
  %1688 = vmatpush1.msra.mxu0 0.0
  %1689 = vmatprep.subr.mxu0 0.0
  %1690 = vmatpush1.msra.mxu0 0.0
  %1691 = vmatprep.subr.mxu0 0.0
  %1692 = vmatpush1.msra.mxu0 0.0
  %1693 = vmatprep.subr.mxu0 0.0
  %1694 = vmatpush1.msra.mxu0 0.0
  %1695 = vmatprep.subr.mxu0 0.0
  %1696 = vmatpush1.msra.mxu0 0.0
  %1697 = vmatprep.subr.mxu0 0.0
  %1698 = vmatpush1.msra.mxu0 0.0
  %1699 = vmatprep.subr.mxu0 0.0
  %1700 = vmatpush1.msra.mxu0 0.0
  %1701 = vmatprep.subr.mxu0 0.0
  %1702 = vmatpush1.msra.mxu0 0.0
  %1703 = vmatprep.subr.mxu0 0.0
  %1704 = vmatpush1.msra.mxu0 0.0
  %1705 = vmatprep.subr.mxu0 0.0
  %1706 = vmatpush1.msra.mxu0 0.0
  %1707 = vmatprep.subr.mxu0 0.0
  %1708 = vmatpush1.msra.mxu0 0.0
  %1709 = vmatprep.subr.mxu0 0.0
  %1710 = vmatpush1.msra.mxu0 0.0
  %1711 = vmatprep.subr.mxu0 0.0
  %1712 = vmatpush1.msra.mxu0 0.0
  %1713 = vmatprep.subr.mxu0 0.0
  %1714 = vmatpush1.msra.mxu0 0.0
  %1715 = vmatprep.subr.mxu0 0.0
  %1716 = vmatpush1.msra.mxu0 0.0
  %1717 = vmatprep.subr.mxu0 0.0
  %1718 = vmatpush1.msra.mxu0 0.0
  %1719 = vmatprep.subr.mxu0 0.0
  %1720 = vmatpush1.msra.mxu0 0.0
  %1721 = vmatprep.subr.mxu0 0.0
  %1722 = vmatpush1.msra.mxu0 0.0
  %1723 = vmatprep.subr.mxu0 0.0
  %1724 = vmatpush1.msra.mxu0 0.0
  %1725 = vmatprep.subr.mxu0 0.0
  %1726 = vmatpush1.msra.mxu0 0.0
  %1727 = vmatprep.subr.mxu0 0.0
  %1728 = vmatpush1.msra.mxu0 0.0
  %1729 = vmatprep.subr.mxu0 0.0
  %1730 = vmatpush1.msra.mxu0 0.0
  %1731 = vmatprep.subr.mxu0 0.0
  %1732 = vmatpush1.msra.mxu0 0.0
  %1733 = vmatprep.subr.mxu0 0.0
  %1734 = vmatpush1.msra.mxu0 0.0
  %1735 = vmatprep.subr.mxu0 0.0
  %1736 = vmatpush1.msra.mxu0 0.0
  %1737 = vmatprep.subr.mxu0 0.0
  %1738 = vmatpush1.msra.mxu0 0.0
  %1739 = vmatprep.mubr.f32.mxu0 0.0
  %1740 = vmatmul.mubr.f32.gmra.mrb[0].mxu0 %v1673
  %v1741 = vpop.f32.mrb[0].mxu0
  %v1742 = vadd.f32 0.0, %v1741
  %v1743 = vpop.f32.mrb[0].mxu0
  %1744 = vdwg.mxu0
  %1745 = vrot.lane.b32.xlu0 %v229, 112
  %v1746 = vpop.permute.xlu0 %1745
  %1747 = vrot.lane.b32.xlu0 %v318, 112
  %v1748 = vpop.permute.xlu0 %1747
  %v1749 = vsel %vm432, %v1746, 0
  %v1751 = vsel %vm432, %v1748, 0
  %1753 = vmatprep.subr.mxu0 0.0
  %1754 = vmatpush1.xpose.msra.mxu0 %v1751
  %1755 = vmatprep.subr.mxu0 0.0
  %1756 = vmatpush1.xpose.msra.mxu0 0.0
  %1757 = vmatprep.subr.mxu0 0.0
  %1758 = vmatpush1.xpose.msra.mxu0 0.0
  %1759 = vmatprep.subr.mxu0 0.0
  %1760 = vmatpush1.xpose.msra.mxu0 0.0
  %1761 = vmatprep.subr.mxu0 0.0
  %1762 = vmatpush1.xpose.msra.mxu0 0.0
  %1763 = vmatprep.subr.mxu0 0.0
  %1764 = vmatpush1.xpose.msra.mxu0 0.0
  %1765 = vmatprep.subr.mxu0 0.0
  %1766 = vmatpush1.xpose.msra.mxu0 0.0
  %1767 = vmatprep.subr.mxu0 0.0
  %1768 = vmatpush1.xpose.msra.mxu0 0.0
  %1769 = vmatprep.subr.mxu0 0.0
  %1770 = vmatpush1.xpose.msra.mxu0 0.0
  %1771 = vmatprep.subr.mxu0 0.0
  %1772 = vmatpush1.xpose.msra.mxu0 0.0
  %1773 = vmatprep.subr.mxu0 0.0
  %1774 = vmatpush1.xpose.msra.mxu0 0.0
  %1775 = vmatprep.subr.mxu0 0.0
  %1776 = vmatpush1.xpose.msra.mxu0 0.0
  %1777 = vmatprep.subr.mxu0 0.0
  %1778 = vmatpush1.xpose.msra.mxu0 0.0
  %1779 = vmatprep.subr.mxu0 0.0
  %1780 = vmatpush1.xpose.msra.mxu0 0.0
  %1781 = vmatprep.subr.mxu0 0.0
  %1782 = vmatpush1.xpose.msra.mxu0 0.0
  %1783 = vmatprep.subr.mxu0 0.0
  %1784 = vmatpush1.xpose.msra.mxu0 0.0
  %1785 = vmatprep.subr.mxu0 0.0
  %1786 = vmatpush1.xpose.msra.mxu0 0.0
  %1787 = vmatprep.subr.mxu0 0.0
  %1788 = vmatpush1.xpose.msra.mxu0 0.0
  %1789 = vmatprep.subr.mxu0 0.0
  %1790 = vmatpush1.xpose.msra.mxu0 0.0
  %1791 = vmatprep.subr.mxu0 0.0
  %1792 = vmatpush1.xpose.msra.mxu0 0.0
  %1793 = vmatprep.subr.mxu0 0.0
  %1794 = vmatpush1.xpose.msra.mxu0 0.0
  %1795 = vmatprep.subr.mxu0 0.0
  %1796 = vmatpush1.xpose.msra.mxu0 0.0
  %1797 = vmatprep.subr.mxu0 0.0
  %1798 = vmatpush1.xpose.msra.mxu0 0.0
  %1799 = vmatprep.subr.mxu0 0.0
  %1800 = vmatpush1.xpose.msra.mxu0 0.0
  %1801 = vmatprep.subr.mxu0 0.0
  %1802 = vmatpush1.xpose.msra.mxu0 0.0
  %1803 = vmatprep.subr.mxu0 0.0
  %1804 = vmatpush1.xpose.msra.mxu0 0.0
  %1805 = vmatprep.subr.mxu0 0.0
  %1806 = vmatpush1.xpose.msra.mxu0 0.0
  %1807 = vmatprep.subr.mxu0 0.0
  %1808 = vmatpush1.xpose.msra.mxu0 0.0
  %1809 = vmatprep.subr.mxu0 0.0
  %1810 = vmatpush1.xpose.msra.mxu0 0.0
  %1811 = vmatprep.subr.mxu0 0.0
  %1812 = vmatpush1.xpose.msra.mxu0 0.0
  %1813 = vmatprep.subr.mxu0 0.0
  %1814 = vmatpush1.xpose.msra.mxu0 0.0
  %1815 = vmatprep.subr.mxu0 0.0
  %1816 = vmatpush1.xpose.msra.mxu0 0.0
  %1817 = vmatprep.mubr.f32.mxu0 0.0
  %1818 = vmatmul.mubr.f32.gmra.mrb[0].mxu0 %v1749
  %v1819 = vpop.f32.mrb[0].mxu0
  %v1820 = vadd.f32 0.0, %v1819
  %v1821 = vpop.f32.mrb[0].mxu0
  %1822 = vdwg.mxu0
  %1823 = vrot.lane.b32.xlu0 %v234, 112
  %v1824 = vpop.permute.xlu0 %1823
  %1825 = vrot.lane.b32.xlu0 %v323, 112
  %v1826 = vpop.permute.xlu0 %1825
  %v1827 = vsel %vm432, %v1824, 0
  %v1829 = vsel %vm432, %v1826, 0
  %1831 = vmatprep.subr.mxu0 0.0
  %1832 = vmatpush1.xpose.msra.mxu0 %v1829
  %1833 = vmatprep.subr.mxu0 0.0
  %1834 = vmatpush1.xpose.msra.mxu0 0.0
  %1835 = vmatprep.subr.mxu0 0.0
  %1836 = vmatpush1.xpose.msra.mxu0 0.0
  %1837 = vmatprep.subr.mxu0 0.0
  %1838 = vmatpush1.xpose.msra.mxu0 0.0
  %1839 = vmatprep.subr.mxu0 0.0
  %1840 = vmatpush1.xpose.msra.mxu0 0.0
  %1841 = vmatprep.subr.mxu0 0.0
  %1842 = vmatpush1.xpose.msra.mxu0 0.0
  %1843 = vmatprep.subr.mxu0 0.0
  %1844 = vmatpush1.xpose.msra.mxu0 0.0
  %1845 = vmatprep.subr.mxu0 0.0
  %1846 = vmatpush1.xpose.msra.mxu0 0.0
  %1847 = vmatprep.subr.mxu0 0.0
  %1848 = vmatpush1.xpose.msra.mxu0 0.0
  %1849 = vmatprep.subr.mxu0 0.0
  %1850 = vmatpush1.xpose.msra.mxu0 0.0
  %1851 = vmatprep.subr.mxu0 0.0
  %1852 = vmatpush1.xpose.msra.mxu0 0.0
  %1853 = vmatprep.subr.mxu0 0.0
  %1854 = vmatpush1.xpose.msra.mxu0 0.0
  %1855 = vmatprep.subr.mxu0 0.0
  %1856 = vmatpush1.xpose.msra.mxu0 0.0
  %1857 = vmatprep.subr.mxu0 0.0
  %1858 = vmatpush1.xpose.msra.mxu0 0.0
  %1859 = vmatprep.subr.mxu0 0.0
  %1860 = vmatpush1.xpose.msra.mxu0 0.0
  %1861 = vmatprep.subr.mxu0 0.0
  %1862 = vmatpush1.xpose.msra.mxu0 0.0
  %1863 = vmatprep.subr.mxu0 0.0
  %1864 = vmatpush1.xpose.msra.mxu0 0.0
  %1865 = vmatprep.subr.mxu0 0.0
  %1866 = vmatpush1.xpose.msra.mxu0 0.0
  %1867 = vmatprep.subr.mxu0 0.0
  %1868 = vmatpush1.xpose.msra.mxu0 0.0
  %1869 = vmatprep.subr.mxu0 0.0
  %1870 = vmatpush1.xpose.msra.mxu0 0.0
  %1871 = vmatprep.subr.mxu0 0.0
  %1872 = vmatpush1.xpose.msra.mxu0 0.0
  %1873 = vmatprep.subr.mxu0 0.0
  %1874 = vmatpush1.xpose.msra.mxu0 0.0
  %1875 = vmatprep.subr.mxu0 0.0
  %1876 = vmatpush1.xpose.msra.mxu0 0.0
  %1877 = vmatprep.subr.mxu0 0.0
  %1878 = vmatpush1.xpose.msra.mxu0 0.0
  %1879 = vmatprep.subr.mxu0 0.0
  %1880 = vmatpush1.xpose.msra.mxu0 0.0
  %1881 = vmatprep.subr.mxu0 0.0
  %1882 = vmatpush1.xpose.msra.mxu0 0.0
  %1883 = vmatprep.subr.mxu0 0.0
  %1884 = vmatpush1.xpose.msra.mxu0 0.0
  %1885 = vmatprep.subr.mxu0 0.0
  %1886 = vmatpush1.xpose.msra.mxu0 0.0
  %1887 = vmatprep.subr.mxu0 0.0
  %1888 = vmatpush1.xpose.msra.mxu0 0.0
  %1889 = vmatprep.subr.mxu0 0.0
  %1890 = vmatpush1.xpose.msra.mxu0 0.0
  %1891 = vmatprep.subr.mxu0 0.0
  %1892 = vmatpush1.xpose.msra.mxu0 0.0
  %1893 = vmatprep.subr.mxu0 0.0
  %1894 = vmatpush1.xpose.msra.mxu0 0.0
  %1895 = vmatprep.mubr.f32.mxu0 0.0
  %1896 = vmatmul.mubr.f32.gmra.mrb[0].mxu0 %v1827
  %v1897 = vpop.f32.mrb[0].mxu0
  %v1898 = vadd.f32 0.0, %v1897
  %v1899 = vpop.f32.mrb[0].mxu0
  %1900 = vdwg.mxu0
  %1901 = vrot.lane.b32.xlu0 %v239, 112
  %v1902 = vpop.permute.xlu0 %1901
  %1903 = vrot.lane.b32.xlu0 %v328, 112
  %v1904 = vpop.permute.xlu0 %1903
  %v1905 = vsel %vm432, %v1902, 0
  %v1907 = vsel %vm432, %v1904, 0
  %1909 = vmatprep.subr.mxu0 0.0
  %1910 = vmatpush1.xpose.msra.mxu0 %v1907
  %1911 = vmatprep.subr.mxu0 0.0
  %1912 = vmatpush1.xpose.msra.mxu0 0.0
  %1913 = vmatprep.subr.mxu0 0.0
  %1914 = vmatpush1.xpose.msra.mxu0 0.0
  %1915 = vmatprep.subr.mxu0 0.0
  %1916 = vmatpush1.xpose.msra.mxu0 0.0
  %1917 = vmatprep.subr.mxu0 0.0
  %1918 = vmatpush1.xpose.msra.mxu0 0.0
  %1919 = vmatprep.subr.mxu0 0.0
  %1920 = vmatpush1.xpose.msra.mxu0 0.0
  %1921 = vmatprep.subr.mxu0 0.0
  %1922 = vmatpush1.xpose.msra.mxu0 0.0
  %1923 = vmatprep.subr.mxu0 0.0
  %1924 = vmatpush1.xpose.msra.mxu0 0.0
  %1925 = vmatprep.subr.mxu0 0.0
  %1926 = vmatpush1.xpose.msra.mxu0 0.0
  %1927 = vmatprep.subr.mxu0 0.0
  %1928 = vmatpush1.xpose.msra.mxu0 0.0
  %1929 = vmatprep.subr.mxu0 0.0
  %1930 = vmatpush1.xpose.msra.mxu0 0.0
  %1931 = vmatprep.subr.mxu0 0.0
  %1932 = vmatpush1.xpose.msra.mxu0 0.0
  %1933 = vmatprep.subr.mxu0 0.0
  %1934 = vmatpush1.xpose.msra.mxu0 0.0
  %1935 = vmatprep.subr.mxu0 0.0
  %1936 = vmatpush1.xpose.msra.mxu0 0.0
  %1937 = vmatprep.subr.mxu0 0.0
  %1938 = vmatpush1.xpose.msra.mxu0 0.0
  %1939 = vmatprep.subr.mxu0 0.0
  %1940 = vmatpush1.xpose.msra.mxu0 0.0
  %1941 = vmatprep.subr.mxu0 0.0
  %1942 = vmatpush1.xpose.msra.mxu0 0.0
  %1943 = vmatprep.subr.mxu0 0.0
  %1944 = vmatpush1.xpose.msra.mxu0 0.0
  %1945 = vmatprep.subr.mxu0 0.0
  %1946 = vmatpush1.xpose.msra.mxu0 0.0
  %1947 = vmatprep.subr.mxu0 0.0
  %1948 = vmatpush1.xpose.msra.mxu0 0.0
  %1949 = vmatprep.subr.mxu0 0.0
  %1950 = vmatpush1.xpose.msra.mxu0 0.0
  %1951 = vmatprep.subr.mxu0 0.0
  %1952 = vmatpush1.xpose.msra.mxu0 0.0
  %1953 = vmatprep.subr.mxu0 0.0
  %1954 = vmatpush1.xpose.msra.mxu0 0.0
  %1955 = vmatprep.subr.mxu0 0.0
  %1956 = vmatpush1.xpose.msra.mxu0 0.0
  %1957 = vmatprep.subr.mxu0 0.0
  %1958 = vmatpush1.xpose.msra.mxu0 0.0
  %1959 = vmatprep.subr.mxu0 0.0
  %1960 = vmatpush1.xpose.msra.mxu0 0.0
  %1961 = vmatprep.subr.mxu0 0.0
  %1962 = vmatpush1.xpose.msra.mxu0 0.0
  %1963 = vmatprep.subr.mxu0 0.0
  %1964 = vmatpush1.xpose.msra.mxu0 0.0
  %1965 = vmatprep.subr.mxu0 0.0
  %1966 = vmatpush1.xpose.msra.mxu0 0.0
  %1967 = vmatprep.subr.mxu0 0.0
  %1968 = vmatpush1.xpose.msra.mxu0 0.0
  %1969 = vmatprep.subr.mxu0 0.0
  %1970 = vmatpush1.xpose.msra.mxu0 0.0
  %1971 = vmatprep.subr.mxu0 0.0
  %1972 = vmatpush1.xpose.msra.mxu0 0.0
  %1973 = vmatprep.mubr.f32.mxu0 0.0
  %1974 = vmatmul.mubr.f32.gmra.mrb[0].mxu0 %v1905
  %v1975 = vpop.f32.mrb[0].mxu0
  %v1976 = vadd.f32 0.0, %v1975
  %v1977 = vpop.f32.mrb[0].mxu0
  %1978 = vdwg.mxu0
  %1979 = vrot.lane.b32.xlu0 %v244, 112
  %v1980 = vpop.permute.xlu0 %1979
  %1981 = vrot.lane.b32.xlu0 %v333, 112
  %v1982 = vpop.permute.xlu0 %1981
  %v1983 = vsel %vm432, %v1980, 0
  %v1985 = vsel %vm432, %v1982, 0
  %1987 = vmatprep.subr.mxu0 0.0
  %1988 = vmatpush1.xpose.msra.mxu0 %v1985
  %1989 = vmatprep.subr.mxu0 0.0
  %1990 = vmatpush1.xpose.msra.mxu0 0.0
  %1991 = vmatprep.subr.mxu0 0.0
  %1992 = vmatpush1.xpose.msra.mxu0 0.0
  %1993 = vmatprep.subr.mxu0 0.0
  %1994 = vmatpush1.xpose.msra.mxu0 0.0
  %1995 = vmatprep.subr.mxu0 0.0
  %1996 = vmatpush1.xpose.msra.mxu0 0.0
  %1997 = vmatprep.subr.mxu0 0.0
  %1998 = vmatpush1.xpose.msra.mxu0 0.0
  %1999 = vmatprep.subr.mxu0 0.0
  %2000 = vmatpush1.xpose.msra.mxu0 0.0
  %2001 = vmatprep.subr.mxu0 0.0
  %2002 = vmatpush1.xpose.msra.mxu0 0.0
  %2003 = vmatprep.subr.mxu0 0.0
  %2004 = vmatpush1.xpose.msra.mxu0 0.0
  %2005 = vmatprep.subr.mxu0 0.0
  %2006 = vmatpush1.xpose.msra.mxu0 0.0
  %2007 = vmatprep.subr.mxu0 0.0
  %2008 = vmatpush1.xpose.msra.mxu0 0.0
  %2009 = vmatprep.subr.mxu0 0.0
  %2010 = vmatpush1.xpose.msra.mxu0 0.0
  %2011 = vmatprep.subr.mxu0 0.0
  %2012 = vmatpush1.xpose.msra.mxu0 0.0
  %2013 = vmatprep.subr.mxu0 0.0
  %2014 = vmatpush1.xpose.msra.mxu0 0.0
  %2015 = vmatprep.subr.mxu0 0.0
  %2016 = vmatpush1.xpose.msra.mxu0 0.0
  %2017 = vmatprep.subr.mxu0 0.0
  %2018 = vmatpush1.xpose.msra.mxu0 0.0
  %2019 = vmatprep.subr.mxu0 0.0
  %2020 = vmatpush1.xpose.msra.mxu0 0.0
  %2021 = vmatprep.subr.mxu0 0.0
  %2022 = vmatpush1.xpose.msra.mxu0 0.0
  %2023 = vmatprep.subr.mxu0 0.0
  %2024 = vmatpush1.xpose.msra.mxu0 0.0
  %2025 = vmatprep.subr.mxu0 0.0
  %2026 = vmatpush1.xpose.msra.mxu0 0.0
  %2027 = vmatprep.subr.mxu0 0.0
  %2028 = vmatpush1.xpose.msra.mxu0 0.0
  %2029 = vmatprep.subr.mxu0 0.0
  %2030 = vmatpush1.xpose.msra.mxu0 0.0
  %2031 = vmatprep.subr.mxu0 0.0
  %2032 = vmatpush1.xpose.msra.mxu0 0.0
  %2033 = vmatprep.subr.mxu0 0.0
  %2034 = vmatpush1.xpose.msra.mxu0 0.0
  %2035 = vmatprep.subr.mxu0 0.0
  %2036 = vmatpush1.xpose.msra.mxu0 0.0
  %2037 = vmatprep.subr.mxu0 0.0
  %2038 = vmatpush1.xpose.msra.mxu0 0.0
  %2039 = vmatprep.subr.mxu0 0.0
  %2040 = vmatpush1.xpose.msra.mxu0 0.0
  %2041 = vmatprep.subr.mxu0 0.0
  %2042 = vmatpush1.xpose.msra.mxu0 0.0
  %2043 = vmatprep.subr.mxu0 0.0
  %2044 = vmatpush1.xpose.msra.mxu0 0.0
  %2045 = vmatprep.subr.mxu0 0.0
  %2046 = vmatpush1.xpose.msra.mxu0 0.0
  %2047 = vmatprep.subr.mxu0 0.0
  %2048 = vmatpush1.xpose.msra.mxu0 0.0
  %2049 = vmatprep.subr.mxu0 0.0
  %2050 = vmatpush1.xpose.msra.mxu0 0.0
  %2051 = vmatprep.mubr.f32.mxu0 0.0
  %2052 = vmatmul.mubr.f32.gmra.mrb[0].mxu0 %v1983
  %v2053 = vpop.f32.mrb[0].mxu0
  %v2054 = vadd.f32 0.0, %v2053
  %v2055 = vpop.f32.mrb[0].mxu0
  %2056 = vdwg.mxu0
  %v2057 = vmul.f32 %v1820, 0.35355338
  %v2058 = vmul.f32 %v1898, 0.35355338
  %v2059 = vmul.f32 %v1976, 0.35355338
  %v2060 = vmul.f32 %v2054, 0.35355338
  %v2061 = vsel %vm432, %v2057, -inf
  %2062 = vmax.xlane.f32.xlu0 %v2061
  %v2063 = vpop.xlane.xlu0 %2062
  %v2064 = vsel %vm432, %v2058, -inf
  %2065 = vmax.xlane.f32.xlu0 %v2064
  %v2066 = vpop.xlane.xlu0 %2065
  %v2067 = vsel %vm432, %v2059, -inf
  %2068 = vmax.xlane.f32.xlu0 %v2067
  %v2069 = vpop.xlane.xlu0 %2068
  %v2070 = vsel %vm432, %v2060, -inf
  %2071 = vmax.xlane.f32.xlu0 %v2070
  %v2072 = vpop.xlane.xlu0 %2071
  %v2073 = vsub.f32 %v2057, %v2063
  %v2074 = vsub.f32 %v2058, %v2066
  %v2075 = vsub.f32 %v2059, %v2069
  %v2076 = vsub.f32 %v2060, %v2072
  %v2077 = vmul.f32 %v2073, 1.442695
  %v2078 = vpow.pop %v2077
  %v2079 = vmul.f32 %v2074, 1.442695
  %v2080 = vpow.pop %v2079
  %v2081 = vmul.f32 %v2075, 1.442695
  %v2082 = vpow.pop %v2081
  %v2083 = vmul.f32 %v2076, 1.442695
  %v2084 = vpow.pop %v2083
  %v2085 = vsel %vm432, %v2078, 0.0
  %2086 = vadd.xlane.f32.xlu0 %v2085
  %v2087 = vpop.xlane.xlu0 %2086
  %v2088 = vsel %vm432, %v2080, 0.0
  %2089 = vadd.xlane.f32.xlu0 %v2088
  %v2090 = vpop.xlane.xlu0 %2089
  %v2091 = vsel %vm432, %v2082, 0.0
  %2092 = vadd.xlane.f32.xlu0 %v2091
  %v2093 = vpop.xlane.xlu0 %2092
  %v2094 = vsel %vm432, %v2084, 0.0
  %2095 = vadd.xlane.f32.xlu0 %v2094
  %v2096 = vpop.xlane.xlu0 %2095
  %v2097 = vrcp.pop %v2087
  %v2098 = vrcp.pop %v2090
  %v2099 = vrcp.pop %v2093
  %v2100 = vrcp.pop %v2096
  %v2101 = vmul.f32 %v2078, %v2097
  %v2102 = vmul.f32 %v2080, %v2098
  %v2103 = vmul.f32 %v2082, %v2099
  %v2104 = vmul.f32 %v2084, %v2100
  %2105 = vrot.lane.b32.xlu0 %v414, 112
  %v2106 = vpop.permute.xlu0 %2105
  %v2109 = vsel %vm432, %v2101, 0
  %2111 = vmatprep.subr.mxu0 0.0
  %2112 = vmatpush1.msra.mxu0 %v2106
  %2113 = vmatprep.subr.mxu0 0.0
  %2114 = vmatpush1.msra.mxu0 0.0
  %2115 = vmatprep.subr.mxu0 0.0
  %2116 = vmatpush1.msra.mxu0 0.0
  %2117 = vmatprep.subr.mxu0 0.0
  %2118 = vmatpush1.msra.mxu0 0.0
  %2119 = vmatprep.subr.mxu0 0.0
  %2120 = vmatpush1.msra.mxu0 0.0
  %2121 = vmatprep.subr.mxu0 0.0
  %2122 = vmatpush1.msra.mxu0 0.0
  %2123 = vmatprep.subr.mxu0 0.0
  %2124 = vmatpush1.msra.mxu0 0.0
  %2125 = vmatprep.subr.mxu0 0.0
  %2126 = vmatpush1.msra.mxu0 0.0
  %2127 = vmatprep.subr.mxu0 0.0
  %2128 = vmatpush1.msra.mxu0 0.0
  %2129 = vmatprep.subr.mxu0 0.0
  %2130 = vmatpush1.msra.mxu0 0.0
  %2131 = vmatprep.subr.mxu0 0.0
  %2132 = vmatpush1.msra.mxu0 0.0
  %2133 = vmatprep.subr.mxu0 0.0
  %2134 = vmatpush1.msra.mxu0 0.0
  %2135 = vmatprep.subr.mxu0 0.0
  %2136 = vmatpush1.msra.mxu0 0.0
  %2137 = vmatprep.subr.mxu0 0.0
  %2138 = vmatpush1.msra.mxu0 0.0
  %2139 = vmatprep.subr.mxu0 0.0
  %2140 = vmatpush1.msra.mxu0 0.0
  %2141 = vmatprep.subr.mxu0 0.0
  %2142 = vmatpush1.msra.mxu0 0.0
  %2143 = vmatprep.subr.mxu0 0.0
  %2144 = vmatpush1.msra.mxu0 0.0
  %2145 = vmatprep.subr.mxu0 0.0
  %2146 = vmatpush1.msra.mxu0 0.0
  %2147 = vmatprep.subr.mxu0 0.0
  %2148 = vmatpush1.msra.mxu0 0.0
  %2149 = vmatprep.subr.mxu0 0.0
  %2150 = vmatpush1.msra.mxu0 0.0
  %2151 = vmatprep.subr.mxu0 0.0
  %2152 = vmatpush1.msra.mxu0 0.0
  %2153 = vmatprep.subr.mxu0 0.0
  %2154 = vmatpush1.msra.mxu0 0.0
  %2155 = vmatprep.subr.mxu0 0.0
  %2156 = vmatpush1.msra.mxu0 0.0
  %2157 = vmatprep.subr.mxu0 0.0
  %2158 = vmatpush1.msra.mxu0 0.0
  %2159 = vmatprep.subr.mxu0 0.0
  %2160 = vmatpush1.msra.mxu0 0.0
  %2161 = vmatprep.subr.mxu0 0.0
  %2162 = vmatpush1.msra.mxu0 0.0
  %2163 = vmatprep.subr.mxu0 0.0
  %2164 = vmatpush1.msra.mxu0 0.0
  %2165 = vmatprep.subr.mxu0 0.0
  %2166 = vmatpush1.msra.mxu0 0.0
  %2167 = vmatprep.subr.mxu0 0.0
  %2168 = vmatpush1.msra.mxu0 0.0
  %2169 = vmatprep.subr.mxu0 0.0
  %2170 = vmatpush1.msra.mxu0 0.0
  %2171 = vmatprep.subr.mxu0 0.0
  %2172 = vmatpush1.msra.mxu0 0.0
  %2173 = vmatprep.subr.mxu0 0.0
  %2174 = vmatpush1.msra.mxu0 0.0
  %2175 = vmatprep.mubr.f32.mxu0 0.0
  %2176 = vmatmul.mubr.f32.gmra.mrb[0].mxu0 %v2109
  %v2177 = vpop.f32.mrb[0].mxu0
  %v2178 = vadd.f32 0.0, %v2177
  %v2179 = vpop.f32.mrb[0].mxu0
  %2180 = vdwg.mxu0
  %2181 = vrot.lane.b32.xlu0 %v419, 112
  %v2182 = vpop.permute.xlu0 %2181
  %v2185 = vsel %vm432, %v2102, 0
  %2187 = vmatprep.subr.mxu0 0.0
  %2188 = vmatpush1.msra.mxu0 %v2182
  %2189 = vmatprep.subr.mxu0 0.0
  %2190 = vmatpush1.msra.mxu0 0.0
  %2191 = vmatprep.subr.mxu0 0.0
  %2192 = vmatpush1.msra.mxu0 0.0
  %2193 = vmatprep.subr.mxu0 0.0
  %2194 = vmatpush1.msra.mxu0 0.0
  %2195 = vmatprep.subr.mxu0 0.0
  %2196 = vmatpush1.msra.mxu0 0.0
  %2197 = vmatprep.subr.mxu0 0.0
  %2198 = vmatpush1.msra.mxu0 0.0
  %2199 = vmatprep.subr.mxu0 0.0
  %2200 = vmatpush1.msra.mxu0 0.0
  %2201 = vmatprep.subr.mxu0 0.0
  %2202 = vmatpush1.msra.mxu0 0.0
  %2203 = vmatprep.subr.mxu0 0.0
  %2204 = vmatpush1.msra.mxu0 0.0
  %2205 = vmatprep.subr.mxu0 0.0
  %2206 = vmatpush1.msra.mxu0 0.0
  %2207 = vmatprep.subr.mxu0 0.0
  %2208 = vmatpush1.msra.mxu0 0.0
  %2209 = vmatprep.subr.mxu0 0.0
  %2210 = vmatpush1.msra.mxu0 0.0
  %2211 = vmatprep.subr.mxu0 0.0
  %2212 = vmatpush1.msra.mxu0 0.0
  %2213 = vmatprep.subr.mxu0 0.0
  %2214 = vmatpush1.msra.mxu0 0.0
  %2215 = vmatprep.subr.mxu0 0.0
  %2216 = vmatpush1.msra.mxu0 0.0
  %2217 = vmatprep.subr.mxu0 0.0
  %2218 = vmatpush1.msra.mxu0 0.0
  %2219 = vmatprep.subr.mxu0 0.0
  %2220 = vmatpush1.msra.mxu0 0.0
  %2221 = vmatprep.subr.mxu0 0.0
  %2222 = vmatpush1.msra.mxu0 0.0
  %2223 = vmatprep.subr.mxu0 0.0
  %2224 = vmatpush1.msra.mxu0 0.0
  %2225 = vmatprep.subr.mxu0 0.0
  %2226 = vmatpush1.msra.mxu0 0.0
  %2227 = vmatprep.subr.mxu0 0.0
  %2228 = vmatpush1.msra.mxu0 0.0
  %2229 = vmatprep.subr.mxu0 0.0
  %2230 = vmatpush1.msra.mxu0 0.0
  %2231 = vmatprep.subr.mxu0 0.0
  %2232 = vmatpush1.msra.mxu0 0.0
  %2233 = vmatprep.subr.mxu0 0.0
  %2234 = vmatpush1.msra.mxu0 0.0
  %2235 = vmatprep.subr.mxu0 0.0
  %2236 = vmatpush1.msra.mxu0 0.0
  %2237 = vmatprep.subr.mxu0 0.0
  %2238 = vmatpush1.msra.mxu0 0.0
  %2239 = vmatprep.subr.mxu0 0.0
  %2240 = vmatpush1.msra.mxu0 0.0
  %2241 = vmatprep.subr.mxu0 0.0
  %2242 = vmatpush1.msra.mxu0 0.0
  %2243 = vmatprep.subr.mxu0 0.0
  %2244 = vmatpush1.msra.mxu0 0.0
  %2245 = vmatprep.subr.mxu0 0.0
  %2246 = vmatpush1.msra.mxu0 0.0
  %2247 = vmatprep.subr.mxu0 0.0
  %2248 = vmatpush1.msra.mxu0 0.0
  %2249 = vmatprep.subr.mxu0 0.0
  %2250 = vmatpush1.msra.mxu0 0.0
  %2251 = vmatprep.mubr.f32.mxu0 0.0
  %2252 = vmatmul.mubr.f32.gmra.mrb[0].mxu0 %v2185
  %v2253 = vpop.f32.mrb[0].mxu0
  %v2254 = vadd.f32 0.0, %v2253
  %v2255 = vpop.f32.mrb[0].mxu0
  %2256 = vdwg.mxu0
  %2257 = vrot.lane.b32.xlu0 %v424, 112
  %v2258 = vpop.permute.xlu0 %2257
  %v2261 = vsel %vm432, %v2103, 0
  %2263 = vmatprep.subr.mxu0 0.0
  %2264 = vmatpush1.msra.mxu0 %v2258
  %2265 = vmatprep.subr.mxu0 0.0
  %2266 = vmatpush1.msra.mxu0 0.0
  %2267 = vmatprep.subr.mxu0 0.0
  %2268 = vmatpush1.msra.mxu0 0.0
  %2269 = vmatprep.subr.mxu0 0.0
  %2270 = vmatpush1.msra.mxu0 0.0
  %2271 = vmatprep.subr.mxu0 0.0
  %2272 = vmatpush1.msra.mxu0 0.0
  %2273 = vmatprep.subr.mxu0 0.0
  %2274 = vmatpush1.msra.mxu0 0.0
  %2275 = vmatprep.subr.mxu0 0.0
  %2276 = vmatpush1.msra.mxu0 0.0
  %2277 = vmatprep.subr.mxu0 0.0
  %2278 = vmatpush1.msra.mxu0 0.0
  %2279 = vmatprep.subr.mxu0 0.0
  %2280 = vmatpush1.msra.mxu0 0.0
  %2281 = vmatprep.subr.mxu0 0.0
  %2282 = vmatpush1.msra.mxu0 0.0
  %2283 = vmatprep.subr.mxu0 0.0
  %2284 = vmatpush1.msra.mxu0 0.0
  %2285 = vmatprep.subr.mxu0 0.0
  %2286 = vmatpush1.msra.mxu0 0.0
  %2287 = vmatprep.subr.mxu0 0.0
  %2288 = vmatpush1.msra.mxu0 0.0
  %2289 = vmatprep.subr.mxu0 0.0
  %2290 = vmatpush1.msra.mxu0 0.0
  %2291 = vmatprep.subr.mxu0 0.0
  %2292 = vmatpush1.msra.mxu0 0.0
  %2293 = vmatprep.subr.mxu0 0.0
  %2294 = vmatpush1.msra.mxu0 0.0
  %2295 = vmatprep.subr.mxu0 0.0
  %2296 = vmatpush1.msra.mxu0 0.0
  %2297 = vmatprep.subr.mxu0 0.0
  %2298 = vmatpush1.msra.mxu0 0.0
  %2299 = vmatprep.subr.mxu0 0.0
  %2300 = vmatpush1.msra.mxu0 0.0
  %2301 = vmatprep.subr.mxu0 0.0
  %2302 = vmatpush1.msra.mxu0 0.0
  %2303 = vmatprep.subr.mxu0 0.0
  %2304 = vmatpush1.msra.mxu0 0.0
  %2305 = vmatprep.subr.mxu0 0.0
  %2306 = vmatpush1.msra.mxu0 0.0
  %2307 = vmatprep.subr.mxu0 0.0
  %2308 = vmatpush1.msra.mxu0 0.0
  %2309 = vmatprep.subr.mxu0 0.0
  %2310 = vmatpush1.msra.mxu0 0.0
  %2311 = vmatprep.subr.mxu0 0.0
  %2312 = vmatpush1.msra.mxu0 0.0
  %2313 = vmatprep.subr.mxu0 0.0
  %2314 = vmatpush1.msra.mxu0 0.0
  %2315 = vmatprep.subr.mxu0 0.0
  %2316 = vmatpush1.msra.mxu0 0.0
  %2317 = vmatprep.subr.mxu0 0.0
  %2318 = vmatpush1.msra.mxu0 0.0
  %2319 = vmatprep.subr.mxu0 0.0
  %2320 = vmatpush1.msra.mxu0 0.0
  %2321 = vmatprep.subr.mxu0 0.0
  %2322 = vmatpush1.msra.mxu0 0.0
  %2323 = vmatprep.subr.mxu0 0.0
  %2324 = vmatpush1.msra.mxu0 0.0
  %2325 = vmatprep.subr.mxu0 0.0
  %2326 = vmatpush1.msra.mxu0 0.0
  %2327 = vmatprep.mubr.f32.mxu0 0.0
  %2328 = vmatmul.mubr.f32.gmra.mrb[0].mxu0 %v2261
  %v2329 = vpop.f32.mrb[0].mxu0
  %v2330 = vadd.f32 0.0, %v2329
  %v2331 = vpop.f32.mrb[0].mxu0
  %2332 = vdwg.mxu0
  %2333 = vrot.lane.b32.xlu0 %v429, 112
  %v2334 = vpop.permute.xlu0 %2333
  %v2337 = vsel %vm432, %v2104, 0
  %2339 = vmatprep.subr.mxu0 0.0
  %2340 = vmatpush1.msra.mxu0 %v2334
  %2341 = vmatprep.subr.mxu0 0.0
  %2342 = vmatpush1.msra.mxu0 0.0
  %2343 = vmatprep.subr.mxu0 0.0
  %2344 = vmatpush1.msra.mxu0 0.0
  %2345 = vmatprep.subr.mxu0 0.0
  %2346 = vmatpush1.msra.mxu0 0.0
  %2347 = vmatprep.subr.mxu0 0.0
  %2348 = vmatpush1.msra.mxu0 0.0
  %2349 = vmatprep.subr.mxu0 0.0
  %2350 = vmatpush1.msra.mxu0 0.0
  %2351 = vmatprep.subr.mxu0 0.0
  %2352 = vmatpush1.msra.mxu0 0.0
  %2353 = vmatprep.subr.mxu0 0.0
  %2354 = vmatpush1.msra.mxu0 0.0
  %2355 = vmatprep.subr.mxu0 0.0
  %2356 = vmatpush1.msra.mxu0 0.0
  %2357 = vmatprep.subr.mxu0 0.0
  %2358 = vmatpush1.msra.mxu0 0.0
  %2359 = vmatprep.subr.mxu0 0.0
  %2360 = vmatpush1.msra.mxu0 0.0
  %2361 = vmatprep.subr.mxu0 0.0
  %2362 = vmatpush1.msra.mxu0 0.0
  %2363 = vmatprep.subr.mxu0 0.0
  %2364 = vmatpush1.msra.mxu0 0.0
  %2365 = vmatprep.subr.mxu0 0.0
  %2366 = vmatpush1.msra.mxu0 0.0
  %2367 = vmatprep.subr.mxu0 0.0
  %2368 = vmatpush1.msra.mxu0 0.0
  %2369 = vmatprep.subr.mxu0 0.0
  %2370 = vmatpush1.msra.mxu0 0.0
  %2371 = vmatprep.subr.mxu0 0.0
  %2372 = vmatpush1.msra.mxu0 0.0
  %2373 = vmatprep.subr.mxu0 0.0
  %2374 = vmatpush1.msra.mxu0 0.0
  %2375 = vmatprep.subr.mxu0 0.0
  %2376 = vmatpush1.msra.mxu0 0.0
  %2377 = vmatprep.subr.mxu0 0.0
  %2378 = vmatpush1.msra.mxu0 0.0
  %2379 = vmatprep.subr.mxu0 0.0
  %2380 = vmatpush1.msra.mxu0 0.0
  %2381 = vmatprep.subr.mxu0 0.0
  %2382 = vmatpush1.msra.mxu0 0.0
  %2383 = vmatprep.subr.mxu0 0.0
  %2384 = vmatpush1.msra.mxu0 0.0
  %2385 = vmatprep.subr.mxu0 0.0
  %2386 = vmatpush1.msra.mxu0 0.0
  %2387 = vmatprep.subr.mxu0 0.0
  %2388 = vmatpush1.msra.mxu0 0.0
  %2389 = vmatprep.subr.mxu0 0.0
  %2390 = vmatpush1.msra.mxu0 0.0
  %2391 = vmatprep.subr.mxu0 0.0
  %2392 = vmatpush1.msra.mxu0 0.0
  %2393 = vmatprep.subr.mxu0 0.0
  %2394 = vmatpush1.msra.mxu0 0.0
  %2395 = vmatprep.subr.mxu0 0.0
  %2396 = vmatpush1.msra.mxu0 0.0
  %2397 = vmatprep.subr.mxu0 0.0
  %2398 = vmatpush1.msra.mxu0 0.0
  %2399 = vmatprep.subr.mxu0 0.0
  %2400 = vmatpush1.msra.mxu0 0.0
  %2401 = vmatprep.subr.mxu0 0.0
  %2402 = vmatpush1.msra.mxu0 0.0
  %2403 = vmatprep.mubr.f32.mxu0 0.0
  %2404 = vmatmul.mubr.f32.gmra.mrb[0].mxu0 %v2337
  %v2405 = vpop.f32.mrb[0].mxu0
  %v2406 = vadd.f32 0.0, %v2405
  %v2407 = vpop.f32.mrb[0].mxu0
  %2408 = vdwg.mxu0
  %2409 = vrot.lane.b32.xlu0 %v229, 104
  %v2410 = vpop.permute.xlu0 %2409
  %2411 = vrot.lane.b32.xlu0 %v318, 104
  %v2412 = vpop.permute.xlu0 %2411
  %v2413 = vsel %vm432, %v2410, 0
  %v2415 = vsel %vm432, %v2412, 0
  %2417 = vmatprep.subr.mxu0 0.0
  %2418 = vmatpush1.xpose.msra.mxu0 %v2415
  %2419 = vmatprep.subr.mxu0 0.0
  %2420 = vmatpush1.xpose.msra.mxu0 0.0
  %2421 = vmatprep.subr.mxu0 0.0
  %2422 = vmatpush1.xpose.msra.mxu0 0.0
  %2423 = vmatprep.subr.mxu0 0.0
  %2424 = vmatpush1.xpose.msra.mxu0 0.0
  %2425 = vmatprep.subr.mxu0 0.0
  %2426 = vmatpush1.xpose.msra.mxu0 0.0
  %2427 = vmatprep.subr.mxu0 0.0
  %2428 = vmatpush1.xpose.msra.mxu0 0.0
  %2429 = vmatprep.subr.mxu0 0.0
  %2430 = vmatpush1.xpose.msra.mxu0 0.0
  %2431 = vmatprep.subr.mxu0 0.0
  %2432 = vmatpush1.xpose.msra.mxu0 0.0
  %2433 = vmatprep.subr.mxu0 0.0
  %2434 = vmatpush1.xpose.msra.mxu0 0.0
  %2435 = vmatprep.subr.mxu0 0.0
  %2436 = vmatpush1.xpose.msra.mxu0 0.0
  %2437 = vmatprep.subr.mxu0 0.0
  %2438 = vmatpush1.xpose.msra.mxu0 0.0
  %2439 = vmatprep.subr.mxu0 0.0
  %2440 = vmatpush1.xpose.msra.mxu0 0.0
  %2441 = vmatprep.subr.mxu0 0.0
  %2442 = vmatpush1.xpose.msra.mxu0 0.0
  %2443 = vmatprep.subr.mxu0 0.0
  %2444 = vmatpush1.xpose.msra.mxu0 0.0
  %2445 = vmatprep.subr.mxu0 0.0
  %2446 = vmatpush1.xpose.msra.mxu0 0.0
  %2447 = vmatprep.subr.mxu0 0.0
  %2448 = vmatpush1.xpose.msra.mxu0 0.0
  %2449 = vmatprep.subr.mxu0 0.0
  %2450 = vmatpush1.xpose.msra.mxu0 0.0
  %2451 = vmatprep.subr.mxu0 0.0
  %2452 = vmatpush1.xpose.msra.mxu0 0.0
  %2453 = vmatprep.subr.mxu0 0.0
  %2454 = vmatpush1.xpose.msra.mxu0 0.0
  %2455 = vmatprep.subr.mxu0 0.0
  %2456 = vmatpush1.xpose.msra.mxu0 0.0
  %2457 = vmatprep.subr.mxu0 0.0
  %2458 = vmatpush1.xpose.msra.mxu0 0.0
  %2459 = vmatprep.subr.mxu0 0.0
  %2460 = vmatpush1.xpose.msra.mxu0 0.0
  %2461 = vmatprep.subr.mxu0 0.0
  %2462 = vmatpush1.xpose.msra.mxu0 0.0
  %2463 = vmatprep.subr.mxu0 0.0
  %2464 = vmatpush1.xpose.msra.mxu0 0.0
  %2465 = vmatprep.subr.mxu0 0.0
  %2466 = vmatpush1.xpose.msra.mxu0 0.0
  %2467 = vmatprep.subr.mxu0 0.0
  %2468 = vmatpush1.xpose.msra.mxu0 0.0
  %2469 = vmatprep.subr.mxu0 0.0
  %2470 = vmatpush1.xpose.msra.mxu0 0.0
  %2471 = vmatprep.subr.mxu0 0.0
  %2472 = vmatpush1.xpose.msra.mxu0 0.0
  %2473 = vmatprep.subr.mxu0 0.0
  %2474 = vmatpush1.xpose.msra.mxu0 0.0
  %2475 = vmatprep.subr.mxu0 0.0
  %2476 = vmatpush1.xpose.msra.mxu0 0.0
  %2477 = vmatprep.subr.mxu0 0.0
  %2478 = vmatpush1.xpose.msra.mxu0 0.0
  %2479 = vmatprep.subr.mxu0 0.0
  %2480 = vmatpush1.xpose.msra.mxu0 0.0
  %2481 = vmatprep.mubr.f32.mxu0 0.0
  %2482 = vmatmul.mubr.f32.gmra.mrb[0].mxu0 %v2413
  %v2483 = vpop.f32.mrb[0].mxu0
  %v2484 = vadd.f32 0.0, %v2483
  %v2485 = vpop.f32.mrb[0].mxu0
  %2486 = vdwg.mxu0
  %2487 = vrot.lane.b32.xlu0 %v234, 104
  %v2488 = vpop.permute.xlu0 %2487
  %2489 = vrot.lane.b32.xlu0 %v323, 104
  %v2490 = vpop.permute.xlu0 %2489
  %v2491 = vsel %vm432, %v2488, 0
  %v2493 = vsel %vm432, %v2490, 0
  %2495 = vmatprep.subr.mxu0 0.0
  %2496 = vmatpush1.xpose.msra.mxu0 %v2493
  %2497 = vmatprep.subr.mxu0 0.0
  %2498 = vmatpush1.xpose.msra.mxu0 0.0
  %2499 = vmatprep.subr.mxu0 0.0
  %2500 = vmatpush1.xpose.msra.mxu0 0.0
  %2501 = vmatprep.subr.mxu0 0.0
  %2502 = vmatpush1.xpose.msra.mxu0 0.0
  %2503 = vmatprep.subr.mxu0 0.0
  %2504 = vmatpush1.xpose.msra.mxu0 0.0
  %2505 = vmatprep.subr.mxu0 0.0
  %2506 = vmatpush1.xpose.msra.mxu0 0.0
  %2507 = vmatprep.subr.mxu0 0.0
  %2508 = vmatpush1.xpose.msra.mxu0 0.0
  %2509 = vmatprep.subr.mxu0 0.0
  %2510 = vmatpush1.xpose.msra.mxu0 0.0
  %2511 = vmatprep.subr.mxu0 0.0
  %2512 = vmatpush1.xpose.msra.mxu0 0.0
  %2513 = vmatprep.subr.mxu0 0.0
  %2514 = vmatpush1.xpose.msra.mxu0 0.0
  %2515 = vmatprep.subr.mxu0 0.0
  %2516 = vmatpush1.xpose.msra.mxu0 0.0
  %2517 = vmatprep.subr.mxu0 0.0
  %2518 = vmatpush1.xpose.msra.mxu0 0.0
  %2519 = vmatprep.subr.mxu0 0.0
  %2520 = vmatpush1.xpose.msra.mxu0 0.0
  %2521 = vmatprep.subr.mxu0 0.0
  %2522 = vmatpush1.xpose.msra.mxu0 0.0
  %2523 = vmatprep.subr.mxu0 0.0
  %2524 = vmatpush1.xpose.msra.mxu0 0.0
  %2525 = vmatprep.subr.mxu0 0.0
  %2526 = vmatpush1.xpose.msra.mxu0 0.0
  %2527 = vmatprep.subr.mxu0 0.0
  %2528 = vmatpush1.xpose.msra.mxu0 0.0
  %2529 = vmatprep.subr.mxu0 0.0
  %2530 = vmatpush1.xpose.msra.mxu0 0.0
  %2531 = vmatprep.subr.mxu0 0.0
  %2532 = vmatpush1.xpose.msra.mxu0 0.0
  %2533 = vmatprep.subr.mxu0 0.0
  %2534 = vmatpush1.xpose.msra.mxu0 0.0
  %2535 = vmatprep.subr.mxu0 0.0
  %2536 = vmatpush1.xpose.msra.mxu0 0.0
  %2537 = vmatprep.subr.mxu0 0.0
  %2538 = vmatpush1.xpose.msra.mxu0 0.0
  %2539 = vmatprep.subr.mxu0 0.0
  %2540 = vmatpush1.xpose.msra.mxu0 0.0
  %2541 = vmatprep.subr.mxu0 0.0
  %2542 = vmatpush1.xpose.msra.mxu0 0.0
  %2543 = vmatprep.subr.mxu0 0.0
  %2544 = vmatpush1.xpose.msra.mxu0 0.0
  %2545 = vmatprep.subr.mxu0 0.0
  %2546 = vmatpush1.xpose.msra.mxu0 0.0
  %2547 = vmatprep.subr.mxu0 0.0
  %2548 = vmatpush1.xpose.msra.mxu0 0.0
  %2549 = vmatprep.subr.mxu0 0.0
  %2550 = vmatpush1.xpose.msra.mxu0 0.0
  %2551 = vmatprep.subr.mxu0 0.0
  %2552 = vmatpush1.xpose.msra.mxu0 0.0
  %2553 = vmatprep.subr.mxu0 0.0
  %2554 = vmatpush1.xpose.msra.mxu0 0.0
  %2555 = vmatprep.subr.mxu0 0.0
  %2556 = vmatpush1.xpose.msra.mxu0 0.0
  %2557 = vmatprep.subr.mxu0 0.0
  %2558 = vmatpush1.xpose.msra.mxu0 0.0
  %2559 = vmatprep.mubr.f32.mxu0 0.0
  %2560 = vmatmul.mubr.f32.gmra.mrb[0].mxu0 %v2491
  %v2561 = vpop.f32.mrb[0].mxu0
  %v2562 = vadd.f32 0.0, %v2561
  %v2563 = vpop.f32.mrb[0].mxu0
  %2564 = vdwg.mxu0
  %2565 = vrot.lane.b32.xlu0 %v239, 104
  %v2566 = vpop.permute.xlu0 %2565
  %2567 = vrot.lane.b32.xlu0 %v328, 104
  %v2568 = vpop.permute.xlu0 %2567
  %v2569 = vsel %vm432, %v2566, 0
  %v2571 = vsel %vm432, %v2568, 0
  %2573 = vmatprep.subr.mxu0 0.0
  %2574 = vmatpush1.xpose.msra.mxu0 %v2571
  %2575 = vmatprep.subr.mxu0 0.0
  %2576 = vmatpush1.xpose.msra.mxu0 0.0
  %2577 = vmatprep.subr.mxu0 0.0
  %2578 = vmatpush1.xpose.msra.mxu0 0.0
  %2579 = vmatprep.subr.mxu0 0.0
  %2580 = vmatpush1.xpose.msra.mxu0 0.0
  %2581 = vmatprep.subr.mxu0 0.0
  %2582 = vmatpush1.xpose.msra.mxu0 0.0
  %2583 = vmatprep.subr.mxu0 0.0
  %2584 = vmatpush1.xpose.msra.mxu0 0.0
  %2585 = vmatprep.subr.mxu0 0.0
  %2586 = vmatpush1.xpose.msra.mxu0 0.0
  %2587 = vmatprep.subr.mxu0 0.0
  %2588 = vmatpush1.xpose.msra.mxu0 0.0
  %2589 = vmatprep.subr.mxu0 0.0
  %2590 = vmatpush1.xpose.msra.mxu0 0.0
  %2591 = vmatprep.subr.mxu0 0.0
  %2592 = vmatpush1.xpose.msra.mxu0 0.0
  %2593 = vmatprep.subr.mxu0 0.0
  %2594 = vmatpush1.xpose.msra.mxu0 0.0
  %2595 = vmatprep.subr.mxu0 0.0
  %2596 = vmatpush1.xpose.msra.mxu0 0.0
  %2597 = vmatprep.subr.mxu0 0.0
  %2598 = vmatpush1.xpose.msra.mxu0 0.0
  %2599 = vmatprep.subr.mxu0 0.0
  %2600 = vmatpush1.xpose.msra.mxu0 0.0
  %2601 = vmatprep.subr.mxu0 0.0
  %2602 = vmatpush1.xpose.msra.mxu0 0.0
  %2603 = vmatprep.subr.mxu0 0.0
  %2604 = vmatpush1.xpose.msra.mxu0 0.0
  %2605 = vmatprep.subr.mxu0 0.0
  %2606 = vmatpush1.xpose.msra.mxu0 0.0
  %2607 = vmatprep.subr.mxu0 0.0
  %2608 = vmatpush1.xpose.msra.mxu0 0.0
  %2609 = vmatprep.subr.mxu0 0.0
  %2610 = vmatpush1.xpose.msra.mxu0 0.0
  %2611 = vmatprep.subr.mxu0 0.0
  %2612 = vmatpush1.xpose.msra.mxu0 0.0
  %2613 = vmatprep.subr.mxu0 0.0
  %2614 = vmatpush1.xpose.msra.mxu0 0.0
  %2615 = vmatprep.subr.mxu0 0.0
  %2616 = vmatpush1.xpose.msra.mxu0 0.0
  %2617 = vmatprep.subr.mxu0 0.0
  %2618 = vmatpush1.xpose.msra.mxu0 0.0
  %2619 = vmatprep.subr.mxu0 0.0
  %2620 = vmatpush1.xpose.msra.mxu0 0.0
  %2621 = vmatprep.subr.mxu0 0.0
  %2622 = vmatpush1.xpose.msra.mxu0 0.0
  %2623 = vmatprep.subr.mxu0 0.0
  %2624 = vmatpush1.xpose.msra.mxu0 0.0
  %2625 = vmatprep.subr.mxu0 0.0
  %2626 = vmatpush1.xpose.msra.mxu0 0.0
  %2627 = vmatprep.subr.mxu0 0.0
  %2628 = vmatpush1.xpose.msra.mxu0 0.0
  %2629 = vmatprep.subr.mxu0 0.0
  %2630 = vmatpush1.xpose.msra.mxu0 0.0
  %2631 = vmatprep.subr.mxu0 0.0
  %2632 = vmatpush1.xpose.msra.mxu0 0.0
  %2633 = vmatprep.subr.mxu0 0.0
  %2634 = vmatpush1.xpose.msra.mxu0 0.0
  %2635 = vmatprep.subr.mxu0 0.0
  %2636 = vmatpush1.xpose.msra.mxu0 0.0
  %2637 = vmatprep.mubr.f32.mxu0 0.0
  %2638 = vmatmul.mubr.f32.gmra.mrb[0].mxu0 %v2569
  %v2639 = vpop.f32.mrb[0].mxu0
  %v2640 = vadd.f32 0.0, %v2639
  %v2641 = vpop.f32.mrb[0].mxu0
  %2642 = vdwg.mxu0
  %2643 = vrot.lane.b32.xlu0 %v244, 104
  %v2644 = vpop.permute.xlu0 %2643
  %2645 = vrot.lane.b32.xlu0 %v333, 104
  %v2646 = vpop.permute.xlu0 %2645
  %v2647 = vsel %vm432, %v2644, 0
  %v2649 = vsel %vm432, %v2646, 0
  %2651 = vmatprep.subr.mxu0 0.0
  %2652 = vmatpush1.xpose.msra.mxu0 %v2649
  %2653 = vmatprep.subr.mxu0 0.0
  %2654 = vmatpush1.xpose.msra.mxu0 0.0
  %2655 = vmatprep.subr.mxu0 0.0
  %2656 = vmatpush1.xpose.msra.mxu0 0.0
  %2657 = vmatprep.subr.mxu0 0.0
  %2658 = vmatpush1.xpose.msra.mxu0 0.0
  %2659 = vmatprep.subr.mxu0 0.0
  %2660 = vmatpush1.xpose.msra.mxu0 0.0
  %2661 = vmatprep.subr.mxu0 0.0
  %2662 = vmatpush1.xpose.msra.mxu0 0.0
  %2663 = vmatprep.subr.mxu0 0.0
  %2664 = vmatpush1.xpose.msra.mxu0 0.0
  %2665 = vmatprep.subr.mxu0 0.0
  %2666 = vmatpush1.xpose.msra.mxu0 0.0
  %2667 = vmatprep.subr.mxu0 0.0
  %2668 = vmatpush1.xpose.msra.mxu0 0.0
  %2669 = vmatprep.subr.mxu0 0.0
  %2670 = vmatpush1.xpose.msra.mxu0 0.0
  %2671 = vmatprep.subr.mxu0 0.0
  %2672 = vmatpush1.xpose.msra.mxu0 0.0
  %2673 = vmatprep.subr.mxu0 0.0
  %2674 = vmatpush1.xpose.msra.mxu0 0.0
  %2675 = vmatprep.subr.mxu0 0.0
  %2676 = vmatpush1.xpose.msra.mxu0 0.0
  %2677 = vmatprep.subr.mxu0 0.0
  %2678 = vmatpush1.xpose.msra.mxu0 0.0
  %2679 = vmatprep.subr.mxu0 0.0
  %2680 = vmatpush1.xpose.msra.mxu0 0.0
  %2681 = vmatprep.subr.mxu0 0.0
  %2682 = vmatpush1.xpose.msra.mxu0 0.0
  %2683 = vmatprep.subr.mxu0 0.0
  %2684 = vmatpush1.xpose.msra.mxu0 0.0
  %2685 = vmatprep.subr.mxu0 0.0
  %2686 = vmatpush1.xpose.msra.mxu0 0.0
  %2687 = vmatprep.subr.mxu0 0.0
  %2688 = vmatpush1.xpose.msra.mxu0 0.0
  %2689 = vmatprep.subr.mxu0 0.0
  %2690 = vmatpush1.xpose.msra.mxu0 0.0
  %2691 = vmatprep.subr.mxu0 0.0
  %2692 = vmatpush1.xpose.msra.mxu0 0.0
  %2693 = vmatprep.subr.mxu0 0.0
  %2694 = vmatpush1.xpose.msra.mxu0 0.0
  %2695 = vmatprep.subr.mxu0 0.0
  %2696 = vmatpush1.xpose.msra.mxu0 0.0
  %2697 = vmatprep.subr.mxu0 0.0
  %2698 = vmatpush1.xpose.msra.mxu0 0.0
  %2699 = vmatprep.subr.mxu0 0.0
  %2700 = vmatpush1.xpose.msra.mxu0 0.0
  %2701 = vmatprep.subr.mxu0 0.0
  %2702 = vmatpush1.xpose.msra.mxu0 0.0
  %2703 = vmatprep.subr.mxu0 0.0
  %2704 = vmatpush1.xpose.msra.mxu0 0.0
  %2705 = vmatprep.subr.mxu0 0.0
  %2706 = vmatpush1.xpose.msra.mxu0 0.0
  %2707 = vmatprep.subr.mxu0 0.0
  %2708 = vmatpush1.xpose.msra.mxu0 0.0
  %2709 = vmatprep.subr.mxu0 0.0
  %2710 = vmatpush1.xpose.msra.mxu0 0.0
  %2711 = vmatprep.subr.mxu0 0.0
  %2712 = vmatpush1.xpose.msra.mxu0 0.0
  %2713 = vmatprep.subr.mxu0 0.0
  %2714 = vmatpush1.xpose.msra.mxu0 0.0
  %2715 = vmatprep.mubr.f32.mxu0 0.0
  %2716 = vmatmul.mubr.f32.gmra.mrb[0].mxu0 %v2647
  %v2717 = vpop.f32.mrb[0].mxu0
  %v2718 = vadd.f32 0.0, %v2717
  %v2719 = vpop.f32.mrb[0].mxu0
  %2720 = vdwg.mxu0
  %v2721 = vmul.f32 %v2484, 0.35355338
  %v2722 = vmul.f32 %v2562, 0.35355338
  %v2723 = vmul.f32 %v2640, 0.35355338
  %v2724 = vmul.f32 %v2718, 0.35355338
  %v2725 = vsel %vm432, %v2721, -inf
  %2726 = vmax.xlane.f32.xlu0 %v2725
  %v2727 = vpop.xlane.xlu0 %2726
  %v2728 = vsel %vm432, %v2722, -inf
  %2729 = vmax.xlane.f32.xlu0 %v2728
  %v2730 = vpop.xlane.xlu0 %2729
  %v2731 = vsel %vm432, %v2723, -inf
  %2732 = vmax.xlane.f32.xlu0 %v2731
  %v2733 = vpop.xlane.xlu0 %2732
  %v2734 = vsel %vm432, %v2724, -inf
  %2735 = vmax.xlane.f32.xlu0 %v2734
  %v2736 = vpop.xlane.xlu0 %2735
  %v2737 = vsub.f32 %v2721, %v2727
  %v2738 = vsub.f32 %v2722, %v2730
  %v2739 = vsub.f32 %v2723, %v2733
  %v2740 = vsub.f32 %v2724, %v2736
  %v2741 = vmul.f32 %v2737, 1.442695
  %v2742 = vpow.pop %v2741
  %v2743 = vmul.f32 %v2738, 1.442695
  %v2744 = vpow.pop %v2743
  %v2745 = vmul.f32 %v2739, 1.442695
  %v2746 = vpow.pop %v2745
  %v2747 = vmul.f32 %v2740, 1.442695
  %v2748 = vpow.pop %v2747
  %v2749 = vsel %vm432, %v2742, 0.0
  %2750 = vadd.xlane.f32.xlu0 %v2749
  %v2751 = vpop.xlane.xlu0 %2750
  %v2752 = vsel %vm432, %v2744, 0.0
  %2753 = vadd.xlane.f32.xlu0 %v2752
  %v2754 = vpop.xlane.xlu0 %2753
  %v2755 = vsel %vm432, %v2746, 0.0
  %2756 = vadd.xlane.f32.xlu0 %v2755
  %v2757 = vpop.xlane.xlu0 %2756
  %v2758 = vsel %vm432, %v2748, 0.0
  %2759 = vadd.xlane.f32.xlu0 %v2758
  %v2760 = vpop.xlane.xlu0 %2759
  %v2761 = vrcp.pop %v2751
  %v2762 = vrcp.pop %v2754
  %v2763 = vrcp.pop %v2757
  %v2764 = vrcp.pop %v2760
  %v2765 = vmul.f32 %v2742, %v2761
  %v2766 = vmul.f32 %v2744, %v2762
  %v2767 = vmul.f32 %v2746, %v2763
  %v2768 = vmul.f32 %v2748, %v2764
  %2769 = vrot.lane.b32.xlu0 %v414, 104
  %v2770 = vpop.permute.xlu0 %2769
  %v2773 = vsel %vm432, %v2765, 0
  %2775 = vmatprep.subr.mxu0 0.0
  %2776 = vmatpush1.msra.mxu0 %v2770
  %2777 = vmatprep.subr.mxu0 0.0
  %2778 = vmatpush1.msra.mxu0 0.0
  %2779 = vmatprep.subr.mxu0 0.0
  %2780 = vmatpush1.msra.mxu0 0.0
  %2781 = vmatprep.subr.mxu0 0.0
  %2782 = vmatpush1.msra.mxu0 0.0
  %2783 = vmatprep.subr.mxu0 0.0
  %2784 = vmatpush1.msra.mxu0 0.0
  %2785 = vmatprep.subr.mxu0 0.0
  %2786 = vmatpush1.msra.mxu0 0.0
  %2787 = vmatprep.subr.mxu0 0.0
  %2788 = vmatpush1.msra.mxu0 0.0
  %2789 = vmatprep.subr.mxu0 0.0
  %2790 = vmatpush1.msra.mxu0 0.0
  %2791 = vmatprep.subr.mxu0 0.0
  %2792 = vmatpush1.msra.mxu0 0.0
  %2793 = vmatprep.subr.mxu0 0.0
  %2794 = vmatpush1.msra.mxu0 0.0
  %2795 = vmatprep.subr.mxu0 0.0
  %2796 = vmatpush1.msra.mxu0 0.0
  %2797 = vmatprep.subr.mxu0 0.0
  %2798 = vmatpush1.msra.mxu0 0.0
  %2799 = vmatprep.subr.mxu0 0.0
  %2800 = vmatpush1.msra.mxu0 0.0
  %2801 = vmatprep.subr.mxu0 0.0
  %2802 = vmatpush1.msra.mxu0 0.0
  %2803 = vmatprep.subr.mxu0 0.0
  %2804 = vmatpush1.msra.mxu0 0.0
  %2805 = vmatprep.subr.mxu0 0.0
  %2806 = vmatpush1.msra.mxu0 0.0
  %2807 = vmatprep.subr.mxu0 0.0
  %2808 = vmatpush1.msra.mxu0 0.0
  %2809 = vmatprep.subr.mxu0 0.0
  %2810 = vmatpush1.msra.mxu0 0.0
  %2811 = vmatprep.subr.mxu0 0.0
  %2812 = vmatpush1.msra.mxu0 0.0
  %2813 = vmatprep.subr.mxu0 0.0
  %2814 = vmatpush1.msra.mxu0 0.0
  %2815 = vmatprep.subr.mxu0 0.0
  %2816 = vmatpush1.msra.mxu0 0.0
  %2817 = vmatprep.subr.mxu0 0.0
  %2818 = vmatpush1.msra.mxu0 0.0
  %2819 = vmatprep.subr.mxu0 0.0
  %2820 = vmatpush1.msra.mxu0 0.0
  %2821 = vmatprep.subr.mxu0 0.0
  %2822 = vmatpush1.msra.mxu0 0.0
  %2823 = vmatprep.subr.mxu0 0.0
  %2824 = vmatpush1.msra.mxu0 0.0
  %2825 = vmatprep.subr.mxu0 0.0
  %2826 = vmatpush1.msra.mxu0 0.0
  %2827 = vmatprep.subr.mxu0 0.0
  %2828 = vmatpush1.msra.mxu0 0.0
  %2829 = vmatprep.subr.mxu0 0.0
  %2830 = vmatpush1.msra.mxu0 0.0
  %2831 = vmatprep.subr.mxu0 0.0
  %2832 = vmatpush1.msra.mxu0 0.0
  %2833 = vmatprep.subr.mxu0 0.0
  %2834 = vmatpush1.msra.mxu0 0.0
  %2835 = vmatprep.subr.mxu0 0.0
  %2836 = vmatpush1.msra.mxu0 0.0
  %2837 = vmatprep.subr.mxu0 0.0
  %2838 = vmatpush1.msra.mxu0 0.0
  %2839 = vmatprep.mubr.f32.mxu0 0.0
  %2840 = vmatmul.mubr.f32.gmra.mrb[0].mxu0 %v2773
  %v2841 = vpop.f32.mrb[0].mxu0
  %v2842 = vadd.f32 0.0, %v2841
  %v2843 = vpop.f32.mrb[0].mxu0
  %2844 = vdwg.mxu0
  %2845 = vrot.lane.b32.xlu0 %v419, 104
  %v2846 = vpop.permute.xlu0 %2845
  %v2849 = vsel %vm432, %v2766, 0
  %2851 = vmatprep.subr.mxu0 0.0
  %2852 = vmatpush1.msra.mxu0 %v2846
  %2853 = vmatprep.subr.mxu0 0.0
  %2854 = vmatpush1.msra.mxu0 0.0
  %2855 = vmatprep.subr.mxu0 0.0
  %2856 = vmatpush1.msra.mxu0 0.0
  %2857 = vmatprep.subr.mxu0 0.0
  %2858 = vmatpush1.msra.mxu0 0.0
  %2859 = vmatprep.subr.mxu0 0.0
  %2860 = vmatpush1.msra.mxu0 0.0
  %2861 = vmatprep.subr.mxu0 0.0
  %2862 = vmatpush1.msra.mxu0 0.0
  %2863 = vmatprep.subr.mxu0 0.0
  %2864 = vmatpush1.msra.mxu0 0.0
  %2865 = vmatprep.subr.mxu0 0.0
  %2866 = vmatpush1.msra.mxu0 0.0
  %2867 = vmatprep.subr.mxu0 0.0
  %2868 = vmatpush1.msra.mxu0 0.0
  %2869 = vmatprep.subr.mxu0 0.0
  %2870 = vmatpush1.msra.mxu0 0.0
  %2871 = vmatprep.subr.mxu0 0.0
  %2872 = vmatpush1.msra.mxu0 0.0
  %2873 = vmatprep.subr.mxu0 0.0
  %2874 = vmatpush1.msra.mxu0 0.0
  %2875 = vmatprep.subr.mxu0 0.0
  %2876 = vmatpush1.msra.mxu0 0.0
  %2877 = vmatprep.subr.mxu0 0.0
  %2878 = vmatpush1.msra.mxu0 0.0
  %2879 = vmatprep.subr.mxu0 0.0
  %2880 = vmatpush1.msra.mxu0 0.0
  %2881 = vmatprep.subr.mxu0 0.0
  %2882 = vmatpush1.msra.mxu0 0.0
  %2883 = vmatprep.subr.mxu0 0.0
  %2884 = vmatpush1.msra.mxu0 0.0
  %2885 = vmatprep.subr.mxu0 0.0
  %2886 = vmatpush1.msra.mxu0 0.0
  %2887 = vmatprep.subr.mxu0 0.0
  %2888 = vmatpush1.msra.mxu0 0.0
  %2889 = vmatprep.subr.mxu0 0.0
  %2890 = vmatpush1.msra.mxu0 0.0
  %2891 = vmatprep.subr.mxu0 0.0
  %2892 = vmatpush1.msra.mxu0 0.0
  %2893 = vmatprep.subr.mxu0 0.0
  %2894 = vmatpush1.msra.mxu0 0.0
  %2895 = vmatprep.subr.mxu0 0.0
  %2896 = vmatpush1.msra.mxu0 0.0
  %2897 = vmatprep.subr.mxu0 0.0
  %2898 = vmatpush1.msra.mxu0 0.0
  %2899 = vmatprep.subr.mxu0 0.0
  %2900 = vmatpush1.msra.mxu0 0.0
  %2901 = vmatprep.subr.mxu0 0.0
  %2902 = vmatpush1.msra.mxu0 0.0
  %2903 = vmatprep.subr.mxu0 0.0
  %2904 = vmatpush1.msra.mxu0 0.0
  %2905 = vmatprep.subr.mxu0 0.0
  %2906 = vmatpush1.msra.mxu0 0.0
  %2907 = vmatprep.subr.mxu0 0.0
  %2908 = vmatpush1.msra.mxu0 0.0
  %2909 = vmatprep.subr.mxu0 0.0
  %2910 = vmatpush1.msra.mxu0 0.0
  %2911 = vmatprep.subr.mxu0 0.0
  %2912 = vmatpush1.msra.mxu0 0.0
  %2913 = vmatprep.subr.mxu0 0.0
  %2914 = vmatpush1.msra.mxu0 0.0
  %2915 = vmatprep.mubr.f32.mxu0 0.0
  %2916 = vmatmul.mubr.f32.gmra.mrb[0].mxu0 %v2849
  %v2917 = vpop.f32.mrb[0].mxu0
  %v2918 = vadd.f32 0.0, %v2917
  %v2919 = vpop.f32.mrb[0].mxu0
  %2920 = vdwg.mxu0
  %2921 = vrot.lane.b32.xlu0 %v424, 104
  %v2922 = vpop.permute.xlu0 %2921
  %v2925 = vsel %vm432, %v2767, 0
  %2927 = vmatprep.subr.mxu0 0.0
  %2928 = vmatpush1.msra.mxu0 %v2922
  %2929 = vmatprep.subr.mxu0 0.0
  %2930 = vmatpush1.msra.mxu0 0.0
  %2931 = vmatprep.subr.mxu0 0.0
  %2932 = vmatpush1.msra.mxu0 0.0
  %2933 = vmatprep.subr.mxu0 0.0
  %2934 = vmatpush1.msra.mxu0 0.0
  %2935 = vmatprep.subr.mxu0 0.0
  %2936 = vmatpush1.msra.mxu0 0.0
  %2937 = vmatprep.subr.mxu0 0.0
  %2938 = vmatpush1.msra.mxu0 0.0
  %2939 = vmatprep.subr.mxu0 0.0
  %2940 = vmatpush1.msra.mxu0 0.0
  %2941 = vmatprep.subr.mxu0 0.0
  %2942 = vmatpush1.msra.mxu0 0.0
  %2943 = vmatprep.subr.mxu0 0.0
  %2944 = vmatpush1.msra.mxu0 0.0
  %2945 = vmatprep.subr.mxu0 0.0
  %2946 = vmatpush1.msra.mxu0 0.0
  %2947 = vmatprep.subr.mxu0 0.0
  %2948 = vmatpush1.msra.mxu0 0.0
  %2949 = vmatprep.subr.mxu0 0.0
  %2950 = vmatpush1.msra.mxu0 0.0
  %2951 = vmatprep.subr.mxu0 0.0
  %2952 = vmatpush1.msra.mxu0 0.0
  %2953 = vmatprep.subr.mxu0 0.0
  %2954 = vmatpush1.msra.mxu0 0.0
  %2955 = vmatprep.subr.mxu0 0.0
  %2956 = vmatpush1.msra.mxu0 0.0
  %2957 = vmatprep.subr.mxu0 0.0
  %2958 = vmatpush1.msra.mxu0 0.0
  %2959 = vmatprep.subr.mxu0 0.0
  %2960 = vmatpush1.msra.mxu0 0.0
  %2961 = vmatprep.subr.mxu0 0.0
  %2962 = vmatpush1.msra.mxu0 0.0
  %2963 = vmatprep.subr.mxu0 0.0
  %2964 = vmatpush1.msra.mxu0 0.0
  %2965 = vmatprep.subr.mxu0 0.0
  %2966 = vmatpush1.msra.mxu0 0.0
  %2967 = vmatprep.subr.mxu0 0.0
  %2968 = vmatpush1.msra.mxu0 0.0
  %2969 = vmatprep.subr.mxu0 0.0
  %2970 = vmatpush1.msra.mxu0 0.0
  %2971 = vmatprep.subr.mxu0 0.0
  %2972 = vmatpush1.msra.mxu0 0.0
  %2973 = vmatprep.subr.mxu0 0.0
  %2974 = vmatpush1.msra.mxu0 0.0
  %2975 = vmatprep.subr.mxu0 0.0
  %2976 = vmatpush1.msra.mxu0 0.0
  %2977 = vmatprep.subr.mxu0 0.0
  %2978 = vmatpush1.msra.mxu0 0.0
  %2979 = vmatprep.subr.mxu0 0.0
  %2980 = vmatpush1.msra.mxu0 0.0
  %2981 = vmatprep.subr.mxu0 0.0
  %2982 = vmatpush1.msra.mxu0 0.0
  %2983 = vmatprep.subr.mxu0 0.0
  %2984 = vmatpush1.msra.mxu0 0.0
  %2985 = vmatprep.subr.mxu0 0.0
  %2986 = vmatpush1.msra.mxu0 0.0
  %2987 = vmatprep.subr.mxu0 0.0
  %2988 = vmatpush1.msra.mxu0 0.0
  %2989 = vmatprep.subr.mxu0 0.0
  %2990 = vmatpush1.msra.mxu0 0.0
  %2991 = vmatprep.mubr.f32.mxu0 0.0
  %2992 = vmatmul.mubr.f32.gmra.mrb[0].mxu0 %v2925
  %v2993 = vpop.f32.mrb[0].mxu0
  %v2994 = vadd.f32 0.0, %v2993
  %v2995 = vpop.f32.mrb[0].mxu0
  %2996 = vdwg.mxu0
  %2997 = vrot.lane.b32.xlu0 %v429, 104
  %v2998 = vpop.permute.xlu0 %2997
  %v3001 = vsel %vm432, %v2768, 0
  %3003 = vmatprep.subr.mxu0 0.0
  %3004 = vmatpush1.msra.mxu0 %v2998
  %3005 = vmatprep.subr.mxu0 0.0
  %3006 = vmatpush1.msra.mxu0 0.0
  %3007 = vmatprep.subr.mxu0 0.0
  %3008 = vmatpush1.msra.mxu0 0.0
  %3009 = vmatprep.subr.mxu0 0.0
  %3010 = vmatpush1.msra.mxu0 0.0
  %3011 = vmatprep.subr.mxu0 0.0
  %3012 = vmatpush1.msra.mxu0 0.0
  %3013 = vmatprep.subr.mxu0 0.0
  %3014 = vmatpush1.msra.mxu0 0.0
  %3015 = vmatprep.subr.mxu0 0.0
  %3016 = vmatpush1.msra.mxu0 0.0
  %3017 = vmatprep.subr.mxu0 0.0
  %3018 = vmatpush1.msra.mxu0 0.0
  %3019 = vmatprep.subr.mxu0 0.0
  %3020 = vmatpush1.msra.mxu0 0.0
  %3021 = vmatprep.subr.mxu0 0.0
  %3022 = vmatpush1.msra.mxu0 0.0
  %3023 = vmatprep.subr.mxu0 0.0
  %3024 = vmatpush1.msra.mxu0 0.0
  %3025 = vmatprep.subr.mxu0 0.0
  %3026 = vmatpush1.msra.mxu0 0.0
  %3027 = vmatprep.subr.mxu0 0.0
  %3028 = vmatpush1.msra.mxu0 0.0
  %3029 = vmatprep.subr.mxu0 0.0
  %3030 = vmatpush1.msra.mxu0 0.0
  %3031 = vmatprep.subr.mxu0 0.0
  %3032 = vmatpush1.msra.mxu0 0.0
  %3033 = vmatprep.subr.mxu0 0.0
  %3034 = vmatpush1.msra.mxu0 0.0
  %3035 = vmatprep.subr.mxu0 0.0
  %3036 = vmatpush1.msra.mxu0 0.0
  %3037 = vmatprep.subr.mxu0 0.0
  %3038 = vmatpush1.msra.mxu0 0.0
  %3039 = vmatprep.subr.mxu0 0.0
  %3040 = vmatpush1.msra.mxu0 0.0
  %3041 = vmatprep.subr.mxu0 0.0
  %3042 = vmatpush1.msra.mxu0 0.0
  %3043 = vmatprep.subr.mxu0 0.0
  %3044 = vmatpush1.msra.mxu0 0.0
  %3045 = vmatprep.subr.mxu0 0.0
  %3046 = vmatpush1.msra.mxu0 0.0
  %3047 = vmatprep.subr.mxu0 0.0
  %3048 = vmatpush1.msra.mxu0 0.0
  %3049 = vmatprep.subr.mxu0 0.0
  %3050 = vmatpush1.msra.mxu0 0.0
  %3051 = vmatprep.subr.mxu0 0.0
  %3052 = vmatpush1.msra.mxu0 0.0
  %3053 = vmatprep.subr.mxu0 0.0
  %3054 = vmatpush1.msra.mxu0 0.0
  %3055 = vmatprep.subr.mxu0 0.0
  %3056 = vmatpush1.msra.mxu0 0.0
  %3057 = vmatprep.subr.mxu0 0.0
  %3058 = vmatpush1.msra.mxu0 0.0
  %3059 = vmatprep.subr.mxu0 0.0
  %3060 = vmatpush1.msra.mxu0 0.0
  %3061 = vmatprep.subr.mxu0 0.0
  %3062 = vmatpush1.msra.mxu0 0.0
  %3063 = vmatprep.subr.mxu0 0.0
  %3064 = vmatpush1.msra.mxu0 0.0
  %3065 = vmatprep.subr.mxu0 0.0
  %3066 = vmatpush1.msra.mxu0 0.0
  %3067 = vmatprep.mubr.f32.mxu0 0.0
  %3068 = vmatmul.mubr.f32.gmra.mrb[0].mxu0 %v3001
  %v3069 = vpop.f32.mrb[0].mxu0
  %v3070 = vadd.f32 0.0, %v3069
  %v3071 = vpop.f32.mrb[0].mxu0
  %3072 = vdwg.mxu0
  %3077 = vrot.lane.b32.xlu0 %v1511, 8
  %v3078 = vpop.permute.xlu0 %3077
  %3079 = vrot.lane.b32.xlu0 %v1588, 8
  %v3080 = vpop.permute.xlu0 %3079
  %3081 = vrot.lane.b32.xlu0 %v1665, 8
  %v3082 = vpop.permute.xlu0 %3081
  %3083 = vrot.lane.b32.xlu0 %v1742, 8
  %v3084 = vpop.permute.xlu0 %3083
  %3093 = vrot.lane.b32.xlu0 %v2178, 16
  %v3094 = vpop.permute.xlu0 %3093
  %3095 = vrot.lane.b32.xlu0 %v2254, 16
  %v3096 = vpop.permute.xlu0 %3095
  %3097 = vrot.lane.b32.xlu0 %v2330, 16
  %v3098 = vpop.permute.xlu0 %3097
  %3099 = vrot.lane.b32.xlu0 %v2406, 16
  %v3100 = vpop.permute.xlu0 %3099
  %3109 = vrot.lane.b32.xlu0 %v2842, 24
  %v3110 = vpop.permute.xlu0 %3109
  %3111 = vrot.lane.b32.xlu0 %v2918, 24
  %v3112 = vpop.permute.xlu0 %3111
  %3113 = vrot.lane.b32.xlu0 %v2994, 24
  %v3114 = vpop.permute.xlu0 %3113
  %3115 = vrot.lane.b32.xlu0 %v3070, 24
  %v3116 = vpop.permute.xlu0 %3115
  %v3121 = vsel %vm432, %v855, %v3078
  %v3122 = vsel %vm432, %v928, %v3080
  %v3123 = vsel %vm432, %v1001, %v3082
  %v3124 = vsel %vm432, %v1074, %v3084
  %vm3125 = vcmask 130048
  %v3126 = vsel %vm3125, %v3121, %v3094
  %v3127 = vsel %vm3125, %v3122, %v3096
  %v3128 = vsel %vm3125, %v3123, %v3098
  %v3129 = vsel %vm3125, %v3124, %v3100
  %vm3130 = vcmask 195584
  %v3131 = vsel %vm3130, %v3126, %v3110
  %v3132 = vsel %vm3130, %v3127, %v3112
  %v3133 = vsel %vm3130, %v3128, %v3114
  %v3134 = vsel %vm3130, %v3129, %v3116
  %v3135 = vld [vmem:[%s8] sm:$0xff]
  %v3136 = vld [vmem:[%s8 + $0x8] sm:$0xff]
  %v3137 = vld [vmem:[%s8 + $0x10] sm:$0xff]
  %v3138 = vld [vmem:[%s8 + $0x18] sm:$0xff]
  %v3140 = vsel %vm65, %v3131, 0
  %v3143 = vsel %vm65, %v3132, 0
  %v3146 = vsel %vm65, %v3133, 0
  %v3149 = vsel %vm65, %v3134, 0
  %3151 = vmatprep.subr.mxu0 0.0
  %3152 = vmatpush1.msra.mxu0 %v3135
  %3153 = vmatprep.subr.mxu0 0.0
  %3154 = vmatpush1.msra.mxu0 %v3136
  %3155 = vmatprep.subr.mxu0 0.0
  %3156 = vmatpush1.msra.mxu0 %v3137
  %3157 = vmatprep.subr.mxu0 0.0
  %3158 = vmatpush1.msra.mxu0 %v3138
  %3159 = vmatprep.subr.mxu0 0.0
  %3160 = vmatpush1.msra.mxu0 0.0
  %3161 = vmatprep.subr.mxu0 0.0
  %3162 = vmatpush1.msra.mxu0 0.0
  %3163 = vmatprep.subr.mxu0 0.0
  %3164 = vmatpush1.msra.mxu0 0.0
  %3165 = vmatprep.subr.mxu0 0.0
  %3166 = vmatpush1.msra.mxu0 0.0
  %3167 = vmatprep.subr.mxu0 0.0
  %3168 = vmatpush1.msra.mxu0 0.0
  %3169 = vmatprep.subr.mxu0 0.0
  %3170 = vmatpush1.msra.mxu0 0.0
  %3171 = vmatprep.subr.mxu0 0.0
  %3172 = vmatpush1.msra.mxu0 0.0
  %3173 = vmatprep.subr.mxu0 0.0
  %3174 = vmatpush1.msra.mxu0 0.0
  %3175 = vmatprep.subr.mxu0 0.0
  %3176 = vmatpush1.msra.mxu0 0.0
  %3177 = vmatprep.subr.mxu0 0.0
  %3178 = vmatpush1.msra.mxu0 0.0
  %3179 = vmatprep.subr.mxu0 0.0
  %3180 = vmatpush1.msra.mxu0 0.0
  %3181 = vmatprep.subr.mxu0 0.0
  %3182 = vmatpush1.msra.mxu0 0.0
  %3183 = vmatprep.subr.mxu0 0.0
  %3184 = vmatpush1.msra.mxu0 0.0
  %3185 = vmatprep.subr.mxu0 0.0
  %3186 = vmatpush1.msra.mxu0 0.0
  %3187 = vmatprep.subr.mxu0 0.0
  %3188 = vmatpush1.msra.mxu0 0.0
  %3189 = vmatprep.subr.mxu0 0.0
  %3190 = vmatpush1.msra.mxu0 0.0
  %3191 = vmatprep.subr.mxu0 0.0
  %3192 = vmatpush1.msra.mxu0 0.0
  %3193 = vmatprep.subr.mxu0 0.0
  %3194 = vmatpush1.msra.mxu0 0.0
  %3195 = vmatprep.subr.mxu0 0.0
  %3196 = vmatpush1.msra.mxu0 0.0
  %3197 = vmatprep.subr.mxu0 0.0
  %3198 = vmatpush1.msra.mxu0 0.0
  %3199 = vmatprep.subr.mxu0 0.0
  %3200 = vmatpush1.msra.mxu0 0.0
  %3201 = vmatprep.subr.mxu0 0.0
  %3202 = vmatpush1.msra.mxu0 0.0
  %3203 = vmatprep.subr.mxu0 0.0
  %3204 = vmatpush1.msra.mxu0 0.0
  %3205 = vmatprep.subr.mxu0 0.0
  %3206 = vmatpush1.msra.mxu0 0.0
  %3207 = vmatprep.subr.mxu0 0.0
  %3208 = vmatpush1.msra.mxu0 0.0
  %3209 = vmatprep.subr.mxu0 0.0
  %3210 = vmatpush1.msra.mxu0 0.0
  %3211 = vmatprep.subr.mxu0 0.0
  %3212 = vmatpush1.msra.mxu0 0.0
  %3213 = vmatprep.subr.mxu0 0.0
  %3214 = vmatpush1.msra.mxu0 0.0
  %3215 = vmatprep.mubr.f32.mxu0 0.0
  %3216 = vmatmul.mubr.f32.gmra.mrb[0].mxu0 %v3140
  %v3217 = vpop.f32.mrb[0].mxu0
  %v3218 = vadd.f32 0.0, %v3217
  %v3219 = vpop.f32.mrb[0].mxu0
  %3220 = vmatprep.mubr.f32.mxu0 0.0
  %3221 = vmatmul.mubr.f32.gmra.mrb[0].mxu0 %v3143
  %v3222 = vpop.f32.mrb[0].mxu0
  %v3223 = vadd.f32 0.0, %v3222
  %v3224 = vpop.f32.mrb[0].mxu0
  %3225 = vmatprep.mubr.f32.mxu0 0.0
  %3226 = vmatmul.mubr.f32.gmra.mrb[0].mxu0 %v3146
  %v3227 = vpop.f32.mrb[0].mxu0
  %v3228 = vadd.f32 0.0, %v3227
  %v3229 = vpop.f32.mrb[0].mxu0
  %3230 = vmatprep.mubr.f32.mxu0 0.0
  %3231 = vmatmul.mubr.f32.gmra.mrb[0].mxu0 %v3149
  %v3232 = vpop.f32.mrb[0].mxu0
  %v3233 = vadd.f32 0.0, %v3232
  %v3234 = vpop.f32.mrb[0].mxu0
  %3235 = vdwg.mxu0
  %v3236 = vadd.f32 %v59, %v3218
  %v3237 = vadd.f32 %v60, %v3223
  %v3238 = vadd.f32 %v61, %v3228
  %v3239 = vadd.f32 %v62, %v3233
  %v3240 = vld [vmem:[%s9] sm:$0x1]
  %v3242 = vlaneseq
  %v3243 = vshrl.u32 %v3242, 7
  %v3244 = vsub.s32 0, %v3243
  %v3245 = vrot.slane %v3240, %v3244
  %v3247 = vadd.f32 %v3236, %v3245
  %v3248 = vadd.f32 %v3237, %v3245
  %v3249 = vadd.f32 %v3238, %v3245
  %v3250 = vadd.f32 %v3239, %v3245
  %v3251 = vld [vmem:[%s10] sm:$0x1]
  %v3252 = vld [vmem:[%s11] sm:$0x1]
  %v3253 = vsel %vm65, %v3247, 0.0
  %3254 = vadd.xlane.f32.xlu0 %v3253
  %v3255 = vpop.xlane.xlu0 %3254
  %v3256 = vsel %vm65, %v3248, 0.0
  %3257 = vadd.xlane.f32.xlu0 %v3256
  %v3258 = vpop.xlane.xlu0 %3257
  %v3259 = vsel %vm65, %v3249, 0.0
  %3260 = vadd.xlane.f32.xlu0 %v3259
  %v3261 = vpop.xlane.xlu0 %3260
  %v3262 = vsel %vm65, %v3250, 0.0
  %3263 = vadd.xlane.f32.xlu0 %v3262
  %v3264 = vpop.xlane.xlu0 %3263
  %v3265 = vmul.f32 %v3255, %v78
  %v3266 = vmul.f32 %v3258, %v78
  %v3267 = vmul.f32 %v3261, %v78
  %v3268 = vmul.f32 %v3264, %v78
  %v3269 = vsub.f32 %v3247, %v3265
  %v3270 = vsub.f32 %v3248, %v3266
  %v3271 = vsub.f32 %v3249, %v3267
  %v3272 = vsub.f32 %v3250, %v3268
  %v3273 = vmul.f32 %v3269, %v3269
  %v3274 = vmul.f32 %v3270, %v3270
  %v3275 = vmul.f32 %v3271, %v3271
  %v3276 = vmul.f32 %v3272, %v3272
  %v3277 = vsel %vm65, %v3273, 0.0
  %3278 = vadd.xlane.f32.xlu0 %v3277
  %v3279 = vpop.xlane.xlu0 %3278
  %v3280 = vsel %vm65, %v3274, 0.0
  %3281 = vadd.xlane.f32.xlu0 %v3280
  %v3282 = vpop.xlane.xlu0 %3281
  %v3283 = vsel %vm65, %v3275, 0.0
  %3284 = vadd.xlane.f32.xlu0 %v3283
  %v3285 = vpop.xlane.xlu0 %3284
  %v3286 = vsel %vm65, %v3276, 0.0
  %3287 = vadd.xlane.f32.xlu0 %v3286
  %v3288 = vpop.xlane.xlu0 %3287
  %v3289 = vmul.f32 %v3279, %v78
  %v3290 = vmul.f32 %v3282, %v78
  %v3291 = vmul.f32 %v3285, %v78
  %v3292 = vmul.f32 %v3288, %v78
  %v3293 = vadd.f32 %v3289, 1e-05
  %v3294 = vadd.f32 %v3290, 1e-05
  %v3295 = vadd.f32 %v3291, 1e-05
  %v3296 = vadd.f32 %v3292, 1e-05
  %v3297 = vrsqrt.pop %v3293
  %v3298 = vrsqrt.pop %v3294
  %v3299 = vrsqrt.pop %v3295
  %v3300 = vrsqrt.pop %v3296
  %v3301 = vmul.f32 %v3269, %v3297
  %v3302 = vmul.f32 %v3270, %v3298
  %v3303 = vmul.f32 %v3271, %v3299
  %v3304 = vmul.f32 %v3272, %v3300
  %v3306 = vlaneseq
  %v3307 = vshrl.u32 %v3306, 7
  %v3308 = vsub.s32 0, %v3307
  %v3309 = vrot.slane %v3251, %v3308
  %v3311 = vmul.f32 %v3301, %v3309
  %v3312 = vmul.f32 %v3302, %v3309
  %v3313 = vmul.f32 %v3303, %v3309
  %v3314 = vmul.f32 %v3304, %v3309
  %v3316 = vlaneseq
  %v3317 = vshrl.u32 %v3316, 7
  %v3318 = vsub.s32 0, %v3317
  %v3319 = vrot.slane %v3252, %v3318
  %v3321 = vadd.f32 %v3311, %v3319
  %v3322 = vadd.f32 %v3312, %v3319
  %v3323 = vadd.f32 %v3313, %v3319
  %v3324 = vadd.f32 %v3314, %v3319
  %v3325 = vld [vmem:[%s12] sm:$0xff]
  %v3326 = vld [vmem:[%s12 + $0x8] sm:$0xff]
  %v3327 = vld [vmem:[%s12 + $0x10] sm:$0xff]
  %v3328 = vld [vmem:[%s12 + $0x18] sm:$0xff]
  %v3329 = vld [vmem:[%s13] sm:$0x1]
  %v3331 = vlaneseq
  %v3332 = vshrl.u32 %v3331, 7
  %v3333 = vsub.s32 0, %v3332
  %v3334 = vrot.slane %v3329, %v3333
  %v3337 = vsel %vm65, %v3321, 0
  %v3340 = vsel %vm65, %v3322, 0
  %v3343 = vsel %vm65, %v3323, 0
  %v3346 = vsel %vm65, %v3324, 0
  %3348 = vmatprep.subr.mxu0 0.0
  %3349 = vmatpush1.msra.mxu0 %v3325
  %3350 = vmatprep.subr.mxu0 0.0
  %3351 = vmatpush1.msra.mxu0 %v3326
  %3352 = vmatprep.subr.mxu0 0.0
  %3353 = vmatpush1.msra.mxu0 %v3327
  %3354 = vmatprep.subr.mxu0 0.0
  %3355 = vmatpush1.msra.mxu0 %v3328
  %3356 = vmatprep.subr.mxu0 0.0
  %3357 = vmatpush1.msra.mxu0 0.0
  %3358 = vmatprep.subr.mxu0 0.0
  %3359 = vmatpush1.msra.mxu0 0.0
  %3360 = vmatprep.subr.mxu0 0.0
  %3361 = vmatpush1.msra.mxu0 0.0
  %3362 = vmatprep.subr.mxu0 0.0
  %3363 = vmatpush1.msra.mxu0 0.0
  %3364 = vmatprep.subr.mxu0 0.0
  %3365 = vmatpush1.msra.mxu0 0.0
  %3366 = vmatprep.subr.mxu0 0.0
  %3367 = vmatpush1.msra.mxu0 0.0
  %3368 = vmatprep.subr.mxu0 0.0
  %3369 = vmatpush1.msra.mxu0 0.0
  %3370 = vmatprep.subr.mxu0 0.0
  %3371 = vmatpush1.msra.mxu0 0.0
  %3372 = vmatprep.subr.mxu0 0.0
  %3373 = vmatpush1.msra.mxu0 0.0
  %3374 = vmatprep.subr.mxu0 0.0
  %3375 = vmatpush1.msra.mxu0 0.0
  %3376 = vmatprep.subr.mxu0 0.0
  %3377 = vmatpush1.msra.mxu0 0.0
  %3378 = vmatprep.subr.mxu0 0.0
  %3379 = vmatpush1.msra.mxu0 0.0
  %3380 = vmatprep.subr.mxu0 0.0
  %3381 = vmatpush1.msra.mxu0 0.0
  %3382 = vmatprep.subr.mxu0 0.0
  %3383 = vmatpush1.msra.mxu0 0.0
  %3384 = vmatprep.subr.mxu0 0.0
  %3385 = vmatpush1.msra.mxu0 0.0
  %3386 = vmatprep.subr.mxu0 0.0
  %3387 = vmatpush1.msra.mxu0 0.0
  %3388 = vmatprep.subr.mxu0 0.0
  %3389 = vmatpush1.msra.mxu0 0.0
  %3390 = vmatprep.subr.mxu0 0.0
  %3391 = vmatpush1.msra.mxu0 0.0
  %3392 = vmatprep.subr.mxu0 0.0
  %3393 = vmatpush1.msra.mxu0 0.0
  %3394 = vmatprep.subr.mxu0 0.0
  %3395 = vmatpush1.msra.mxu0 0.0
  %3396 = vmatprep.subr.mxu0 0.0
  %3397 = vmatpush1.msra.mxu0 0.0
  %3398 = vmatprep.subr.mxu0 0.0
  %3399 = vmatpush1.msra.mxu0 0.0
  %3400 = vmatprep.subr.mxu0 0.0
  %3401 = vmatpush1.msra.mxu0 0.0
  %3402 = vmatprep.subr.mxu0 0.0
  %3403 = vmatpush1.msra.mxu0 0.0
  %3404 = vmatprep.subr.mxu0 0.0
  %3405 = vmatpush1.msra.mxu0 0.0
  %3406 = vmatprep.subr.mxu0 0.0
  %3407 = vmatpush1.msra.mxu0 0.0
  %3408 = vmatprep.subr.mxu0 0.0
  %3409 = vmatpush1.msra.mxu0 0.0
  %3410 = vmatprep.subr.mxu0 0.0
  %3411 = vmatpush1.msra.mxu0 0.0
  %3412 = vmatprep.mubr.f32.mxu0 0.0
  %3413 = vmatmul.mubr.f32.gmra.mrb[0].mxu0 %v3337
  %v3414 = vpop.f32.mrb[0].mxu0
  %v3415 = vadd.f32 %v3334, %v3414
  %v3416 = vpop.f32.mrb[0].mxu0
  %3417 = vmatprep.mubr.f32.mxu0 0.0
  %3418 = vmatmul.mubr.f32.gmra.mrb[0].mxu0 %v3340
  %v3419 = vpop.f32.mrb[0].mxu0
  %v3420 = vadd.f32 %v3334, %v3419
  %v3421 = vpop.f32.mrb[0].mxu0
  %3422 = vmatprep.mubr.f32.mxu0 0.0
  %3423 = vmatmul.mubr.f32.gmra.mrb[0].mxu0 %v3343
  %v3424 = vpop.f32.mrb[0].mxu0
  %v3425 = vadd.f32 %v3334, %v3424
  %v3426 = vpop.f32.mrb[0].mxu0
  %3427 = vmatprep.mubr.f32.mxu0 0.0
  %3428 = vmatmul.mubr.f32.gmra.mrb[0].mxu0 %v3346
  %v3429 = vpop.f32.mrb[0].mxu0
  %v3430 = vadd.f32 %v3334, %v3429
  %v3431 = vpop.f32.mrb[0].mxu0
  %3432 = vdwg.mxu0
  %v3433 = vmul.f32 %v3415, 0.5
  %v3434 = vmul.f32 %v3420, 0.5
  %v3435 = vmul.f32 %v3425, 0.5
  %v3436 = vmul.f32 %v3430, 0.5
  %v3437 = vmul.f32 %v3415, 0.044715
  %v3438 = vmul.f32 %v3420, 0.044715
  %v3439 = vmul.f32 %v3425, 0.044715
  %v3440 = vmul.f32 %v3430, 0.044715
  %v3441 = vmul.f32 %v3437, %v3415
  %v3442 = vmul.f32 %v3438, %v3420
  %v3443 = vmul.f32 %v3439, %v3425
  %v3444 = vmul.f32 %v3440, %v3430
  %v3445 = vmul.f32 %v3441, %v3415
  %v3446 = vmul.f32 %v3442, %v3420
  %v3447 = vmul.f32 %v3443, %v3425
  %v3448 = vmul.f32 %v3444, %v3430
  %v3449 = vadd.f32 %v3415, %v3445
  %v3450 = vadd.f32 %v3420, %v3446
  %v3451 = vadd.f32 %v3425, %v3447
  %v3452 = vadd.f32 %v3430, %v3448
  %v3453 = vmul.f32 %v3449, 0.7978846
  %v3454 = vmul.f32 %v3450, 0.7978846
  %v3455 = vmul.f32 %v3451, 0.7978846
  %v3456 = vmul.f32 %v3452, 0.7978846
  %v3457 = vtanh.pop %v3453
  %v3458 = vtanh.pop %v3454
  %v3459 = vtanh.pop %v3455
  %v3460 = vtanh.pop %v3456
  %v3461 = vadd.f32 %v3457, 1.0
  %v3462 = vadd.f32 %v3458, 1.0
  %v3463 = vadd.f32 %v3459, 1.0
  %v3464 = vadd.f32 %v3460, 1.0
  %v3465 = vmul.f32 %v3433, %v3461
  %v3466 = vmul.f32 %v3434, %v3462
  %v3467 = vmul.f32 %v3435, %v3463
  %v3468 = vmul.f32 %v3436, %v3464
  %v3469 = vld [vmem:[%s14] sm:$0xff]
  %v3470 = vld [vmem:[%s14 + $0x8] sm:$0xff]
  %v3471 = vld [vmem:[%s14 + $0x10] sm:$0xff]
  %v3472 = vld [vmem:[%s14 + $0x18] sm:$0xff]
  %v3473 = vld [vmem:[%s14 + $0x20] sm:$0xff]
  %v3474 = vld [vmem:[%s14 + $0x28] sm:$0xff]
  %v3475 = vld [vmem:[%s14 + $0x30] sm:$0xff]
  %v3476 = vld [vmem:[%s14 + $0x38] sm:$0xff]
  %v3477 = vld [vmem:[%s14 + $0x40] sm:$0xff]
  %v3478 = vld [vmem:[%s14 + $0x48] sm:$0xff]
  %v3479 = vld [vmem:[%s14 + $0x50] sm:$0xff]
  %v3480 = vld [vmem:[%s14 + $0x58] sm:$0xff]
  %v3481 = vld [vmem:[%s14 + $0x60] sm:$0xff]
  %v3482 = vld [vmem:[%s14 + $0x68] sm:$0xff]
  %v3483 = vld [vmem:[%s14 + $0x70] sm:$0xff]
  %v3484 = vld [vmem:[%s14 + $0x78] sm:$0xff]
  %3485 = vmatprep.subr.mxu0 0.0
  %3486 = vmatpush1.msra.mxu0 %v3469
  %3487 = vmatprep.subr.mxu0 0.0
  %3488 = vmatpush1.msra.mxu0 %v3470
  %3489 = vmatprep.subr.mxu0 0.0
  %3490 = vmatpush1.msra.mxu0 %v3471
  %3491 = vmatprep.subr.mxu0 0.0
  %3492 = vmatpush1.msra.mxu0 %v3472
  %3493 = vmatprep.subr.mxu0 0.0
  %3494 = vmatpush1.msra.mxu0 %v3473
  %3495 = vmatprep.subr.mxu0 0.0
  %3496 = vmatpush1.msra.mxu0 %v3474
  %3497 = vmatprep.subr.mxu0 0.0
  %3498 = vmatpush1.msra.mxu0 %v3475
  %3499 = vmatprep.subr.mxu0 0.0
  %3500 = vmatpush1.msra.mxu0 %v3476
  %3501 = vmatprep.subr.mxu0 0.0
  %3502 = vmatpush1.msra.mxu0 %v3477
  %3503 = vmatprep.subr.mxu0 0.0
  %3504 = vmatpush1.msra.mxu0 %v3478
  %3505 = vmatprep.subr.mxu0 0.0
  %3506 = vmatpush1.msra.mxu0 %v3479
  %3507 = vmatprep.subr.mxu0 0.0
  %3508 = vmatpush1.msra.mxu0 %v3480
  %3509 = vmatprep.subr.mxu0 0.0
  %3510 = vmatpush1.msra.mxu0 %v3481
  %3511 = vmatprep.subr.mxu0 0.0
  %3512 = vmatpush1.msra.mxu0 %v3482
  %3513 = vmatprep.subr.mxu0 0.0
  %3514 = vmatpush1.msra.mxu0 %v3483
  %3515 = vmatprep.subr.mxu0 0.0
  %3516 = vmatpush1.msra.mxu0 %v3484
  %3517 = vmatprep.subr.mxu0 0.0
  %3518 = vmatpush1.msra.mxu0 0.0
  %3519 = vmatprep.subr.mxu0 0.0
  %3520 = vmatpush1.msra.mxu0 0.0
  %3521 = vmatprep.subr.mxu0 0.0
  %3522 = vmatpush1.msra.mxu0 0.0
  %3523 = vmatprep.subr.mxu0 0.0
  %3524 = vmatpush1.msra.mxu0 0.0
  %3525 = vmatprep.subr.mxu0 0.0
  %3526 = vmatpush1.msra.mxu0 0.0
  %3527 = vmatprep.subr.mxu0 0.0
  %3528 = vmatpush1.msra.mxu0 0.0
  %3529 = vmatprep.subr.mxu0 0.0
  %3530 = vmatpush1.msra.mxu0 0.0
  %3531 = vmatprep.subr.mxu0 0.0
  %3532 = vmatpush1.msra.mxu0 0.0
  %3533 = vmatprep.subr.mxu0 0.0
  %3534 = vmatpush1.msra.mxu0 0.0
  %3535 = vmatprep.subr.mxu0 0.0
  %3536 = vmatpush1.msra.mxu0 0.0
  %3537 = vmatprep.subr.mxu0 0.0
  %3538 = vmatpush1.msra.mxu0 0.0
  %3539 = vmatprep.subr.mxu0 0.0
  %3540 = vmatpush1.msra.mxu0 0.0
  %3541 = vmatprep.subr.mxu0 0.0
  %3542 = vmatpush1.msra.mxu0 0.0
  %3543 = vmatprep.subr.mxu0 0.0
  %3544 = vmatpush1.msra.mxu0 0.0
  %3545 = vmatprep.subr.mxu0 0.0
  %3546 = vmatpush1.msra.mxu0 0.0
  %3547 = vmatprep.subr.mxu0 0.0
  %3548 = vmatpush1.msra.mxu0 0.0
  %3549 = vmatprep.mubr.f32.mxu0 0.0
  %3550 = vmatmul.mubr.f32.gmra.mrb[0].mxu0 %v3465
  %v3551 = vpop.f32.mrb[0].mxu0
  %v3552 = vadd.f32 0.0, %v3551
  %v3553 = vpop.f32.mrb[0].mxu0
  %3554 = vmatprep.mubr.f32.mxu0 0.0
  %3555 = vmatmul.mubr.f32.gmra.mrb[0].mxu0 %v3466
  %v3556 = vpop.f32.mrb[0].mxu0
  %v3557 = vadd.f32 0.0, %v3556
  %v3558 = vpop.f32.mrb[0].mxu0
  %3559 = vmatprep.mubr.f32.mxu0 0.0
  %3560 = vmatmul.mubr.f32.gmra.mrb[0].mxu0 %v3467
  %v3561 = vpop.f32.mrb[0].mxu0
  %v3562 = vadd.f32 0.0, %v3561
  %v3563 = vpop.f32.mrb[0].mxu0
  %3564 = vmatprep.mubr.f32.mxu0 0.0
  %3565 = vmatmul.mubr.f32.gmra.mrb[0].mxu0 %v3468
  %v3566 = vpop.f32.mrb[0].mxu0
  %v3567 = vadd.f32 0.0, %v3566
  %v3568 = vpop.f32.mrb[0].mxu0
  %3569 = vdwg.mxu0
  %v3570 = vadd.f32 %v3247, %v3552
  %v3571 = vadd.f32 %v3248, %v3557
  %v3572 = vadd.f32 %v3249, %v3562
  %v3573 = vadd.f32 %v3250, %v3567
  %v3574 = vld [vmem:[%s15] sm:$0x1]
  %v3576 = vlaneseq
  %v3577 = vshrl.u32 %v3576, 7
  %v3578 = vsub.s32 0, %v3577
  %v3579 = vrot.slane %v3574, %v3578
  %v3581 = vadd.f32 %v3570, %v3579
  %v3582 = vadd.f32 %v3571, %v3579
  %v3583 = vadd.f32 %v3572, %v3579
  %v3584 = vadd.f32 %v3573, %v3579
  %v3585 = vld [vmem:[%s16] sm:$0x1]
  %v3586 = vld [vmem:[%s17] sm:$0x1]
  %v3587 = vsel %vm65, %v3581, 0.0
  %3588 = vadd.xlane.f32.xlu0 %v3587
  %v3589 = vpop.xlane.xlu0 %3588
  %v3590 = vsel %vm65, %v3582, 0.0
  %3591 = vadd.xlane.f32.xlu0 %v3590
  %v3592 = vpop.xlane.xlu0 %3591
  %v3593 = vsel %vm65, %v3583, 0.0
  %3594 = vadd.xlane.f32.xlu0 %v3593
  %v3595 = vpop.xlane.xlu0 %3594
  %v3596 = vsel %vm65, %v3584, 0.0
  %3597 = vadd.xlane.f32.xlu0 %v3596
  %v3598 = vpop.xlane.xlu0 %3597
  %v3599 = vmul.f32 %v3589, %v78
  %v3600 = vmul.f32 %v3592, %v78
  %v3601 = vmul.f32 %v3595, %v78
  %v3602 = vmul.f32 %v3598, %v78
  %v3603 = vsub.f32 %v3581, %v3599
  %v3604 = vsub.f32 %v3582, %v3600
  %v3605 = vsub.f32 %v3583, %v3601
  %v3606 = vsub.f32 %v3584, %v3602
  %v3607 = vmul.f32 %v3603, %v3603
  %v3608 = vmul.f32 %v3604, %v3604
  %v3609 = vmul.f32 %v3605, %v3605
  %v3610 = vmul.f32 %v3606, %v3606
  %v3611 = vsel %vm65, %v3607, 0.0
  %3612 = vadd.xlane.f32.xlu0 %v3611
  %v3613 = vpop.xlane.xlu0 %3612
  %v3614 = vsel %vm65, %v3608, 0.0
  %3615 = vadd.xlane.f32.xlu0 %v3614
  %v3616 = vpop.xlane.xlu0 %3615
  %v3617 = vsel %vm65, %v3609, 0.0
  %3618 = vadd.xlane.f32.xlu0 %v3617
  %v3619 = vpop.xlane.xlu0 %3618
  %v3620 = vsel %vm65, %v3610, 0.0
  %3621 = vadd.xlane.f32.xlu0 %v3620
  %v3622 = vpop.xlane.xlu0 %3621
  %v3623 = vmul.f32 %v3613, %v78
  %v3624 = vmul.f32 %v3616, %v78
  %v3625 = vmul.f32 %v3619, %v78
  %v3626 = vmul.f32 %v3622, %v78
  %v3627 = vadd.f32 %v3623, 1e-05
  %v3628 = vadd.f32 %v3624, 1e-05
  %v3629 = vadd.f32 %v3625, 1e-05
  %v3630 = vadd.f32 %v3626, 1e-05
  %v3631 = vrsqrt.pop %v3627
  %v3632 = vrsqrt.pop %v3628
  %v3633 = vrsqrt.pop %v3629
  %v3634 = vrsqrt.pop %v3630
  %v3635 = vmul.f32 %v3603, %v3631
  %v3636 = vmul.f32 %v3604, %v3632
  %v3637 = vmul.f32 %v3605, %v3633
  %v3638 = vmul.f32 %v3606, %v3634
  %v3640 = vlaneseq
  %v3641 = vshrl.u32 %v3640, 7
  %v3642 = vsub.s32 0, %v3641
  %v3643 = vrot.slane %v3585, %v3642
  %v3645 = vmul.f32 %v3635, %v3643
  %v3646 = vmul.f32 %v3636, %v3643
  %v3647 = vmul.f32 %v3637, %v3643
  %v3648 = vmul.f32 %v3638, %v3643
  %v3650 = vlaneseq
  %v3651 = vshrl.u32 %v3650, 7
  %v3652 = vsub.s32 0, %v3651
  %v3653 = vrot.slane %v3586, %v3652
  %v3655 = vadd.f32 %v3645, %v3653
  %v3656 = vadd.f32 %v3646, %v3653
  %v3657 = vadd.f32 %v3647, %v3653
  %v3658 = vadd.f32 %v3648, %v3653
  %3659 = vst.msk [vmem:[%s18] sm:$0xff] %vm65, %v3655
  %3660 = vst.msk [vmem:[%s18 + $0x8] sm:$0xff] %vm65, %v3656
  %3661 = vst.msk [vmem:[%s18 + $0x10] sm:$0xff] %vm65, %v3657
  %3662 = vst.msk [vmem:[%s18 + $0x18] sm:$0xff] %vm65, %v3658
  // Predicated region
  $region74: #{model_forward.7} parent=0 // pred_check
    _
  $region75: #{model_forward.7} parent=0 // pred_check_branch
    %3664 = sbr.rel (0) target = $region77
  $region76: #{model_forward.7} parent=0 // pred_region
    _
  $region77: #{model_forward.7} parent=0 // pred_fallthru
    _
  // Predicated region
  $region78: #{model_forward.7} parent=0 // pred_check
    _
  $region79: #{model_forward.7} parent=0 // pred_check_branch
    %3666 = sbr.rel (0) target = $region81
  $region80: #{model_forward.7} parent=0 // pred_region
    _
  $region81: #{model_forward.7} parent=0 // pred_fallthru
    _

// kernel: model_forward.9
$region0: #{model_forward.9}
  #allocation0 [shape = 'u32[]', space=smem, size = 0x4, offset = 0x4, fixed_abs, tag = 'smem constant byte address 0x4 - core index']
  #allocation1 [shape = 'u32[144,128]{1,0:T(1,128)}', space=vmem, size = 0x12000, scoped, tag = 'internal scratch']
  %s0 = inlined_call_operand.vmem [shape: f32[40,64], index: 0, kind: input, shape index: {}]
  %s1 = inlined_call_operand.vmem [shape: f32[64,128], index: 1, kind: input, shape index: {}]
  %s2 = inlined_call_operand.vmem [shape: f32[1,128], index: 2, kind: input, shape index: {}]
  %s3 = inlined_call_operand.vmem [shape: f32[40,128], index: 3, kind: output, shape index: {0}]
  %s4 = inlined_call_operand.vmem [shape: f32[40,128], index: 4, kind: output, shape index: {1}]
  %5 = xla_tuple %s3, %s4
  %s6 = sld [smem:[#allocation0]]
  $region30: #{model_forward.9} parent=0
    _
  %s8 = ssub.s32 1, %s6
  %s9 = scalar_select 0, %s8, %s6
  // Predicated region
  $region2: #{model_forward.9} parent=0 // pred_check
    _
  $region3: #{model_forward.9} parent=0 // pred_check_branch
    %11 = sbr.rel (0) target = $region5
  $region4: #{model_forward.9} parent=0 // pred_region
    _
  $region5: #{model_forward.9} parent=0 // pred_fallthru
    _
  // Predicated region
  $region6: #{model_forward.9} parent=0 // pred_check
    _
  $region7: #{model_forward.9} parent=0 // pred_check_branch
    %13 = sbr.rel (0) target = $region9
  $region8: #{model_forward.9} parent=0 // pred_region
    _
  $region9: #{model_forward.9} parent=0 // pred_fallthru
    _
  // Predicated region
  $region10: #{model_forward.9} parent=0 // pred_check
    _
  $region11: #{model_forward.9} parent=0 // pred_check_branch
    %15 = sbr.rel (0) target = $region13
  $region12: #{model_forward.9} parent=0 // pred_region
    _
  $region13: #{model_forward.9} parent=0 // pred_fallthru
    _
  %v16 = vld [vmem:[%s0] sm:$0xff]
  %v17 = vld [vmem:[%s0 + $0x8] sm:$0xff]
  %v18 = vld [vmem:[%s0 + $0x10] sm:$0xff]
  %v19 = vld [vmem:[%s0 + $0x18] sm:$0xff]
  %v20 = vld [vmem:[%s0 + $0x20] sm:$0xff]
  %v21 = vld [vmem:[%s1] sm:$0xff]
  %v22 = vld [vmem:[%s1 + $0x8] sm:$0xff]
  %v23 = vld [vmem:[%s1 + $0x10] sm:$0xff]
  %v24 = vld [vmem:[%s1 + $0x18] sm:$0xff]
  %v25 = vld [vmem:[%s1 + $0x20] sm:$0xff]
  %v26 = vld [vmem:[%s1 + $0x28] sm:$0xff]
  %v27 = vld [vmem:[%s1 + $0x30] sm:$0xff]
  %v28 = vld [vmem:[%s1 + $0x38] sm:$0xff]
  %v29 = vld [vmem:[%s2] sm:$0x1]
  %v31 = vlaneseq
  %v32 = vshrl.u32 %v31, 7
  %v33 = vsub.s32 0, %v32
  %v34 = vrot.slane %v29, %v33
  %vm36 = vcmask 523264
  %v38 = vsel %vm36, %v16, 0
  %v41 = vsel %vm36, %v17, 0
  %v44 = vsel %vm36, %v18, 0
  %v47 = vsel %vm36, %v19, 0
  %v50 = vsel %vm36, %v20, 0
  %52 = vmatprep.subr.mxu0 0.0
  %53 = vmatpush1.msra.mxu0 %v21
  %54 = vmatprep.subr.mxu0 0.0
  %55 = vmatpush1.msra.mxu0 %v22
  %56 = vmatprep.subr.mxu0 0.0
  %57 = vmatpush1.msra.mxu0 %v23
  %58 = vmatprep.subr.mxu0 0.0
  %59 = vmatpush1.msra.mxu0 %v24
  %60 = vmatprep.subr.mxu0 0.0
  %61 = vmatpush1.msra.mxu0 %v25
  %62 = vmatprep.subr.mxu0 0.0
  %63 = vmatpush1.msra.mxu0 %v26
  %64 = vmatprep.subr.mxu0 0.0
  %65 = vmatpush1.msra.mxu0 %v27
  %66 = vmatprep.subr.mxu0 0.0
  %67 = vmatpush1.msra.mxu0 %v28
  %68 = vmatprep.subr.mxu0 0.0
  %69 = vmatpush1.msra.mxu0 0.0
  %70 = vmatprep.subr.mxu0 0.0
  %71 = vmatpush1.msra.mxu0 0.0
  %72 = vmatprep.subr.mxu0 0.0
  %73 = vmatpush1.msra.mxu0 0.0
  %74 = vmatprep.subr.mxu0 0.0
  %75 = vmatpush1.msra.mxu0 0.0
  %76 = vmatprep.subr.mxu0 0.0
  %77 = vmatpush1.msra.mxu0 0.0
  %78 = vmatprep.subr.mxu0 0.0
  %79 = vmatpush1.msra.mxu0 0.0
  %80 = vmatprep.subr.mxu0 0.0
  %81 = vmatpush1.msra.mxu0 0.0
  %82 = vmatprep.subr.mxu0 0.0
  %83 = vmatpush1.msra.mxu0 0.0
  %84 = vmatprep.subr.mxu0 0.0
  %85 = vmatpush1.msra.mxu0 0.0
  %86 = vmatprep.subr.mxu0 0.0
  %87 = vmatpush1.msra.mxu0 0.0
  %88 = vmatprep.subr.mxu0 0.0
  %89 = vmatpush1.msra.mxu0 0.0
  %90 = vmatprep.subr.mxu0 0.0
  %91 = vmatpush1.msra.mxu0 0.0
  %92 = vmatprep.subr.mxu0 0.0
  %93 = vmatpush1.msra.mxu0 0.0
  %94 = vmatprep.subr.mxu0 0.0
  %95 = vmatpush1.msra.mxu0 0.0
  %96 = vmatprep.subr.mxu0 0.0
  %97 = vmatpush1.msra.mxu0 0.0
  %98 = vmatprep.subr.mxu0 0.0
  %99 = vmatpush1.msra.mxu0 0.0
  %100 = vmatprep.subr.mxu0 0.0
  %101 = vmatpush1.msra.mxu0 0.0
  %102 = vmatprep.subr.mxu0 0.0
  %103 = vmatpush1.msra.mxu0 0.0
  %104 = vmatprep.subr.mxu0 0.0
  %105 = vmatpush1.msra.mxu0 0.0
  %106 = vmatprep.subr.mxu0 0.0
  %107 = vmatpush1.msra.mxu0 0.0
  %108 = vmatprep.subr.mxu0 0.0
  %109 = vmatpush1.msra.mxu0 0.0
  %110 = vmatprep.subr.mxu0 0.0
  %111 = vmatpush1.msra.mxu0 0.0
  %112 = vmatprep.subr.mxu0 0.0
  %113 = vmatpush1.msra.mxu0 0.0
  %114 = vmatprep.subr.mxu0 0.0
  %115 = vmatpush1.msra.mxu0 0.0
  %116 = vmatprep.mubr.f32.mxu0 0.0
  %117 = vmatmul.mubr.f32.gmra.mrb[0].mxu0 %v38
  %v118 = vpop.f32.mrb[0].mxu0
  %v119 = vadd.f32 %v34, %v118
  %v120 = vpop.f32.mrb[0].mxu0
  %121 = vmatprep.mubr.f32.mxu0 0.0
  %122 = vmatmul.mubr.f32.gmra.mrb[0].mxu0 %v41
  %v123 = vpop.f32.mrb[0].mxu0
  %v124 = vadd.f32 %v34, %v123
  %v125 = vpop.f32.mrb[0].mxu0
  %126 = vmatprep.mubr.f32.mxu0 0.0
  %127 = vmatmul.mubr.f32.gmra.mrb[0].mxu0 %v44
  %v128 = vpop.f32.mrb[0].mxu0
  %v129 = vadd.f32 %v34, %v128
  %v130 = vpop.f32.mrb[0].mxu0
  %131 = vmatprep.mubr.f32.mxu0 0.0
  %132 = vmatmul.mubr.f32.gmra.mrb[0].mxu0 %v47
  %v133 = vpop.f32.mrb[0].mxu0
  %v134 = vadd.f32 %v34, %v133
  %v135 = vpop.f32.mrb[0].mxu0
  %136 = vmatprep.mubr.f32.mxu0 0.0
  %137 = vmatmul.mubr.f32.gmra.mrb[0].mxu0 %v50
  %v138 = vpop.f32.mrb[0].mxu0
  %v139 = vadd.f32 %v34, %v138
  %v140 = vpop.f32.mrb[0].mxu0
  %141 = vdwg.mxu0
  %142 = vmax.xlane.f32.xlu0 %v119
  %v143 = vpop.xlane.xlu0 %142
  %144 = vmax.xlane.f32.xlu0 %v124
  %v145 = vpop.xlane.xlu0 %144
  %146 = vmax.xlane.f32.xlu0 %v129
  %v147 = vpop.xlane.xlu0 %146
  %148 = vmax.xlane.f32.xlu0 %v134
  %v149 = vpop.xlane.xlu0 %148
  %150 = vmax.xlane.f32.xlu0 %v139
  %v151 = vpop.xlane.xlu0 %150
  %v152 = vsub.f32 %v119, %v143
  %v153 = vsub.f32 %v124, %v145
  %v154 = vsub.f32 %v129, %v147
  %v155 = vsub.f32 %v134, %v149
  %v156 = vsub.f32 %v139, %v151
  %v157 = vmul.f32 %v152, 1.442695
  %v158 = vpow.pop %v157
  %v159 = vmul.f32 %v153, 1.442695
  %v160 = vpow.pop %v159
  %v161 = vmul.f32 %v154, 1.442695
  %v162 = vpow.pop %v161
  %v163 = vmul.f32 %v155, 1.442695
  %v164 = vpow.pop %v163
  %v165 = vmul.f32 %v156, 1.442695
  %v166 = vpow.pop %v165
  %167 = vadd.xlane.f32.xlu0 %v158
  %v168 = vpop.xlane.xlu0 %167
  %169 = vadd.xlane.f32.xlu0 %v160
  %v170 = vpop.xlane.xlu0 %169
  %171 = vadd.xlane.f32.xlu0 %v162
  %v172 = vpop.xlane.xlu0 %171
  %173 = vadd.xlane.f32.xlu0 %v164
  %v174 = vpop.xlane.xlu0 %173
  %175 = vadd.xlane.f32.xlu0 %v166
  %v176 = vpop.xlane.xlu0 %175
  %v177 = vlog2.pop %v168
  %v178 = vmul.f32 %v177, 0.6931472
  %v179 = vlog2.pop %v170
  %v180 = vmul.f32 %v179, 0.6931472
  %v181 = vlog2.pop %v172
  %v182 = vmul.f32 %v181, 0.6931472
  %v183 = vlog2.pop %v174
  %v184 = vmul.f32 %v183, 0.6931472
  %v185 = vlog2.pop %v176
  %v186 = vmul.f32 %v185, 0.6931472
  %187 = vst [vmem:[%s3] sm:$0xff] %v119
  %188 = vst [vmem:[%s3 + $0x8] sm:$0xff] %v124
  %189 = vst [vmem:[%s3 + $0x10] sm:$0xff] %v129
  %190 = vst [vmem:[%s3 + $0x18] sm:$0xff] %v134
  %191 = vst [vmem:[%s3 + $0x20] sm:$0xff] %v139
  %v192 = vsub.f32 %v152, %v178
  %v193 = vsub.f32 %v153, %v180
  %v194 = vsub.f32 %v154, %v182
  %v195 = vsub.f32 %v155, %v184
  %v196 = vsub.f32 %v156, %v186
  %197 = vst [vmem:[%s4] sm:$0xff] %v192
  %198 = vst [vmem:[%s4 + $0x8] sm:$0xff] %v193
  %199 = vst [vmem:[%s4 + $0x10] sm:$0xff] %v194
  %200 = vst [vmem:[%s4 + $0x18] sm:$0xff] %v195
  %201 = vst [vmem:[%s4 + $0x20] sm:$0xff] %v196
  // Predicated region
  $region14: #{model_forward.9} parent=0 // pred_check
    _
  $region15: #{model_forward.9} parent=0 // pred_check_branch
    %203 = sbr.rel (0) target = $region17
  $region16: #{model_forward.9} parent=0 // pred_region
    _
  $region17: #{model_forward.9} parent=0 // pred_fallthru
    _
  // Predicated region
  $region18: #{model_forward.9} parent=0 // pred_check
    _
  $region19: #{model_forward.9} parent=0 // pred_check_branch
    %205 = sbr.rel (0) target = $region21
  $region20: #{model_forward.9} parent=0 // pred_region
    _
  $region21: #{model_forward.9} parent=0 // pred_fallthru
    _
  // Predicated region
  $region22: #{model_forward.9} parent=0 // pred_check
    _
  $region23: #{model_forward.9} parent=0 // pred_check_branch
    %207 = sbr.rel (0) target = $region25
  $region24: #{model_forward.9} parent=0 // pred_region
    _
  $region25: #{model_forward.9} parent=0 // pred_fallthru
    _
  // Predicated region
  $region26: #{model_forward.9} parent=0 // pred_check
    _
  $region27: #{model_forward.9} parent=0 // pred_check_branch
    %209 = sbr.rel (0) target = $region29
  $region28: #{model_forward.9} parent=0 // pred_region
    _
  $region29: #{model_forward.9} parent=0 // pred_fallthru
    _

// kernel: model_forward.6
$region0: #{model_forward.6}
  #allocation0 [shape = 'u32[]', space=smem, size = 0x4, offset = 0x4, fixed_abs, tag = 'smem constant byte address 0x4 - core index']
  #allocation1 [shape = 'u32[144,128]{1,0:T(1,128)}', space=vmem, size = 0x12000, scoped, tag = 'internal scratch']
  %s0 = inlined_call_operand.vmem [shape: f32[4,8,32], index: 0, kind: input, shape index: {}]
  %s1 = inlined_call_operand.vmem [shape: f32[1,32], index: 1, kind: input, shape index: {}]
  %s2 = inlined_call_operand.vmem [shape: f32[1,32], index: 2, kind: input, shape index: {}]
  %s3 = inlined_call_operand.vmem [shape: f32[32,32], index: 3, kind: input, shape index: {}]
  %s4 = inlined_call_operand.vmem [shape: f32[1,32], index: 4, kind: input, shape index: {}]
  %s5 = inlined_call_operand.vmem [shape: f32[32,32], index: 5, kind: input, shape index: {}]
  %s6 = inlined_call_operand.vmem [shape: f32[32,32], index: 6, kind: input, shape index: {}]
  %s7 = inlined_call_operand.vmem [shape: f32[1,32], index: 7, kind: input, shape index: {}]
  %s8 = inlined_call_operand.vmem [shape: f32[32,32], index: 8, kind: input, shape index: {}]
  %s9 = inlined_call_operand.vmem [shape: f32[1,32], index: 9, kind: input, shape index: {}]
  %s10 = inlined_call_operand.vmem [shape: f32[1,32], index: 10, kind: input, shape index: {}]
  %s11 = inlined_call_operand.vmem [shape: f32[1,32], index: 11, kind: input, shape index: {}]
  %s12 = inlined_call_operand.vmem [shape: f32[32,128], index: 12, kind: input, shape index: {}]
  %s13 = inlined_call_operand.vmem [shape: f32[1,128], index: 13, kind: input, shape index: {}]
  %s14 = inlined_call_operand.vmem [shape: f32[128,32], index: 14, kind: input, shape index: {}]
  %s15 = inlined_call_operand.vmem [shape: f32[1,32], index: 15, kind: input, shape index: {}]
  %s16 = inlined_call_operand.vmem [shape: f32[1,32], index: 16, kind: input, shape index: {}]
  %s17 = inlined_call_operand.vmem [shape: f32[1,32], index: 17, kind: input, shape index: {}]
  %s18 = inlined_call_operand.vmem [shape: f32[4,8,32], index: 18, kind: output, shape index: {}]
  %s19 = sld [smem:[#allocation0]]
  $region82: #{model_forward.6} parent=0
    _
  %s21 = ssub.s32 1, %s19
  %s22 = scalar_select 0, %s21, %s19
  // Predicated region
  $region2: #{model_forward.6} parent=0 // pred_check
    _
  $region3: #{model_forward.6} parent=0 // pred_check_branch
    %24 = sbr.rel (0) target = $region5
  $region4: #{model_forward.6} parent=0 // pred_region
    _
  $region5: #{model_forward.6} parent=0 // pred_fallthru
    _
  // Predicated region
  $region6: #{model_forward.6} parent=0 // pred_check
    _
  $region7: #{model_forward.6} parent=0 // pred_check_branch
    %26 = sbr.rel (0) target = $region9
  $region8: #{model_forward.6} parent=0 // pred_region
    _
  $region9: #{model_forward.6} parent=0 // pred_fallthru
    _
  // Predicated region
  $region10: #{model_forward.6} parent=0 // pred_check
    _
  $region11: #{model_forward.6} parent=0 // pred_check_branch
    %28 = sbr.rel (0) target = $region13
  $region12: #{model_forward.6} parent=0 // pred_region
    _
  $region13: #{model_forward.6} parent=0 // pred_fallthru
    _
  // Predicated region
  $region14: #{model_forward.6} parent=0 // pred_check
    _
  $region15: #{model_forward.6} parent=0 // pred_check_branch
    %30 = sbr.rel (0) target = $region17
  $region16: #{model_forward.6} parent=0 // pred_region
    _
  $region17: #{model_forward.6} parent=0 // pred_fallthru
    _
  // Predicated region
  $region18: #{model_forward.6} parent=0 // pred_check
    _
  $region19: #{model_forward.6} parent=0 // pred_check_branch
    %32 = sbr.rel (0) target = $region21
  $region20: #{model_forward.6} parent=0 // pred_region
    _
  $region21: #{model_forward.6} parent=0 // pred_fallthru
    _
  // Predicated region
  $region22: #{model_forward.6} parent=0 // pred_check
    _
  $region23: #{model_forward.6} parent=0 // pred_check_branch
    %34 = sbr.rel (0) target = $region25
  $region24: #{model_forward.6} parent=0 // pred_region
    _
  $region25: #{model_forward.6} parent=0 // pred_fallthru
    _
  // Predicated region
  $region26: #{model_forward.6} parent=0 // pred_check
    _
  $region27: #{model_forward.6} parent=0 // pred_check_branch
    %36 = sbr.rel (0) target = $region29
  $region28: #{model_forward.6} parent=0 // pred_region
    _
  $region29: #{model_forward.6} parent=0 // pred_fallthru
    _
  // Predicated region
  $region30: #{model_forward.6} parent=0 // pred_check
    _
  $region31: #{model_forward.6} parent=0 // pred_check_branch
    %38 = sbr.rel (0) target = $region33
  $region32: #{model_forward.6} parent=0 // pred_region
    _
  $region33: #{model_forward.6} parent=0 // pred_fallthru
    _
  // Predicated region
  $region34: #{model_forward.6} parent=0 // pred_check
    _
  $region35: #{model_forward.6} parent=0 // pred_check_branch
    %40 = sbr.rel (0) target = $region37
  $region36: #{model_forward.6} parent=0 // pred_region
    _
  $region37: #{model_forward.6} parent=0 // pred_fallthru
    _
  // Predicated region
  $region38: #{model_forward.6} parent=0 // pred_check
    _
  $region39: #{model_forward.6} parent=0 // pred_check_branch
    %42 = sbr.rel (0) target = $region41
  $region40: #{model_forward.6} parent=0 // pred_region
    _
  $region41: #{model_forward.6} parent=0 // pred_fallthru
    _
  // Predicated region
  $region42: #{model_forward.6} parent=0 // pred_check
    _
  $region43: #{model_forward.6} parent=0 // pred_check_branch
    %44 = sbr.rel (0) target = $region45
  $region44: #{model_forward.6} parent=0 // pred_region
    _
  $region45: #{model_forward.6} parent=0 // pred_fallthru
    _
  // Predicated region
  $region46: #{model_forward.6} parent=0 // pred_check
    _
  $region47: #{model_forward.6} parent=0 // pred_check_branch
    %46 = sbr.rel (0) target = $region49
  $region48: #{model_forward.6} parent=0 // pred_region
    _
  $region49: #{model_forward.6} parent=0 // pred_fallthru
    _
  // Predicated region
  $region50: #{model_forward.6} parent=0 // pred_check
    _
  $region51: #{model_forward.6} parent=0 // pred_check_branch
    %48 = sbr.rel (0) target = $region53
  $region52: #{model_forward.6} parent=0 // pred_region
    _
  $region53: #{model_forward.6} parent=0 // pred_fallthru
    _
  // Predicated region
  $region54: #{model_forward.6} parent=0 // pred_check
    _
  $region55: #{model_forward.6} parent=0 // pred_check_branch
    %50 = sbr.rel (0) target = $region57
  $region56: #{model_forward.6} parent=0 // pred_region
    _
  $region57: #{model_forward.6} parent=0 // pred_fallthru
    _
  // Predicated region
  $region58: #{model_forward.6} parent=0 // pred_check
    _
  $region59: #{model_forward.6} parent=0 // pred_check_branch
    %52 = sbr.rel (0) target = $region61
  $region60: #{model_forward.6} parent=0 // pred_region
    _
  $region61: #{model_forward.6} parent=0 // pred_fallthru
    _
  // Predicated region
  $region62: #{model_forward.6} parent=0 // pred_check
    _
  $region63: #{model_forward.6} parent=0 // pred_check_branch
    %54 = sbr.rel (0) target = $region65
  $region64: #{model_forward.6} parent=0 // pred_region
    _
  $region65: #{model_forward.6} parent=0 // pred_fallthru
    _
  // Predicated region
  $region66: #{model_forward.6} parent=0 // pred_check
    _
  $region67: #{model_forward.6} parent=0 // pred_check_branch
    %56 = sbr.rel (0) target = $region69
  $region68: #{model_forward.6} parent=0 // pred_region
    _
  $region69: #{model_forward.6} parent=0 // pred_fallthru
    _
  // Predicated region
  $region70: #{model_forward.6} parent=0 // pred_check
    _
  $region71: #{model_forward.6} parent=0 // pred_check_branch
    %58 = sbr.rel (0) target = $region73
  $region72: #{model_forward.6} parent=0 // pred_region
    _
  $region73: #{model_forward.6} parent=0 // pred_fallthru
    _
  %v59 = vld [vmem:[%s0] sm:$0xff]
  %v60 = vld [vmem:[%s0 + $0x8] sm:$0xff]
  %v61 = vld [vmem:[%s0 + $0x10] sm:$0xff]
  %v62 = vld [vmem:[%s0 + $0x18] sm:$0xff]
  %v63 = vld [vmem:[%s1] sm:$0x1]
  %v64 = vld [vmem:[%s2] sm:$0x1]
  %vm65 = vcmask 261120
  %v66 = vsel %vm65, %v59, 0.0
  %67 = vadd.xlane.f32.xlu0 %v66
  %v68 = vpop.xlane.xlu0 %67
  %v69 = vsel %vm65, %v60, 0.0
  %70 = vadd.xlane.f32.xlu0 %v69
  %v71 = vpop.xlane.xlu0 %70
  %v72 = vsel %vm65, %v61, 0.0
  %73 = vadd.xlane.f32.xlu0 %v72
  %v74 = vpop.xlane.xlu0 %73
  %v75 = vsel %vm65, %v62, 0.0
  %76 = vadd.xlane.f32.xlu0 %v75
  %v77 = vpop.xlane.xlu0 %76
  %v78 = vrcp.pop 32.0
  %v79 = vmul.f32 %v68, %v78
  %v80 = vmul.f32 %v71, %v78
  %v81 = vmul.f32 %v74, %v78
  %v82 = vmul.f32 %v77, %v78
  %v83 = vsub.f32 %v59, %v79
  %v84 = vsub.f32 %v60, %v80
  %v85 = vsub.f32 %v61, %v81
  %v86 = vsub.f32 %v62, %v82
  %v87 = vmul.f32 %v83, %v83
  %v88 = vmul.f32 %v84, %v84
  %v89 = vmul.f32 %v85, %v85
  %v90 = vmul.f32 %v86, %v86
  %v91 = vsel %vm65, %v87, 0.0
  %92 = vadd.xlane.f32.xlu0 %v91
  %v93 = vpop.xlane.xlu0 %92
  %v94 = vsel %vm65, %v88, 0.0
  %95 = vadd.xlane.f32.xlu0 %v94
  %v96 = vpop.xlane.xlu0 %95
  %v97 = vsel %vm65, %v89, 0.0
  %98 = vadd.xlane.f32.xlu0 %v97
  %v99 = vpop.xlane.xlu0 %98
  %v100 = vsel %vm65, %v90, 0.0
  %101 = vadd.xlane.f32.xlu0 %v100
  %v102 = vpop.xlane.xlu0 %101
  %v103 = vmul.f32 %v93, %v78
  %v104 = vmul.f32 %v96, %v78
  %v105 = vmul.f32 %v99, %v78
  %v106 = vmul.f32 %v102, %v78
  %v107 = vadd.f32 %v103, 1e-05
  %v108 = vadd.f32 %v104, 1e-05
  %v109 = vadd.f32 %v105, 1e-05
  %v110 = vadd.f32 %v106, 1e-05
  %v111 = vrsqrt.pop %v107
  %v112 = vrsqrt.pop %v108
  %v113 = vrsqrt.pop %v109
  %v114 = vrsqrt.pop %v110
  %v115 = vmul.f32 %v83, %v111
  %v116 = vmul.f32 %v84, %v112
  %v117 = vmul.f32 %v85, %v113
  %v118 = vmul.f32 %v86, %v114
  %v120 = vlaneseq
  %v121 = vshrl.u32 %v120, 7
  %v122 = vsub.s32 0, %v121
  %v123 = vrot.slane %v63, %v122
  %v125 = vmul.f32 %v115, %v123
  %v126 = vmul.f32 %v116, %v123
  %v127 = vmul.f32 %v117, %v123
  %v128 = vmul.f32 %v118, %v123
  %v130 = vlaneseq
  %v131 = vshrl.u32 %v130, 7
  %v132 = vsub.s32 0, %v131
  %v133 = vrot.slane %v64, %v132
  %v135 = vadd.f32 %v125, %v133
  %v136 = vadd.f32 %v126, %v133
  %v137 = vadd.f32 %v127, %v133
  %v138 = vadd.f32 %v128, %v133
  %v139 = vld [vmem:[%s3] sm:$0xff]
  %v140 = vld [vmem:[%s3 + $0x8] sm:$0xff]
  %v141 = vld [vmem:[%s3 + $0x10] sm:$0xff]
  %v142 = vld [vmem:[%s3 + $0x18] sm:$0xff]
  %v143 = vld [vmem:[%s4] sm:$0x1]
  %v145 = vlaneseq
  %v146 = vshrl.u32 %v145, 7
  %v147 = vsub.s32 0, %v146
  %v148 = vrot.slane %v143, %v147
  %v151 = vsel %vm65, %v135, 0
  %v154 = vsel %vm65, %v136, 0
  %v157 = vsel %vm65, %v137, 0
  %v160 = vsel %vm65, %v138, 0
  %162 = vmatprep.subr.mxu0 0.0
  %163 = vmatpush1.msra.mxu0 %v139
  %164 = vmatprep.subr.mxu0 0.0
  %165 = vmatpush1.msra.mxu0 %v140
  %166 = vmatprep.subr.mxu0 0.0
  %167 = vmatpush1.msra.mxu0 %v141
  %168 = vmatprep.subr.mxu0 0.0
  %169 = vmatpush1.msra.mxu0 %v142
  %170 = vmatprep.subr.mxu0 0.0
  %171 = vmatpush1.msra.mxu0 0.0
  %172 = vmatprep.subr.mxu0 0.0
  %173 = vmatpush1.msra.mxu0 0.0
  %174 = vmatprep.subr.mxu0 0.0
  %175 = vmatpush1.msra.mxu0 0.0
  %176 = vmatprep.subr.mxu0 0.0
  %177 = vmatpush1.msra.mxu0 0.0
  %178 = vmatprep.subr.mxu0 0.0
  %179 = vmatpush1.msra.mxu0 0.0
  %180 = vmatprep.subr.mxu0 0.0
  %181 = vmatpush1.msra.mxu0 0.0
  %182 = vmatprep.subr.mxu0 0.0
  %183 = vmatpush1.msra.mxu0 0.0
  %184 = vmatprep.subr.mxu0 0.0
  %185 = vmatpush1.msra.mxu0 0.0
  %186 = vmatprep.subr.mxu0 0.0
  %187 = vmatpush1.msra.mxu0 0.0
  %188 = vmatprep.subr.mxu0 0.0
  %189 = vmatpush1.msra.mxu0 0.0
  %190 = vmatprep.subr.mxu0 0.0
  %191 = vmatpush1.msra.mxu0 0.0
  %192 = vmatprep.subr.mxu0 0.0
  %193 = vmatpush1.msra.mxu0 0.0
  %194 = vmatprep.subr.mxu0 0.0
  %195 = vmatpush1.msra.mxu0 0.0
  %196 = vmatprep.subr.mxu0 0.0
  %197 = vmatpush1.msra.mxu0 0.0
  %198 = vmatprep.subr.mxu0 0.0
  %199 = vmatpush1.msra.mxu0 0.0
  %200 = vmatprep.subr.mxu0 0.0
  %201 = vmatpush1.msra.mxu0 0.0
  %202 = vmatprep.subr.mxu0 0.0
  %203 = vmatpush1.msra.mxu0 0.0
  %204 = vmatprep.subr.mxu0 0.0
  %205 = vmatpush1.msra.mxu0 0.0
  %206 = vmatprep.subr.mxu0 0.0
  %207 = vmatpush1.msra.mxu0 0.0
  %208 = vmatprep.subr.mxu0 0.0
  %209 = vmatpush1.msra.mxu0 0.0
  %210 = vmatprep.subr.mxu0 0.0
  %211 = vmatpush1.msra.mxu0 0.0
  %212 = vmatprep.subr.mxu0 0.0
  %213 = vmatpush1.msra.mxu0 0.0
  %214 = vmatprep.subr.mxu0 0.0
  %215 = vmatpush1.msra.mxu0 0.0
  %216 = vmatprep.subr.mxu0 0.0
  %217 = vmatpush1.msra.mxu0 0.0
  %218 = vmatprep.subr.mxu0 0.0
  %219 = vmatpush1.msra.mxu0 0.0
  %220 = vmatprep.subr.mxu0 0.0
  %221 = vmatpush1.msra.mxu0 0.0
  %222 = vmatprep.subr.mxu0 0.0
  %223 = vmatpush1.msra.mxu0 0.0
  %224 = vmatprep.subr.mxu0 0.0
  %225 = vmatpush1.msra.mxu0 0.0
  %226 = vmatprep.mubr.f32.mxu0 0.0
  %227 = vmatmul.mubr.f32.gmra.mrb[0].mxu0 %v151
  %v228 = vpop.f32.mrb[0].mxu0
  %v229 = vadd.f32 %v148, %v228
  %v230 = vpop.f32.mrb[0].mxu0
  %231 = vmatprep.mubr.f32.mxu0 0.0
  %232 = vmatmul.mubr.f32.gmra.mrb[0].mxu0 %v154
  %v233 = vpop.f32.mrb[0].mxu0
  %v234 = vadd.f32 %v148, %v233
  %v235 = vpop.f32.mrb[0].mxu0
  %236 = vmatprep.mubr.f32.mxu0 0.0
  %237 = vmatmul.mubr.f32.gmra.mrb[0].mxu0 %v157
  %v238 = vpop.f32.mrb[0].mxu0
  %v239 = vadd.f32 %v148, %v238
  %v240 = vpop.f32.mrb[0].mxu0
  %241 = vmatprep.mubr.f32.mxu0 0.0
  %242 = vmatmul.mubr.f32.gmra.mrb[0].mxu0 %v160
  %v243 = vpop.f32.mrb[0].mxu0
  %v244 = vadd.f32 %v148, %v243
  %v245 = vpop.f32.mrb[0].mxu0
  %246 = vdwg.mxu0
  %v247 = vld [vmem:[%s5] sm:$0xff]
  %v248 = vld [vmem:[%s5 + $0x8] sm:$0xff]
  %v249 = vld [vmem:[%s5 + $0x10] sm:$0xff]
  %v250 = vld [vmem:[%s5 + $0x18] sm:$0xff]
  %251 = vmatprep.subr.mxu0 0.0
  %252 = vmatpush1.msra.mxu0 %v247
  %253 = vmatprep.subr.mxu0 0.0
  %254 = vmatpush1.msra.mxu0 %v248
  %255 = vmatprep.subr.mxu0 0.0
  %256 = vmatpush1.msra.mxu0 %v249
  %257 = vmatprep.subr.mxu0 0.0
  %258 = vmatpush1.msra.mxu0 %v250
  %259 = vmatprep.subr.mxu0 0.0
  %260 = vmatpush1.msra.mxu0 0.0
  %261 = vmatprep.subr.mxu0 0.0
  %262 = vmatpush1.msra.mxu0 0.0
  %263 = vmatprep.subr.mxu0 0.0
  %264 = vmatpush1.msra.mxu0 0.0
  %265 = vmatprep.subr.mxu0 0.0
  %266 = vmatpush1.msra.mxu0 0.0
  %267 = vmatprep.subr.mxu0 0.0
  %268 = vmatpush1.msra.mxu0 0.0
  %269 = vmatprep.subr.mxu0 0.0
  %270 = vmatpush1.msra.mxu0 0.0
  %271 = vmatprep.subr.mxu0 0.0
  %272 = vmatpush1.msra.mxu0 0.0
  %273 = vmatprep.subr.mxu0 0.0
  %274 = vmatpush1.msra.mxu0 0.0
  %275 = vmatprep.subr.mxu0 0.0
  %276 = vmatpush1.msra.mxu0 0.0
  %277 = vmatprep.subr.mxu0 0.0
  %278 = vmatpush1.msra.mxu0 0.0
  %279 = vmatprep.subr.mxu0 0.0
  %280 = vmatpush1.msra.mxu0 0.0
  %281 = vmatprep.subr.mxu0 0.0
  %282 = vmatpush1.msra.mxu0 0.0
  %283 = vmatprep.subr.mxu0 0.0
  %284 = vmatpush1.msra.mxu0 0.0
  %285 = vmatprep.subr.mxu0 0.0
  %286 = vmatpush1.msra.mxu0 0.0
  %287 = vmatprep.subr.mxu0 0.0
  %288 = vmatpush1.msra.mxu0 0.0
  %289 = vmatprep.subr.mxu0 0.0
  %290 = vmatpush1.msra.mxu0 0.0
  %291 = vmatprep.subr.mxu0 0.0
  %292 = vmatpush1.msra.mxu0 0.0
  %293 = vmatprep.subr.mxu0 0.0
  %294 = vmatpush1.msra.mxu0 0.0
  %295 = vmatprep.subr.mxu0 0.0
  %296 = vmatpush1.msra.mxu0 0.0
  %297 = vmatprep.subr.mxu0 0.0
  %298 = vmatpush1.msra.mxu0 0.0
  %299 = vmatprep.subr.mxu0 0.0
  %300 = vmatpush1.msra.mxu0 0.0
  %301 = vmatprep.subr.mxu0 0.0
  %302 = vmatpush1.msra.mxu0 0.0
  %303 = vmatprep.subr.mxu0 0.0
  %304 = vmatpush1.msra.mxu0 0.0
  %305 = vmatprep.subr.mxu0 0.0
  %306 = vmatpush1.msra.mxu0 0.0
  %307 = vmatprep.subr.mxu0 0.0
  %308 = vmatpush1.msra.mxu0 0.0
  %309 = vmatprep.subr.mxu0 0.0
  %310 = vmatpush1.msra.mxu0 0.0
  %311 = vmatprep.subr.mxu0 0.0
  %312 = vmatpush1.msra.mxu0 0.0
  %313 = vmatprep.subr.mxu0 0.0
  %314 = vmatpush1.msra.mxu0 0.0
  %315 = vmatprep.mubr.f32.mxu0 0.0
  %316 = vmatmul.mubr.f32.gmra.mrb[0].mxu0 %v151
  %v317 = vpop.f32.mrb[0].mxu0
  %v318 = vadd.f32 0.0, %v317
  %v319 = vpop.f32.mrb[0].mxu0
  %320 = vmatprep.mubr.f32.mxu0 0.0
  %321 = vmatmul.mubr.f32.gmra.mrb[0].mxu0 %v154
  %v322 = vpop.f32.mrb[0].mxu0
  %v323 = vadd.f32 0.0, %v322
  %v324 = vpop.f32.mrb[0].mxu0
  %325 = vmatprep.mubr.f32.mxu0 0.0
  %326 = vmatmul.mubr.f32.gmra.mrb[0].mxu0 %v157
  %v327 = vpop.f32.mrb[0].mxu0
  %v328 = vadd.f32 0.0, %v327
  %v329 = vpop.f32.mrb[0].mxu0
  %330 = vmatprep.mubr.f32.mxu0 0.0
  %331 = vmatmul.mubr.f32.gmra.mrb[0].mxu0 %v160
  %v332 = vpop.f32.mrb[0].mxu0
  %v333 = vadd.f32 0.0, %v332
  %v334 = vpop.f32.mrb[0].mxu0
  %335 = vdwg.mxu0
  %v336 = vld [vmem:[%s6] sm:$0xff]
  %v337 = vld [vmem:[%s6 + $0x8] sm:$0xff]
  %v338 = vld [vmem:[%s6 + $0x10] sm:$0xff]
  %v339 = vld [vmem:[%s6 + $0x18] sm:$0xff]
  %v340 = vld [vmem:[%s7] sm:$0x1]
  %v342 = vlaneseq
  %v343 = vshrl.u32 %v342, 7
  %v344 = vsub.s32 0, %v343
  %v345 = vrot.slane %v340, %v344
  %347 = vmatprep.subr.mxu0 0.0
  %348 = vmatpush1.msra.mxu0 %v336
  %349 = vmatprep.subr.mxu0 0.0
  %350 = vmatpush1.msra.mxu0 %v337
  %351 = vmatprep.subr.mxu0 0.0
  %352 = vmatpush1.msra.mxu0 %v338
  %353 = vmatprep.subr.mxu0 0.0
  %354 = vmatpush1.msra.mxu0 %v339
  %355 = vmatprep.subr.mxu0 0.0
  %356 = vmatpush1.msra.mxu0 0.0
  %357 = vmatprep.subr.mxu0 0.0
  %358 = vmatpush1.msra.mxu0 0.0
  %359 = vmatprep.subr.mxu0 0.0
  %360 = vmatpush1.msra.mxu0 0.0
  %361 = vmatprep.subr.mxu0 0.0
  %362 = vmatpush1.msra.mxu0 0.0
  %363 = vmatprep.subr.mxu0 0.0
  %364 = vmatpush1.msra.mxu0 0.0
  %365 = vmatprep.subr.mxu0 0.0
  %366 = vmatpush1.msra.mxu0 0.0
  %367 = vmatprep.subr.mxu0 0.0
  %368 = vmatpush1.msra.mxu0 0.0
  %369 = vmatprep.subr.mxu0 0.0
  %370 = vmatpush1.msra.mxu0 0.0
  %371 = vmatprep.subr.mxu0 0.0
  %372 = vmatpush1.msra.mxu0 0.0
  %373 = vmatprep.subr.mxu0 0.0
  %374 = vmatpush1.msra.mxu0 0.0
  %375 = vmatprep.subr.mxu0 0.0
  %376 = vmatpush1.msra.mxu0 0.0
  %377 = vmatprep.subr.mxu0 0.0
  %378 = vmatpush1.msra.mxu0 0.0
  %379 = vmatprep.subr.mxu0 0.0
  %380 = vmatpush1.msra.mxu0 0.0
  %381 = vmatprep.subr.mxu0 0.0
  %382 = vmatpush1.msra.mxu0 0.0
  %383 = vmatprep.subr.mxu0 0.0
  %384 = vmatpush1.msra.mxu0 0.0
  %385 = vmatprep.subr.mxu0 0.0
  %386 = vmatpush1.msra.mxu0 0.0
  %387 = vmatprep.subr.mxu0 0.0
  %388 = vmatpush1.msra.mxu0 0.0
  %389 = vmatprep.subr.mxu0 0.0
  %390 = vmatpush1.msra.mxu0 0.0
  %391 = vmatprep.subr.mxu0 0.0
  %392 = vmatpush1.msra.mxu0 0.0
  %393 = vmatprep.subr.mxu0 0.0
  %394 = vmatpush1.msra.mxu0 0.0
  %395 = vmatprep.subr.mxu0 0.0
  %396 = vmatpush1.msra.mxu0 0.0
  %397 = vmatprep.subr.mxu0 0.0
  %398 = vmatpush1.msra.mxu0 0.0
  %399 = vmatprep.subr.mxu0 0.0
  %400 = vmatpush1.msra.mxu0 0.0
  %401 = vmatprep.subr.mxu0 0.0
  %402 = vmatpush1.msra.mxu0 0.0
  %403 = vmatprep.subr.mxu0 0.0
  %404 = vmatpush1.msra.mxu0 0.0
  %405 = vmatprep.subr.mxu0 0.0
  %406 = vmatpush1.msra.mxu0 0.0
  %407 = vmatprep.subr.mxu0 0.0
  %408 = vmatpush1.msra.mxu0 0.0
  %409 = vmatprep.subr.mxu0 0.0
  %410 = vmatpush1.msra.mxu0 0.0
  %411 = vmatprep.mubr.f32.mxu0 0.0
  %412 = vmatmul.mubr.f32.gmra.mrb[0].mxu0 %v151
  %v413 = vpop.f32.mrb[0].mxu0
  %v414 = vadd.f32 %v345, %v413
  %v415 = vpop.f32.mrb[0].mxu0
  %416 = vmatprep.mubr.f32.mxu0 0.0
  %417 = vmatmul.mubr.f32.gmra.mrb[0].mxu0 %v154
  %v418 = vpop.f32.mrb[0].mxu0
  %v419 = vadd.f32 %v345, %v418
  %v420 = vpop.f32.mrb[0].mxu0
  %421 = vmatprep.mubr.f32.mxu0 0.0
  %422 = vmatmul.mubr.f32.gmra.mrb[0].mxu0 %v157
  %v423 = vpop.f32.mrb[0].mxu0
  %v424 = vadd.f32 %v345, %v423
  %v425 = vpop.f32.mrb[0].mxu0
  %426 = vmatprep.mubr.f32.mxu0 0.0
  %427 = vmatmul.mubr.f32.gmra.mrb[0].mxu0 %v160
  %v428 = vpop.f32.mrb[0].mxu0
  %v429 = vadd.f32 %v345, %v428
  %v430 = vpop.f32.mrb[0].mxu0
  %431 = vdwg.mxu0
  %vm432 = vcmask 64512
  %v434 = vsel %vm432, %v229, 0
  %v437 = vsel %vm432, %v318, 0
  %439 = vmatprep.subr.mxu0 0.0
  %440 = vmatpush1.xpose.msra.mxu0 %v437
  %441 = vmatprep.subr.mxu0 0.0
  %442 = vmatpush1.xpose.msra.mxu0 0.0
  %443 = vmatprep.subr.mxu0 0.0
  %444 = vmatpush1.xpose.msra.mxu0 0.0
  %445 = vmatprep.subr.mxu0 0.0
  %446 = vmatpush1.xpose.msra.mxu0 0.0
  %447 = vmatprep.subr.mxu0 0.0
  %448 = vmatpush1.xpose.msra.mxu0 0.0
  %449 = vmatprep.subr.mxu0 0.0
  %450 = vmatpush1.xpose.msra.mxu0 0.0
  %451 = vmatprep.subr.mxu0 0.0
  %452 = vmatpush1.xpose.msra.mxu0 0.0
  %453 = vmatprep.subr.mxu0 0.0
  %454 = vmatpush1.xpose.msra.mxu0 0.0
  %455 = vmatprep.subr.mxu0 0.0
  %456 = vmatpush1.xpose.msra.mxu0 0.0
  %457 = vmatprep.subr.mxu0 0.0
  %458 = vmatpush1.xpose.msra.mxu0 0.0
  %459 = vmatprep.subr.mxu0 0.0
  %460 = vmatpush1.xpose.msra.mxu0 0.0
  %461 = vmatprep.subr.mxu0 0.0
  %462 = vmatpush1.xpose.msra.mxu0 0.0
  %463 = vmatprep.subr.mxu0 0.0
  %464 = vmatpush1.xpose.msra.mxu0 0.0
  %465 = vmatprep.subr.mxu0 0.0
  %466 = vmatpush1.xpose.msra.mxu0 0.0
  %467 = vmatprep.subr.mxu0 0.0
  %468 = vmatpush1.xpose.msra.mxu0 0.0
  %469 = vmatprep.subr.mxu0 0.0
  %470 = vmatpush1.xpose.msra.mxu0 0.0
  %471 = vmatprep.subr.mxu0 0.0
  %472 = vmatpush1.xpose.msra.mxu0 0.0
  %473 = vmatprep.subr.mxu0 0.0
  %474 = vmatpush1.xpose.msra.mxu0 0.0
  %475 = vmatprep.subr.mxu0 0.0
  %476 = vmatpush1.xpose.msra.mxu0 0.0
  %477 = vmatprep.subr.mxu0 0.0
  %478 = vmatpush1.xpose.msra.mxu0 0.0
  %479 = vmatprep.subr.mxu0 0.0
  %480 = vmatpush1.xpose.msra.mxu0 0.0
  %481 = vmatprep.subr.mxu0 0.0
  %482 = vmatpush1.xpose.msra.mxu0 0.0
  %483 = vmatprep.subr.mxu0 0.0
  %484 = vmatpush1.xpose.msra.mxu0 0.0
  %485 = vmatprep.subr.mxu0 0.0
  %486 = vmatpush1.xpose.msra.mxu0 0.0
  %487 = vmatprep.subr.mxu0 0.0
  %488 = vmatpush1.xpose.msra.mxu0 0.0
  %489 = vmatprep.subr.mxu0 0.0
  %490 = vmatpush1.xpose.msra.mxu0 0.0
  %491 = vmatprep.subr.mxu0 0.0
  %492 = vmatpush1.xpose.msra.mxu0 0.0
  %493 = vmatprep.subr.mxu0 0.0
  %494 = vmatpush1.xpose.msra.mxu0 0.0
  %495 = vmatprep.subr.mxu0 0.0
  %496 = vmatpush1.xpose.msra.mxu0 0.0
  %497 = vmatprep.subr.mxu0 0.0
  %498 = vmatpush1.xpose.msra.mxu0 0.0
  %499 = vmatprep.subr.mxu0 0.0
  %500 = vmatpush1.xpose.msra.mxu0 0.0
  %501 = vmatprep.subr.mxu0 0.0
  %502 = vmatpush1.xpose.msra.mxu0 0.0
  %503 = vmatprep.mubr.f32.mxu0 0.0
  %504 = vmatmul.mubr.f32.gmra.mrb[0].mxu0 %v434
  %v505 = vpop.f32.mrb[0].mxu0
  %v506 = vadd.f32 0.0, %v505
  %v507 = vpop.f32.mrb[0].mxu0
  %508 = vdwg.mxu0
  %v510 = vsel %vm432, %v234, 0
  %v513 = vsel %vm432, %v323, 0
  %515 = vmatprep.subr.mxu0 0.0
  %516 = vmatpush1.xpose.msra.mxu0 %v513
  %517 = vmatprep.subr.mxu0 0.0
  %518 = vmatpush1.xpose.msra.mxu0 0.0
  %519 = vmatprep.subr.mxu0 0.0
  %520 = vmatpush1.xpose.msra.mxu0 0.0
  %521 = vmatprep.subr.mxu0 0.0
  %522 = vmatpush1.xpose.msra.mxu0 0.0
  %523 = vmatprep.subr.mxu0 0.0
  %524 = vmatpush1.xpose.msra.mxu0 0.0
  %525 = vmatprep.subr.mxu0 0.0
  %526 = vmatpush1.xpose.msra.mxu0 0.0
  %527 = vmatprep.subr.mxu0 0.0
  %528 = vmatpush1.xpose.msra.mxu0 0.0
  %529 = vmatprep.subr.mxu0 0.0
  %530 = vmatpush1.xpose.msra.mxu0 0.0
  %531 = vmatprep.subr.mxu0 0.0
  %532 = vmatpush1.xpose.msra.mxu0 0.0
  %533 = vmatprep.subr.mxu0 0.0
  %534 = vmatpush1.xpose.msra.mxu0 0.0
  %535 = vmatprep.subr.mxu0 0.0
  %536 = vmatpush1.xpose.msra.mxu0 0.0
  %537 = vmatprep.subr.mxu0 0.0
  %538 = vmatpush1.xpose.msra.mxu0 0.0
  %539 = vmatprep.subr.mxu0 0.0
  %540 = vmatpush1.xpose.msra.mxu0 0.0
  %541 = vmatprep.subr.mxu0 0.0
  %542 = vmatpush1.xpose.msra.mxu0 0.0
  %543 = vmatprep.subr.mxu0 0.0
  %544 = vmatpush1.xpose.msra.mxu0 0.0
  %545 = vmatprep.subr.mxu0 0.0
  %546 = vmatpush1.xpose.msra.mxu0 0.0
  %547 = vmatprep.subr.mxu0 0.0
  %548 = vmatpush1.xpose.msra.mxu0 0.0
  %549 = vmatprep.subr.mxu0 0.0
  %550 = vmatpush1.xpose.msra.mxu0 0.0
  %551 = vmatprep.subr.mxu0 0.0
  %552 = vmatpush1.xpose.msra.mxu0 0.0
  %553 = vmatprep.subr.mxu0 0.0
  %554 = vmatpush1.xpose.msra.mxu0 0.0
  %555 = vmatprep.subr.mxu0 0.0
  %556 = vmatpush1.xpose.msra.mxu0 0.0
  %557 = vmatprep.subr.mxu0 0.0
  %558 = vmatpush1.xpose.msra.mxu0 0.0
  %559 = vmatprep.subr.mxu0 0.0
  %560 = vmatpush1.xpose.msra.mxu0 0.0
  %561 = vmatprep.subr.mxu0 0.0
  %562 = vmatpush1.xpose.msra.mxu0 0.0
  %563 = vmatprep.subr.mxu0 0.0
  %564 = vmatpush1.xpose.msra.mxu0 0.0
  %565 = vmatprep.subr.mxu0 0.0
  %566 = vmatpush1.xpose.msra.mxu0 0.0
  %567 = vmatprep.subr.mxu0 0.0
  %568 = vmatpush1.xpose.msra.mxu0 0.0
  %569 = vmatprep.subr.mxu0 0.0
  %570 = vmatpush1.xpose.msra.mxu0 0.0
  %571 = vmatprep.subr.mxu0 0.0
  %572 = vmatpush1.xpose.msra.mxu0 0.0
  %573 = vmatprep.subr.mxu0 0.0
  %574 = vmatpush1.xpose.msra.mxu0 0.0
  %575 = vmatprep.subr.mxu0 0.0
  %576 = vmatpush1.xpose.msra.mxu0 0.0
  %577 = vmatprep.subr.mxu0 0.0
  %578 = vmatpush1.xpose.msra.mxu0 0.0
  %579 = vmatprep.mubr.f32.mxu0 0.0
  %580 = vmatmul.mubr.f32.gmra.mrb[0].mxu0 %v510
  %v581 = vpop.f32.mrb[0].mxu0
  %v582 = vadd.f32 0.0, %v581
  %v583 = vpop.f32.mrb[0].mxu0
  %584 = vdwg.mxu0
  %v586 = vsel %vm432, %v239, 0
  %v589 = vsel %vm432, %v328, 0
  %591 = vmatprep.subr.mxu0 0.0
  %592 = vmatpush1.xpose.msra.mxu0 %v589
  %593 = vmatprep.subr.mxu0 0.0
  %594 = vmatpush1.xpose.msra.mxu0 0.0
  %595 = vmatprep.subr.mxu0 0.0
  %596 = vmatpush1.xpose.msra.mxu0 0.0
  %597 = vmatprep.subr.mxu0 0.0
  %598 = vmatpush1.xpose.msra.mxu0 0.0
  %599 = vmatprep.subr.mxu0 0.0
  %600 = vmatpush1.xpose.msra.mxu0 0.0
  %601 = vmatprep.subr.mxu0 0.0
  %602 = vmatpush1.xpose.msra.mxu0 0.0
  %603 = vmatprep.subr.mxu0 0.0
  %604 = vmatpush1.xpose.msra.mxu0 0.0
  %605 = vmatprep.subr.mxu0 0.0
  %606 = vmatpush1.xpose.msra.mxu0 0.0
  %607 = vmatprep.subr.mxu0 0.0
  %608 = vmatpush1.xpose.msra.mxu0 0.0
  %609 = vmatprep.subr.mxu0 0.0
  %610 = vmatpush1.xpose.msra.mxu0 0.0
  %611 = vmatprep.subr.mxu0 0.0
  %612 = vmatpush1.xpose.msra.mxu0 0.0
  %613 = vmatprep.subr.mxu0 0.0
  %614 = vmatpush1.xpose.msra.mxu0 0.0
  %615 = vmatprep.subr.mxu0 0.0
  %616 = vmatpush1.xpose.msra.mxu0 0.0
  %617 = vmatprep.subr.mxu0 0.0
  %618 = vmatpush1.xpose.msra.mxu0 0.0
  %619 = vmatprep.subr.mxu0 0.0
  %620 = vmatpush1.xpose.msra.mxu0 0.0
  %621 = vmatprep.subr.mxu0 0.0
  %622 = vmatpush1.xpose.msra.mxu0 0.0
  %623 = vmatprep.subr.mxu0 0.0
  %624 = vmatpush1.xpose.msra.mxu0 0.0
  %625 = vmatprep.subr.mxu0 0.0
  %626 = vmatpush1.xpose.msra.mxu0 0.0
  %627 = vmatprep.subr.mxu0 0.0
  %628 = vmatpush1.xpose.msra.mxu0 0.0
  %629 = vmatprep.subr.mxu0 0.0
  %630 = vmatpush1.xpose.msra.mxu0 0.0
  %631 = vmatprep.subr.mxu0 0.0
  %632 = vmatpush1.xpose.msra.mxu0 0.0
  %633 = vmatprep.subr.mxu0 0.0
  %634 = vmatpush1.xpose.msra.mxu0 0.0
  %635 = vmatprep.subr.mxu0 0.0
  %636 = vmatpush1.xpose.msra.mxu0 0.0
  %637 = vmatprep.subr.mxu0 0.0
  %638 = vmatpush1.xpose.msra.mxu0 0.0
  %639 = vmatprep.subr.mxu0 0.0
  %640 = vmatpush1.xpose.msra.mxu0 0.0
  %641 = vmatprep.subr.mxu0 0.0
  %642 = vmatpush1.xpose.msra.mxu0 0.0
  %643 = vmatprep.subr.mxu0 0.0
  %644 = vmatpush1.xpose.msra.mxu0 0.0
  %645 = vmatprep.subr.mxu0 0.0
  %646 = vmatpush1.xpose.msra.mxu0 0.0
  %647 = vmatprep.subr.mxu0 0.0
  %648 = vmatpush1.xpose.msra.mxu0 0.0
  %649 = vmatprep.subr.mxu0 0.0
  %650 = vmatpush1.xpose.msra.mxu0 0.0
  %651 = vmatprep.subr.mxu0 0.0
  %652 = vmatpush1.xpose.msra.mxu0 0.0
  %653 = vmatprep.subr.mxu0 0.0
  %654 = vmatpush1.xpose.msra.mxu0 0.0
  %655 = vmatprep.mubr.f32.mxu0 0.0
  %656 = vmatmul.mubr.f32.gmra.mrb[0].mxu0 %v586
  %v657 = vpop.f32.mrb[0].mxu0
  %v658 = vadd.f32 0.0, %v657
  %v659 = vpop.f32.mrb[0].mxu0
  %660 = vdwg.mxu0
  %v662 = vsel %vm432, %v244, 0
  %v665 = vsel %vm432, %v333, 0
  %667 = vmatprep.subr.mxu0 0.0
  %668 = vmatpush1.xpose.msra.mxu0 %v665
  %669 = vmatprep.subr.mxu0 0.0
  %670 = vmatpush1.xpose.msra.mxu0 0.0
  %671 = vmatprep.subr.mxu0 0.0
  %672 = vmatpush1.xpose.msra.mxu0 0.0
  %673 = vmatprep.subr.mxu0 0.0
  %674 = vmatpush1.xpose.msra.mxu0 0.0
  %675 = vmatprep.subr.mxu0 0.0
  %676 = vmatpush1.xpose.msra.mxu0 0.0
  %677 = vmatprep.subr.mxu0 0.0
  %678 = vmatpush1.xpose.msra.mxu0 0.0
  %679 = vmatprep.subr.mxu0 0.0
  %680 = vmatpush1.xpose.msra.mxu0 0.0
  %681 = vmatprep.subr.mxu0 0.0
  %682 = vmatpush1.xpose.msra.mxu0 0.0
  %683 = vmatprep.subr.mxu0 0.0
  %684 = vmatpush1.xpose.msra.mxu0 0.0
  %685 = vmatprep.subr.mxu0 0.0
  %686 = vmatpush1.xpose.msra.mxu0 0.0
  %687 = vmatprep.subr.mxu0 0.0
  %688 = vmatpush1.xpose.msra.mxu0 0.0
  %689 = vmatprep.subr.mxu0 0.0
  %690 = vmatpush1.xpose.msra.mxu0 0.0
  %691 = vmatprep.subr.mxu0 0.0
  %692 = vmatpush1.xpose.msra.mxu0 0.0
  %693 = vmatprep.subr.mxu0 0.0
  %694 = vmatpush1.xpose.msra.mxu0 0.0
  %695 = vmatprep.subr.mxu0 0.0
  %696 = vmatpush1.xpose.msra.mxu0 0.0
  %697 = vmatprep.subr.mxu0 0.0
  %698 = vmatpush1.xpose.msra.mxu0 0.0
  %699 = vmatprep.subr.mxu0 0.0
  %700 = vmatpush1.xpose.msra.mxu0 0.0
  %701 = vmatprep.subr.mxu0 0.0
  %702 = vmatpush1.xpose.msra.mxu0 0.0
  %703 = vmatprep.subr.mxu0 0.0
  %704 = vmatpush1.xpose.msra.mxu0 0.0
  %705 = vmatprep.subr.mxu0 0.0
  %706 = vmatpush1.xpose.msra.mxu0 0.0
  %707 = vmatprep.subr.mxu0 0.0
  %708 = vmatpush1.xpose.msra.mxu0 0.0
  %709 = vmatprep.subr.mxu0 0.0
  %710 = vmatpush1.xpose.msra.mxu0 0.0
  %711 = vmatprep.subr.mxu0 0.0
  %712 = vmatpush1.xpose.msra.mxu0 0.0
  %713 = vmatprep.subr.mxu0 0.0
  %714 = vmatpush1.xpose.msra.mxu0 0.0
  %715 = vmatprep.subr.mxu0 0.0
  %716 = vmatpush1.xpose.msra.mxu0 0.0
  %717 = vmatprep.subr.mxu0 0.0
  %718 = vmatpush1.xpose.msra.mxu0 0.0
  %719 = vmatprep.subr.mxu0 0.0
  %720 = vmatpush1.xpose.msra.mxu0 0.0
  %721 = vmatprep.subr.mxu0 0.0
  %722 = vmatpush1.xpose.msra.mxu0 0.0
  %723 = vmatprep.subr.mxu0 0.0
  %724 = vmatpush1.xpose.msra.mxu0 0.0
  %725 = vmatprep.subr.mxu0 0.0
  %726 = vmatpush1.xpose.msra.mxu0 0.0
  %727 = vmatprep.subr.mxu0 0.0
  %728 = vmatpush1.xpose.msra.mxu0 0.0
  %729 = vmatprep.subr.mxu0 0.0
  %730 = vmatpush1.xpose.msra.mxu0 0.0
  %731 = vmatprep.mubr.f32.mxu0 0.0
  %732 = vmatmul.mubr.f32.gmra.mrb[0].mxu0 %v662
  %v733 = vpop.f32.mrb[0].mxu0
  %v734 = vadd.f32 0.0, %v733
  %v735 = vpop.f32.mrb[0].mxu0
  %736 = vdwg.mxu0
  %v737 = vmul.f32 %v506, 0.35355338
  %v738 = vmul.f32 %v582, 0.35355338
  %v739 = vmul.f32 %v658, 0.35355338
  %v740 = vmul.f32 %v734, 0.35355338
  %v741 = vsel %vm432, %v737, -inf
  %742 = vmax.xlane.f32.xlu0 %v741
  %v743 = vpop.xlane.xlu0 %742
  %v744 = vsel %vm432, %v738, -inf
  %745 = vmax.xlane.f32.xlu0 %v744
  %v746 = vpop.xlane.xlu0 %745
  %v747 = vsel %vm432, %v739, -inf
  %748 = vmax.xlane.f32.xlu0 %v747
  %v749 = vpop.xlane.xlu0 %748
  %v750 = vsel %vm432, %v740, -inf
  %751 = vmax.xlane.f32.xlu0 %v750
  %v752 = vpop.xlane.xlu0 %751
  %v753 = vsub.f32 %v737, %v743
  %v754 = vsub.f32 %v738, %v746
  %v755 = vsub.f32 %v739, %v749
  %v756 = vsub.f32 %v740, %v752
  %v757 = vmul.f32 %v753, 1.442695
  %v758 = vpow.pop %v757
  %v759 = vmul.f32 %v754, 1.442695
  %v760 = vpow.pop %v759
  %v761 = vmul.f32 %v755, 1.442695
  %v762 = vpow.pop %v761
  %v763 = vmul.f32 %v756, 1.442695
  %v764 = vpow.pop %v763
  %v765 = vsel %vm432, %v758, 0.0
  %766 = vadd.xlane.f32.xlu0 %v765
  %v767 = vpop.xlane.xlu0 %766
  %v768 = vsel %vm432, %v760, 0.0
  %769 = vadd.xlane.f32.xlu0 %v768
  %v770 = vpop.xlane.xlu0 %769
  %v771 = vsel %vm432, %v762, 0.0
  %772 = vadd.xlane.f32.xlu0 %v771
  %v773 = vpop.xlane.xlu0 %772
  %v774 = vsel %vm432, %v764, 0.0
  %775 = vadd.xlane.f32.xlu0 %v774
  %v776 = vpop.xlane.xlu0 %775
  %v777 = vrcp.pop %v767
  %v778 = vrcp.pop %v770
  %v779 = vrcp.pop %v773
  %v780 = vrcp.pop %v776
  %v781 = vmul.f32 %v758, %v777
  %v782 = vmul.f32 %v760, %v778
  %v783 = vmul.f32 %v762, %v779
  %v784 = vmul.f32 %v764, %v780
  %v786 = vsel %vm432, %v781, 0
  %788 = vmatprep.subr.mxu0 0.0
  %789 = vmatpush1.msra.mxu0 %v414
  %790 = vmatprep.subr.mxu0 0.0
  %791 = vmatpush1.msra.mxu0 0.0
  %792 = vmatprep.subr.mxu0 0.0
  %793 = vmatpush1.msra.mxu0 0.0
  %794 = vmatprep.subr.mxu0 0.0
  %795 = vmatpush1.msra.mxu0 0.0
  %796 = vmatprep.subr.mxu0 0.0
  %797 = vmatpush1.msra.mxu0 0.0
  %798 = vmatprep.subr.mxu0 0.0
  %799 = vmatpush1.msra.mxu0 0.0
  %800 = vmatprep.subr.mxu0 0.0
  %801 = vmatpush1.msra.mxu0 0.0
  %802 = vmatprep.subr.mxu0 0.0
  %803 = vmatpush1.msra.mxu0 0.0
  %804 = vmatprep.subr.mxu0 0.0
  %805 = vmatpush1.msra.mxu0 0.0
  %806 = vmatprep.subr.mxu0 0.0
  %807 = vmatpush1.msra.mxu0 0.0
  %808 = vmatprep.subr.mxu0 0.0
  %809 = vmatpush1.msra.mxu0 0.0
  %810 = vmatprep.subr.mxu0 0.0
  %811 = vmatpush1.msra.mxu0 0.0
  %812 = vmatprep.subr.mxu0 0.0
  %813 = vmatpush1.msra.mxu0 0.0
  %814 = vmatprep.subr.mxu0 0.0
  %815 = vmatpush1.msra.mxu0 0.0
  %816 = vmatprep.subr.mxu0 0.0
  %817 = vmatpush1.msra.mxu0 0.0
  %818 = vmatprep.subr.mxu0 0.0
  %819 = vmatpush1.msra.mxu0 0.0
  %820 = vmatprep.subr.mxu0 0.0
  %821 = vmatpush1.msra.mxu0 0.0
  %822 = vmatprep.subr.mxu0 0.0
  %823 = vmatpush1.msra.mxu0 0.0
  %824 = vmatprep.subr.mxu0 0.0
  %825 = vmatpush1.msra.mxu0 0.0
  %826 = vmatprep.subr.mxu0 0.0
  %827 = vmatpush1.msra.mxu0 0.0
  %828 = vmatprep.subr.mxu0 0.0
  %829 = vmatpush1.msra.mxu0 0.0
  %830 = vmatprep.subr.mxu0 0.0
  %831 = vmatpush1.msra.mxu0 0.0
  %832 = vmatprep.subr.mxu0 0.0
  %833 = vmatpush1.msra.mxu0 0.0
  %834 = vmatprep.subr.mxu0 0.0
  %835 = vmatpush1.msra.mxu0 0.0
  %836 = vmatprep.subr.mxu0 0.0
  %837 = vmatpush1.msra.mxu0 0.0
  %838 = vmatprep.subr.mxu0 0.0
  %839 = vmatpush1.msra.mxu0 0.0
  %840 = vmatprep.subr.mxu0 0.0
  %841 = vmatpush1.msra.mxu0 0.0
  %842 = vmatprep.subr.mxu0 0.0
  %843 = vmatpush1.msra.mxu0 0.0
  %844 = vmatprep.subr.mxu0 0.0
  %845 = vmatpush1.msra.mxu0 0.0
  %846 = vmatprep.subr.mxu0 0.0
  %847 = vmatpush1.msra.mxu0 0.0
  %848 = vmatprep.subr.mxu0 0.0
  %849 = vmatpush1.msra.mxu0 0.0
  %850 = vmatprep.subr.mxu0 0.0
  %851 = vmatpush1.msra.mxu0 0.0
  %852 = vmatprep.mubr.f32.mxu0 0.0
  %853 = vmatmul.mubr.f32.gmra.mrb[0].mxu0 %v786
  %v854 = vpop.f32.mrb[0].mxu0
  %v855 = vadd.f32 0.0, %v854
  %v856 = vpop.f32.mrb[0].mxu0
  %857 = vdwg.mxu0
  %v859 = vsel %vm432, %v782, 0
  %861 = vmatprep.subr.mxu0 0.0
  %862 = vmatpush1.msra.mxu0 %v419
  %863 = vmatprep.subr.mxu0 0.0
  %864 = vmatpush1.msra.mxu0 0.0
  %865 = vmatprep.subr.mxu0 0.0
  %866 = vmatpush1.msra.mxu0 0.0
  %867 = vmatprep.subr.mxu0 0.0
  %868 = vmatpush1.msra.mxu0 0.0
  %869 = vmatprep.subr.mxu0 0.0
  %870 = vmatpush1.msra.mxu0 0.0
  %871 = vmatprep.subr.mxu0 0.0
  %872 = vmatpush1.msra.mxu0 0.0
  %873 = vmatprep.subr.mxu0 0.0
  %874 = vmatpush1.msra.mxu0 0.0
  %875 = vmatprep.subr.mxu0 0.0
  %876 = vmatpush1.msra.mxu0 0.0
  %877 = vmatprep.subr.mxu0 0.0
  %878 = vmatpush1.msra.mxu0 0.0
  %879 = vmatprep.subr.mxu0 0.0
  %880 = vmatpush1.msra.mxu0 0.0
  %881 = vmatprep.subr.mxu0 0.0
  %882 = vmatpush1.msra.mxu0 0.0
  %883 = vmatprep.subr.mxu0 0.0
  %884 = vmatpush1.msra.mxu0 0.0
  %885 = vmatprep.subr.mxu0 0.0
  %886 = vmatpush1.msra.mxu0 0.0
  %887 = vmatprep.subr.mxu0 0.0
  %888 = vmatpush1.msra.mxu0 0.0
  %889 = vmatprep.subr.mxu0 0.0
  %890 = vmatpush1.msra.mxu0 0.0
  %891 = vmatprep.subr.mxu0 0.0
  %892 = vmatpush1.msra.mxu0 0.0
  %893 = vmatprep.subr.mxu0 0.0
  %894 = vmatpush1.msra.mxu0 0.0
  %895 = vmatprep.subr.mxu0 0.0
  %896 = vmatpush1.msra.mxu0 0.0
  %897 = vmatprep.subr.mxu0 0.0
  %898 = vmatpush1.msra.mxu0 0.0
  %899 = vmatprep.subr.mxu0 0.0
  %900 = vmatpush1.msra.mxu0 0.0
  %901 = vmatprep.subr.mxu0 0.0
  %902 = vmatpush1.msra.mxu0 0.0
  %903 = vmatprep.subr.mxu0 0.0
  %904 = vmatpush1.msra.mxu0 0.0
  %905 = vmatprep.subr.mxu0 0.0
  %906 = vmatpush1.msra.mxu0 0.0
  %907 = vmatprep.subr.mxu0 0.0
  %908 = vmatpush1.msra.mxu0 0.0
  %909 = vmatprep.subr.mxu0 0.0
  %910 = vmatpush1.msra.mxu0 0.0
  %911 = vmatprep.subr.mxu0 0.0
  %912 = vmatpush1.msra.mxu0 0.0
  %913 = vmatprep.subr.mxu0 0.0
  %914 = vmatpush1.msra.mxu0 0.0
  %915 = vmatprep.subr.mxu0 0.0
  %916 = vmatpush1.msra.mxu0 0.0
  %917 = vmatprep.subr.mxu0 0.0
  %918 = vmatpush1.msra.mxu0 0.0
  %919 = vmatprep.subr.mxu0 0.0
  %920 = vmatpush1.msra.mxu0 0.0
  %921 = vmatprep.subr.mxu0 0.0
  %922 = vmatpush1.msra.mxu0 0.0
  %923 = vmatprep.subr.mxu0 0.0
  %924 = vmatpush1.msra.mxu0 0.0
  %925 = vmatprep.mubr.f32.mxu0 0.0
  %926 = vmatmul.mubr.f32.gmra.mrb[0].mxu0 %v859
  %v927 = vpop.f32.mrb[0].mxu0
  %v928 = vadd.f32 0.0, %v927
  %v929 = vpop.f32.mrb[0].mxu0
  %930 = vdwg.mxu0
  %v932 = vsel %vm432, %v783, 0
  %934 = vmatprep.subr.mxu0 0.0
  %935 = vmatpush1.msra.mxu0 %v424
  %936 = vmatprep.subr.mxu0 0.0
  %937 = vmatpush1.msra.mxu0 0.0
  %938 = vmatprep.subr.mxu0 0.0
  %939 = vmatpush1.msra.mxu0 0.0
  %940 = vmatprep.subr.mxu0 0.0
  %941 = vmatpush1.msra.mxu0 0.0
  %942 = vmatprep.subr.mxu0 0.0
  %943 = vmatpush1.msra.mxu0 0.0
  %944 = vmatprep.subr.mxu0 0.0
  %945 = vmatpush1.msra.mxu0 0.0
  %946 = vmatprep.subr.mxu0 0.0
  %947 = vmatpush1.msra.mxu0 0.0
  %948 = vmatprep.subr.mxu0 0.0
  %949 = vmatpush1.msra.mxu0 0.0
  %950 = vmatprep.subr.mxu0 0.0
  %951 = vmatpush1.msra.mxu0 0.0
  %952 = vmatprep.subr.mxu0 0.0
  %953 = vmatpush1.msra.mxu0 0.0
  %954 = vmatprep.subr.mxu0 0.0
  %955 = vmatpush1.msra.mxu0 0.0
  %956 = vmatprep.subr.mxu0 0.0
  %957 = vmatpush1.msra.mxu0 0.0
  %958 = vmatprep.subr.mxu0 0.0
  %959 = vmatpush1.msra.mxu0 0.0
  %960 = vmatprep.subr.mxu0 0.0
  %961 = vmatpush1.msra.mxu0 0.0
  %962 = vmatprep.subr.mxu0 0.0
  %963 = vmatpush1.msra.mxu0 0.0
  %964 = vmatprep.subr.mxu0 0.0
  %965 = vmatpush1.msra.mxu0 0.0
  %966 = vmatprep.subr.mxu0 0.0
  %967 = vmatpush1.msra.mxu0 0.0
  %968 = vmatprep.subr.mxu0 0.0
  %969 = vmatpush1.msra.mxu0 0.0
  %970 = vmatprep.subr.mxu0 0.0
  %971 = vmatpush1.msra.mxu0 0.0
  %972 = vmatprep.subr.mxu0 0.0
  %973 = vmatpush1.msra.mxu0 0.0
  %974 = vmatprep.subr.mxu0 0.0
  %975 = vmatpush1.msra.mxu0 0.0
  %976 = vmatprep.subr.mxu0 0.0
  %977 = vmatpush1.msra.mxu0 0.0
  %978 = vmatprep.subr.mxu0 0.0
  %979 = vmatpush1.msra.mxu0 0.0
  %980 = vmatprep.subr.mxu0 0.0
  %981 = vmatpush1.msra.mxu0 0.0
  %982 = vmatprep.subr.mxu0 0.0
  %983 = vmatpush1.msra.mxu0 0.0
  %984 = vmatprep.subr.mxu0 0.0
  %985 = vmatpush1.msra.mxu0 0.0
  %986 = vmatprep.subr.mxu0 0.0
  %987 = vmatpush1.msra.mxu0 0.0
  %988 = vmatprep.subr.mxu0 0.0
  %989 = vmatpush1.msra.mxu0 0.0
  %990 = vmatprep.subr.mxu0 0.0
  %991 = vmatpush1.msra.mxu0 0.0
  %992 = vmatprep.subr.mxu0 0.0
  %993 = vmatpush1.msra.mxu0 0.0
  %994 = vmatprep.subr.mxu0 0.0
  %995 = vmatpush1.msra.mxu0 0.0
  %996 = vmatprep.subr.mxu0 0.0
  %997 = vmatpush1.msra.mxu0 0.0
  %998 = vmatprep.mubr.f32.mxu0 0.0
  %999 = vmatmul.mubr.f32.gmra.mrb[0].mxu0 %v932
  %v1000 = vpop.f32.mrb[0].mxu0
  %v1001 = vadd.f32 0.0, %v1000
  %v1002 = vpop.f32.mrb[0].mxu0
  %1003 = vdwg.mxu0
  %v1005 = vsel %vm432, %v784, 0
  %1007 = vmatprep.subr.mxu0 0.0
  %1008 = vmatpush1.msra.mxu0 %v429
  %1009 = vmatprep.subr.mxu0 0.0
  %1010 = vmatpush1.msra.mxu0 0.0
  %1011 = vmatprep.subr.mxu0 0.0
  %1012 = vmatpush1.msra.mxu0 0.0
  %1013 = vmatprep.subr.mxu0 0.0
  %1014 = vmatpush1.msra.mxu0 0.0
  %1015 = vmatprep.subr.mxu0 0.0
  %1016 = vmatpush1.msra.mxu0 0.0
  %1017 = vmatprep.subr.mxu0 0.0
  %1018 = vmatpush1.msra.mxu0 0.0
  %1019 = vmatprep.subr.mxu0 0.0
  %1020 = vmatpush1.msra.mxu0 0.0
  %1021 = vmatprep.subr.mxu0 0.0
  %1022 = vmatpush1.msra.mxu0 0.0
  %1023 = vmatprep.subr.mxu0 0.0
  %1024 = vmatpush1.msra.mxu0 0.0
  %1025 = vmatprep.subr.mxu0 0.0
  %1026 = vmatpush1.msra.mxu0 0.0
  %1027 = vmatprep.subr.mxu0 0.0
  %1028 = vmatpush1.msra.mxu0 0.0
  %1029 = vmatprep.subr.mxu0 0.0
  %1030 = vmatpush1.msra.mxu0 0.0
  %1031 = vmatprep.subr.mxu0 0.0
  %1032 = vmatpush1.msra.mxu0 0.0
  %1033 = vmatprep.subr.mxu0 0.0
  %1034 = vmatpush1.msra.mxu0 0.0
  %1035 = vmatprep.subr.mxu0 0.0
  %1036 = vmatpush1.msra.mxu0 0.0
  %1037 = vmatprep.subr.mxu0 0.0
  %1038 = vmatpush1.msra.mxu0 0.0
  %1039 = vmatprep.subr.mxu0 0.0
  %1040 = vmatpush1.msra.mxu0 0.0
  %1041 = vmatprep.subr.mxu0 0.0
  %1042 = vmatpush1.msra.mxu0 0.0
  %1043 = vmatprep.subr.mxu0 0.0
  %1044 = vmatpush1.msra.mxu0 0.0
  %1045 = vmatprep.subr.mxu0 0.0
  %1046 = vmatpush1.msra.mxu0 0.0
  %1047 = vmatprep.subr.mxu0 0.0
  %1048 = vmatpush1.msra.mxu0 0.0
  %1049 = vmatprep.subr.mxu0 0.0
  %1050 = vmatpush1.msra.mxu0 0.0
  %1051 = vmatprep.subr.mxu0 0.0
  %1052 = vmatpush1.msra.mxu0 0.0
  %1053 = vmatprep.subr.mxu0 0.0
  %1054 = vmatpush1.msra.mxu0 0.0
  %1055 = vmatprep.subr.mxu0 0.0
  %1056 = vmatpush1.msra.mxu0 0.0
  %1057 = vmatprep.subr.mxu0 0.0
  %1058 = vmatpush1.msra.mxu0 0.0
  %1059 = vmatprep.subr.mxu0 0.0
  %1060 = vmatpush1.msra.mxu0 0.0
  %1061 = vmatprep.subr.mxu0 0.0
  %1062 = vmatpush1.msra.mxu0 0.0
  %1063 = vmatprep.subr.mxu0 0.0
  %1064 = vmatpush1.msra.mxu0 0.0
  %1065 = vmatprep.subr.mxu0 0.0
  %1066 = vmatpush1.msra.mxu0 0.0
  %1067 = vmatprep.subr.mxu0 0.0
  %1068 = vmatpush1.msra.mxu0 0.0
  %1069 = vmatprep.subr.mxu0 0.0
  %1070 = vmatpush1.msra.mxu0 0.0
  %1071 = vmatprep.mubr.f32.mxu0 0.0
  %1072 = vmatmul.mubr.f32.gmra.mrb[0].mxu0 %v1005
  %v1073 = vpop.f32.mrb[0].mxu0
  %v1074 = vadd.f32 0.0, %v1073
  %v1075 = vpop.f32.mrb[0].mxu0
  %1076 = vdwg.mxu0
  %1077 = vrot.lane.b32.xlu0 %v229, 120
  %v1078 = vpop.permute.xlu0 %1077
  %1079 = vrot.lane.b32.xlu0 %v318, 120
  %v1080 = vpop.permute.xlu0 %1079
  %v1081 = vsel %vm432, %v1078, 0
  %v1083 = vsel %vm432, %v1080, 0
  %1085 = vmatprep.subr.mxu0 0.0
  %1086 = vmatpush1.xpose.msra.mxu0 %v1083
  %1087 = vmatprep.subr.mxu0 0.0
  %1088 = vmatpush1.xpose.msra.mxu0 0.0
  %1089 = vmatprep.subr.mxu0 0.0
  %1090 = vmatpush1.xpose.msra.mxu0 0.0
  %1091 = vmatprep.subr.mxu0 0.0
  %1092 = vmatpush1.xpose.msra.mxu0 0.0
  %1093 = vmatprep.subr.mxu0 0.0
  %1094 = vmatpush1.xpose.msra.mxu0 0.0
  %1095 = vmatprep.subr.mxu0 0.0
  %1096 = vmatpush1.xpose.msra.mxu0 0.0
  %1097 = vmatprep.subr.mxu0 0.0
  %1098 = vmatpush1.xpose.msra.mxu0 0.0
  %1099 = vmatprep.subr.mxu0 0.0
  %1100 = vmatpush1.xpose.msra.mxu0 0.0
  %1101 = vmatprep.subr.mxu0 0.0
  %1102 = vmatpush1.xpose.msra.mxu0 0.0
  %1103 = vmatprep.subr.mxu0 0.0
  %1104 = vmatpush1.xpose.msra.mxu0 0.0
  %1105 = vmatprep.subr.mxu0 0.0
  %1106 = vmatpush1.xpose.msra.mxu0 0.0
  %1107 = vmatprep.subr.mxu0 0.0
  %1108 = vmatpush1.xpose.msra.mxu0 0.0
  %1109 = vmatprep.subr.mxu0 0.0
  %1110 = vmatpush1.xpose.msra.mxu0 0.0
  %1111 = vmatprep.subr.mxu0 0.0
  %1112 = vmatpush1.xpose.msra.mxu0 0.0
  %1113 = vmatprep.subr.mxu0 0.0
  %1114 = vmatpush1.xpose.msra.mxu0 0.0
  %1115 = vmatprep.subr.mxu0 0.0
  %1116 = vmatpush1.xpose.msra.mxu0 0.0
  %1117 = vmatprep.subr.mxu0 0.0
  %1118 = vmatpush1.xpose.msra.mxu0 0.0
  %1119 = vmatprep.subr.mxu0 0.0
  %1120 = vmatpush1.xpose.msra.mxu0 0.0
  %1121 = vmatprep.subr.mxu0 0.0
  %1122 = vmatpush1.xpose.msra.mxu0 0.0
  %1123 = vmatprep.subr.mxu0 0.0
  %1124 = vmatpush1.xpose.msra.mxu0 0.0
  %1125 = vmatprep.subr.mxu0 0.0
  %1126 = vmatpush1.xpose.msra.mxu0 0.0
  %1127 = vmatprep.subr.mxu0 0.0
  %1128 = vmatpush1.xpose.msra.mxu0 0.0
  %1129 = vmatprep.subr.mxu0 0.0
  %1130 = vmatpush1.xpose.msra.mxu0 0.0
  %1131 = vmatprep.subr.mxu0 0.0
  %1132 = vmatpush1.xpose.msra.mxu0 0.0
  %1133 = vmatprep.subr.mxu0 0.0
  %1134 = vmatpush1.xpose.msra.mxu0 0.0
  %1135 = vmatprep.subr.mxu0 0.0
  %1136 = vmatpush1.xpose.msra.mxu0 0.0
  %1137 = vmatprep.subr.mxu0 0.0
  %1138 = vmatpush1.xpose.msra.mxu0 0.0
  %1139 = vmatprep.subr.mxu0 0.0
  %1140 = vmatpush1.xpose.msra.mxu0 0.0
  %1141 = vmatprep.subr.mxu0 0.0
  %1142 = vmatpush1.xpose.msra.mxu0 0.0
  %1143 = vmatprep.subr.mxu0 0.0
  %1144 = vmatpush1.xpose.msra.mxu0 0.0
  %1145 = vmatprep.subr.mxu0 0.0
  %1146 = vmatpush1.xpose.msra.mxu0 0.0
  %1147 = vmatprep.subr.mxu0 0.0
  %1148 = vmatpush1.xpose.msra.mxu0 0.0
  %1149 = vmatprep.mubr.f32.mxu0 0.0
  %1150 = vmatmul.mubr.f32.gmra.mrb[0].mxu0 %v1081
  %v1151 = vpop.f32.mrb[0].mxu0
  %v1152 = vadd.f32 0.0, %v1151
  %v1153 = vpop.f32.mrb[0].mxu0
  %1154 = vdwg.mxu0
  %1155 = vrot.lane.b32.xlu0 %v234, 120
  %v1156 = vpop.permute.xlu0 %1155
  %1157 = vrot.lane.b32.xlu0 %v323, 120
  %v1158 = vpop.permute.xlu0 %1157
  %v1159 = vsel %vm432, %v1156, 0
  %v1161 = vsel %vm432, %v1158, 0
  %1163 = vmatprep.subr.mxu0 0.0
  %1164 = vmatpush1.xpose.msra.mxu0 %v1161
  %1165 = vmatprep.subr.mxu0 0.0
  %1166 = vmatpush1.xpose.msra.mxu0 0.0
  %1167 = vmatprep.subr.mxu0 0.0
  %1168 = vmatpush1.xpose.msra.mxu0 0.0
  %1169 = vmatprep.subr.mxu0 0.0
  %1170 = vmatpush1.xpose.msra.mxu0 0.0
  %1171 = vmatprep.subr.mxu0 0.0
  %1172 = vmatpush1.xpose.msra.mxu0 0.0
  %1173 = vmatprep.subr.mxu0 0.0
  %1174 = vmatpush1.xpose.msra.mxu0 0.0
  %1175 = vmatprep.subr.mxu0 0.0
  %1176 = vmatpush1.xpose.msra.mxu0 0.0
  %1177 = vmatprep.subr.mxu0 0.0
  %1178 = vmatpush1.xpose.msra.mxu0 0.0
  %1179 = vmatprep.subr.mxu0 0.0
  %1180 = vmatpush1.xpose.msra.mxu0 0.0
  %1181 = vmatprep.subr.mxu0 0.0
  %1182 = vmatpush1.xpose.msra.mxu0 0.0
  %1183 = vmatprep.subr.mxu0 0.0
  %1184 = vmatpush1.xpose.msra.mxu0 0.0
  %1185 = vmatprep.subr.mxu0 0.0
  %1186 = vmatpush1.xpose.msra.mxu0 0.0
  %1187 = vmatprep.subr.mxu0 0.0
  %1188 = vmatpush1.xpose.msra.mxu0 0.0
  %1189 = vmatprep.subr.mxu0 0.0
  %1190 = vmatpush1.xpose.msra.mxu0 0.0
  %1191 = vmatprep.subr.mxu0 0.0
  %1192 = vmatpush1.xpose.msra.mxu0 0.0
  %1193 = vmatprep.subr.mxu0 0.0
  %1194 = vmatpush1.xpose.msra.mxu0 0.0
  %1195 = vmatprep.subr.mxu0 0.0
  %1196 = vmatpush1.xpose.msra.mxu0 0.0
  %1197 = vmatprep.subr.mxu0 0.0
  %1198 = vmatpush1.xpose.msra.mxu0 0.0
  %1199 = vmatprep.subr.mxu0 0.0
  %1200 = vmatpush1.xpose.msra.mxu0 0.0
  %1201 = vmatprep.subr.mxu0 0.0
  %1202 = vmatpush1.xpose.msra.mxu0 0.0
  %1203 = vmatprep.subr.mxu0 0.0
  %1204 = vmatpush1.xpose.msra.mxu0 0.0
  %1205 = vmatprep.subr.mxu0 0.0
  %1206 = vmatpush1.xpose.msra.mxu0 0.0
  %1207 = vmatprep.subr.mxu0 0.0
  %1208 = vmatpush1.xpose.msra.mxu0 0.0
  %1209 = vmatprep.subr.mxu0 0.0
  %1210 = vmatpush1.xpose.msra.mxu0 0.0
  %1211 = vmatprep.subr.mxu0 0.0
  %1212 = vmatpush1.xpose.msra.mxu0 0.0
  %1213 = vmatprep.subr.mxu0 0.0
  %1214 = vmatpush1.xpose.msra.mxu0 0.0
  %1215 = vmatprep.subr.mxu0 0.0
  %1216 = vmatpush1.xpose.msra.mxu0 0.0
  %1217 = vmatprep.subr.mxu0 0.0
  %1218 = vmatpush1.xpose.msra.mxu0 0.0
  %1219 = vmatprep.subr.mxu0 0.0
  %1220 = vmatpush1.xpose.msra.mxu0 0.0
  %1221 = vmatprep.subr.mxu0 0.0
  %1222 = vmatpush1.xpose.msra.mxu0 0.0
  %1223 = vmatprep.subr.mxu0 0.0
  %1224 = vmatpush1.xpose.msra.mxu0 0.0
  %1225 = vmatprep.subr.mxu0 0.0
  %1226 = vmatpush1.xpose.msra.mxu0 0.0
  %1227 = vmatprep.mubr.f32.mxu0 0.0
  %1228 = vmatmul.mubr.f32.gmra.mrb[0].mxu0 %v1159
  %v1229 = vpop.f32.mrb[0].mxu0
  %v1230 = vadd.f32 0.0, %v1229
  %v1231 = vpop.f32.mrb[0].mxu0
  %1232 = vdwg.mxu0
  %1233 = vrot.lane.b32.xlu0 %v239, 120
  %v1234 = vpop.permute.xlu0 %1233
  %1235 = vrot.lane.b32.xlu0 %v328, 120
  %v1236 = vpop.permute.xlu0 %1235
  %v1237 = vsel %vm432, %v1234, 0
  %v1239 = vsel %vm432, %v1236, 0
  %1241 = vmatprep.subr.mxu0 0.0
  %1242 = vmatpush1.xpose.msra.mxu0 %v1239
  %1243 = vmatprep.subr.mxu0 0.0
  %1244 = vmatpush1.xpose.msra.mxu0 0.0
  %1245 = vmatprep.subr.mxu0 0.0
  %1246 = vmatpush1.xpose.msra.mxu0 0.0
  %1247 = vmatprep.subr.mxu0 0.0
  %1248 = vmatpush1.xpose.msra.mxu0 0.0
  %1249 = vmatprep.subr.mxu0 0.0
  %1250 = vmatpush1.xpose.msra.mxu0 0.0
  %1251 = vmatprep.subr.mxu0 0.0
  %1252 = vmatpush1.xpose.msra.mxu0 0.0
  %1253 = vmatprep.subr.mxu0 0.0
  %1254 = vmatpush1.xpose.msra.mxu0 0.0
  %1255 = vmatprep.subr.mxu0 0.0
  %1256 = vmatpush1.xpose.msra.mxu0 0.0
  %1257 = vmatprep.subr.mxu0 0.0
  %1258 = vmatpush1.xpose.msra.mxu0 0.0
  %1259 = vmatprep.subr.mxu0 0.0
  %1260 = vmatpush1.xpose.msra.mxu0 0.0
  %1261 = vmatprep.subr.mxu0 0.0
  %1262 = vmatpush1.xpose.msra.mxu0 0.0
  %1263 = vmatprep.subr.mxu0 0.0
  %1264 = vmatpush1.xpose.msra.mxu0 0.0
  %1265 = vmatprep.subr.mxu0 0.0
  %1266 = vmatpush1.xpose.msra.mxu0 0.0
  %1267 = vmatprep.subr.mxu0 0.0
  %1268 = vmatpush1.xpose.msra.mxu0 0.0
  %1269 = vmatprep.subr.mxu0 0.0
  %1270 = vmatpush1.xpose.msra.mxu0 0.0
  %1271 = vmatprep.subr.mxu0 0.0
  %1272 = vmatpush1.xpose.msra.mxu0 0.0
  %1273 = vmatprep.subr.mxu0 0.0
  %1274 = vmatpush1.xpose.msra.mxu0 0.0
  %1275 = vmatprep.subr.mxu0 0.0
  %1276 = vmatpush1.xpose.msra.mxu0 0.0
  %1277 = vmatprep.subr.mxu0 0.0
  %1278 = vmatpush1.xpose.msra.mxu0 0.0
  %1279 = vmatprep.subr.mxu0 0.0
  %1280 = vmatpush1.xpose.msra.mxu0 0.0
  %1281 = vmatprep.subr.mxu0 0.0
  %1282 = vmatpush1.xpose.msra.mxu0 0.0
  %1283 = vmatprep.subr.mxu0 0.0
  %1284 = vmatpush1.xpose.msra.mxu0 0.0
  %1285 = vmatprep.subr.mxu0 0.0
  %1286 = vmatpush1.xpose.msra.mxu0 0.0
  %1287 = vmatprep.subr.mxu0 0.0
  %1288 = vmatpush1.xpose.msra.mxu0 0.0
  %1289 = vmatprep.subr.mxu0 0.0
  %1290 = vmatpush1.xpose.msra.mxu0 0.0
  %1291 = vmatprep.subr.mxu0 0.0
  %1292 = vmatpush1.xpose.msra.mxu0 0.0
  %1293 = vmatprep.subr.mxu0 0.0
  %1294 = vmatpush1.xpose.msra.mxu0 0.0
  %1295 = vmatprep.subr.mxu0 0.0
  %1296 = vmatpush1.xpose.msra.mxu0 0.0
  %1297 = vmatprep.subr.mxu0 0.0
  %1298 = vmatpush1.xpose.msra.mxu0 0.0
  %1299 = vmatprep.subr.mxu0 0.0
  %1300 = vmatpush1.xpose.msra.mxu0 0.0
  %1301 = vmatprep.subr.mxu0 0.0
  %1302 = vmatpush1.xpose.msra.mxu0 0.0
  %1303 = vmatprep.subr.mxu0 0.0
  %1304 = vmatpush1.xpose.msra.mxu0 0.0
  %1305 = vmatprep.mubr.f32.mxu0 0.0
  %1306 = vmatmul.mubr.f32.gmra.mrb[0].mxu0 %v1237
  %v1307 = vpop.f32.mrb[0].mxu0
  %v1308 = vadd.f32 0.0, %v1307
  %v1309 = vpop.f32.mrb[0].mxu0
  %1310 = vdwg.mxu0
  %1311 = vrot.lane.b32.xlu0 %v244, 120
  %v1312 = vpop.permute.xlu0 %1311
  %1313 = vrot.lane.b32.xlu0 %v333, 120
  %v1314 = vpop.permute.xlu0 %1313
  %v1315 = vsel %vm432, %v1312, 0
  %v1317 = vsel %vm432, %v1314, 0
  %1319 = vmatprep.subr.mxu0 0.0
  %1320 = vmatpush1.xpose.msra.mxu0 %v1317
  %1321 = vmatprep.subr.mxu0 0.0
  %1322 = vmatpush1.xpose.msra.mxu0 0.0
  %1323 = vmatprep.subr.mxu0 0.0
  %1324 = vmatpush1.xpose.msra.mxu0 0.0
  %1325 = vmatprep.subr.mxu0 0.0
  %1326 = vmatpush1.xpose.msra.mxu0 0.0
  %1327 = vmatprep.subr.mxu0 0.0
  %1328 = vmatpush1.xpose.msra.mxu0 0.0
  %1329 = vmatprep.subr.mxu0 0.0
  %1330 = vmatpush1.xpose.msra.mxu0 0.0
  %1331 = vmatprep.subr.mxu0 0.0
  %1332 = vmatpush1.xpose.msra.mxu0 0.0
  %1333 = vmatprep.subr.mxu0 0.0
  %1334 = vmatpush1.xpose.msra.mxu0 0.0
  %1335 = vmatprep.subr.mxu0 0.0
  %1336 = vmatpush1.xpose.msra.mxu0 0.0
  %1337 = vmatprep.subr.mxu0 0.0
  %1338 = vmatpush1.xpose.msra.mxu0 0.0
  %1339 = vmatprep.subr.mxu0 0.0
  %1340 = vmatpush1.xpose.msra.mxu0 0.0
  %1341 = vmatprep.subr.mxu0 0.0
  %1342 = vmatpush1.xpose.msra.mxu0 0.0
  %1343 = vmatprep.subr.mxu0 0.0
  %1344 = vmatpush1.xpose.msra.mxu0 0.0
  %1345 = vmatprep.subr.mxu0 0.0
  %1346 = vmatpush1.xpose.msra.mxu0 0.0
  %1347 = vmatprep.subr.mxu0 0.0
  %1348 = vmatpush1.xpose.msra.mxu0 0.0
  %1349 = vmatprep.subr.mxu0 0.0
  %1350 = vmatpush1.xpose.msra.mxu0 0.0
  %1351 = vmatprep.subr.mxu0 0.0
  %1352 = vmatpush1.xpose.msra.mxu0 0.0
  %1353 = vmatprep.subr.mxu0 0.0
  %1354 = vmatpush1.xpose.msra.mxu0 0.0
  %1355 = vmatprep.subr.mxu0 0.0
  %1356 = vmatpush1.xpose.msra.mxu0 0.0
  %1357 = vmatprep.subr.mxu0 0.0
  %1358 = vmatpush1.xpose.msra.mxu0 0.0
  %1359 = vmatprep.subr.mxu0 0.0
  %1360 = vmatpush1.xpose.msra.mxu0 0.0
  %1361 = vmatprep.subr.mxu0 0.0
  %1362 = vmatpush1.xpose.msra.mxu0 0.0
  %1363 = vmatprep.subr.mxu0 0.0
  %1364 = vmatpush1.xpose.msra.mxu0 0.0
  %1365 = vmatprep.subr.mxu0 0.0
  %1366 = vmatpush1.xpose.msra.mxu0 0.0
  %1367 = vmatprep.subr.mxu0 0.0
  %1368 = vmatpush1.xpose.msra.mxu0 0.0
  %1369 = vmatprep.subr.mxu0 0.0
  %1370 = vmatpush1.xpose.msra.mxu0 0.0
  %1371 = vmatprep.subr.mxu0 0.0
  %1372 = vmatpush1.xpose.msra.mxu0 0.0
  %1373 = vmatprep.subr.mxu0 0.0
  %1374 = vmatpush1.xpose.msra.mxu0 0.0
  %1375 = vmatprep.subr.mxu0 0.0
  %1376 = vmatpush1.xpose.msra.mxu0 0.0
  %1377 = vmatprep.subr.mxu0 0.0
  %1378 = vmatpush1.xpose.msra.mxu0 0.0
  %1379 = vmatprep.subr.mxu0 0.0
  %1380 = vmatpush1.xpose.msra.mxu0 0.0
  %1381 = vmatprep.subr.mxu0 0.0
  %1382 = vmatpush1.xpose.msra.mxu0 0.0
  %1383 = vmatprep.mubr.f32.mxu0 0.0
  %1384 = vmatmul.mubr.f32.gmra.mrb[0].mxu0 %v1315
  %v1385 = vpop.f32.mrb[0].mxu0
  %v1386 = vadd.f32 0.0, %v1385
  %v1387 = vpop.f32.mrb[0].mxu0
  %1388 = vdwg.mxu0
  %v1389 = vmul.f32 %v1152, 0.35355338
  %v1390 = vmul.f32 %v1230, 0.35355338
  %v1391 = vmul.f32 %v1308, 0.35355338
  %v1392 = vmul.f32 %v1386, 0.35355338
  %v1393 = vsel %vm432, %v1389, -inf
  %1394 = vmax.xlane.f32.xlu0 %v1393
  %v1395 = vpop.xlane.xlu0 %1394
  %v1396 = vsel %vm432, %v1390, -inf
  %1397 = vmax.xlane.f32.xlu0 %v1396
  %v1398 = vpop.xlane.xlu0 %1397
  %v1399 = vsel %vm432, %v1391, -inf
  %1400 = vmax.xlane.f32.xlu0 %v1399
  %v1401 = vpop.xlane.xlu0 %1400
  %v1402 = vsel %vm432, %v1392, -inf
  %1403 = vmax.xlane.f32.xlu0 %v1402
  %v1404 = vpop.xlane.xlu0 %1403
  %v1405 = vsub.f32 %v1389, %v1395
  %v1406 = vsub.f32 %v1390, %v1398
  %v1407 = vsub.f32 %v1391, %v1401
  %v1408 = vsub.f32 %v1392, %v1404
  %v1409 = vmul.f32 %v1405, 1.442695
  %v1410 = vpow.pop %v1409
  %v1411 = vmul.f32 %v1406, 1.442695
  %v1412 = vpow.pop %v1411
  %v1413 = vmul.f32 %v1407, 1.442695
  %v1414 = vpow.pop %v1413
  %v1415 = vmul.f32 %v1408, 1.442695
  %v1416 = vpow.pop %v1415
  %v1417 = vsel %vm432, %v1410, 0.0
  %1418 = vadd.xlane.f32.xlu0 %v1417
  %v1419 = vpop.xlane.xlu0 %1418
  %v1420 = vsel %vm432, %v1412, 0.0
  %1421 = vadd.xlane.f32.xlu0 %v1420
  %v1422 = vpop.xlane.xlu0 %1421
  %v1423 = vsel %vm432, %v1414, 0.0
  %1424 = vadd.xlane.f32.xlu0 %v1423
  %v1425 = vpop.xlane.xlu0 %1424
  %v1426 = vsel %vm432, %v1416, 0.0
  %1427 = vadd.xlane.f32.xlu0 %v1426
  %v1428 = vpop.xlane.xlu0 %1427
  %v1429 = vrcp.pop %v1419
  %v1430 = vrcp.pop %v1422
  %v1431 = vrcp.pop %v1425
  %v1432 = vrcp.pop %v1428
  %v1433 = vmul.f32 %v1410, %v1429
  %v1434 = vmul.f32 %v1412, %v1430
  %v1435 = vmul.f32 %v1414, %v1431
  %v1436 = vmul.f32 %v1416, %v1432
  %1438 = vrot.lane.b32.xlu0 %v414, 120
  %v1439 = vpop.permute.xlu0 %1438
  %v1442 = vsel %vm432, %v1433, 0
  %1444 = vmatprep.subr.mxu0 0.0
  %1445 = vmatpush1.msra.mxu0 %v1439
  %1446 = vmatprep.subr.mxu0 0.0
  %1447 = vmatpush1.msra.mxu0 0.0
  %1448 = vmatprep.subr.mxu0 0.0
  %1449 = vmatpush1.msra.mxu0 0.0
  %1450 = vmatprep.subr.mxu0 0.0
  %1451 = vmatpush1.msra.mxu0 0.0
  %1452 = vmatprep.subr.mxu0 0.0
  %1453 = vmatpush1.msra.mxu0 0.0
  %1454 = vmatprep.subr.mxu0 0.0
  %1455 = vmatpush1.msra.mxu0 0.0
  %1456 = vmatprep.subr.mxu0 0.0
  %1457 = vmatpush1.msra.mxu0 0.0
  %1458 = vmatprep.subr.mxu0 0.0
  %1459 = vmatpush1.msra.mxu0 0.0
  %1460 = vmatprep.subr.mxu0 0.0
  %1461 = vmatpush1.msra.mxu0 0.0
  %1462 = vmatprep.subr.mxu0 0.0
  %1463 = vmatpush1.msra.mxu0 0.0
  %1464 = vmatprep.subr.mxu0 0.0
  %1465 = vmatpush1.msra.mxu0 0.0
  %1466 = vmatprep.subr.mxu0 0.0
  %1467 = vmatpush1.msra.mxu0 0.0
  %1468 = vmatprep.subr.mxu0 0.0
  %1469 = vmatpush1.msra.mxu0 0.0
  %1470 = vmatprep.subr.mxu0 0.0
  %1471 = vmatpush1.msra.mxu0 0.0
  %1472 = vmatprep.subr.mxu0 0.0
  %1473 = vmatpush1.msra.mxu0 0.0
  %1474 = vmatprep.subr.mxu0 0.0
  %1475 = vmatpush1.msra.mxu0 0.0
  %1476 = vmatprep.subr.mxu0 0.0
  %1477 = vmatpush1.msra.mxu0 0.0
  %1478 = vmatprep.subr.mxu0 0.0
  %1479 = vmatpush1.msra.mxu0 0.0
  %1480 = vmatprep.subr.mxu0 0.0
  %1481 = vmatpush1.msra.mxu0 0.0
  %1482 = vmatprep.subr.mxu0 0.0
  %1483 = vmatpush1.msra.mxu0 0.0
  %1484 = vmatprep.subr.mxu0 0.0
  %1485 = vmatpush1.msra.mxu0 0.0
  %1486 = vmatprep.subr.mxu0 0.0
  %1487 = vmatpush1.msra.mxu0 0.0
  %1488 = vmatprep.subr.mxu0 0.0
  %1489 = vmatpush1.msra.mxu0 0.0
  %1490 = vmatprep.subr.mxu0 0.0
  %1491 = vmatpush1.msra.mxu0 0.0
  %1492 = vmatprep.subr.mxu0 0.0
  %1493 = vmatpush1.msra.mxu0 0.0
  %1494 = vmatprep.subr.mxu0 0.0
  %1495 = vmatpush1.msra.mxu0 0.0
  %1496 = vmatprep.subr.mxu0 0.0
  %1497 = vmatpush1.msra.mxu0 0.0
  %1498 = vmatprep.subr.mxu0 0.0
  %1499 = vmatpush1.msra.mxu0 0.0
  %1500 = vmatprep.subr.mxu0 0.0
  %1501 = vmatpush1.msra.mxu0 0.0
  %1502 = vmatprep.subr.mxu0 0.0
  %1503 = vmatpush1.msra.mxu0 0.0
  %1504 = vmatprep.subr.mxu0 0.0
  %1505 = vmatpush1.msra.mxu0 0.0
  %1506 = vmatprep.subr.mxu0 0.0
  %1507 = vmatpush1.msra.mxu0 0.0
  %1508 = vmatprep.mubr.f32.mxu0 0.0
  %1509 = vmatmul.mubr.f32.gmra.mrb[0].mxu0 %v1442
  %v1510 = vpop.f32.mrb[0].mxu0
  %v1511 = vadd.f32 0.0, %v1510
  %v1512 = vpop.f32.mrb[0].mxu0
  %1513 = vdwg.mxu0
  %1515 = vrot.lane.b32.xlu0 %v419, 120
  %v1516 = vpop.permute.xlu0 %1515
  %v1519 = vsel %vm432, %v1434, 0
  %1521 = vmatprep.subr.mxu0 0.0
  %1522 = vmatpush1.msra.mxu0 %v1516
  %1523 = vmatprep.subr.mxu0 0.0
  %1524 = vmatpush1.msra.mxu0 0.0
  %1525 = vmatprep.subr.mxu0 0.0
  %1526 = vmatpush1.msra.mxu0 0.0
  %1527 = vmatprep.subr.mxu0 0.0
  %1528 = vmatpush1.msra.mxu0 0.0
  %1529 = vmatprep.subr.mxu0 0.0
  %1530 = vmatpush1.msra.mxu0 0.0
  %1531 = vmatprep.subr.mxu0 0.0
  %1532 = vmatpush1.msra.mxu0 0.0
  %1533 = vmatprep.subr.mxu0 0.0
  %1534 = vmatpush1.msra.mxu0 0.0
  %1535 = vmatprep.subr.mxu0 0.0
  %1536 = vmatpush1.msra.mxu0 0.0
  %1537 = vmatprep.subr.mxu0 0.0
  %1538 = vmatpush1.msra.mxu0 0.0
  %1539 = vmatprep.subr.mxu0 0.0
  %1540 = vmatpush1.msra.mxu0 0.0
  %1541 = vmatprep.subr.mxu0 0.0
  %1542 = vmatpush1.msra.mxu0 0.0
  %1543 = vmatprep.subr.mxu0 0.0
  %1544 = vmatpush1.msra.mxu0 0.0
  %1545 = vmatprep.subr.mxu0 0.0
  %1546 = vmatpush1.msra.mxu0 0.0
  %1547 = vmatprep.subr.mxu0 0.0
  %1548 = vmatpush1.msra.mxu0 0.0
  %1549 = vmatprep.subr.mxu0 0.0
  %1550 = vmatpush1.msra.mxu0 0.0
  %1551 = vmatprep.subr.mxu0 0.0
  %1552 = vmatpush1.msra.mxu0 0.0
  %1553 = vmatprep.subr.mxu0 0.0
  %1554 = vmatpush1.msra.mxu0 0.0
  %1555 = vmatprep.subr.mxu0 0.0
  %1556 = vmatpush1.msra.mxu0 0.0
  %1557 = vmatprep.subr.mxu0 0.0
  %1558 = vmatpush1.msra.mxu0 0.0
  %1559 = vmatprep.subr.mxu0 0.0
  %1560 = vmatpush1.msra.mxu0 0.0
  %1561 = vmatprep.subr.mxu0 0.0
  %1562 = vmatpush1.msra.mxu0 0.0
  %1563 = vmatprep.subr.mxu0 0.0
  %1564 = vmatpush1.msra.mxu0 0.0
  %1565 = vmatprep.subr.mxu0 0.0
  %1566 = vmatpush1.msra.mxu0 0.0
  %1567 = vmatprep.subr.mxu0 0.0
  %1568 = vmatpush1.msra.mxu0 0.0
  %1569 = vmatprep.subr.mxu0 0.0
  %1570 = vmatpush1.msra.mxu0 0.0
  %1571 = vmatprep.subr.mxu0 0.0
  %1572 = vmatpush1.msra.mxu0 0.0
  %1573 = vmatprep.subr.mxu0 0.0
  %1574 = vmatpush1.msra.mxu0 0.0
  %1575 = vmatprep.subr.mxu0 0.0
  %1576 = vmatpush1.msra.mxu0 0.0
  %1577 = vmatprep.subr.mxu0 0.0
  %1578 = vmatpush1.msra.mxu0 0.0
  %1579 = vmatprep.subr.mxu0 0.0
  %1580 = vmatpush1.msra.mxu0 0.0
  %1581 = vmatprep.subr.mxu0 0.0
  %1582 = vmatpush1.msra.mxu0 0.0
  %1583 = vmatprep.subr.mxu0 0.0
  %1584 = vmatpush1.msra.mxu0 0.0
  %1585 = vmatprep.mubr.f32.mxu0 0.0
  %1586 = vmatmul.mubr.f32.gmra.mrb[0].mxu0 %v1519
  %v1587 = vpop.f32.mrb[0].mxu0
  %v1588 = vadd.f32 0.0, %v1587
  %v1589 = vpop.f32.mrb[0].mxu0
  %1590 = vdwg.mxu0
  %1592 = vrot.lane.b32.xlu0 %v424, 120
  %v1593 = vpop.permute.xlu0 %1592
  %v1596 = vsel %vm432, %v1435, 0
  %1598 = vmatprep.subr.mxu0 0.0
  %1599 = vmatpush1.msra.mxu0 %v1593
  %1600 = vmatprep.subr.mxu0 0.0
  %1601 = vmatpush1.msra.mxu0 0.0
  %1602 = vmatprep.subr.mxu0 0.0
  %1603 = vmatpush1.msra.mxu0 0.0
  %1604 = vmatprep.subr.mxu0 0.0
  %1605 = vmatpush1.msra.mxu0 0.0
  %1606 = vmatprep.subr.mxu0 0.0
  %1607 = vmatpush1.msra.mxu0 0.0
  %1608 = vmatprep.subr.mxu0 0.0
  %1609 = vmatpush1.msra.mxu0 0.0
  %1610 = vmatprep.subr.mxu0 0.0
  %1611 = vmatpush1.msra.mxu0 0.0
  %1612 = vmatprep.subr.mxu0 0.0
  %1613 = vmatpush1.msra.mxu0 0.0
  %1614 = vmatprep.subr.mxu0 0.0
  %1615 = vmatpush1.msra.mxu0 0.0
  %1616 = vmatprep.subr.mxu0 0.0
  %1617 = vmatpush1.msra.mxu0 0.0
  %1618 = vmatprep.subr.mxu0 0.0
  %1619 = vmatpush1.msra.mxu0 0.0
  %1620 = vmatprep.subr.mxu0 0.0
  %1621 = vmatpush1.msra.mxu0 0.0
  %1622 = vmatprep.subr.mxu0 0.0
  %1623 = vmatpush1.msra.mxu0 0.0
  %1624 = vmatprep.subr.mxu0 0.0
  %1625 = vmatpush1.msra.mxu0 0.0
  %1626 = vmatprep.subr.mxu0 0.0
  %1627 = vmatpush1.msra.mxu0 0.0
  %1628 = vmatprep.subr.mxu0 0.0
  %1629 = vmatpush1.msra.mxu0 0.0
  %1630 = vmatprep.subr.mxu0 0.0
  %1631 = vmatpush1.msra.mxu0 0.0
  %1632 = vmatprep.subr.mxu0 0.0
  %1633 = vmatpush1.msra.mxu0 0.0
  %1634 = vmatprep.subr.mxu0 0.0
  %1635 = vmatpush1.msra.mxu0 0.0
  %1636 = vmatprep.subr.mxu0 0.0
  %1637 = vmatpush1.msra.mxu0 0.0
  %1638 = vmatprep.subr.mxu0 0.0
  %1639 = vmatpush1.msra.mxu0 0.0
  %1640 = vmatprep.subr.mxu0 0.0
  %1641 = vmatpush1.msra.mxu0 0.0
  %1642 = vmatprep.subr.mxu0 0.0
  %1643 = vmatpush1.msra.mxu0 0.0
  %1644 = vmatprep.subr.mxu0 0.0
  %1645 = vmatpush1.msra.mxu0 0.0
  %1646 = vmatprep.subr.mxu0 0.0
  %1647 = vmatpush1.msra.mxu0 0.0
  %1648 = vmatprep.subr.mxu0 0.0
  %1649 = vmatpush1.msra.mxu0 0.0
  %1650 = vmatprep.subr.mxu0 0.0
  %1651 = vmatpush1.msra.mxu0 0.0
  %1652 = vmatprep.subr.mxu0 0.0
  %1653 = vmatpush1.msra.mxu0 0.0
  %1654 = vmatprep.subr.mxu0 0.0
  %1655 = vmatpush1.msra.mxu0 0.0
  %1656 = vmatprep.subr.mxu0 0.0
  %1657 = vmatpush1.msra.mxu0 0.0
  %1658 = vmatprep.subr.mxu0 0.0
  %1659 = vmatpush1.msra.mxu0 0.0
  %1660 = vmatprep.subr.mxu0 0.0
  %1661 = vmatpush1.msra.mxu0 0.0
  %1662 = vmatprep.mubr.f32.mxu0 0.0
  %1663 = vmatmul.mubr.f32.gmra.mrb[0].mxu0 %v1596
  %v1664 = vpop.f32.mrb[0].mxu0
  %v1665 = vadd.f32 0.0, %v1664
  %v1666 = vpop.f32.mrb[0].mxu0
  %1667 = vdwg.mxu0
  %1669 = vrot.lane.b32.xlu0 %v429, 120
  %v1670 = vpop.permute.xlu0 %1669
  %v1673 = vsel %vm432, %v1436, 0
  %1675 = vmatprep.subr.mxu0 0.0
  %1676 = vmatpush1.msra.mxu0 %v1670
  %1677 = vmatprep.subr.mxu0 0.0
  %1678 = vmatpush1.msra.mxu0 0.0
  %1679 = vmatprep.subr.mxu0 0.0
  %1680 = vmatpush1.msra.mxu0 0.0
  %1681 = vmatprep.subr.mxu0 0.0
  %1682 = vmatpush1.msra.mxu0 0.0
  %1683 = vmatprep.subr.mxu0 0.0
  %1684 = vmatpush1.msra.mxu0 0.0
  %1685 = vmatprep.subr.mxu0 0.0
  %1686 = vmatpush1.msra.mxu0 0.0
  %1687 = vmatprep.subr.mxu0 0.0
  %1688 = vmatpush1.msra.mxu0 0.0
  %1689 = vmatprep.subr.mxu0 0.0
  %1690 = vmatpush1.msra.mxu0 0.0
  %1691 = vmatprep.subr.mxu0 0.0
  %1692 = vmatpush1.msra.mxu0 0.0
  %1693 = vmatprep.subr.mxu0 0.0
  %1694 = vmatpush1.msra.mxu0 0.0
  %1695 = vmatprep.subr.mxu0 0.0
  %1696 = vmatpush1.msra.mxu0 0.0
  %1697 = vmatprep.subr.mxu0 0.0
  %1698 = vmatpush1.msra.mxu0 0.0
  %1699 = vmatprep.subr.mxu0 0.0
  %1700 = vmatpush1.msra.mxu0 0.0
  %1701 = vmatprep.subr.mxu0 0.0
  %1702 = vmatpush1.msra.mxu0 0.0
  %1703 = vmatprep.subr.mxu0 0.0
  %1704 = vmatpush1.msra.mxu0 0.0
  %1705 = vmatprep.subr.mxu0 0.0
  %1706 = vmatpush1.msra.mxu0 0.0
  %1707 = vmatprep.subr.mxu0 0.0
  %1708 = vmatpush1.msra.mxu0 0.0
  %1709 = vmatprep.subr.mxu0 0.0
  %1710 = vmatpush1.msra.mxu0 0.0
  %1711 = vmatprep.subr.mxu0 0.0
  %1712 = vmatpush1.msra.mxu0 0.0
  %1713 = vmatprep.subr.mxu0 0.0
  %1714 = vmatpush1.msra.mxu0 0.0
  %1715 = vmatprep.subr.mxu0 0.0
  %1716 = vmatpush1.msra.mxu0 0.0
  %1717 = vmatprep.subr.mxu0 0.0
  %1718 = vmatpush1.msra.mxu0 0.0
  %1719 = vmatprep.subr.mxu0 0.0
  %1720 = vmatpush1.msra.mxu0 0.0
  %1721 = vmatprep.subr.mxu0 0.0
  %1722 = vmatpush1.msra.mxu0 0.0
  %1723 = vmatprep.subr.mxu0 0.0
  %1724 = vmatpush1.msra.mxu0 0.0
  %1725 = vmatprep.subr.mxu0 0.0
  %1726 = vmatpush1.msra.mxu0 0.0
  %1727 = vmatprep.subr.mxu0 0.0
  %1728 = vmatpush1.msra.mxu0 0.0
  %1729 = vmatprep.subr.mxu0 0.0
  %1730 = vmatpush1.msra.mxu0 0.0
  %1731 = vmatprep.subr.mxu0 0.0
  %1732 = vmatpush1.msra.mxu0 0.0
  %1733 = vmatprep.subr.mxu0 0.0
  %1734 = vmatpush1.msra.mxu0 0.0
  %1735 = vmatprep.subr.mxu0 0.0
  %1736 = vmatpush1.msra.mxu0 0.0
  %1737 = vmatprep.subr.mxu0 0.0
  %1738 = vmatpush1.msra.mxu0 0.0
  %1739 = vmatprep.mubr.f32.mxu0 0.0
  %1740 = vmatmul.mubr.f32.gmra.mrb[0].mxu0 %v1673
  %v1741 = vpop.f32.mrb[0].mxu0
  %v1742 = vadd.f32 0.0, %v1741
  %v1743 = vpop.f32.mrb[0].mxu0
  %1744 = vdwg.mxu0
  %1745 = vrot.lane.b32.xlu0 %v229, 112
  %v1746 = vpop.permute.xlu0 %1745
  %1747 = vrot.lane.b32.xlu0 %v318, 112
  %v1748 = vpop.permute.xlu0 %1747
  %v1749 = vsel %vm432, %v1746, 0
  %v1751 = vsel %vm432, %v1748, 0
  %1753 = vmatprep.subr.mxu0 0.0
  %1754 = vmatpush1.xpose.msra.mxu0 %v1751
  %1755 = vmatprep.subr.mxu0 0.0
  %1756 = vmatpush1.xpose.msra.mxu0 0.0
  %1757 = vmatprep.subr.mxu0 0.0
  %1758 = vmatpush1.xpose.msra.mxu0 0.0
  %1759 = vmatprep.subr.mxu0 0.0
  %1760 = vmatpush1.xpose.msra.mxu0 0.0
  %1761 = vmatprep.subr.mxu0 0.0
  %1762 = vmatpush1.xpose.msra.mxu0 0.0
  %1763 = vmatprep.subr.mxu0 0.0
  %1764 = vmatpush1.xpose.msra.mxu0 0.0
  %1765 = vmatprep.subr.mxu0 0.0
  %1766 = vmatpush1.xpose.msra.mxu0 0.0
  %1767 = vmatprep.subr.mxu0 0.0
  %1768 = vmatpush1.xpose.msra.mxu0 0.0
  %1769 = vmatprep.subr.mxu0 0.0
  %1770 = vmatpush1.xpose.msra.mxu0 0.0
  %1771 = vmatprep.subr.mxu0 0.0
  %1772 = vmatpush1.xpose.msra.mxu0 0.0
  %1773 = vmatprep.subr.mxu0 0.0
  %1774 = vmatpush1.xpose.msra.mxu0 0.0
  %1775 = vmatprep.subr.mxu0 0.0
  %1776 = vmatpush1.xpose.msra.mxu0 0.0
  %1777 = vmatprep.subr.mxu0 0.0
  %1778 = vmatpush1.xpose.msra.mxu0 0.0
  %1779 = vmatprep.subr.mxu0 0.0
  %1780 = vmatpush1.xpose.msra.mxu0 0.0
  %1781 = vmatprep.subr.mxu0 0.0
  %1782 = vmatpush1.xpose.msra.mxu0 0.0
  %1783 = vmatprep.subr.mxu0 0.0
  %1784 = vmatpush1.xpose.msra.mxu0 0.0
  %1785 = vmatprep.subr.mxu0 0.0
  %1786 = vmatpush1.xpose.msra.mxu0 0.0
  %1787 = vmatprep.subr.mxu0 0.0
  %1788 = vmatpush1.xpose.msra.mxu0 0.0
  %1789 = vmatprep.subr.mxu0 0.0
  %1790 = vmatpush1.xpose.msra.mxu0 0.0
  %1791 = vmatprep.subr.mxu0 0.0
  %1792 = vmatpush1.xpose.msra.mxu0 0.0
  %1793 = vmatprep.subr.mxu0 0.0
  %1794 = vmatpush1.xpose.msra.mxu0 0.0
  %1795 = vmatprep.subr.mxu0 0.0
  %1796 = vmatpush1.xpose.msra.mxu0 0.0
  %1797 = vmatprep.subr.mxu0 0.0
  %1798 = vmatpush1.xpose.msra.mxu0 0.0
  %1799 = vmatprep.subr.mxu0 0.0
  %1800 = vmatpush1.xpose.msra.mxu0 0.0
  %1801 = vmatprep.subr.mxu0 0.0
  %1802 = vmatpush1.xpose.msra.mxu0 0.0
  %1803 = vmatprep.subr.mxu0 0.0
  %1804 = vmatpush1.xpose.msra.mxu0 0.0
  %1805 = vmatprep.subr.mxu0 0.0
  %1806 = vmatpush1.xpose.msra.mxu0 0.0
  %1807 = vmatprep.subr.mxu0 0.0
  %1808 = vmatpush1.xpose.msra.mxu0 0.0
  %1809 = vmatprep.subr.mxu0 0.0
  %1810 = vmatpush1.xpose.msra.mxu0 0.0
  %1811 = vmatprep.subr.mxu0 0.0
  %1812 = vmatpush1.xpose.msra.mxu0 0.0
  %1813 = vmatprep.subr.mxu0 0.0
  %1814 = vmatpush1.xpose.msra.mxu0 0.0
  %1815 = vmatprep.subr.mxu0 0.0
  %1816 = vmatpush1.xpose.msra.mxu0 0.0
  %1817 = vmatprep.mubr.f32.mxu0 0.0
  %1818 = vmatmul.mubr.f32.gmra.mrb[0].mxu0 %v1749
  %v1819 = vpop.f32.mrb[0].mxu0
  %v1820 = vadd.f32 0.0, %v1819
  %v1821 = vpop.f32.mrb[0].mxu0
  %1822 = vdwg.mxu0
  %1823 = vrot.lane.b32.xlu0 %v234, 112
  %v1824 = vpop.permute.xlu0 %1823
  %1825 = vrot.lane.b32.xlu0 %v323, 112
  %v1826 = vpop.permute.xlu0 %1825
  %v1827 = vsel %vm432, %v1824, 0
  %v1829 = vsel %vm432, %v1826, 0
  %1831 = vmatprep.subr.mxu0 0.0
  %1832 = vmatpush1.xpose.msra.mxu0 %v1829
  %1833 = vmatprep.subr.mxu0 0.0
  %1834 = vmatpush1.xpose.msra.mxu0 0.0
  %1835 = vmatprep.subr.mxu0 0.0
  %1836 = vmatpush1.xpose.msra.mxu0 0.0
  %1837 = vmatprep.subr.mxu0 0.0
  %1838 = vmatpush1.xpose.msra.mxu0 0.0
  %1839 = vmatprep.subr.mxu0 0.0
  %1840 = vmatpush1.xpose.msra.mxu0 0.0
  %1841 = vmatprep.subr.mxu0 0.0
  %1842 = vmatpush1.xpose.msra.mxu0 0.0
  %1843 = vmatprep.subr.mxu0 0.0
  %1844 = vmatpush1.xpose.msra.mxu0 0.0
  %1845 = vmatprep.subr.mxu0 0.0
  %1846 = vmatpush1.xpose.msra.mxu0 0.0
  %1847 = vmatprep.subr.mxu0 0.0
  %1848 = vmatpush1.xpose.msra.mxu0 0.0
  %1849 = vmatprep.subr.mxu0 0.0
  %1850 = vmatpush1.xpose.msra.mxu0 0.0
  %1851 = vmatprep.subr.mxu0 0.0
  %1852 = vmatpush1.xpose.msra.mxu0 0.0
  %1853 = vmatprep.subr.mxu0 0.0
  %1854 = vmatpush1.xpose.msra.mxu0 0.0
  %1855 = vmatprep.subr.mxu0 0.0
  %1856 = vmatpush1.xpose.msra.mxu0 0.0
  %1857 = vmatprep.subr.mxu0 0.0
  %1858 = vmatpush1.xpose.msra.mxu0 0.0
  %1859 = vmatprep.subr.mxu0 0.0
  %1860 = vmatpush1.xpose.msra.mxu0 0.0
  %1861 = vmatprep.subr.mxu0 0.0
  %1862 = vmatpush1.xpose.msra.mxu0 0.0
  %1863 = vmatprep.subr.mxu0 0.0
  %1864 = vmatpush1.xpose.msra.mxu0 0.0
  %1865 = vmatprep.subr.mxu0 0.0
  %1866 = vmatpush1.xpose.msra.mxu0 0.0
  %1867 = vmatprep.subr.mxu0 0.0
  %1868 = vmatpush1.xpose.msra.mxu0 0.0
  %1869 = vmatprep.subr.mxu0 0.0
  %1870 = vmatpush1.xpose.msra.mxu0 0.0
  %1871 = vmatprep.subr.mxu0 0.0
  %1872 = vmatpush1.xpose.msra.mxu0 0.0
  %1873 = vmatprep.subr.mxu0 0.0
  %1874 = vmatpush1.xpose.msra.mxu0 0.0
  %1875 = vmatprep.subr.mxu0 0.0
  %1876 = vmatpush1.xpose.msra.mxu0 0.0
  %1877 = vmatprep.subr.mxu0 0.0
  %1878 = vmatpush1.xpose.msra.mxu0 0.0
  %1879 = vmatprep.subr.mxu0 0.0
  %1880 = vmatpush1.xpose.msra.mxu0 0.0
  %1881 = vmatprep.subr.mxu0 0.0
  %1882 = vmatpush1.xpose.msra.mxu0 0.0
  %1883 = vmatprep.subr.mxu0 0.0
  %1884 = vmatpush1.xpose.msra.mxu0 0.0
  %1885 = vmatprep.subr.mxu0 0.0
  %1886 = vmatpush1.xpose.msra.mxu0 0.0
  %1887 = vmatprep.subr.mxu0 0.0
  %1888 = vmatpush1.xpose.msra.mxu0 0.0
  %1889 = vmatprep.subr.mxu0 0.0
  %1890 = vmatpush1.xpose.msra.mxu0 0.0
  %1891 = vmatprep.subr.mxu0 0.0
  %1892 = vmatpush1.xpose.msra.mxu0 0.0
  %1893 = vmatprep.subr.mxu0 0.0
  %1894 = vmatpush1.xpose.msra.mxu0 0.0
  %1895 = vmatprep.mubr.f32.mxu0 0.0
  %1896 = vmatmul.mubr.f32.gmra.mrb[0].mxu0 %v1827
  %v1897 = vpop.f32.mrb[0].mxu0
  %v1898 = vadd.f32 0.0, %v1897
  %v1899 = vpop.f32.mrb[0].mxu0
  %1900 = vdwg.mxu0
  %1901 = vrot.lane.b32.xlu0 %v239, 112
  %v1902 = vpop.permute.xlu0 %1901
  %1903 = vrot.lane.b32.xlu0 %v328, 112
  %v1904 = vpop.permute.xlu0 %1903
  %v1905 = vsel %vm432, %v1902, 0
  %v1907 = vsel %vm432, %v1904, 0
  %1909 = vmatprep.subr.mxu0 0.0
  %1910 = vmatpush1.xpose.msra.mxu0 %v1907
  %1911 = vmatprep.subr.mxu0 0.0
  %1912 = vmatpush1.xpose.msra.mxu0 0.0
  %1913 = vmatprep.subr.mxu0 0.0
  %1914 = vmatpush1.xpose.msra.mxu0 0.0
  %1915 = vmatprep.subr.mxu0 0.0
  %1916 = vmatpush1.xpose.msra.mxu0 0.0
  %1917 = vmatprep.subr.mxu0 0.0
  %1918 = vmatpush1.xpose.msra.mxu0 0.0
  %1919 = vmatprep.subr.mxu0 0.0
  %1920 = vmatpush1.xpose.msra.mxu0 0.0
  %1921 = vmatprep.subr.mxu0 0.0
  %1922 = vmatpush1.xpose.msra.mxu0 0.0
  %1923 = vmatprep.subr.mxu0 0.0
  %1924 = vmatpush1.xpose.msra.mxu0 0.0
  %1925 = vmatprep.subr.mxu0 0.0
  %1926 = vmatpush1.xpose.msra.mxu0 0.0
  %1927 = vmatprep.subr.mxu0 0.0
  %1928 = vmatpush1.xpose.msra.mxu0 0.0
  %1929 = vmatprep.subr.mxu0 0.0
  %1930 = vmatpush1.xpose.msra.mxu0 0.0
  %1931 = vmatprep.subr.mxu0 0.0
  %1932 = vmatpush1.xpose.msra.mxu0 0.0
  %1933 = vmatprep.subr.mxu0 0.0
  %1934 = vmatpush1.xpose.msra.mxu0 0.0
  %1935 = vmatprep.subr.mxu0 0.0
  %1936 = vmatpush1.xpose.msra.mxu0 0.0
  %1937 = vmatprep.subr.mxu0 0.0
  %1938 = vmatpush1.xpose.msra.mxu0 0.0
  %1939 = vmatprep.subr.mxu0 0.0
  %1940 = vmatpush1.xpose.msra.mxu0 0.0
  %1941 = vmatprep.subr.mxu0 0.0
  %1942 = vmatpush1.xpose.msra.mxu0 0.0
  %1943 = vmatprep.subr.mxu0 0.0
  %1944 = vmatpush1.xpose.msra.mxu0 0.0
  %1945 = vmatprep.subr.mxu0 0.0
  %1946 = vmatpush1.xpose.msra.mxu0 0.0
  %1947 = vmatprep.subr.mxu0 0.0
  %1948 = vmatpush1.xpose.msra.mxu0 0.0
  %1949 = vmatprep.subr.mxu0 0.0
  %1950 = vmatpush1.xpose.msra.mxu0 0.0
  %1951 = vmatprep.subr.mxu0 0.0
  %1952 = vmatpush1.xpose.msra.mxu0 0.0
  %1953 = vmatprep.subr.mxu0 0.0
  %1954 = vmatpush1.xpose.msra.mxu0 0.0
  %1955 = vmatprep.subr.mxu0 0.0
  %1956 = vmatpush1.xpose.msra.mxu0 0.0
  %1957 = vmatprep.subr.mxu0 0.0
  %1958 = vmatpush1.xpose.msra.mxu0 0.0
  %1959 = vmatprep.subr.mxu0 0.0
  %1960 = vmatpush1.xpose.msra.mxu0 0.0
  %1961 = vmatprep.subr.mxu0 0.0
  %1962 = vmatpush1.xpose.msra.mxu0 0.0
  %1963 = vmatprep.subr.mxu0 0.0
  %1964 = vmatpush1.xpose.msra.mxu0 0.0
  %1965 = vmatprep.subr.mxu0 0.0
  %1966 = vmatpush1.xpose.msra.mxu0 0.0
  %1967 = vmatprep.subr.mxu0 0.0
  %1968 = vmatpush1.xpose.msra.mxu0 0.0
  %1969 = vmatprep.subr.mxu0 0.0
  %1970 = vmatpush1.xpose.msra.mxu0 0.0
  %1971 = vmatprep.subr.mxu0 0.0
  %1972 = vmatpush1.xpose.msra.mxu0 0.0
  %1973 = vmatprep.mubr.f32.mxu0 0.0
  %1974 = vmatmul.mubr.f32.gmra.mrb[0].mxu0 %v1905
  %v1975 = vpop.f32.mrb[0].mxu0
  %v1976 = vadd.f32 0.0, %v1975
  %v1977 = vpop.f32.mrb[0].mxu0
  %1978 = vdwg.mxu0
  %1979 = vrot.lane.b32.xlu0 %v244, 112
  %v1980 = vpop.permute.xlu0 %1979
  %1981 = vrot.lane.b32.xlu0 %v333, 112
  %v1982 = vpop.permute.xlu0 %1981
  %v1983 = vsel %vm432, %v1980, 0
  %v1985 = vsel %vm432, %v1982, 0
  %1987 = vmatprep.subr.mxu0 0.0
  %1988 = vmatpush1.xpose.msra.mxu0 %v1985
  %1989 = vmatprep.subr.mxu0 0.0
  %1990 = vmatpush1.xpose.msra.mxu0 0.0
  %1991 = vmatprep.subr.mxu0 0.0
  %1992 = vmatpush1.xpose.msra.mxu0 0.0
  %1993 = vmatprep.subr.mxu0 0.0
  %1994 = vmatpush1.xpose.msra.mxu0 0.0
  %1995 = vmatprep.subr.mxu0 0.0
  %1996 = vmatpush1.xpose.msra.mxu0 0.0
  %1997 = vmatprep.subr.mxu0 0.0
  %1998 = vmatpush1.xpose.msra.mxu0 0.0
  %1999 = vmatprep.subr.mxu0 0.0
  %2000 = vmatpush1.xpose.msra.mxu0 0.0
  %2001 = vmatprep.subr.mxu0 0.0
  %2002 = vmatpush1.xpose.msra.mxu0 0.0
  %2003 = vmatprep.subr.mxu0 0.0
  %2004 = vmatpush1.xpose.msra.mxu0 0.0
  %2005 = vmatprep.subr.mxu0 0.0
  %2006 = vmatpush1.xpose.msra.mxu0 0.0
  %2007 = vmatprep.subr.mxu0 0.0
  %2008 = vmatpush1.xpose.msra.mxu0 0.0
  %2009 = vmatprep.subr.mxu0 0.0
  %2010 = vmatpush1.xpose.msra.mxu0 0.0
  %2011 = vmatprep.subr.mxu0 0.0
  %2012 = vmatpush1.xpose.msra.mxu0 0.0
  %2013 = vmatprep.subr.mxu0 0.0
  %2014 = vmatpush1.xpose.msra.mxu0 0.0
  %2015 = vmatprep.subr.mxu0 0.0
  %2016 = vmatpush1.xpose.msra.mxu0 0.0
  %2017 = vmatprep.subr.mxu0 0.0
  %2018 = vmatpush1.xpose.msra.mxu0 0.0
  %2019 = vmatprep.subr.mxu0 0.0
  %2020 = vmatpush1.xpose.msra.mxu0 0.0
  %2021 = vmatprep.subr.mxu0 0.0
  %2022 = vmatpush1.xpose.msra.mxu0 0.0
  %2023 = vmatprep.subr.mxu0 0.0
  %2024 = vmatpush1.xpose.msra.mxu0 0.0
  %2025 = vmatprep.subr.mxu0 0.0
  %2026 = vmatpush1.xpose.msra.mxu0 0.0
  %2027 = vmatprep.subr.mxu0 0.0
  %2028 = vmatpush1.xpose.msra.mxu0 0.0
  %2029 = vmatprep.subr.mxu0 0.0
  %2030 = vmatpush1.xpose.msra.mxu0 0.0
  %2031 = vmatprep.subr.mxu0 0.0
  %2032 = vmatpush1.xpose.msra.mxu0 0.0
  %2033 = vmatprep.subr.mxu0 0.0
  %2034 = vmatpush1.xpose.msra.mxu0 0.0
  %2035 = vmatprep.subr.mxu0 0.0
  %2036 = vmatpush1.xpose.msra.mxu0 0.0
  %2037 = vmatprep.subr.mxu0 0.0
  %2038 = vmatpush1.xpose.msra.mxu0 0.0
  %2039 = vmatprep.subr.mxu0 0.0
  %2040 = vmatpush1.xpose.msra.mxu0 0.0
  %2041 = vmatprep.subr.mxu0 0.0
  %2042 = vmatpush1.xpose.msra.mxu0 0.0
  %2043 = vmatprep.subr.mxu0 0.0
  %2044 = vmatpush1.xpose.msra.mxu0 0.0
  %2045 = vmatprep.subr.mxu0 0.0
  %2046 = vmatpush1.xpose.msra.mxu0 0.0
  %2047 = vmatprep.subr.mxu0 0.0
  %2048 = vmatpush1.xpose.msra.mxu0 0.0
  %2049 = vmatprep.subr.mxu0 0.0
  %2050 = vmatpush1.xpose.msra.mxu0 0.0
  %2051 = vmatprep.mubr.f32.mxu0 0.0
  %2052 = vmatmul.mubr.f32.gmra.mrb[0].mxu0 %v1983
  %v2053 = vpop.f32.mrb[0].mxu0
  %v2054 = vadd.f32 0.0, %v2053
  %v2055 = vpop.f32.mrb[0].mxu0
  %2056 = vdwg.mxu0
  %v2057 = vmul.f32 %v1820, 0.35355338
  %v2058 = vmul.f32 %v1898, 0.35355338
  %v2059 = vmul.f32 %v1976, 0.35355338
  %v2060 = vmul.f32 %v2054, 0.35355338
  %v2061 = vsel %vm432, %v2057, -inf
  %2062 = vmax.xlane.f32.xlu0 %v2061
  %v2063 = vpop.xlane.xlu0 %2062
  %v2064 = vsel %vm432, %v2058, -inf
  %2065 = vmax.xlane.f32.xlu0 %v2064
  %v2066 = vpop.xlane.xlu0 %2065
  %v2067 = vsel %vm432, %v2059, -inf
  %2068 = vmax.xlane.f32.xlu0 %v2067
  %v2069 = vpop.xlane.xlu0 %2068
  %v2070 = vsel %vm432, %v2060, -inf
  %2071 = vmax.xlane.f32.xlu0 %v2070
  %v2072 = vpop.xlane.xlu0 %2071
  %v2073 = vsub.f32 %v2057, %v2063
  %v2074 = vsub.f32 %v2058, %v2066
  %v2075 = vsub.f32 %v2059, %v2069
  %v2076 = vsub.f32 %v2060, %v2072
  %v2077 = vmul.f32 %v2073, 1.442695
  %v2078 = vpow.pop %v2077
  %v2079 = vmul.f32 %v2074, 1.442695
  %v2080 = vpow.pop %v2079
  %v2081 = vmul.f32 %v2075, 1.442695
  %v2082 = vpow.pop %v2081
  %v2083 = vmul.f32 %v2076, 1.442695
  %v2084 = vpow.pop %v2083
  %v2085 = vsel %vm432, %v2078, 0.0
  %2086 = vadd.xlane.f32.xlu0 %v2085
  %v2087 = vpop.xlane.xlu0 %2086
  %v2088 = vsel %vm432, %v2080, 0.0
  %2089 = vadd.xlane.f32.xlu0 %v2088
  %v2090 = vpop.xlane.xlu0 %2089
  %v2091 = vsel %vm432, %v2082, 0.0
  %2092 = vadd.xlane.f32.xlu0 %v2091
  %v2093 = vpop.xlane.xlu0 %2092
  %v2094 = vsel %vm432, %v2084, 0.0
  %2095 = vadd.xlane.f32.xlu0 %v2094
  %v2096 = vpop.xlane.xlu0 %2095
  %v2097 = vrcp.pop %v2087
  %v2098 = vrcp.pop %v2090
  %v2099 = vrcp.pop %v2093
  %v2100 = vrcp.pop %v2096
  %v2101 = vmul.f32 %v2078, %v2097
  %v2102 = vmul.f32 %v2080, %v2098
  %v2103 = vmul.f32 %v2082, %v2099
  %v2104 = vmul.f32 %v2084, %v2100
  %2105 = vrot.lane.b32.xlu0 %v414, 112
  %v2106 = vpop.permute.xlu0 %2105
  %v2109 = vsel %vm432, %v2101, 0
  %2111 = vmatprep.subr.mxu0 0.0
  %2112 = vmatpush1.msra.mxu0 %v2106
  %2113 = vmatprep.subr.mxu0 0.0
  %2114 = vmatpush1.msra.mxu0 0.0
  %2115 = vmatprep.subr.mxu0 0.0
  %2116 = vmatpush1.msra.mxu0 0.0
  %2117 = vmatprep.subr.mxu0 0.0
  %2118 = vmatpush1.msra.mxu0 0.0
  %2119 = vmatprep.subr.mxu0 0.0
  %2120 = vmatpush1.msra.mxu0 0.0
  %2121 = vmatprep.subr.mxu0 0.0
  %2122 = vmatpush1.msra.mxu0 0.0
  %2123 = vmatprep.subr.mxu0 0.0
  %2124 = vmatpush1.msra.mxu0 0.0
  %2125 = vmatprep.subr.mxu0 0.0
  %2126 = vmatpush1.msra.mxu0 0.0
  %2127 = vmatprep.subr.mxu0 0.0
  %2128 = vmatpush1.msra.mxu0 0.0
  %2129 = vmatprep.subr.mxu0 0.0
  %2130 = vmatpush1.msra.mxu0 0.0
  %2131 = vmatprep.subr.mxu0 0.0
  %2132 = vmatpush1.msra.mxu0 0.0
  %2133 = vmatprep.subr.mxu0 0.0
  %2134 = vmatpush1.msra.mxu0 0.0
  %2135 = vmatprep.subr.mxu0 0.0
  %2136 = vmatpush1.msra.mxu0 0.0
  %2137 = vmatprep.subr.mxu0 0.0
  %2138 = vmatpush1.msra.mxu0 0.0
  %2139 = vmatprep.subr.mxu0 0.0
  %2140 = vmatpush1.msra.mxu0 0.0
  %2141 = vmatprep.subr.mxu0 0.0
  %2142 = vmatpush1.msra.mxu0 0.0
  %2143 = vmatprep.subr.mxu0 0.0
  %2144 = vmatpush1.msra.mxu0 0.0
  %2145 = vmatprep.subr.mxu0 0.0
  %2146 = vmatpush1.msra.mxu0 0.0
  %2147 = vmatprep.subr.mxu0 0.0
  %2148 = vmatpush1.msra.mxu0 0.0
  %2149 = vmatprep.subr.mxu0 0.0
  %2150 = vmatpush1.msra.mxu0 0.0
  %2151 = vmatprep.subr.mxu0 0.0
  %2152 = vmatpush1.msra.mxu0 0.0
  %2153 = vmatprep.subr.mxu0 0.0
  %2154 = vmatpush1.msra.mxu0 0.0
  %2155 = vmatprep.subr.mxu0 0.0
  %2156 = vmatpush1.msra.mxu0 0.0
  %2157 = vmatprep.subr.mxu0 0.0
  %2158 = vmatpush1.msra.mxu0 0.0
  %2159 = vmatprep.subr.mxu0 0.0
  %2160 = vmatpush1.msra.mxu0 0.0
  %2161 = vmatprep.subr.mxu0 0.0
  %2162 = vmatpush1.msra.mxu0 0.0
  %2163 = vmatprep.subr.mxu0 0.0
  %2164 = vmatpush1.msra.mxu0 0.0
  %2165 = vmatprep.subr.mxu0 0.0
  %2166 = vmatpush1.msra.mxu0 0.0
  %2167 = vmatprep.subr.mxu0 0.0
  %2168 = vmatpush1.msra.mxu0 0.0
  %2169 = vmatprep.subr.mxu0 0.0
  %2170 = vmatpush1.msra.mxu0 0.0
  %2171 = vmatprep.subr.mxu0 0.0
  %2172 = vmatpush1.msra.mxu0 0.0
  %2173 = vmatprep.subr.mxu0 0.0
  %2174 = vmatpush1.msra.mxu0 0.0
  %2175 = vmatprep.mubr.f32.mxu0 0.0
  %2176 = vmatmul.mubr.f32.gmra.mrb[0].mxu0 %v2109
  %v2177 = vpop.f32.mrb[0].mxu0
  %v2178 = vadd.f32 0.0, %v2177
  %v2179 = vpop.f32.mrb[0].mxu0
  %2180 = vdwg.mxu0
  %2181 = vrot.lane.b32.xlu0 %v419, 112
  %v2182 = vpop.permute.xlu0 %2181
  %v2185 = vsel %vm432, %v2102, 0
  %2187 = vmatprep.subr.mxu0 0.0
  %2188 = vmatpush1.msra.mxu0 %v2182
  %2189 = vmatprep.subr.mxu0 0.0
  %2190 = vmatpush1.msra.mxu0 0.0
  %2191 = vmatprep.subr.mxu0 0.0
  %2192 = vmatpush1.msra.mxu0 0.0
  %2193 = vmatprep.subr.mxu0 0.0
  %2194 = vmatpush1.msra.mxu0 0.0
  %2195 = vmatprep.subr.mxu0 0.0
  %2196 = vmatpush1.msra.mxu0 0.0
  %2197 = vmatprep.subr.mxu0 0.0
  %2198 = vmatpush1.msra.mxu0 0.0
  %2199 = vmatprep.subr.mxu0 0.0
  %2200 = vmatpush1.msra.mxu0 0.0
  %2201 = vmatprep.subr.mxu0 0.0
  %2202 = vmatpush1.msra.mxu0 0.0
  %2203 = vmatprep.subr.mxu0 0.0
  %2204 = vmatpush1.msra.mxu0 0.0
  %2205 = vmatprep.subr.mxu0 0.0
  %2206 = vmatpush1.msra.mxu0 0.0
  %2207 = vmatprep.subr.mxu0 0.0
  %2208 = vmatpush1.msra.mxu0 0.0
  %2209 = vmatprep.subr.mxu0 0.0
  %2210 = vmatpush1.msra.mxu0 0.0
  %2211 = vmatprep.subr.mxu0 0.0
  %2212 = vmatpush1.msra.mxu0 0.0
  %2213 = vmatprep.subr.mxu0 0.0
  %2214 = vmatpush1.msra.mxu0 0.0
  %2215 = vmatprep.subr.mxu0 0.0
  %2216 = vmatpush1.msra.mxu0 0.0
  %2217 = vmatprep.subr.mxu0 0.0
  %2218 = vmatpush1.msra.mxu0 0.0
  %2219 = vmatprep.subr.mxu0 0.0
  %2220 = vmatpush1.msra.mxu0 0.0
  %2221 = vmatprep.subr.mxu0 0.0
  %2222 = vmatpush1.msra.mxu0 0.0
  %2223 = vmatprep.subr.mxu0 0.0
  %2224 = vmatpush1.msra.mxu0 0.0
  %2225 = vmatprep.subr.mxu0 0.0
  %2226 = vmatpush1.msra.mxu0 0.0
  %2227 = vmatprep.subr.mxu0 0.0
  %2228 = vmatpush1.msra.mxu0 0.0
  %2229 = vmatprep.subr.mxu0 0.0
  %2230 = vmatpush1.msra.mxu0 0.0
  %2231 = vmatprep.subr.mxu0 0.0
  %2232 = vmatpush1.msra.mxu0 0.0
  %2233 = vmatprep.subr.mxu0 0.0
  %2234 = vmatpush1.msra.mxu0 0.0
  %2235 = vmatprep.subr.mxu0 0.0
  %2236 = vmatpush1.msra.mxu0 0.0
  %2237 = vmatprep.subr.mxu0 0.0
  %2238 = vmatpush1.msra.mxu0 0.0
  %2239 = vmatprep.subr.mxu0 0.0
  %2240 = vmatpush1.msra.mxu0 0.0
  %2241 = vmatprep.subr.mxu0 0.0
  %2242 = vmatpush1.msra.mxu0 0.0
  %2243 = vmatprep.subr.mxu0 0.0
  %2244 = vmatpush1.msra.mxu0 0.0
  %2245 = vmatprep.subr.mxu0 0.0
  %2246 = vmatpush1.msra.mxu0 0.0
  %2247 = vmatprep.subr.mxu0 0.0
  %2248 = vmatpush1.msra.mxu0 0.0
  %2249 = vmatprep.subr.mxu0 0.0
  %2250 = vmatpush1.msra.mxu0 0.0
  %2251 = vmatprep.mubr.f32.mxu0 0.0
  %2252 = vmatmul.mubr.f32.gmra.mrb[0].mxu0 %v2185
  %v2253 = vpop.f32.mrb[0].mxu0
  %v2254 = vadd.f32 0.0, %v2253
  %v2255 = vpop.f32.mrb[0].mxu0
  %2256 = vdwg.mxu0
  %2257 = vrot.lane.b32.xlu0 %v424, 112
  %v2258 = vpop.permute.xlu0 %2257
  %v2261 = vsel %vm432, %v2103, 0
  %2263 = vmatprep.subr.mxu0 0.0
  %2264 = vmatpush1.msra.mxu0 %v2258
  %2265 = vmatprep.subr.mxu0 0.0
  %2266 = vmatpush1.msra.mxu0 0.0
  %2267 = vmatprep.subr.mxu0 0.0
  %2268 = vmatpush1.msra.mxu0 0.0
  %2269 = vmatprep.subr.mxu0 0.0
  %2270 = vmatpush1.msra.mxu0 0.0
  %2271 = vmatprep.subr.mxu0 0.0
  %2272 = vmatpush1.msra.mxu0 0.0
  %2273 = vmatprep.subr.mxu0 0.0
  %2274 = vmatpush1.msra.mxu0 0.0
  %2275 = vmatprep.subr.mxu0 0.0
  %2276 = vmatpush1.msra.mxu0 0.0
  %2277 = vmatprep.subr.mxu0 0.0
  %2278 = vmatpush1.msra.mxu0 0.0
  %2279 = vmatprep.subr.mxu0 0.0
  %2280 = vmatpush1.msra.mxu0 0.0
  %2281 = vmatprep.subr.mxu0 0.0
  %2282 = vmatpush1.msra.mxu0 0.0
  %2283 = vmatprep.subr.mxu0 0.0
  %2284 = vmatpush1.msra.mxu0 0.0
  %2285 = vmatprep.subr.mxu0 0.0
  %2286 = vmatpush1.msra.mxu0 0.0
  %2287 = vmatprep.subr.mxu0 0.0
  %2288 = vmatpush1.msra.mxu0 0.0
  %2289 = vmatprep.subr.mxu0 0.0
  %2290 = vmatpush1.msra.mxu0 0.0
  %2291 = vmatprep.subr.mxu0 0.0
  %2292 = vmatpush1.msra.mxu0 0.0
  %2293 = vmatprep.subr.mxu0 0.0
  %2294 = vmatpush1.msra.mxu0 0.0
  %2295 = vmatprep.subr.mxu0 0.0
  %2296 = vmatpush1.msra.mxu0 0.0
  %2297 = vmatprep.subr.mxu0 0.0
  %2298 = vmatpush1.msra.mxu0 0.0
  %2299 = vmatprep.subr.mxu0 0.0
  %2300 = vmatpush1.msra.mxu0 0.0
  %2301 = vmatprep.subr.mxu0 0.0
  %2302 = vmatpush1.msra.mxu0 0.0
  %2303 = vmatprep.subr.mxu0 0.0
  %2304 = vmatpush1.msra.mxu0 0.0
  %2305 = vmatprep.subr.mxu0 0.0
  %2306 = vmatpush1.msra.mxu0 0.0
  %2307 = vmatprep.subr.mxu0 0.0
  %2308 = vmatpush1.msra.mxu0 0.0
  %2309 = vmatprep.subr.mxu0 0.0
  %2310 = vmatpush1.msra.mxu0 0.0
  %2311 = vmatprep.subr.mxu0 0.0
  %2312 = vmatpush1.msra.mxu0 0.0
  %2313 = vmatprep.subr.mxu0 0.0
  %2314 = vmatpush1.msra.mxu0 0.0
  %2315 = vmatprep.subr.mxu0 0.0
  %2316 = vmatpush1.msra.mxu0 0.0
  %2317 = vmatprep.subr.mxu0 0.0
  %2318 = vmatpush1.msra.mxu0 0.0
  %2319 = vmatprep.subr.mxu0 0.0
  %2320 = vmatpush1.msra.mxu0 0.0
  %2321 = vmatprep.subr.mxu0 0.0
  %2322 = vmatpush1.msra.mxu0 0.0
  %2323 = vmatprep.subr.mxu0 0.0
  %2324 = vmatpush1.msra.mxu0 0.0
  %2325 = vmatprep.subr.mxu0 0.0
  %2326 = vmatpush1.msra.mxu0 0.0
  %2327 = vmatprep.mubr.f32.mxu0 0.0
  %2328 = vmatmul.mubr.f32.gmra.mrb[0].mxu0 %v2261
  %v2329 = vpop.f32.mrb[0].mxu0
  %v2330 = vadd.f32 0.0, %v2329
  %v2331 = vpop.f32.mrb[0].mxu0
  %2332 = vdwg.mxu0
  %2333 = vrot.lane.b32.xlu0 %v429, 112
  %v2334 = vpop.permute.xlu0 %2333
  %v2337 = vsel %vm432, %v2104, 0
  %2339 = vmatprep.subr.mxu0 0.0
  %2340 = vmatpush1.msra.mxu0 %v2334
  %2341 = vmatprep.subr.mxu0 0.0
  %2342 = vmatpush1.msra.mxu0 0.0
  %2343 = vmatprep.subr.mxu0 0.0
  %2344 = vmatpush1.msra.mxu0 0.0
  %2345 = vmatprep.subr.mxu0 0.0
  %2346 = vmatpush1.msra.mxu0 0.0
  %2347 = vmatprep.subr.mxu0 0.0
  %2348 = vmatpush1.msra.mxu0 0.0
  %2349 = vmatprep.subr.mxu0 0.0
  %2350 = vmatpush1.msra.mxu0 0.0
  %2351 = vmatprep.subr.mxu0 0.0
  %2352 = vmatpush1.msra.mxu0 0.0
  %2353 = vmatprep.subr.mxu0 0.0
  %2354 = vmatpush1.msra.mxu0 0.0
  %2355 = vmatprep.subr.mxu0 0.0
  %2356 = vmatpush1.msra.mxu0 0.0
  %2357 = vmatprep.subr.mxu0 0.0
  %2358 = vmatpush1.msra.mxu0 0.0
  %2359 = vmatprep.subr.mxu0 0.0
  %2360 = vmatpush1.msra.mxu0 0.0
  %2361 = vmatprep.subr.mxu0 0.0
  %2362 = vmatpush1.msra.mxu0 0.0
  %2363 = vmatprep.subr.mxu0 0.0
  %2364 = vmatpush1.msra.mxu0 0.0
  %2365 = vmatprep.subr.mxu0 0.0
  %2366 = vmatpush1.msra.mxu0 0.0
  %2367 = vmatprep.subr.mxu0 0.0
  %2368 = vmatpush1.msra.mxu0 0.0
  %2369 = vmatprep.subr.mxu0 0.0
  %2370 = vmatpush1.msra.mxu0 0.0
  %2371 = vmatprep.subr.mxu0 0.0
  %2372 = vmatpush1.msra.mxu0 0.0
  %2373 = vmatprep.subr.mxu0 0.0
  %2374 = vmatpush1.msra.mxu0 0.0
  %2375 = vmatprep.subr.mxu0 0.0
  %2376 = vmatpush1.msra.mxu0 0.0
  %2377 = vmatprep.subr.mxu0 0.0
  %2378 = vmatpush1.msra.mxu0 0.0
  %2379 = vmatprep.subr.mxu0 0.0
  %2380 = vmatpush1.msra.mxu0 0.0
  %2381 = vmatprep.subr.mxu0 0.0
  %2382 = vmatpush1.msra.mxu0 0.0
  %2383 = vmatprep.subr.mxu0 0.0
  %2384 = vmatpush1.msra.mxu0 0.0
  %2385 = vmatprep.subr.mxu0 0.0
  %2386 = vmatpush1.msra.mxu0 0.0
  %2387 = vmatprep.subr.mxu0 0.0
  %2388 = vmatpush1.msra.mxu0 0.0
  %2389 = vmatprep.subr.mxu0 0.0
  %2390 = vmatpush1.msra.mxu0 0.0
  %2391 = vmatprep.subr.mxu0 0.0
  %2392 = vmatpush1.msra.mxu0 0.0
  %2393 = vmatprep.subr.mxu0 0.0
  %2394 = vmatpush1.msra.mxu0 0.0
  %2395 = vmatprep.subr.mxu0 0.0
  %2396 = vmatpush1.msra.mxu0 0.0
  %2397 = vmatprep.subr.mxu0 0.0
  %2398 = vmatpush1.msra.mxu0 0.0
  %2399 = vmatprep.subr.mxu0 0.0
  %2400 = vmatpush1.msra.mxu0 0.0
  %2401 = vmatprep.subr.mxu0 0.0
  %2402 = vmatpush1.msra.mxu0 0.0
  %2403 = vmatprep.mubr.f32.mxu0 0.0
  %2404 = vmatmul.mubr.f32.gmra.mrb[0].mxu0 %v2337
  %v2405 = vpop.f32.mrb[0].mxu0
  %v2406 = vadd.f32 0.0, %v2405
  %v2407 = vpop.f32.mrb[0].mxu0
  %2408 = vdwg.mxu0
  %2409 = vrot.lane.b32.xlu0 %v229, 104
  %v2410 = vpop.permute.xlu0 %2409
  %2411 = vrot.lane.b32.xlu0 %v318, 104
  %v2412 = vpop.permute.xlu0 %2411
  %v2413 = vsel %vm432, %v2410, 0
  %v2415 = vsel %vm432, %v2412, 0
  %2417 = vmatprep.subr.mxu0 0.0
  %2418 = vmatpush1.xpose.msra.mxu0 %v2415
  %2419 = vmatprep.subr.mxu0 0.0
  %2420 = vmatpush1.xpose.msra.mxu0 0.0
  %2421 = vmatprep.subr.mxu0 0.0
  %2422 = vmatpush1.xpose.msra.mxu0 0.0
  %2423 = vmatprep.subr.mxu0 0.0
  %2424 = vmatpush1.xpose.msra.mxu0 0.0
  %2425 = vmatprep.subr.mxu0 0.0
  %2426 = vmatpush1.xpose.msra.mxu0 0.0
  %2427 = vmatprep.subr.mxu0 0.0
  %2428 = vmatpush1.xpose.msra.mxu0 0.0
  %2429 = vmatprep.subr.mxu0 0.0
  %2430 = vmatpush1.xpose.msra.mxu0 0.0
  %2431 = vmatprep.subr.mxu0 0.0
  %2432 = vmatpush1.xpose.msra.mxu0 0.0
  %2433 = vmatprep.subr.mxu0 0.0
  %2434 = vmatpush1.xpose.msra.mxu0 0.0
  %2435 = vmatprep.subr.mxu0 0.0
  %2436 = vmatpush1.xpose.msra.mxu0 0.0
  %2437 = vmatprep.subr.mxu0 0.0
  %2438 = vmatpush1.xpose.msra.mxu0 0.0
  %2439 = vmatprep.subr.mxu0 0.0
  %2440 = vmatpush1.xpose.msra.mxu0 0.0
  %2441 = vmatprep.subr.mxu0 0.0
  %2442 = vmatpush1.xpose.msra.mxu0 0.0
  %2443 = vmatprep.subr.mxu0 0.0
  %2444 = vmatpush1.xpose.msra.mxu0 0.0
  %2445 = vmatprep.subr.mxu0 0.0
  %2446 = vmatpush1.xpose.msra.mxu0 0.0
  %2447 = vmatprep.subr.mxu0 0.0
  %2448 = vmatpush1.xpose.msra.mxu0 0.0
  %2449 = vmatprep.subr.mxu0 0.0
  %2450 = vmatpush1.xpose.msra.mxu0 0.0
  %2451 = vmatprep.subr.mxu0 0.0
  %2452 = vmatpush1.xpose.msra.mxu0 0.0
  %2453 = vmatprep.subr.mxu0 0.0
  %2454 = vmatpush1.xpose.msra.mxu0 0.0
  %2455 = vmatprep.subr.mxu0 0.0
  %2456 = vmatpush1.xpose.msra.mxu0 0.0
  %2457 = vmatprep.subr.mxu0 0.0
  %2458 = vmatpush1.xpose.msra.mxu0 0.0
  %2459 = vmatprep.subr.mxu0 0.0
  %2460 = vmatpush1.xpose.msra.mxu0 0.0
  %2461 = vmatprep.subr.mxu0 0.0
  %2462 = vmatpush1.xpose.msra.mxu0 0.0
  %2463 = vmatprep.subr.mxu0 0.0
  %2464 = vmatpush1.xpose.msra.mxu0 0.0
  %2465 = vmatprep.subr.mxu0 0.0
  %2466 = vmatpush1.xpose.msra.mxu0 0.0
  %2467 = vmatprep.subr.mxu0 0.0
  %2468 = vmatpush1.xpose.msra.mxu0 0.0
  %2469 = vmatprep.subr.mxu0 0.0
  %2470 = vmatpush1.xpose.msra.mxu0 0.0
  %2471 = vmatprep.subr.mxu0 0.0
  %2472 = vmatpush1.xpose.msra.mxu0 0.0
  %2473 = vmatprep.subr.mxu0 0.0
  %2474 = vmatpush1.xpose.msra.mxu0 0.0
  %2475 = vmatprep.subr.mxu0 0.0
  %2476 = vmatpush1.xpose.msra.mxu0 0.0
  %2477 = vmatprep.subr.mxu0 0.0
  %2478 = vmatpush1.xpose.msra.mxu0 0.0
  %2479 = vmatprep.subr.mxu0 0.0
  %2480 = vmatpush1.xpose.msra.mxu0 0.0
  %2481 = vmatprep.mubr.f32.mxu0 0.0
  %2482 = vmatmul.mubr.f32.gmra.mrb[0].mxu0 %v2413
  %v2483 = vpop.f32.mrb[0].mxu0
  %v2484 = vadd.f32 0.0, %v2483
  %v2485 = vpop.f32.mrb[0].mxu0
  %2486 = vdwg.mxu0
  %2487 = vrot.lane.b32.xlu0 %v234, 104
  %v2488 = vpop.permute.xlu0 %2487
  %2489 = vrot.lane.b32.xlu0 %v323, 104
  %v2490 = vpop.permute.xlu0 %2489
  %v2491 = vsel %vm432, %v2488, 0
  %v2493 = vsel %vm432, %v2490, 0
  %2495 = vmatprep.subr.mxu0 0.0
  %2496 = vmatpush1.xpose.msra.mxu0 %v2493
  %2497 = vmatprep.subr.mxu0 0.0
  %2498 = vmatpush1.xpose.msra.mxu0 0.0
  %2499 = vmatprep.subr.mxu0 0.0
  %2500 = vmatpush1.xpose.msra.mxu0 0.0
  %2501 = vmatprep.subr.mxu0 0.0
  %2502 = vmatpush1.xpose.msra.mxu0 0.0
  %2503 = vmatprep.subr.mxu0 0.0
  %2504 = vmatpush1.xpose.msra.mxu0 0.0
  %2505 = vmatprep.subr.mxu0 0.0
  %2506 = vmatpush1.xpose.msra.mxu0 0.0
  %2507 = vmatprep.subr.mxu0 0.0
  %2508 = vmatpush1.xpose.msra.mxu0 0.0
  %2509 = vmatprep.subr.mxu0 0.0
  %2510 = vmatpush1.xpose.msra.mxu0 0.0
  %2511 = vmatprep.subr.mxu0 0.0
  %2512 = vmatpush1.xpose.msra.mxu0 0.0
  %2513 = vmatprep.subr.mxu0 0.0
  %2514 = vmatpush1.xpose.msra.mxu0 0.0
  %2515 = vmatprep.subr.mxu0 0.0
  %2516 = vmatpush1.xpose.msra.mxu0 0.0
  %2517 = vmatprep.subr.mxu0 0.0
  %2518 = vmatpush1.xpose.msra.mxu0 0.0
  %2519 = vmatprep.subr.mxu0 0.0
  %2520 = vmatpush1.xpose.msra.mxu0 0.0
  %2521 = vmatprep.subr.mxu0 0.0
  %2522 = vmatpush1.xpose.msra.mxu0 0.0
  %2523 = vmatprep.subr.mxu0 0.0
  %2524 = vmatpush1.xpose.msra.mxu0 0.0
  %2525 = vmatprep.subr.mxu0 0.0
  %2526 = vmatpush1.xpose.msra.mxu0 0.0
  %2527 = vmatprep.subr.mxu0 0.0
  %2528 = vmatpush1.xpose.msra.mxu0 0.0
  %2529 = vmatprep.subr.mxu0 0.0
  %2530 = vmatpush1.xpose.msra.mxu0 0.0
  %2531 = vmatprep.subr.mxu0 0.0
  %2532 = vmatpush1.xpose.msra.mxu0 0.0
  %2533 = vmatprep.subr.mxu0 0.0
  %2534 = vmatpush1.xpose.msra.mxu0 0.0
  %2535 = vmatprep.subr.mxu0 0.0
  %2536 = vmatpush1.xpose.msra.mxu0 0.0
  %2537 = vmatprep.subr.mxu0 0.0
  %2538 = vmatpush1.xpose.msra.mxu0 0.0
  %2539 = vmatprep.subr.mxu0 0.0
  %2540 = vmatpush1.xpose.msra.mxu0 0.0
  %2541 = vmatprep.subr.mxu0 0.0
  %2542 = vmatpush1.xpose.msra.mxu0 0.0
  %2543 = vmatprep.subr.mxu0 0.0
  %2544 = vmatpush1.xpose.msra.mxu0 0.0
  %2545 = vmatprep.subr.mxu0 0.0
  %2546 = vmatpush1.xpose.msra.mxu0 0.0
  %2547 = vmatprep.subr.mxu0 0.0
  %2548 = vmatpush1.xpose.msra.mxu0 0.0
  %2549 = vmatprep.subr.mxu0 0.0
  %2550 = vmatpush1.xpose.msra.mxu0 0.0
  %2551 = vmatprep.subr.mxu0 0.0
  %2552 = vmatpush1.xpose.msra.mxu0 0.0
  %2553 = vmatprep.subr.mxu0 0.0
  %2554 = vmatpush1.xpose.msra.mxu0 0.0
  %2555 = vmatprep.subr.mxu0 0.0
  %2556 = vmatpush1.xpose.msra.mxu0 0.0
  %2557 = vmatprep.subr.mxu0 0.0
  %2558 = vmatpush1.xpose.msra.mxu0 0.0
  %2559 = vmatprep.mubr.f32.mxu0 0.0
  %2560 = vmatmul.mubr.f32.gmra.mrb[0].mxu0 %v2491
  %v2561 = vpop.f32.mrb[0].mxu0
  %v2562 = vadd.f32 0.0, %v2561
  %v2563 = vpop.f32.mrb[0].mxu0
  %2564 = vdwg.mxu0
  %2565 = vrot.lane.b32.xlu0 %v239, 104
  %v2566 = vpop.permute.xlu0 %2565
  %2567 = vrot.lane.b32.xlu0 %v328, 104
  %v2568 = vpop.permute.xlu0 %2567
  %v2569 = vsel %vm432, %v2566, 0
  %v2571 = vsel %vm432, %v2568, 0
  %2573 = vmatprep.subr.mxu0 0.0
  %2574 = vmatpush1.xpose.msra.mxu0 %v2571
  %2575 = vmatprep.subr.mxu0 0.0
  %2576 = vmatpush1.xpose.msra.mxu0 0.0
  %2577 = vmatprep.subr.mxu0 0.0
  %2578 = vmatpush1.xpose.msra.mxu0 0.0
  %2579 = vmatprep.subr.mxu0 0.0
  %2580 = vmatpush1.xpose.msra.mxu0 0.0
  %2581 = vmatprep.subr.mxu0 0.0
  %2582 = vmatpush1.xpose.msra.mxu0 0.0
  %2583 = vmatprep.subr.mxu0 0.0
  %2584 = vmatpush1.xpose.msra.mxu0 0.0
  %2585 = vmatprep.subr.mxu0 0.0
  %2586 = vmatpush1.xpose.msra.mxu0 0.0
  %2587 = vmatprep.subr.mxu0 0.0
  %2588 = vmatpush1.xpose.msra.mxu0 0.0
  %2589 = vmatprep.subr.mxu0 0.0
  %2590 = vmatpush1.xpose.msra.mxu0 0.0
  %2591 = vmatprep.subr.mxu0 0.0
  %2592 = vmatpush1.xpose.msra.mxu0 0.0
  %2593 = vmatprep.subr.mxu0 0.0
  %2594 = vmatpush1.xpose.msra.mxu0 0.0
  %2595 = vmatprep.subr.mxu0 0.0
  %2596 = vmatpush1.xpose.msra.mxu0 0.0
  %2597 = vmatprep.subr.mxu0 0.0
  %2598 = vmatpush1.xpose.msra.mxu0 0.0
  %2599 = vmatprep.subr.mxu0 0.0
  %2600 = vmatpush1.xpose.msra.mxu0 0.0
  %2601 = vmatprep.subr.mxu0 0.0
  %2602 = vmatpush1.xpose.msra.mxu0 0.0
  %2603 = vmatprep.subr.mxu0 0.0
  %2604 = vmatpush1.xpose.msra.mxu0 0.0
  %2605 = vmatprep.subr.mxu0 0.0
  %2606 = vmatpush1.xpose.msra.mxu0 0.0
  %2607 = vmatprep.subr.mxu0 0.0
  %2608 = vmatpush1.xpose.msra.mxu0 0.0
  %2609 = vmatprep.subr.mxu0 0.0
  %2610 = vmatpush1.xpose.msra.mxu0 0.0
  %2611 = vmatprep.subr.mxu0 0.0
  %2612 = vmatpush1.xpose.msra.mxu0 0.0
  %2613 = vmatprep.subr.mxu0 0.0
  %2614 = vmatpush1.xpose.msra.mxu0 0.0
  %2615 = vmatprep.subr.mxu0 0.0
  %2616 = vmatpush1.xpose.msra.mxu0 0.0
  %2617 = vmatprep.subr.mxu0 0.0
  %2618 = vmatpush1.xpose.msra.mxu0 0.0
  %2619 = vmatprep.subr.mxu0 0.0
  %2620 = vmatpush1.xpose.msra.mxu0 0.0
  %2621 = vmatprep.subr.mxu0 0.0
  %2622 = vmatpush1.xpose.msra.mxu0 0.0
  %2623 = vmatprep.subr.mxu0 0.0
  %2624 = vmatpush1.xpose.msra.mxu0 0.0
  %2625 = vmatprep.subr.mxu0 0.0
  %2626 = vmatpush1.xpose.msra.mxu0 0.0
  %2627 = vmatprep.subr.mxu0 0.0
  %2628 = vmatpush1.xpose.msra.mxu0 0.0
  %2629 = vmatprep.subr.mxu0 0.0
  %2630 = vmatpush1.xpose.msra.mxu0 0.0
  %2631 = vmatprep.subr.mxu0 0.0
  %2632 = vmatpush1.xpose.msra.mxu0 0.0
  %2633 = vmatprep.subr.mxu0 0.0
  %2634 = vmatpush1.xpose.msra.mxu0 0.0
  %2635 = vmatprep.subr.mxu0 0.0
  %2636 = vmatpush1.xpose.msra.mxu0 0.0
  %2637 = vmatprep.mubr.f32.mxu0 0.0
  %2638 = vmatmul.mubr.f32.gmra.mrb[0].mxu0 %v2569
  %v2639 = vpop.f32.mrb[0].mxu0
  %v2640 = vadd.f32 0.0, %v2639
  %v2641 = vpop.f32.mrb[0].mxu0
  %2642 = vdwg.mxu0
  %2643 = vrot.lane.b32.xlu0 %v244, 104
  %v2644 = vpop.permute.xlu0 %2643
  %2645 = vrot.lane.b32.xlu0 %v333, 104
  %v2646 = vpop.permute.xlu0 %2645
  %v2647 = vsel %vm432, %v2644, 0
  %v2649 = vsel %vm432, %v2646, 0
  %2651 = vmatprep.subr.mxu0 0.0
  %2652 = vmatpush1.xpose.msra.mxu0 %v2649
  %2653 = vmatprep.subr.mxu0 0.0
  %2654 = vmatpush1.xpose.msra.mxu0 0.0
  %2655 = vmatprep.subr.mxu0 0.0
  %2656 = vmatpush1.xpose.msra.mxu0 0.0
  %2657 = vmatprep.subr.mxu0 0.0
  %2658 = vmatpush1.xpose.msra.mxu0 0.0
  %2659 = vmatprep.subr.mxu0 0.0
  %2660 = vmatpush1.xpose.msra.mxu0 0.0
  %2661 = vmatprep.subr.mxu0 0.0
  %2662 = vmatpush1.xpose.msra.mxu0 0.0
  %2663 = vmatprep.subr.mxu0 0.0
  %2664 = vmatpush1.xpose.msra.mxu0 0.0
  %2665 = vmatprep.subr.mxu0 0.0
  %2666 = vmatpush1.xpose.msra.mxu0 0.0
  %2667 = vmatprep.subr.mxu0 0.0
  %2668 = vmatpush1.xpose.msra.mxu0 0.0
  %2669 = vmatprep.subr.mxu0 0.0
  %2670 = vmatpush1.xpose.msra.mxu0 0.0
  %2671 = vmatprep.subr.mxu0 0.0
  %2672 = vmatpush1.xpose.msra.mxu0 0.0
  %2673 = vmatprep.subr.mxu0 0.0
  %2674 = vmatpush1.xpose.msra.mxu0 0.0
  %2675 = vmatprep.subr.mxu0 0.0
  %2676 = vmatpush1.xpose.msra.mxu0 0.0
  %2677 = vmatprep.subr.mxu0 0.0
  %2678 = vmatpush1.xpose.msra.mxu0 0.0
  %2679 = vmatprep.subr.mxu0 0.0
  %2680 = vmatpush1.xpose.msra.mxu0 0.0
  %2681 = vmatprep.subr.mxu0 0.0
  %2682 = vmatpush1.xpose.msra.mxu0 0.0
  %2683 = vmatprep.subr.mxu0 0.0
  %2684 = vmatpush1.xpose.msra.mxu0 0.0
  %2685 = vmatprep.subr.mxu0 0.0
  %2686 = vmatpush1.xpose.msra.mxu0 0.0
  %2687 = vmatprep.subr.mxu0 0.0
  %2688 = vmatpush1.xpose.msra.mxu0 0.0
  %2689 = vmatprep.subr.mxu0 0.0
  %2690 = vmatpush1.xpose.msra.mxu0 0.0
  %2691 = vmatprep.subr.mxu0 0.0
  %2692 = vmatpush1.xpose.msra.mxu0 0.0
  %2693 = vmatprep.subr.mxu0 0.0
  %2694 = vmatpush1.xpose.msra.mxu0 0.0
  %2695 = vmatprep.subr.mxu0 0.0
  %2696 = vmatpush1.xpose.msra.mxu0 0.0
  %2697 = vmatprep.subr.mxu0 0.0
  %2698 = vmatpush1.xpose.msra.mxu0 0.0
  %2699 = vmatprep.subr.mxu0 0.0
  %2700 = vmatpush1.xpose.msra.mxu0 0.0
  %2701 = vmatprep.subr.mxu0 0.0
  %2702 = vmatpush1.xpose.msra.mxu0 0.0
  %2703 = vmatprep.subr.mxu0 0.0
  %2704 = vmatpush1.xpose.msra.mxu0 0.0
  %2705 = vmatprep.subr.mxu0 0.0
  %2706 = vmatpush1.xpose.msra.mxu0 0.0
  %2707 = vmatprep.subr.mxu0 0.0
  %2708 = vmatpush1.xpose.msra.mxu0 0.0
  %2709 = vmatprep.subr.mxu0 0.0
  %2710 = vmatpush1.xpose.msra.mxu0 0.0
  %2711 = vmatprep.subr.mxu0 0.0
  %2712 = vmatpush1.xpose.msra.mxu0 0.0
  %2713 = vmatprep.subr.mxu0 0.0
  %2714 = vmatpush1.xpose.msra.mxu0 0.0
  %2715 = vmatprep.mubr.f32.mxu0 0.0
  %2716 = vmatmul.mubr.f32.gmra.mrb[0].mxu0 %v2647
  %v2717 = vpop.f32.mrb[0].mxu0
  %v2718 = vadd.f32 0.0, %v2717
  %v2719 = vpop.f32.mrb[0].mxu0
  %2720 = vdwg.mxu0
  %v2721 = vmul.f32 %v2484, 0.35355338
  %v2722 = vmul.f32 %v2562, 0.35355338
  %v2723 = vmul.f32 %v2640, 0.35355338
  %v2724 = vmul.f32 %v2718, 0.35355338
  %v2725 = vsel %vm432, %v2721, -inf
  %2726 = vmax.xlane.f32.xlu0 %v2725
  %v2727 = vpop.xlane.xlu0 %2726
  %v2728 = vsel %vm432, %v2722, -inf
  %2729 = vmax.xlane.f32.xlu0 %v2728
  %v2730 = vpop.xlane.xlu0 %2729
  %v2731 = vsel %vm432, %v2723, -inf
  %2732 = vmax.xlane.f32.xlu0 %v2731
  %v2733 = vpop.xlane.xlu0 %2732
  %v2734 = vsel %vm432, %v2724, -inf
  %2735 = vmax.xlane.f32.xlu0 %v2734
  %v2736 = vpop.xlane.xlu0 %2735
  %v2737 = vsub.f32 %v2721, %v2727
  %v2738 = vsub.f32 %v2722, %v2730
  %v2739 = vsub.f32 %v2723, %v2733
  %v2740 = vsub.f32 %v2724, %v2736
  %v2741 = vmul.f32 %v2737, 1.442695
  %v2742 = vpow.pop %v2741
  %v2743 = vmul.f32 %v2738, 1.442695
  %v2744 = vpow.pop %v2743
  %v2745 = vmul.f32 %v2739, 1.442695
  %v2746 = vpow.pop %v2745
  %v2747 = vmul.f32 %v2740, 1.442695
  %v2748 = vpow.pop %v2747
  %v2749 = vsel %vm432, %v2742, 0.0
  %2750 = vadd.xlane.f32.xlu0 %v2749
  %v2751 = vpop.xlane.xlu0 %2750
  %v2752 = vsel %vm432, %v2744, 0.0
  %2753 = vadd.xlane.f32.xlu0 %v2752
  %v2754 = vpop.xlane.xlu0 %2753
  %v2755 = vsel %vm432, %v2746, 0.0
  %2756 = vadd.xlane.f32.xlu0 %v2755
  %v2757 = vpop.xlane.xlu0 %2756
  %v2758 = vsel %vm432, %v2748, 0.0
  %2759 = vadd.xlane.f32.xlu0 %v2758
  %v2760 = vpop.xlane.xlu0 %2759
  %v2761 = vrcp.pop %v2751
  %v2762 = vrcp.pop %v2754
  %v2763 = vrcp.pop %v2757
  %v2764 = vrcp.pop %v2760
  %v2765 = vmul.f32 %v2742, %v2761
  %v2766 = vmul.f32 %v2744, %v2762
  %v2767 = vmul.f32 %v2746, %v2763
  %v2768 = vmul.f32 %v2748, %v2764
  %2769 = vrot.lane.b32.xlu0 %v414, 104
  %v2770 = vpop.permute.xlu0 %2769
  %v2773 = vsel %vm432, %v2765, 0
  %2775 = vmatprep.subr.mxu0 0.0
  %2776 = vmatpush1.msra.mxu0 %v2770
  %2777 = vmatprep.subr.mxu0 0.0
  %2778 = vmatpush1.msra.mxu0 0.0
  %2779 = vmatprep.subr.mxu0 0.0
  %2780 = vmatpush1.msra.mxu0 0.0
  %2781 = vmatprep.subr.mxu0 0.0
  %2782 = vmatpush1.msra.mxu0 0.0
  %2783 = vmatprep.subr.mxu0 0.0
  %2784 = vmatpush1.msra.mxu0 0.0
  %2785 = vmatprep.subr.mxu0 0.0
  %2786 = vmatpush1.msra.mxu0 0.0
  %2787 = vmatprep.subr.mxu0 0.0
  %2788 = vmatpush1.msra.mxu0 0.0
  %2789 = vmatprep.subr.mxu0 0.0
  %2790 = vmatpush1.msra.mxu0 0.0
  %2791 = vmatprep.subr.mxu0 0.0
  %2792 = vmatpush1.msra.mxu0 0.0
  %2793 = vmatprep.subr.mxu0 0.0
  %2794 = vmatpush1.msra.mxu0 0.0
  %2795 = vmatprep.subr.mxu0 0.0
  %2796 = vmatpush1.msra.mxu0 0.0
  %2797 = vmatprep.subr.mxu0 0.0
  %2798 = vmatpush1.msra.mxu0 0.0
  %2799 = vmatprep.subr.mxu0 0.0
  %2800 = vmatpush1.msra.mxu0 0.0
  %2801 = vmatprep.subr.mxu0 0.0
  %2802 = vmatpush1.msra.mxu0 0.0
  %2803 = vmatprep.subr.mxu0 0.0
  %2804 = vmatpush1.msra.mxu0 0.0
  %2805 = vmatprep.subr.mxu0 0.0
  %2806 = vmatpush1.msra.mxu0 0.0
  %2807 = vmatprep.subr.mxu0 0.0
  %2808 = vmatpush1.msra.mxu0 0.0
  %2809 = vmatprep.subr.mxu0 0.0
  %2810 = vmatpush1.msra.mxu0 0.0
  %2811 = vmatprep.subr.mxu0 0.0
  %2812 = vmatpush1.msra.mxu0 0.0
  %2813 = vmatprep.subr.mxu0 0.0
  %2814 = vmatpush1.msra.mxu0 0.0
  %2815 = vmatprep.subr.mxu0 0.0
  %2816 = vmatpush1.msra.mxu0 0.0
  %2817 = vmatprep.subr.mxu0 0.0
  %2818 = vmatpush1.msra.mxu0 0.0
  %2819 = vmatprep.subr.mxu0 0.0
  %2820 = vmatpush1.msra.mxu0 0.0
  %2821 = vmatprep.subr.mxu0 0.0
  %2822 = vmatpush1.msra.mxu0 0.0
  %2823 = vmatprep.subr.mxu0 0.0
  %2824 = vmatpush1.msra.mxu0 0.0
  %2825 = vmatprep.subr.mxu0 0.0
  %2826 = vmatpush1.msra.mxu0 0.0
  %2827 = vmatprep.subr.mxu0 0.0
  %2828 = vmatpush1.msra.mxu0 0.0
  %2829 = vmatprep.subr.mxu0 0.0
  %2830 = vmatpush1.msra.mxu0 0.0
  %2831 = vmatprep.subr.mxu0 0.0
  %2832 = vmatpush1.msra.mxu0 0.0
  %2833 = vmatprep.subr.mxu0 0.0
  %2834 = vmatpush1.msra.mxu0 0.0
  %2835 = vmatprep.subr.mxu0 0.0
  %2836 = vmatpush1.msra.mxu0 0.0
  %2837 = vmatprep.subr.mxu0 0.0
  %2838 = vmatpush1.msra.mxu0 0.0
  %2839 = vmatprep.mubr.f32.mxu0 0.0
  %2840 = vmatmul.mubr.f32.gmra.mrb[0].mxu0 %v2773
  %v2841 = vpop.f32.mrb[0].mxu0
  %v2842 = vadd.f32 0.0, %v2841
  %v2843 = vpop.f32.mrb[0].mxu0
  %2844 = vdwg.mxu0
  %2845 = vrot.lane.b32.xlu0 %v419, 104
  %v2846 = vpop.permute.xlu0 %2845
  %v2849 = vsel %vm432, %v2766, 0
  %2851 = vmatprep.subr.mxu0 0.0
  %2852 = vmatpush1.msra.mxu0 %v2846
  %2853 = vmatprep.subr.mxu0 0.0
  %2854 = vmatpush1.msra.mxu0 0.0
  %2855 = vmatprep.subr.mxu0 0.0
  %2856 = vmatpush1.msra.mxu0 0.0
  %2857 = vmatprep.subr.mxu0 0.0
  %2858 = vmatpush1.msra.mxu0 0.0
  %2859 = vmatprep.subr.mxu0 0.0
  %2860 = vmatpush1.msra.mxu0 0.0
  %2861 = vmatprep.subr.mxu0 0.0
  %2862 = vmatpush1.msra.mxu0 0.0
  %2863 = vmatprep.subr.mxu0 0.0
  %2864 = vmatpush1.msra.mxu0 0.0
  %2865 = vmatprep.subr.mxu0 0.0
  %2866 = vmatpush1.msra.mxu0 0.0
  %2867 = vmatprep.subr.mxu0 0.0
  %2868 = vmatpush1.msra.mxu0 0.0
  %2869 = vmatprep.subr.mxu0 0.0
  %2870 = vmatpush1.msra.mxu0 0.0
  %2871 = vmatprep.subr.mxu0 0.0
  %2872 = vmatpush1.msra.mxu0 0.0
  %2873 = vmatprep.subr.mxu0 0.0
  %2874 = vmatpush1.msra.mxu0 0.0
  %2875 = vmatprep.subr.mxu0 0.0
  %2876 = vmatpush1.msra.mxu0 0.0
  %2877 = vmatprep.subr.mxu0 0.0
  %2878 = vmatpush1.msra.mxu0 0.0
  %2879 = vmatprep.subr.mxu0 0.0
  %2880 = vmatpush1.msra.mxu0 0.0
  %2881 = vmatprep.subr.mxu0 0.0
  %2882 = vmatpush1.msra.mxu0 0.0
  %2883 = vmatprep.subr.mxu0 0.0
  %2884 = vmatpush1.msra.mxu0 0.0
  %2885 = vmatprep.subr.mxu0 0.0
  %2886 = vmatpush1.msra.mxu0 0.0
  %2887 = vmatprep.subr.mxu0 0.0
  %2888 = vmatpush1.msra.mxu0 0.0
  %2889 = vmatprep.subr.mxu0 0.0
  %2890 = vmatpush1.msra.mxu0 0.0
  %2891 = vmatprep.subr.mxu0 0.0
  %2892 = vmatpush1.msra.mxu0 0.0
  %2893 = vmatprep.subr.mxu0 0.0
  %2894 = vmatpush1.msra.mxu0 0.0
  %2895 = vmatprep.subr.mxu0 0.0
  %2896 = vmatpush1.msra.mxu0 0.0
  %2897 = vmatprep.subr.mxu0 0.0
  %2898 = vmatpush1.msra.mxu0 0.0
  %2899 = vmatprep.subr.mxu0 0.0
  %2900 = vmatpush1.msra.mxu0 0.0
  %2901 = vmatprep.subr.mxu0 0.0
  %2902 = vmatpush1.msra.mxu0 0.0
  %2903 = vmatprep.subr.mxu0 0.0
  %2904 = vmatpush1.msra.mxu0 0.0
  %2905 = vmatprep.subr.mxu0 0.0
  %2906 = vmatpush1.msra.mxu0 0.0
  %2907 = vmatprep.subr.mxu0 0.0
  %2908 = vmatpush1.msra.mxu0 0.0
  %2909 = vmatprep.subr.mxu0 0.0
  %2910 = vmatpush1.msra.mxu0 0.0
  %2911 = vmatprep.subr.mxu0 0.0
  %2912 = vmatpush1.msra.mxu0 0.0
  %2913 = vmatprep.subr.mxu0 0.0
  %2914 = vmatpush1.msra.mxu0 0.0
  %2915 = vmatprep.mubr.f32.mxu0 0.0
  %2916 = vmatmul.mubr.f32.gmra.mrb[0].mxu0 %v2849
  %v2917 = vpop.f32.mrb[0].mxu0
  %v2918 = vadd.f32 0.0, %v2917
  %v2919 = vpop.f32.mrb[0].mxu0
  %2920 = vdwg.mxu0
  %2921 = vrot.lane.b32.xlu0 %v424, 104
  %v2922 = vpop.permute.xlu0 %2921
  %v2925 = vsel %vm432, %v2767, 0
  %2927 = vmatprep.subr.mxu0 0.0
  %2928 = vmatpush1.msra.mxu0 %v2922
  %2929 = vmatprep.subr.mxu0 0.0
  %2930 = vmatpush1.msra.mxu0 0.0
  %2931 = vmatprep.subr.mxu0 0.0
  %2932 = vmatpush1.msra.mxu0 0.0
  %2933 = vmatprep.subr.mxu0 0.0
  %2934 = vmatpush1.msra.mxu0 0.0
  %2935 = vmatprep.subr.mxu0 0.0
  %2936 = vmatpush1.msra.mxu0 0.0
  %2937 = vmatprep.subr.mxu0 0.0
  %2938 = vmatpush1.msra.mxu0 0.0
  %2939 = vmatprep.subr.mxu0 0.0
  %2940 = vmatpush1.msra.mxu0 0.0
  %2941 = vmatprep.subr.mxu0 0.0
  %2942 = vmatpush1.msra.mxu0 0.0
  %2943 = vmatprep.subr.mxu0 0.0
  %2944 = vmatpush1.msra.mxu0 0.0
  %2945 = vmatprep.subr.mxu0 0.0
  %2946 = vmatpush1.msra.mxu0 0.0
  %2947 = vmatprep.subr.mxu0 0.0
  %2948 = vmatpush1.msra.mxu0 0.0
  %2949 = vmatprep.subr.mxu0 0.0
  %2950 = vmatpush1.msra.mxu0 0.0
  %2951 = vmatprep.subr.mxu0 0.0
  %2952 = vmatpush1.msra.mxu0 0.0
  %2953 = vmatprep.subr.mxu0 0.0
  %2954 = vmatpush1.msra.mxu0 0.0
  %2955 = vmatprep.subr.mxu0 0.0
  %2956 = vmatpush1.msra.mxu0 0.0
  %2957 = vmatprep.subr.mxu0 0.0
  %2958 = vmatpush1.msra.mxu0 0.0
  %2959 = vmatprep.subr.mxu0 0.0
  %2960 = vmatpush1.msra.mxu0 0.0
  %2961 = vmatprep.subr.mxu0 0.0
  %2962 = vmatpush1.msra.mxu0 0.0
  %2963 = vmatprep.subr.mxu0 0.0
  %2964 = vmatpush1.msra.mxu0 0.0
  %2965 = vmatprep.subr.mxu0 0.0
  %2966 = vmatpush1.msra.mxu0 0.0
  %2967 = vmatprep.subr.mxu0 0.0
  %2968 = vmatpush1.msra.mxu0 0.0
  %2969 = vmatprep.subr.mxu0 0.0
  %2970 = vmatpush1.msra.mxu0 0.0
  %2971 = vmatprep.subr.mxu0 0.0
  %2972 = vmatpush1.msra.mxu0 0.0
  %2973 = vmatprep.subr.mxu0 0.0
  %2974 = vmatpush1.msra.mxu0 0.0
  %2975 = vmatprep.subr.mxu0 0.0
  %2976 = vmatpush1.msra.mxu0 0.0
  %2977 = vmatprep.subr.mxu0 0.0
  %2978 = vmatpush1.msra.mxu0 0.0
  %2979 = vmatprep.subr.mxu0 0.0
  %2980 = vmatpush1.msra.mxu0 0.0
  %2981 = vmatprep.subr.mxu0 0.0
  %2982 = vmatpush1.msra.mxu0 0.0
  %2983 = vmatprep.subr.mxu0 0.0
  %2984 = vmatpush1.msra.mxu0 0.0
  %2985 = vmatprep.subr.mxu0 0.0
  %2986 = vmatpush1.msra.mxu0 0.0
  %2987 = vmatprep.subr.mxu0 0.0
  %2988 = vmatpush1.msra.mxu0 0.0
  %2989 = vmatprep.subr.mxu0 0.0
  %2990 = vmatpush1.msra.mxu0 0.0
  %2991 = vmatprep.mubr.f32.mxu0 0.0
  %2992 = vmatmul.mubr.f32.gmra.mrb[0].mxu0 %v2925
  %v2993 = vpop.f32.mrb[0].mxu0
  %v2994 = vadd.f32 0.0, %v2993
  %v2995 = vpop.f32.mrb[0].mxu0
  %2996 = vdwg.mxu0
  %2997 = vrot.lane.b32.xlu0 %v429, 104
  %v2998 = vpop.permute.xlu0 %2997
  %v3001 = vsel %vm432, %v2768, 0
  %3003 = vmatprep.subr.mxu0 0.0
  %3004 = vmatpush1.msra.mxu0 %v2998
  %3005 = vmatprep.subr.mxu0 0.0
  %3006 = vmatpush1.msra.mxu0 0.0
  %3007 = vmatprep.subr.mxu0 0.0
  %3008 = vmatpush1.msra.mxu0 0.0
  %3009 = vmatprep.subr.mxu0 0.0
  %3010 = vmatpush1.msra.mxu0 0.0
  %3011 = vmatprep.subr.mxu0 0.0
  %3012 = vmatpush1.msra.mxu0 0.0
  %3013 = vmatprep.subr.mxu0 0.0
  %3014 = vmatpush1.msra.mxu0 0.0
  %3015 = vmatprep.subr.mxu0 0.0
  %3016 = vmatpush1.msra.mxu0 0.0
  %3017 = vmatprep.subr.mxu0 0.0
  %3018 = vmatpush1.msra.mxu0 0.0
  %3019 = vmatprep.subr.mxu0 0.0
  %3020 = vmatpush1.msra.mxu0 0.0
  %3021 = vmatprep.subr.mxu0 0.0
  %3022 = vmatpush1.msra.mxu0 0.0
  %3023 = vmatprep.subr.mxu0 0.0
  %3024 = vmatpush1.msra.mxu0 0.0
  %3025 = vmatprep.subr.mxu0 0.0
  %3026 = vmatpush1.msra.mxu0 0.0
  %3027 = vmatprep.subr.mxu0 0.0
  %3028 = vmatpush1.msra.mxu0 0.0
  %3029 = vmatprep.subr.mxu0 0.0
  %3030 = vmatpush1.msra.mxu0 0.0
  %3031 = vmatprep.subr.mxu0 0.0
  %3032 = vmatpush1.msra.mxu0 0.0
  %3033 = vmatprep.subr.mxu0 0.0
  %3034 = vmatpush1.msra.mxu0 0.0
  %3035 = vmatprep.subr.mxu0 0.0
  %3036 = vmatpush1.msra.mxu0 0.0
  %3037 = vmatprep.subr.mxu0 0.0
  %3038 = vmatpush1.msra.mxu0 0.0
  %3039 = vmatprep.subr.mxu0 0.0
  %3040 = vmatpush1.msra.mxu0 0.0
  %3041 = vmatprep.subr.mxu0 0.0
  %3042 = vmatpush1.msra.mxu0 0.0
  %3043 = vmatprep.subr.mxu0 0.0
  %3044 = vmatpush1.msra.mxu0 0.0
  %3045 = vmatprep.subr.mxu0 0.0
  %3046 = vmatpush1.msra.mxu0 0.0
  %3047 = vmatprep.subr.mxu0 0.0
  %3048 = vmatpush1.msra.mxu0 0.0
  %3049 = vmatprep.subr.mxu0 0.0
  %3050 = vmatpush1.msra.mxu0 0.0
  %3051 = vmatprep.subr.mxu0 0.0
  %3052 = vmatpush1.msra.mxu0 0.0
  %3053 = vmatprep.subr.mxu0 0.0
  %3054 = vmatpush1.msra.mxu0 0.0
  %3055 = vmatprep.subr.mxu0 0.0
  %3056 = vmatpush1.msra.mxu0 0.0
  %3057 = vmatprep.subr.mxu0 0.0
  %3058 = vmatpush1.msra.mxu0 0.0
  %3059 = vmatprep.subr.mxu0 0.0
  %3060 = vmatpush1.msra.mxu0 0.0
  %3061 = vmatprep.subr.mxu0 0.0
  %3062 = vmatpush1.msra.mxu0 0.0
  %3063 = vmatprep.subr.mxu0 0.0
  %3064 = vmatpush1.msra.mxu0 0.0
  %3065 = vmatprep.subr.mxu0 0.0
  %3066 = vmatpush1.msra.mxu0 0.0
  %3067 = vmatprep.mubr.f32.mxu0 0.0
  %3068 = vmatmul.mubr.f32.gmra.mrb[0].mxu0 %v3001
  %v3069 = vpop.f32.mrb[0].mxu0
  %v3070 = vadd.f32 0.0, %v3069
  %v3071 = vpop.f32.mrb[0].mxu0
  %3072 = vdwg.mxu0
  %3077 = vrot.lane.b32.xlu0 %v1511, 8
  %v3078 = vpop.permute.xlu0 %3077
  %3079 = vrot.lane.b32.xlu0 %v1588, 8
  %v3080 = vpop.permute.xlu0 %3079
  %3081 = vrot.lane.b32.xlu0 %v1665, 8
  %v3082 = vpop.permute.xlu0 %3081
  %3083 = vrot.lane.b32.xlu0 %v1742, 8
  %v3084 = vpop.permute.xlu0 %3083
  %3093 = vrot.lane.b32.xlu0 %v2178, 16
  %v3094 = vpop.permute.xlu0 %3093
  %3095 = vrot.lane.b32.xlu0 %v2254, 16
  %v3096 = vpop.permute.xlu0 %3095
  %3097 = vrot.lane.b32.xlu0 %v2330, 16
  %v3098 = vpop.permute.xlu0 %3097
  %3099 = vrot.lane.b32.xlu0 %v2406, 16
  %v3100 = vpop.permute.xlu0 %3099
  %3109 = vrot.lane.b32.xlu0 %v2842, 24
  %v3110 = vpop.permute.xlu0 %3109
  %3111 = vrot.lane.b32.xlu0 %v2918, 24
  %v3112 = vpop.permute.xlu0 %3111
  %3113 = vrot.lane.b32.xlu0 %v2994, 24
  %v3114 = vpop.permute.xlu0 %3113
  %3115 = vrot.lane.b32.xlu0 %v3070, 24
  %v3116 = vpop.permute.xlu0 %3115
  %v3121 = vsel %vm432, %v855, %v3078
  %v3122 = vsel %vm432, %v928, %v3080
  %v3123 = vsel %vm432, %v1001, %v3082
  %v3124 = vsel %vm432, %v1074, %v3084
  %vm3125 = vcmask 130048
  %v3126 = vsel %vm3125, %v3121, %v3094
  %v3127 = vsel %vm3125, %v3122, %v3096
  %v3128 = vsel %vm3125, %v3123, %v3098
  %v3129 = vsel %vm3125, %v3124, %v3100
  %vm3130 = vcmask 195584
  %v3131 = vsel %vm3130, %v3126, %v3110
  %v3132 = vsel %vm3130, %v3127, %v3112
  %v3133 = vsel %vm3130, %v3128, %v3114
  %v3134 = vsel %vm3130, %v3129, %v3116
  %v3135 = vld [vmem:[%s8] sm:$0xff]
  %v3136 = vld [vmem:[%s8 + $0x8] sm:$0xff]
  %v3137 = vld [vmem:[%s8 + $0x10] sm:$0xff]
  %v3138 = vld [vmem:[%s8 + $0x18] sm:$0xff]
  %v3140 = vsel %vm65, %v3131, 0
  %v3143 = vsel %vm65, %v3132, 0
  %v3146 = vsel %vm65, %v3133, 0
  %v3149 = vsel %vm65, %v3134, 0
  %3151 = vmatprep.subr.mxu0 0.0
  %3152 = vmatpush1.msra.mxu0 %v3135
  %3153 = vmatprep.subr.mxu0 0.0
  %3154 = vmatpush1.msra.mxu0 %v3136
  %3155 = vmatprep.subr.mxu0 0.0
  %3156 = vmatpush1.msra.mxu0 %v3137
  %3157 = vmatprep.subr.mxu0 0.0
  %3158 = vmatpush1.msra.mxu0 %v3138
  %3159 = vmatprep.subr.mxu0 0.0
  %3160 = vmatpush1.msra.mxu0 0.0
  %3161 = vmatprep.subr.mxu0 0.0
  %3162 = vmatpush1.msra.mxu0 0.0
  %3163 = vmatprep.subr.mxu0 0.0
  %3164 = vmatpush1.msra.mxu0 0.0
  %3165 = vmatprep.subr.mxu0 0.0
  %3166 = vmatpush1.msra.mxu0 0.0
  %3167 = vmatprep.subr.mxu0 0.0
  %3168 = vmatpush1.msra.mxu0 0.0
  %3169 = vmatprep.subr.mxu0 0.0
  %3170 = vmatpush1.msra.mxu0 0.0
  %3171 = vmatprep.subr.mxu0 0.0
  %3172 = vmatpush1.msra.mxu0 0.0
  %3173 = vmatprep.subr.mxu0 0.0
  %3174 = vmatpush1.msra.mxu0 0.0
  %3175 = vmatprep.subr.mxu0 0.0
  %3176 = vmatpush1.msra.mxu0 0.0
  %3177 = vmatprep.subr.mxu0 0.0
  %3178 = vmatpush1.msra.mxu0 0.0
  %3179 = vmatprep.subr.mxu0 0.0
  %3180 = vmatpush1.msra.mxu0 0.0
  %3181 = vmatprep.subr.mxu0 0.0
  %3182 = vmatpush1.msra.mxu0 0.0
  %3183 = vmatprep.subr.mxu0 0.0
  %3184 = vmatpush1.msra.mxu0 0.0
  %3185 = vmatprep.subr.mxu0 0.0
  %3186 = vmatpush1.msra.mxu0 0.0
  %3187 = vmatprep.subr.mxu0 0.0
  %3188 = vmatpush1.msra.mxu0 0.0
  %3189 = vmatprep.subr.mxu0 0.0
  %3190 = vmatpush1.msra.mxu0 0.0
  %3191 = vmatprep.subr.mxu0 0.0
  %3192 = vmatpush1.msra.mxu0 0.0
  %3193 = vmatprep.subr.mxu0 0.0
  %3194 = vmatpush1.msra.mxu0 0.0
  %3195 = vmatprep.subr.mxu0 0.0
  %3196 = vmatpush1.msra.mxu0 0.0
  %3197 = vmatprep.subr.mxu0 0.0
  %3198 = vmatpush1.msra.mxu0 0.0
  %3199 = vmatprep.subr.mxu0 0.0
  %3200 = vmatpush1.msra.mxu0 0.0
  %3201 = vmatprep.subr.mxu0 0.0
  %3202 = vmatpush1.msra.mxu0 0.0
  %3203 = vmatprep.subr.mxu0 0.0
  %3204 = vmatpush1.msra.mxu0 0.0
  %3205 = vmatprep.subr.mxu0 0.0
  %3206 = vmatpush1.msra.mxu0 0.0
  %3207 = vmatprep.subr.mxu0 0.0
  %3208 = vmatpush1.msra.mxu0 0.0
  %3209 = vmatprep.subr.mxu0 0.0
  %3210 = vmatpush1.msra.mxu0 0.0
  %3211 = vmatprep.subr.mxu0 0.0
  %3212 = vmatpush1.msra.mxu0 0.0
  %3213 = vmatprep.subr.mxu0 0.0
  %3214 = vmatpush1.msra.mxu0 0.0
  %3215 = vmatprep.mubr.f32.mxu0 0.0
  %3216 = vmatmul.mubr.f32.gmra.mrb[0].mxu0 %v3140
  %v3217 = vpop.f32.mrb[0].mxu0
  %v3218 = vadd.f32 0.0, %v3217
  %v3219 = vpop.f32.mrb[0].mxu0
  %3220 = vmatprep.mubr.f32.mxu0 0.0
  %3221 = vmatmul.mubr.f32.gmra.mrb[0].mxu0 %v3143
  %v3222 = vpop.f32.mrb[0].mxu0
  %v3223 = vadd.f32 0.0, %v3222
  %v3224 = vpop.f32.mrb[0].mxu0
  %3225 = vmatprep.mubr.f32.mxu0 0.0
  %3226 = vmatmul.mubr.f32.gmra.mrb[0].mxu0 %v3146
  %v3227 = vpop.f32.mrb[0].mxu0
  %v3228 = vadd.f32 0.0, %v3227
  %v3229 = vpop.f32.mrb[0].mxu0
  %3230 = vmatprep.mubr.f32.mxu0 0.0
  %3231 = vmatmul.mubr.f32.gmra.mrb[0].mxu0 %v3149
  %v3232 = vpop.f32.mrb[0].mxu0
  %v3233 = vadd.f32 0.0, %v3232
  %v3234 = vpop.f32.mrb[0].mxu0
  %3235 = vdwg.mxu0
  %v3236 = vadd.f32 %v59, %v3218
  %v3237 = vadd.f32 %v60, %v3223
  %v3238 = vadd.f32 %v61, %v3228
  %v3239 = vadd.f32 %v62, %v3233
  %v3240 = vld [vmem:[%s9] sm:$0x1]
  %v3242 = vlaneseq
  %v3243 = vshrl.u32 %v3242, 7
  %v3244 = vsub.s32 0, %v3243
  %v3245 = vrot.slane %v3240, %v3244
  %v3247 = vadd.f32 %v3236, %v3245
  %v3248 = vadd.f32 %v3237, %v3245
  %v3249 = vadd.f32 %v3238, %v3245
  %v3250 = vadd.f32 %v3239, %v3245
  %v3251 = vld [vmem:[%s10] sm:$0x1]
  %v3252 = vld [vmem:[%s11] sm:$0x1]
  %v3253 = vsel %vm65, %v3247, 0.0
  %3254 = vadd.xlane.f32.xlu0 %v3253
  %v3255 = vpop.xlane.xlu0 %3254
  %v3256 = vsel %vm65, %v3248, 0.0
  %3257 = vadd.xlane.f32.xlu0 %v3256
  %v3258 = vpop.xlane.xlu0 %3257
  %v3259 = vsel %vm65, %v3249, 0.0
  %3260 = vadd.xlane.f32.xlu0 %v3259
  %v3261 = vpop.xlane.xlu0 %3260
  %v3262 = vsel %vm65, %v3250, 0.0
  %3263 = vadd.xlane.f32.xlu0 %v3262
  %v3264 = vpop.xlane.xlu0 %3263
  %v3265 = vmul.f32 %v3255, %v78
  %v3266 = vmul.f32 %v3258, %v78
  %v3267 = vmul.f32 %v3261, %v78
  %v3268 = vmul.f32 %v3264, %v78
  %v3269 = vsub.f32 %v3247, %v3265
  %v3270 = vsub.f32 %v3248, %v3266
  %v3271 = vsub.f32 %v3249, %v3267
  %v3272 = vsub.f32 %v3250, %v3268
  %v3273 = vmul.f32 %v3269, %v3269
  %v3274 = vmul.f32 %v3270, %v3270
  %v3275 = vmul.f32 %v3271, %v3271
  %v3276 = vmul.f32 %v3272, %v3272
  %v3277 = vsel %vm65, %v3273, 0.0
  %3278 = vadd.xlane.f32.xlu0 %v3277
  %v3279 = vpop.xlane.xlu0 %3278
  %v3280 = vsel %vm65, %v3274, 0.0
  %3281 = vadd.xlane.f32.xlu0 %v3280
  %v3282 = vpop.xlane.xlu0 %3281
  %v3283 = vsel %vm65, %v3275, 0.0
  %3284 = vadd.xlane.f32.xlu0 %v3283
  %v3285 = vpop.xlane.xlu0 %3284
  %v3286 = vsel %vm65, %v3276, 0.0
  %3287 = vadd.xlane.f32.xlu0 %v3286
  %v3288 = vpop.xlane.xlu0 %3287
  %v3289 = vmul.f32 %v3279, %v78
  %v3290 = vmul.f32 %v3282, %v78
  %v3291 = vmul.f32 %v3285, %v78
  %v3292 = vmul.f32 %v3288, %v78
  %v3293 = vadd.f32 %v3289, 1e-05
  %v3294 = vadd.f32 %v3290, 1e-05
  %v3295 = vadd.f32 %v3291, 1e-05
  %v3296 = vadd.f32 %v3292, 1e-05
  %v3297 = vrsqrt.pop %v3293
  %v3298 = vrsqrt.pop %v3294
  %v3299 = vrsqrt.pop %v3295
  %v3300 = vrsqrt.pop %v3296
  %v3301 = vmul.f32 %v3269, %v3297
  %v3302 = vmul.f32 %v3270, %v3298
  %v3303 = vmul.f32 %v3271, %v3299
  %v3304 = vmul.f32 %v3272, %v3300
  %v3306 = vlaneseq
  %v3307 = vshrl.u32 %v3306, 7
  %v3308 = vsub.s32 0, %v3307
  %v3309 = vrot.slane %v3251, %v3308
  %v3311 = vmul.f32 %v3301, %v3309
  %v3312 = vmul.f32 %v3302, %v3309
  %v3313 = vmul.f32 %v3303, %v3309
  %v3314 = vmul.f32 %v3304, %v3309
  %v3316 = vlaneseq
  %v3317 = vshrl.u32 %v3316, 7
  %v3318 = vsub.s32 0, %v3317
  %v3319 = vrot.slane %v3252, %v3318
  %v3321 = vadd.f32 %v3311, %v3319
  %v3322 = vadd.f32 %v3312, %v3319
  %v3323 = vadd.f32 %v3313, %v3319
  %v3324 = vadd.f32 %v3314, %v3319
  %v3325 = vld [vmem:[%s12] sm:$0xff]
  %v3326 = vld [vmem:[%s12 + $0x8] sm:$0xff]
  %v3327 = vld [vmem:[%s12 + $0x10] sm:$0xff]
  %v3328 = vld [vmem:[%s12 + $0x18] sm:$0xff]
  %v3329 = vld [vmem:[%s13] sm:$0x1]
  %v3331 = vlaneseq
  %v3332 = vshrl.u32 %v3331, 7
  %v3333 = vsub.s32 0, %v3332
  %v3334 = vrot.slane %v3329, %v3333
  %v3337 = vsel %vm65, %v3321, 0
  %v3340 = vsel %vm65, %v3322, 0
  %v3343 = vsel %vm65, %v3323, 0
  %v3346 = vsel %vm65, %v3324, 0
  %3348 = vmatprep.subr.mxu0 0.0
  %3349 = vmatpush1.msra.mxu0 %v3325
  %3350 = vmatprep.subr.mxu0 0.0
  %3351 = vmatpush1.msra.mxu0 %v3326
  %3352 = vmatprep.subr.mxu0 0.0
  %3353 = vmatpush1.msra.mxu0 %v3327
  %3354 = vmatprep.subr.mxu0 0.0
  %3355 = vmatpush1.msra.mxu0 %v3328
  %3356 = vmatprep.subr.mxu0 0.0
  %3357 = vmatpush1.msra.mxu0 0.0
  %3358 = vmatprep.subr.mxu0 0.0
  %3359 = vmatpush1.msra.mxu0 0.0
  %3360 = vmatprep.subr.mxu0 0.0
  %3361 = vmatpush1.msra.mxu0 0.0
  %3362 = vmatprep.subr.mxu0 0.0
  %3363 = vmatpush1.msra.mxu0 0.0
  %3364 = vmatprep.subr.mxu0 0.0
  %3365 = vmatpush1.msra.mxu0 0.0
  %3366 = vmatprep.subr.mxu0 0.0
  %3367 = vmatpush1.msra.mxu0 0.0
  %3368 = vmatprep.subr.mxu0 0.0
  %3369 = vmatpush1.msra.mxu0 0.0
  %3370 = vmatprep.subr.mxu0 0.0
  %3371 = vmatpush1.msra.mxu0 0.0
  %3372 = vmatprep.subr.mxu0 0.0
  %3373 = vmatpush1.msra.mxu0 0.0
  %3374 = vmatprep.subr.mxu0 0.0
  %3375 = vmatpush1.msra.mxu0 0.0
  %3376 = vmatprep.subr.mxu0 0.0
  %3377 = vmatpush1.msra.mxu0 0.0
  %3378 = vmatprep.subr.mxu0 0.0
  %3379 = vmatpush1.msra.mxu0 0.0
  %3380 = vmatprep.subr.mxu0 0.0
  %3381 = vmatpush1.msra.mxu0 0.0
  %3382 = vmatprep.subr.mxu0 0.0
  %3383 = vmatpush1.msra.mxu0 0.0
  %3384 = vmatprep.subr.mxu0 0.0
  %3385 = vmatpush1.msra.mxu0 0.0
  %3386 = vmatprep.subr.mxu0 0.0
  %3387 = vmatpush1.msra.mxu0 0.0
  %3388 = vmatprep.subr.mxu0 0.0
  %3389 = vmatpush1.msra.mxu0 0.0
  %3390 = vmatprep.subr.mxu0 0.0
  %3391 = vmatpush1.msra.mxu0 0.0
  %3392 = vmatprep.subr.mxu0 0.0
  %3393 = vmatpush1.msra.mxu0 0.0
  %3394 = vmatprep.subr.mxu0 0.0
  %3395 = vmatpush1.msra.mxu0 0.0
  %3396 = vmatprep.subr.mxu0 0.0
  %3397 = vmatpush1.msra.mxu0 0.0
  %3398 = vmatprep.subr.mxu0 0.0
  %3399 = vmatpush1.msra.mxu0 0.0
  %3400 = vmatprep.subr.mxu0 0.0
  %3401 = vmatpush1.msra.mxu0 0.0
  %3402 = vmatprep.subr.mxu0 0.0
  %3403 = vmatpush1.msra.mxu0 0.0
  %3404 = vmatprep.subr.mxu0 0.0
  %3405 = vmatpush1.msra.mxu0 0.0
  %3406 = vmatprep.subr.mxu0 0.0
  %3407 = vmatpush1.msra.mxu0 0.0
  %3408 = vmatprep.subr.mxu0 0.0
  %3409 = vmatpush1.msra.mxu0 0.0
  %3410 = vmatprep.subr.mxu0 0.0
  %3411 = vmatpush1.msra.mxu0 0.0
  %3412 = vmatprep.mubr.f32.mxu0 0.0
  %3413 = vmatmul.mubr.f32.gmra.mrb[0].mxu0 %v3337
  %v3414 = vpop.f32.mrb[0].mxu0
  %v3415 = vadd.f32 %v3334, %v3414
  %v3416 = vpop.f32.mrb[0].mxu0
  %3417 = vmatprep.mubr.f32.mxu0 0.0
  %3418 = vmatmul.mubr.f32.gmra.mrb[0].mxu0 %v3340
  %v3419 = vpop.f32.mrb[0].mxu0
  %v3420 = vadd.f32 %v3334, %v3419
  %v3421 = vpop.f32.mrb[0].mxu0
  %3422 = vmatprep.mubr.f32.mxu0 0.0
  %3423 = vmatmul.mubr.f32.gmra.mrb[0].mxu0 %v3343
  %v3424 = vpop.f32.mrb[0].mxu0
  %v3425 = vadd.f32 %v3334, %v3424
  %v3426 = vpop.f32.mrb[0].mxu0
  %3427 = vmatprep.mubr.f32.mxu0 0.0
  %3428 = vmatmul.mubr.f32.gmra.mrb[0].mxu0 %v3346
  %v3429 = vpop.f32.mrb[0].mxu0
  %v3430 = vadd.f32 %v3334, %v3429
  %v3431 = vpop.f32.mrb[0].mxu0
  %3432 = vdwg.mxu0
  %v3433 = vmul.f32 %v3415, 0.5
  %v3434 = vmul.f32 %v3420, 0.5
  %v3435 = vmul.f32 %v3425, 0.5
  %v3436 = vmul.f32 %v3430, 0.5
  %v3437 = vmul.f32 %v3415, 0.044715
  %v3438 = vmul.f32 %v3420, 0.044715
  %v3439 = vmul.f32 %v3425, 0.044715
  %v3440 = vmul.f32 %v3430, 0.044715
  %v3441 = vmul.f32 %v3437, %v3415
  %v3442 = vmul.f32 %v3438, %v3420
  %v3443 = vmul.f32 %v3439, %v3425
  %v3444 = vmul.f32 %v3440, %v3430
  %v3445 = vmul.f32 %v3441, %v3415
  %v3446 = vmul.f32 %v3442, %v3420
  %v3447 = vmul.f32 %v3443, %v3425
  %v3448 = vmul.f32 %v3444, %v3430
  %v3449 = vadd.f32 %v3415, %v3445
  %v3450 = vadd.f32 %v3420, %v3446
  %v3451 = vadd.f32 %v3425, %v3447
  %v3452 = vadd.f32 %v3430, %v3448
  %v3453 = vmul.f32 %v3449, 0.7978846
  %v3454 = vmul.f32 %v3450, 0.7978846
  %v3455 = vmul.f32 %v3451, 0.7978846
  %v3456 = vmul.f32 %v3452, 0.7978846
  %v3457 = vtanh.pop %v3453
  %v3458 = vtanh.pop %v3454
  %v3459 = vtanh.pop %v3455
  %v3460 = vtanh.pop %v3456
  %v3461 = vadd.f32 %v3457, 1.0
  %v3462 = vadd.f32 %v3458, 1.0
  %v3463 = vadd.f32 %v3459, 1.0
  %v3464 = vadd.f32 %v3460, 1.0
  %v3465 = vmul.f32 %v3433, %v3461
  %v3466 = vmul.f32 %v3434, %v3462
  %v3467 = vmul.f32 %v3435, %v3463
  %v3468 = vmul.f32 %v3436, %v3464
  %v3469 = vld [vmem:[%s14] sm:$0xff]
  %v3470 = vld [vmem:[%s14 + $0x8] sm:$0xff]
  %v3471 = vld [vmem:[%s14 + $0x10] sm:$0xff]
  %v3472 = vld [vmem:[%s14 + $0x18] sm:$0xff]
  %v3473 = vld [vmem:[%s14 + $0x20] sm:$0xff]
  %v3474 = vld [vmem:[%s14 + $0x28] sm:$0xff]
  %v3475 = vld [vmem:[%s14 + $0x30] sm:$0xff]
  %v3476 = vld [vmem:[%s14 + $0x38] sm:$0xff]
  %v3477 = vld [vmem:[%s14 + $0x40] sm:$0xff]
  %v3478 = vld [vmem:[%s14 + $0x48] sm:$0xff]
  %v3479 = vld [vmem:[%s14 + $0x50] sm:$0xff]
  %v3480 = vld [vmem:[%s14 + $0x58] sm:$0xff]
  %v3481 = vld [vmem:[%s14 + $0x60] sm:$0xff]
  %v3482 = vld [vmem:[%s14 + $0x68] sm:$0xff]
  %v3483 = vld [vmem:[%s14 + $0x70] sm:$0xff]
  %v3484 = vld [vmem:[%s14 + $0x78] sm:$0xff]
  %3485 = vmatprep.subr.mxu0 0.0
  %3486 = vmatpush1.msra.mxu0 %v3469
  %3487 = vmatprep.subr.mxu0 0.0
  %3488 = vmatpush1.msra.mxu0 %v3470
  %3489 = vmatprep.subr.mxu0 0.0
  %3490 = vmatpush1.msra.mxu0 %v3471
  %3491 = vmatprep.subr.mxu0 0.0
  %3492 = vmatpush1.msra.mxu0 %v3472
  %3493 = vmatprep.subr.mxu0 0.0
  %3494 = vmatpush1.msra.mxu0 %v3473
  %3495 = vmatprep.subr.mxu0 0.0
  %3496 = vmatpush1.msra.mxu0 %v3474
  %3497 = vmatprep.subr.mxu0 0.0
  %3498 = vmatpush1.msra.mxu0 %v3475
  %3499 = vmatprep.subr.mxu0 0.0
  %3500 = vmatpush1.msra.mxu0 %v3476
  %3501 = vmatprep.subr.mxu0 0.0
  %3502 = vmatpush1.msra.mxu0 %v3477
  %3503 = vmatprep.subr.mxu0 0.0
  %3504 = vmatpush1.msra.mxu0 %v3478
  %3505 = vmatprep.subr.mxu0 0.0
  %3506 = vmatpush1.msra.mxu0 %v3479
  %3507 = vmatprep.subr.mxu0 0.0
  %3508 = vmatpush1.msra.mxu0 %v3480
  %3509 = vmatprep.subr.mxu0 0.0
  %3510 = vmatpush1.msra.mxu0 %v3481
  %3511 = vmatprep.subr.mxu0 0.0
  %3512 = vmatpush1.msra.mxu0 %v3482
  %3513 = vmatprep.subr.mxu0 0.0
  %3514 = vmatpush1.msra.mxu0 %v3483
  %3515 = vmatprep.subr.mxu0 0.0
  %3516 = vmatpush1.msra.mxu0 %v3484
  %3517 = vmatprep.subr.mxu0 0.0
  %3518 = vmatpush1.msra.mxu0 0.0
  %3519 = vmatprep.subr.mxu0 0.0
  %3520 = vmatpush1.msra.mxu0 0.0
  %3521 = vmatprep.subr.mxu0 0.0
  %3522 = vmatpush1.msra.mxu0 0.0
  %3523 = vmatprep.subr.mxu0 0.0
  %3524 = vmatpush1.msra.mxu0 0.0
  %3525 = vmatprep.subr.mxu0 0.0
  %3526 = vmatpush1.msra.mxu0 0.0
  %3527 = vmatprep.subr.mxu0 0.0
  %3528 = vmatpush1.msra.mxu0 0.0
  %3529 = vmatprep.subr.mxu0 0.0
  %3530 = vmatpush1.msra.mxu0 0.0
  %3531 = vmatprep.subr.mxu0 0.0
  %3532 = vmatpush1.msra.mxu0 0.0
  %3533 = vmatprep.subr.mxu0 0.0
  %3534 = vmatpush1.msra.mxu0 0.0
  %3535 = vmatprep.subr.mxu0 0.0
  %3536 = vmatpush1.msra.mxu0 0.0
  %3537 = vmatprep.subr.mxu0 0.0
  %3538 = vmatpush1.msra.mxu0 0.0
  %3539 = vmatprep.subr.mxu0 0.0
  %3540 = vmatpush1.msra.mxu0 0.0
  %3541 = vmatprep.subr.mxu0 0.0
  %3542 = vmatpush1.msra.mxu0 0.0
  %3543 = vmatprep.subr.mxu0 0.0
  %3544 = vmatpush1.msra.mxu0 0.0
  %3545 = vmatprep.subr.mxu0 0.0
  %3546 = vmatpush1.msra.mxu0 0.0
  %3547 = vmatprep.subr.mxu0 0.0
  %3548 = vmatpush1.msra.mxu0 0.0
  %3549 = vmatprep.mubr.f32.mxu0 0.0
  %3550 = vmatmul.mubr.f32.gmra.mrb[0].mxu0 %v3465
  %v3551 = vpop.f32.mrb[0].mxu0
  %v3552 = vadd.f32 0.0, %v3551
  %v3553 = vpop.f32.mrb[0].mxu0
  %3554 = vmatprep.mubr.f32.mxu0 0.0
  %3555 = vmatmul.mubr.f32.gmra.mrb[0].mxu0 %v3466
  %v3556 = vpop.f32.mrb[0].mxu0
  %v3557 = vadd.f32 0.0, %v3556
  %v3558 = vpop.f32.mrb[0].mxu0
  %3559 = vmatprep.mubr.f32.mxu0 0.0
  %3560 = vmatmul.mubr.f32.gmra.mrb[0].mxu0 %v3467
  %v3561 = vpop.f32.mrb[0].mxu0
  %v3562 = vadd.f32 0.0, %v3561
  %v3563 = vpop.f32.mrb[0].mxu0
  %3564 = vmatprep.mubr.f32.mxu0 0.0
  %3565 = vmatmul.mubr.f32.gmra.mrb[0].mxu0 %v3468
  %v3566 = vpop.f32.mrb[0].mxu0
  %v3567 = vadd.f32 0.0, %v3566
  %v3568 = vpop.f32.mrb[0].mxu0
  %3569 = vdwg.mxu0
  %v3570 = vadd.f32 %v3247, %v3552
  %v3571 = vadd.f32 %v3248, %v3557
  %v3572 = vadd.f32 %v3249, %v3562
  %v3573 = vadd.f32 %v3250, %v3567
  %v3574 = vld [vmem:[%s15] sm:$0x1]
  %v3576 = vlaneseq
  %v3577 = vshrl.u32 %v3576, 7
  %v3578 = vsub.s32 0, %v3577
  %v3579 = vrot.slane %v3574, %v3578
  %v3581 = vadd.f32 %v3570, %v3579
  %v3582 = vadd.f32 %v3571, %v3579
  %v3583 = vadd.f32 %v3572, %v3579
  %v3584 = vadd.f32 %v3573, %v3579
  %3585 = vst.msk [vmem:[%s18] sm:$0xff] %vm65, %v3581
  %3586 = vst.msk [vmem:[%s18 + $0x8] sm:$0xff] %vm65, %v3582
  %3587 = vst.msk [vmem:[%s18 + $0x10] sm:$0xff] %vm65, %v3583
  %3588 = vst.msk [vmem:[%s18 + $0x18] sm:$0xff] %vm65, %v3584
  // Predicated region
  $region74: #{model_forward.6} parent=0 // pred_check
    _
  $region75: #{model_forward.6} parent=0 // pred_check_branch
    %3590 = sbr.rel (0) target = $region77
  $region76: #{model_forward.6} parent=0 // pred_region
    _
  $region77: #{model_forward.6} parent=0 // pred_fallthru
    _
  // Predicated region
  $region78: #{model_forward.6} parent=0 // pred_check
    _
  $region79: #{model_forward.6} parent=0 // pred_check_branch
    %3592 = sbr.rel (0) target = $region81
  $region80: #{model_forward.6} parent=0 // pred_region
    _
  $region81: #{model_forward.6} parent=0 // pred_fallthru
    _

</llo_original>
